<compile_context>
chip_gen: v7x
topology: tpu7x:2x2x1
jax: 0.10.0
libtpu: 0.0.40
codegen_flags: <defaults>
</compile_context>

<pallas_src>
import jax
import jax.numpy as jnp
from jax.experimental import pallas as pl
from jax.experimental.pallas import tpu as pltpu

# MXU operand dtype (accumulation is always f32).  Set to jnp.float32 for
# bit-closer parity with the f32 PyTorch reference.
MATMUL_DTYPE = jnp.bfloat16
LANE = 128
_EPS = 1e-5
_VMEM_LIMIT = 32 * 1024 * 1024   # explicit scoped-VMEM budget (safe on v5e/v6e/v7x)


def _round_up(x, m):
    return (x + m - 1) // m * m


# ---------------------------------------------------------------------------
# Kernels
# ---------------------------------------------------------------------------

def _make_conv_stats_kernel(wp, m_rows, matmul_dtype):
    """3x3 conv as 9 flat-shifted matmuls + global per-channel sum / sumsq.

    x_ref   : (1, Mpad, Cin)   padded-flat activation of one image (f32)
    w_ref   : (9, Cin, Cpad)   conv weights, resident across the grid
    mask_ref: (M, 1)           1.0 on valid pixels, 0.0 on width-pad columns
    y_ref   : (1, M, Cpad)     conv output (pre-BN), masked, per image
    sum_ref : (1, Cpad)        resident accumulator: sum over all images
    ssq_ref : (1, Cpad)        resident accumulator: sum of squares
    """

    def kernel(x_ref, w_ref, mask_ref, y_ref, sum_ref, ssq_ref):
        step = pl.program_id(0)

        acc = None
        for k in range(9):
            ky, kx = divmod(k, 3)
            s = ky * wp + kx                       # static flat row shift
            xs = x_ref[0, s:s + m_rows, :].astype(matmul_dtype)
            part = jnp.dot(xs, w_ref[k], preferred_element_type=jnp.float32)
            acc = part if acc is None else acc + part

        acc = acc * mask_ref[...]                  # zero out width-pad columns
        y_ref[0] = acc

        @pl.when(step == 0)
        def _():
            sum_ref[...] = jnp.zeros_like(sum_ref)
            ssq_ref[...] = jnp.zeros_like(ssq_ref)

        sum_ref[...] = sum_ref[...] + jnp.sum(acc, axis=0, keepdims=True)
        ssq_ref[...] = ssq_ref[...] + jnp.sum(acc * acc, axis=0, keepdims=True)

    return kernel


def _make_bn_relu_kernel(wp, m_rows, mpad, cpad):
    """Folded BN scale/shift + ReLU, re-emitted in padded-flat layout.

    y_ref    : (1, M, Cpad)    conv output of one image (pre-BN)
    scale_ref: (1, Cpad)       gamma * rsqrt(var + eps)
    shift_ref: (1, Cpad)       beta - mean * scale
    mask_ref : (M, 1)          validity mask (keeps pad columns at exactly 0)
    o_ref    : (1, Mpad, Cpad) next layer's padded-flat activation
    """
    top = wp + 1              # rows [0, top): leading zero row + top pad row
    bot = top + m_rows

    def kernel(y_ref, scale_ref, shift_ref, mask_ref, o_ref):
        act = jnp.maximum(y_ref[0] * scale_ref[...] + shift_ref[...], 0.0)
        act = act * mask_ref[...]
        o_ref[0, 0:top, :] = jnp.zeros((top, cpad), jnp.float32)
        o_ref[0, top:bot, :] = act
        o_ref[0, bot:mpad, :] = jnp.zeros((mpad - bot, cpad), jnp.float32)

    return kernel


# ---------------------------------------------------------------------------
# Per-layer wrapper
# ---------------------------------------------------------------------------

def _conv_bn_relu_layer(act_flat, mask, w_oihw, gamma, beta,
                        n, hgt, wid, wp, m_rows, mpad):
    """One Conv2d(3x3, pad=1, bias) + BatchNorm2d(train) + ReLU.

    The conv bias is dropped: training-mode BN subtracts the batch mean, which
    removes any per-channel constant, so the result is mathematically identical.
    """
    cin_store = act_flat.shape[-1]
    cout, cin = w_oihw.shape[0], w_oihw.shape[1]
    cpad = _round_up(cout, LANE)

    # (Cout, Cin, 3, 3) -> (ky, kx, Cin, Cout), zero-pad to the stored widths.
    w = jnp.transpose(w_oihw, (2, 3, 1, 0))
    w = jnp.pad(w, ((0, 0), (0, 0), (0, cin_store - cin), (0, cpad - cout)))
    w = w.reshape(9, cin_store, cpad).astype(MATMUL_DTYPE)

    # ---- pass 1: conv (MXU) + global per-channel sum / sum-of-squares -------
    flops1 = 2 * n * m_rows * 9 * cin_store * cpad + 4 * n * m_rows * cpad
    bytes1 = (act_flat.size * 4 + w.size * w.dtype.itemsize + mask.size * 4
              + n * m_rows * cpad * 4 + 2 * cpad * 4)
    y, ssum, ssq = pl.pallas_call(
        _make_conv_stats_kernel(wp, m_rows, MATMUL_DTYPE),
        grid=(n,),
        in_specs=[
            pl.BlockSpec((1, mpad, cin_store), lambda i: (i, 0, 0)),
            pl.BlockSpec((9, cin_store, cpad), lambda i: (0, 0, 0)),  # resident
            pl.BlockSpec((m_rows, 1), lambda i: (0, 0)),              # resident
        ],
        out_specs=[
            pl.BlockSpec((1, m_rows, cpad), lambda i: (i, 0, 0)),
            pl.BlockSpec((1, cpad), lambda i: (0, 0)),                # resident acc
            pl.BlockSpec((1, cpad), lambda i: (0, 0)),                # resident acc
        ],
        out_shape=[
            jax.ShapeDtypeStruct((n, m_rows, cpad), jnp.float32),
            jax.ShapeDtypeStruct((1, cpad), jnp.float32),
            jax.ShapeDtypeStruct((1, cpad), jnp.float32),
        ],
        compiler_params=pltpu.CompilerParams(
            dimension_semantics=("arbitrary",),      # stats accumulate over grid
            vmem_limit_bytes=_VMEM_LIMIT),
        cost_estimate=pl.CostEstimate(
            flops=int(flops1), transcendentals=0, bytes_accessed=int(bytes1)),
    )(act_flat, w, mask)

    # ---- fold BN (batch stats, biased var, eps=1e-5) into scale/shift -------
    count = float(n * hgt * wid)                    # valid pixels only
    mean = ssum / count
    var = jnp.maximum(ssq / count - mean * mean, 0.0)
    inv_std = jax.lax.rsqrt(var + _EPS)
    gamma_p = jnp.pad(gamma, (0, cpad - cout)).reshape(1, cpad)
    beta_p = jnp.pad(beta, (0, cpad - cout)).reshape(1, cpad)
    scale = gamma_p * inv_std
    shift = beta_p - mean * scale

    # ---- pass 2: y*scale + shift, ReLU, write padded-flat activation --------
    flops2 = 3 * n * m_rows * cpad
    bytes2 = (n * m_rows * cpad * 4 + n * mpad * cpad * 4
              + mask.size * 4 + 2 * cpad * 4)
    act_next = pl.pallas_call(
        _make_bn_relu_kernel(wp, m_rows, mpad, cpad),
        grid=(n,),
        in_specs=[
            pl.BlockSpec((1, m_rows, cpad), lambda i: (i, 0, 0)),
            pl.BlockSpec((1, cpad), lambda i: (0, 0)),
            pl.BlockSpec((1, cpad), lambda i: (0, 0)),
            pl.BlockSpec((m_rows, 1), lambda i: (0, 0)),
        ],
        out_specs=pl.BlockSpec((1, mpad, cpad), lambda i: (i, 0, 0)),
        out_shape=jax.ShapeDtypeStruct((n, mpad, cpad), jnp.float32),
        compiler_params=pltpu.CompilerParams(
            dimension_semantics=("parallel",),       # independent per image
            vmem_limit_bytes=_VMEM_LIMIT),
        cost_estimate=pl.CostEstimate(
            flops=int(flops2), transcendentals=0, bytes_accessed=int(bytes2)),
    )(y, scale, shift, mask)

    return act_next, cout


# ---------------------------------------------------------------------------
# Forward pass
# ---------------------------------------------------------------------------

def _to_padded_flat(a_nhwc, mpad, c_store):
    """(N,H,W,C) -> (N, Mpad, c_store): zero-pad H and W by 1, flatten spatial
    dims, add one leading zero row (so all 9 conv shifts stay in range) and
    zero-fill up to Mpad rows / c_store channels."""
    n, h, w, c = a_nhwc.shape
    xp = jnp.pad(a_nhwc, ((0, 0), (1, 1), (1, 1), (0, c_store - c)))
    flat = xp.reshape(n, (h + 2) * (w + 2), c_store)
    return jnp.pad(flat, ((0, 0), (1, mpad - (h + 2) * (w + 2) - 1), (0, 0)))


def encoder_forward(x_nchw, params):
    """Reproduces Encoder.forward: chain the 4 blocks (2 conv-bn-relu layers
    each, spatial size unchanged) and return every block output (NCHW)."""
    n, cin, hgt, wid = x_nchw.shape
    hp, wp = hgt + 2, wid + 2
    m_rows = hgt * wp                    # conv-output rows per image (width-padded)
    mpad = _round_up(hp * wp + 2, 8)     # padded-flat activation rows

    # validity mask: zero on the two width-pad columns of every output row
    col = jnp.arange(m_rows, dtype=jnp.int32) % wp
    mask = ((col != 0) & (col != wp - 1)).astype(jnp.float32).reshape(m_rows, 1)

    a_nhwc = jnp.transpose(x_nchw, (0, 2, 3, 1))
    act_flat = _to_padded_flat(a_nhwc, mpad, _round_up(cin, 8))

    # TODO(synk): for very large spatial sizes (one padded image exceeding the
    # per-step VMEM budget) the batch grid should gain haloed row tiles.
    outs = []
    for block in params:
        cout = None
        for (w, _bias, g, be) in block:   # conv bias is annihilated by train-BN
            act_flat, cout = _conv_bn_relu_layer(
                act_flat, mask, w, g, be, n, hgt, wid, wp, m_rows, mpad)
        blk = act_flat[:, 1:1 + hp * wp, :cout].reshape(n, hp, wp, cout)
        blk = blk[:, 1:hgt + 1, 1:wid + 1, :]
        outs.append(jnp.transpose(blk, (0, 3, 1, 2)))
    return tuple(outs)


encoder_forward = jax.jit(encoder_forward)


def init_encoder_params(key, in_channels, hidden_channels,
                        hidden_channels_multiplier=(1, 2, 4, 8)):
    """Deterministic parameter init matching the module's layer shapes."""
    params = []
    c_in = in_channels
    for mult in hidden_channels_multiplier:
        c_out = hidden_channels * mult
        block = []
        c_prev = c_in
        for _ in range(2):  # two conv-bn-relu layers per encoder block
            key, k_w, k_b, k_g, k_be = jax.random.split(key, 5)
            fan_in = c_prev * 9
            bound = 1.0 / jnp.sqrt(float(fan_in))
            w = jax.random.uniform(k_w, (c_out, c_prev, 3, 3), jnp.float32,
                                   -bound, bound)
            b = jax.random.uniform(k_b, (c_out,), jnp.float32, -bound, bound)
            gamma = 1.0 + 0.1 * jax.random.normal(k_g, (c_out,), jnp.float32)
            beta = 0.1 * jax.random.normal(k_be, (c_out,), jnp.float32)
            block.append((w, b, gamma, beta))
            c_prev = c_out
        params.append(block)
        c_in = c_out
    return params


if __name__ == "__main__":
    key = jax.random.PRNGKey(0)
    k_x, k_p = jax.random.split(key)

    in_channels = 4
    hidden_channels = 8
    N, H, W = 2, 16, 16

    x = jax.random.normal(k_x, (N, in_channels, H, W), jnp.float32)
    params = init_encoder_params(k_p, in_channels, hidden_channels)

    outs = encoder_forward(x, params)
    outs = jax.block_until_ready(outs)

    expected_channels = [hidden_channels * m for m in (1, 2, 4, 8)]
    for o, c in zip(outs, expected_channels):
        assert o.shape == (N, c, H, W), o.shape
        assert bool(jnp.all(jnp.isfinite(o)))

    print("KERNEL_OK")
</pallas_src>

<mosaic_0001>
module attributes {stable_mosaic.version = 11 : i64} {
  func.func @kernel(%arg0: i32, %arg1: memref<1x288x128xf32, #tpu.memory_space<vmem>>, %arg2: memref<1x128xf32, #tpu.memory_space<vmem>>, %arg3: memref<1x128xf32, #tpu.memory_space<vmem>>, %arg4: memref<288x1xf32, #tpu.memory_space<vmem>>, %arg5: memref<1x328x128xf32, #tpu.memory_space<vmem>>) attributes {dimension_semantics = [#tpu.dimension_semantics<parallel>], iteration_bounds = array<i64: 2>, scalar_prefetch = 0 : i64, scratch_operands = 0 : i64, tpu.core_type = #tpu.core_type<tc>, window_params = [{transform_indices = @transform_0, window_bounds = array<i64: 1, 288, 128>}, {pipeline_mode = #tpu.pipeline_mode<synchronous>, transform_indices = @transform_1, window_bounds = array<i64: 1, 128>}, {pipeline_mode = #tpu.pipeline_mode<synchronous>, transform_indices = @transform_2, window_bounds = array<i64: 1, 128>}, {pipeline_mode = #tpu.pipeline_mode<synchronous>, transform_indices = @transform_3, window_bounds = array<i64: 288, 1>}, {transform_indices = @transform_4, window_bounds = array<i64: 1, 328, 128>}]} {
    %c0 = arith.constant 0 : index
    %c0_0 = arith.constant 0 : index
    %c0_1 = arith.constant 0 : index
    %0 = vector.load %arg1[%c0, %c0_0, %c0_1] : memref<1x288x128xf32, #tpu.memory_space<vmem>>, vector<1x288x128xf32>
    %1 = vector.shape_cast %0 : vector<1x288x128xf32> to vector<288x128xf32>
    %c0_2 = arith.constant 0 : index
    %c0_3 = arith.constant 0 : index
    %2 = vector.load %arg2[%c0_2, %c0_3] : memref<1x128xf32, #tpu.memory_space<vmem>>, vector<1x128xf32>
    %3 = vector.broadcast %2 : vector<1x128xf32> to vector<288x128xf32>
    %4 = arith.mulf %1, %3 : vector<288x128xf32>
    %c0_4 = arith.constant 0 : index
    %c0_5 = arith.constant 0 : index
    %5 = vector.load %arg3[%c0_4, %c0_5] : memref<1x128xf32, #tpu.memory_space<vmem>>, vector<1x128xf32>
    %6 = vector.broadcast %5 : vector<1x128xf32> to vector<288x128xf32>
    %7 = arith.addf %4, %6 : vector<288x128xf32>
    %cst = arith.constant 0.000000e+00 : f32
    %8 = vector.broadcast %cst : f32 to vector<288x128xf32>
    %9 = arith.maximumf %7, %8 : vector<288x128xf32>
    %c0_6 = arith.constant 0 : index
    %c0_7 = arith.constant 0 : index
    %10 = vector.load %arg4[%c0_6, %c0_7] : memref<288x1xf32, #tpu.memory_space<vmem>>, vector<288x1xf32>
    %11 = vector.broadcast %10 : vector<288x1xf32> to vector<288x128xf32>
    %12 = arith.mulf %9, %11 : vector<288x128xf32>
    %cst_8 = arith.constant 0.000000e+00 : f32
    %13 = vector.broadcast %cst_8 : f32 to vector<19x128xf32>
    %c0_9 = arith.constant 0 : index
    %c0_10 = arith.constant 0 : index
    %c0_11 = arith.constant 0 : index
    %14 = vector.load %arg5[%c0_9, %c0_10, %c0_11] : memref<1x328x128xf32, #tpu.memory_space<vmem>>, vector<1x19x128xf32>
    %15 = vector.shape_cast %14 : vector<1x19x128xf32> to vector<19x128xf32>
    %16 = vector.shape_cast %13 : vector<19x128xf32> to vector<1x19x128xf32>
    tpu.vector_store %arg5[%c0_9, %c0_10, %c0_11], %16 {strides = array<i32>} : memref<1x328x128xf32, #tpu.memory_space<vmem>>, vector<1x19x128xf32>,
    %c0_12 = arith.constant 0 : index
    %c19 = arith.constant 19 : index
    %c0_13 = arith.constant 0 : index
    %17 = vector.load %arg5[%c0_12, %c19, %c0_13] : memref<1x328x128xf32, #tpu.memory_space<vmem>>, vector<1x288x128xf32>
    %18 = vector.shape_cast %17 : vector<1x288x128xf32> to vector<288x128xf32>
    %19 = vector.shape_cast %12 : vector<288x128xf32> to vector<1x288x128xf32>
    tpu.vector_store %arg5[%c0_12, %c19, %c0_13], %19 {strides = array<i32>} : memref<1x328x128xf32, #tpu.memory_space<vmem>>, vector<1x288x128xf32>,
    %cst_14 = arith.constant 0.000000e+00 : f32
    %20 = vector.broadcast %cst_14 : f32 to vector<21x128xf32>
    %c0_15 = arith.constant 0 : index
    %c307 = arith.constant 307 : index
    %c0_16 = arith.constant 0 : index
    %21 = vector.load %arg5[%c0_15, %c307, %c0_16] : memref<1x328x128xf32, #tpu.memory_space<vmem>>, vector<1x21x128xf32>
    %22 = vector.shape_cast %21 : vector<1x21x128xf32> to vector<21x128xf32>
    %23 = vector.shape_cast %20 : vector<21x128xf32> to vector<1x21x128xf32>
    tpu.vector_store %arg5[%c0_15, %c307, %c0_16], %23 {strides = array<i32>} : memref<1x328x128xf32, #tpu.memory_space<vmem>>, vector<1x21x128xf32>,
    return
  }
  func.func @transform_0(%arg0: i32) -> (i32, i32, i32) {
    %c0_i32 = arith.constant 0 : i32
    %c0_i32_0 = arith.constant 0 : i32
    %c0_i32_1 = arith.constant 0 : i32
    return %arg0, %c0_i32, %c0_i32_0 : i32, i32, i32
  }
  func.func @transform_1(%arg0: i32) -> (i32, i32) {
    %c0_i32 = arith.constant 0 : i32
    %c0_i32_0 = arith.constant 0 : i32
    %c0_i32_1 = arith.constant 0 : i32
    return %c0_i32, %c0_i32_0 : i32, i32
  }
  func.func @transform_2(%arg0: i32) -> (i32, i32) {
    %c0_i32 = arith.constant 0 : i32
    %c0_i32_0 = arith.constant 0 : i32
    %c0_i32_1 = arith.constant 0 : i32
    return %c0_i32, %c0_i32_0 : i32, i32
  }
  func.func @transform_3(%arg0: i32) -> (i32, i32) {
    %c0_i32 = arith.constant 0 : i32
    %c0_i32_0 = arith.constant 0 : i32
    %c0_i32_1 = arith.constant 0 : i32
    return %c0_i32, %c0_i32_0 : i32, i32
  }
  func.func @transform_4(%arg0: i32) -> (i32, i32, i32) {
    %c0_i32 = arith.constant 0 : i32
    %c0_i32_0 = arith.constant 0 : i32
    %c0_i32_1 = arith.constant 0 : i32
    return %arg0, %c0_i32, %c0_i32_0 : i32, i32, i32
  }
}

module attributes {stable_mosaic.version = 11 : i64} {
  func.func @kernel(%arg0: i32, %arg1: memref<1x328x8xf32, #tpu.memory_space<vmem>>, %arg2: memref<9x8x128xbf16, #tpu.memory_space<vmem>>, %arg3: memref<288x1xf32, #tpu.memory_space<vmem>>, %arg4: memref<1x288x128xf32, #tpu.memory_space<vmem>>, %arg5: memref<1x128xf32, #tpu.memory_space<vmem>>, %arg6: memref<1x128xf32, #tpu.memory_space<vmem>>) attributes {dimension_semantics = [#tpu.dimension_semantics<arbitrary>], iteration_bounds = array<i64: 2>, scalar_prefetch = 0 : i64, scratch_operands = 0 : i64, tpu.core_type = #tpu.core_type<tc>, window_params = [{transform_indices = @transform_0, window_bounds = array<i64: 1, 328, 8>}, {pipeline_mode = #tpu.pipeline_mode<synchronous>, transform_indices = @transform_1, window_bounds = array<i64: 9, 8, 128>}, {pipeline_mode = #tpu.pipeline_mode<synchronous>, transform_indices = @transform_2, window_bounds = array<i64: 288, 1>}, {transform_indices = @transform_3, window_bounds = array<i64: 1, 288, 128>}, {pipeline_mode = #tpu.pipeline_mode<synchronous>, transform_indices = @transform_4, window_bounds = array<i64: 1, 128>}, {pipeline_mode = #tpu.pipeline_mode<synchronous>, transform_indices = @transform_5, window_bounds = array<i64: 1, 128>}]} {
    %c0 = arith.constant 0 : index
    %c0_0 = arith.constant 0 : index
    %c0_1 = arith.constant 0 : index
    %0 = vector.load %arg1[%c0, %c0_0, %c0_1] : memref<1x328x8xf32, #tpu.memory_space<vmem>>, vector<1x288x8xf32>
    %1 = vector.shape_cast %0 : vector<1x288x8xf32> to vector<288x8xf32>
    %2 = arith.truncf %1 : vector<288x8xf32> to vector<288x8xbf16>
    %c0_2 = arith.constant 0 : index
    %c0_3 = arith.constant 0 : index
    %c0_4 = arith.constant 0 : index
    %3 = vector.load %arg2[%c0_2, %c0_3, %c0_4] : memref<9x8x128xbf16, #tpu.memory_space<vmem>>, vector<1x8x128xbf16>
    %4 = vector.shape_cast %3 : vector<1x8x128xbf16> to vector<8x128xbf16>
    %cst = arith.constant dense<0.000000e+00> : vector<288x128xf32>
    %5 = tpu.matmul %2, %4, %cst {dimension_numbers = #tpu.dot_dimension_numbers<[1], [0], [0], [1], [0, 0, 1, 1], [], []>} : vector<288x8xbf16>, vector<8x128xbf16>, vector<288x128xf32> -> vector<288x128xf32>
    %c0_5 = arith.constant 0 : index
    %c1 = arith.constant 1 : index
    %c0_6 = arith.constant 0 : index
    %6 = vector.load %arg1[%c0_5, %c1, %c0_6] : memref<1x328x8xf32, #tpu.memory_space<vmem>>, vector<1x288x8xf32>
    %7 = vector.shape_cast %6 : vector<1x288x8xf32> to vector<288x8xf32>
    %8 = arith.truncf %7 : vector<288x8xf32> to vector<288x8xbf16>
    %c1_7 = arith.constant 1 : index
    %c0_8 = arith.constant 0 : index
    %c0_9 = arith.constant 0 : index
    %9 = vector.load %arg2[%c1_7, %c0_8, %c0_9] : memref<9x8x128xbf16, #tpu.memory_space<vmem>>, vector<1x8x128xbf16>
    %10 = vector.shape_cast %9 : vector<1x8x128xbf16> to vector<8x128xbf16>
    %cst_10 = arith.constant dense<0.000000e+00> : vector<288x128xf32>
    %11 = tpu.matmul %8, %10, %cst_10 {dimension_numbers = #tpu.dot_dimension_numbers<[1], [0], [0], [1], [0, 0, 1, 1], [], []>} : vector<288x8xbf16>, vector<8x128xbf16>, vector<288x128xf32> -> vector<288x128xf32>
    %12 = arith.addf %5, %11 : vector<288x128xf32>
    %c0_11 = arith.constant 0 : index
    %c2 = arith.constant 2 : index
    %c0_12 = arith.constant 0 : index
    %13 = vector.load %arg1[%c0_11, %c2, %c0_12] : memref<1x328x8xf32, #tpu.memory_space<vmem>>, vector<1x288x8xf32>
    %14 = vector.shape_cast %13 : vector<1x288x8xf32> to vector<288x8xf32>
    %15 = arith.truncf %14 : vector<288x8xf32> to vector<288x8xbf16>
    %c2_13 = arith.constant 2 : index
    %c0_14 = arith.constant 0 : index
    %c0_15 = arith.constant 0 : index
    %16 = vector.load %arg2[%c2_13, %c0_14, %c0_15] : memref<9x8x128xbf16, #tpu.memory_space<vmem>>, vector<1x8x128xbf16>
    %17 = vector.shape_cast %16 : vector<1x8x128xbf16> to vector<8x128xbf16>
    %cst_16 = arith.constant dense<0.000000e+00> : vector<288x128xf32>
    %18 = tpu.matmul %15, %17, %cst_16 {dimension_numbers = #tpu.dot_dimension_numbers<[1], [0], [0], [1], [0, 0, 1, 1], [], []>} : vector<288x8xbf16>, vector<8x128xbf16>, vector<288x128xf32> -> vector<288x128xf32>
    %19 = arith.addf %12, %18 : vector<288x128xf32>
    %c0_17 = arith.constant 0 : index
    %c18 = arith.constant 18 : index
    %c0_18 = arith.constant 0 : index
    %20 = vector.load %arg1[%c0_17, %c18, %c0_18] : memref<1x328x8xf32, #tpu.memory_space<vmem>>, vector<1x288x8xf32>
    %21 = vector.shape_cast %20 : vector<1x288x8xf32> to vector<288x8xf32>
    %22 = arith.truncf %21 : vector<288x8xf32> to vector<288x8xbf16>
    %c3 = arith.constant 3 : index
    %c0_19 = arith.constant 0 : index
    %c0_20 = arith.constant 0 : index
    %23 = vector.load %arg2[%c3, %c0_19, %c0_20] : memref<9x8x128xbf16, #tpu.memory_space<vmem>>, vector<1x8x128xbf16>
    %24 = vector.shape_cast %23 : vector<1x8x128xbf16> to vector<8x128xbf16>
    %cst_21 = arith.constant dense<0.000000e+00> : vector<288x128xf32>
    %25 = tpu.matmul %22, %24, %cst_21 {dimension_numbers = #tpu.dot_dimension_numbers<[1], [0], [0], [1], [0, 0, 1, 1], [], []>} : vector<288x8xbf16>, vector<8x128xbf16>, vector<288x128xf32> -> vector<288x128xf32>
    %26 = arith.addf %19, %25 : vector<288x128xf32>
    %c0_22 = arith.constant 0 : index
    %c19 = arith.constant 19 : index
    %c0_23 = arith.constant 0 : index
    %27 = vector.load %arg1[%c0_22, %c19, %c0_23] : memref<1x328x8xf32, #tpu.memory_space<vmem>>, vector<1x288x8xf32>
    %28 = vector.shape_cast %27 : vector<1x288x8xf32> to vector<288x8xf32>
    %29 = arith.truncf %28 : vector<288x8xf32> to vector<288x8xbf16>
    %c4 = arith.constant 4 : index
    %c0_24 = arith.constant 0 : index
    %c0_25 = arith.constant 0 : index
    %30 = vector.load %arg2[%c4, %c0_24, %c0_25] : memref<9x8x128xbf16, #tpu.memory_space<vmem>>, vector<1x8x128xbf16>
    %31 = vector.shape_cast %30 : vector<1x8x128xbf16> to vector<8x128xbf16>
    %cst_26 = arith.constant dense<0.000000e+00> : vector<288x128xf32>
    %32 = tpu.matmul %29, %31, %cst_26 {dimension_numbers = #tpu.dot_dimension_numbers<[1], [0], [0], [1], [0, 0, 1, 1], [], []>} : vector<288x8xbf16>, vector<8x128xbf16>, vector<288x128xf32> -> vector<288x128xf32>
    %33 = arith.addf %26, %32 : vector<288x128xf32>
    %c0_27 = arith.constant 0 : index
    %c20 = arith.constant 20 : index
    %c0_28 = arith.constant 0 : index
    %34 = vector.load %arg1[%c0_27, %c20, %c0_28] : memref<1x328x8xf32, #tpu.memory_space<vmem>>, vector<1x288x8xf32>
    %35 = vector.shape_cast %34 : vector<1x288x8xf32> to vector<288x8xf32>
    %36 = arith.truncf %35 : vector<288x8xf32> to vector<288x8xbf16>
    %c5 = arith.constant 5 : index
    %c0_29 = arith.constant 0 : index
    %c0_30 = arith.constant 0 : index
    %37 = vector.load %arg2[%c5, %c0_29, %c0_30] : memref<9x8x128xbf16, #tpu.memory_space<vmem>>, vector<1x8x128xbf16>
    %38 = vector.shape_cast %37 : vector<1x8x128xbf16> to vector<8x128xbf16>
    %cst_31 = arith.constant dense<0.000000e+00> : vector<288x128xf32>
    %39 = tpu.matmul %36, %38, %cst_31 {dimension_numbers = #tpu.dot_dimension_numbers<[1], [0], [0], [1], [0, 0, 1, 1], [], []>} : vector<288x8xbf16>, vector<8x128xbf16>, vector<288x128xf32> -> vector<288x128xf32>
    %40 = arith.addf %33, %39 : vector<288x128xf32>
    %c0_32 = arith.constant 0 : index
    %c36 = arith.constant 36 : index
    %c0_33 = arith.constant 0 : index
    %41 = vector.load %arg1[%c0_32, %c36, %c0_33] : memref<1x328x8xf32, #tpu.memory_space<vmem>>, vector<1x288x8xf32>
    %42 = vector.shape_cast %41 : vector<1x288x8xf32> to vector<288x8xf32>
    %43 = arith.truncf %42 : vector<288x8xf32> to vector<288x8xbf16>
    %c6 = arith.constant 6 : index
    %c0_34 = arith.constant 0 : index
    %c0_35 = arith.constant 0 : index
    %44 = vector.load %arg2[%c6, %c0_34, %c0_35] : memref<9x8x128xbf16, #tpu.memory_space<vmem>>, vector<1x8x128xbf16>
    %45 = vector.shape_cast %44 : vector<1x8x128xbf16> to vector<8x128xbf16>
    %cst_36 = arith.constant dense<0.000000e+00> : vector<288x128xf32>
    %46 = tpu.matmul %43, %45, %cst_36 {dimension_numbers = #tpu.dot_dimension_numbers<[1], [0], [0], [1], [0, 0, 1, 1], [], []>} : vector<288x8xbf16>, vector<8x128xbf16>, vector<288x128xf32> -> vector<288x128xf32>
    %47 = arith.addf %40, %46 : vector<288x128xf32>
    %c0_37 = arith.constant 0 : index
    %c37 = arith.constant 37 : index
    %c0_38 = arith.constant 0 : index
    %48 = vector.load %arg1[%c0_37, %c37, %c0_38] : memref<1x328x8xf32, #tpu.memory_space<vmem>>, vector<1x288x8xf32>
    %49 = vector.shape_cast %48 : vector<1x288x8xf32> to vector<288x8xf32>
    %50 = arith.truncf %49 : vector<288x8xf32> to vector<288x8xbf16>
    %c7 = arith.constant 7 : index
    %c0_39 = arith.constant 0 : index
    %c0_40 = arith.constant 0 : index
    %51 = vector.load %arg2[%c7, %c0_39, %c0_40] : memref<9x8x128xbf16, #tpu.memory_space<vmem>>, vector<1x8x128xbf16>
    %52 = vector.shape_cast %51 : vector<1x8x128xbf16> to vector<8x128xbf16>
    %cst_41 = arith.constant dense<0.000000e+00> : vector<288x128xf32>
    %53 = tpu.matmul %50, %52, %cst_41 {dimension_numbers = #tpu.dot_dimension_numbers<[1], [0], [0], [1], [0, 0, 1, 1], [], []>} : vector<288x8xbf16>, vector<8x128xbf16>, vector<288x128xf32> -> vector<288x128xf32>
    %54 = arith.addf %47, %53 : vector<288x128xf32>
    %c0_42 = arith.constant 0 : index
    %c38 = arith.constant 38 : index
    %c0_43 = arith.constant 0 : index
    %55 = vector.load %arg1[%c0_42, %c38, %c0_43] : memref<1x328x8xf32, #tpu.memory_space<vmem>>, vector<1x288x8xf32>
    %56 = vector.shape_cast %55 : vector<1x288x8xf32> to vector<288x8xf32>
    %57 = arith.truncf %56 : vector<288x8xf32> to vector<288x8xbf16>
    %c8 = arith.constant 8 : index
    %c0_44 = arith.constant 0 : index
    %c0_45 = arith.constant 0 : index
    %58 = vector.load %arg2[%c8, %c0_44, %c0_45] : memref<9x8x128xbf16, #tpu.memory_space<vmem>>, vector<1x8x128xbf16>
    %59 = vector.shape_cast %58 : vector<1x8x128xbf16> to vector<8x128xbf16>
    %cst_46 = arith.constant dense<0.000000e+00> : vector<288x128xf32>
    %60 = tpu.matmul %57, %59, %cst_46 {dimension_numbers = #tpu.dot_dimension_numbers<[1], [0], [0], [1], [0, 0, 1, 1], [], []>} : vector<288x8xbf16>, vector<8x128xbf16>, vector<288x128xf32> -> vector<288x128xf32>
    %61 = arith.addf %54, %60 : vector<288x128xf32>
    %c0_47 = arith.constant 0 : index
    %c0_48 = arith.constant 0 : index
    %62 = vector.load %arg3[%c0_47, %c0_48] : memref<288x1xf32, #tpu.memory_space<vmem>>, vector<288x1xf32>
    %63 = vector.broadcast %62 : vector<288x1xf32> to vector<288x128xf32>
    %64 = arith.mulf %61, %63 : vector<288x128xf32>
    %c0_49 = arith.constant 0 : index
    %c0_50 = arith.constant 0 : index
    %c0_51 = arith.constant 0 : index
    %65 = vector.load %arg4[%c0_49, %c0_50, %c0_51] : memref<1x288x128xf32, #tpu.memory_space<vmem>>, vector<1x288x128xf32>
    %66 = vector.shape_cast %65 : vector<1x288x128xf32> to vector<288x128xf32>
    %67 = vector.shape_cast %64 : vector<288x128xf32> to vector<1x288x128xf32>
    tpu.vector_store %arg4[%c0_49, %c0_50, %c0_51], %67 {strides = array<i32>} : memref<1x288x128xf32, #tpu.memory_space<vmem>>, vector<1x288x128xf32>,
    %c0_i32 = arith.constant 0 : i32
    %68 = arith.cmpi eq, %arg0, %c0_i32 : i32
    %69 = arith.extui %68 : i1 to i32
    %c0_i32_52 = arith.constant 0 : i32
    %70 = arith.cmpi ne, %69, %c0_i32_52 : i32
    scf.if %70 {
      %cst_63 = arith.constant 0.000000e+00 : f32
      %82 = vector.broadcast %cst_63 : f32 to vector<1x128xf32>
      %c0_64 = arith.constant 0 : index
      %c0_65 = arith.constant 0 : index
      %83 = vector.load %arg5[%c0_64, %c0_65] : memref<1x128xf32, #tpu.memory_space<vmem>>, vector<1x128xf32>
      tpu.vector_store %arg5[%c0_64, %c0_65], %82 {strides = array<i32>} : memref<1x128xf32, #tpu.memory_space<vmem>>, vector<1x128xf32>,
      %cst_66 = arith.constant 0.000000e+00 : f32
      %84 = vector.broadcast %cst_66 : f32 to vector<1x128xf32>
      %c0_67 = arith.constant 0 : index
      %c0_68 = arith.constant 0 : index
      %85 = vector.load %arg6[%c0_67, %c0_68] : memref<1x128xf32, #tpu.memory_space<vmem>>, vector<1x128xf32>
      tpu.vector_store %arg6[%c0_67, %c0_68], %84 {strides = array<i32>} : memref<1x128xf32, #tpu.memory_space<vmem>>, vector<1x128xf32>,
    } else {
    }
    %c0_53 = arith.constant 0 : index
    %c0_54 = arith.constant 0 : index
    %71 = vector.load %arg5[%c0_53, %c0_54] : memref<1x128xf32, #tpu.memory_space<vmem>>, vector<1x128xf32>
    %cst_55 = arith.constant dense<0.000000e+00> : vector<128xf32>
    %72 = vector.multi_reduction <add>, %64, %cst_55 [0] : vector<288x128xf32> to vector<128xf32>
    %73 = vector.shape_cast %72 : vector<128xf32> to vector<1x128xf32>
    %74 = arith.addf %71, %73 : vector<1x128xf32>
    %c0_56 = arith.constant 0 : index
    %c0_57 = arith.constant 0 : index
    %75 = vector.load %arg5[%c0_56, %c0_57] : memref<1x128xf32, #tpu.memory_space<vmem>>, vector<1x128xf32>
    tpu.vector_store %arg5[%c0_56, %c0_57], %74 {strides = array<i32>} : memref<1x128xf32, #tpu.memory_space<vmem>>, vector<1x128xf32>,
    %c0_58 = arith.constant 0 : index
    %c0_59 = arith.constant 0 : index
    %76 = vector.load %arg6[%c0_58, %c0_59] : memref<1x128xf32, #tpu.memory_space<vmem>>, vector<1x128xf32>
    %77 = arith.mulf %64, %64 : vector<288x128xf32>
    %cst_60 = arith.constant dense<0.000000e+00> : vector<128xf32>
    %78 = vector.multi_reduction <add>, %77, %cst_60 [0] : vector<288x128xf32> to vector<128xf32>
    %79 = vector.shape_cast %78 : vector<128xf32> to vector<1x128xf32>
    %80 = arith.addf %76, %79 : vector<1x128xf32>
    %c0_61 = arith.constant 0 : index
    %c0_62 = arith.constant 0 : index
    %81 = vector.load %arg6[%c0_61, %c0_62] : memref<1x128xf32, #tpu.memory_space<vmem>>, vector<1x128xf32>
    tpu.vector_store %arg6[%c0_61, %c0_62], %80 {strides = array<i32>} : memref<1x128xf32, #tpu.memory_space<vmem>>, vector<1x128xf32>,
    return
  }
  func.func @transform_0(%arg0: i32) -> (i32, i32, i32) {
    %c0_i32 = arith.constant 0 : i32
    %c0_i32_0 = arith.constant 0 : i32
    %c0_i32_1 = arith.constant 0 : i32
    return %arg0, %c0_i32, %c0_i32_0 : i32, i32, i32
  }
  func.func @transform_1(%arg0: i32) -> (i32, i32, i32) {
    %c0_i32 = arith.constant 0 : i32
    %c0_i32_0 = arith.constant 0 : i32
    %c0_i32_1 = arith.constant 0 : i32
    %c0_i32_2 = arith.constant 0 : i32
    return %c0_i32, %c0_i32_0, %c0_i32_1 : i32, i32, i32
  }
  func.func @transform_2(%arg0: i32) -> (i32, i32) {
    %c0_i32 = arith.constant 0 : i32
    %c0_i32_0 = arith.constant 0 : i32
    %c0_i32_1 = arith.constant 0 : i32
    return %c0_i32, %c0_i32_0 : i32, i32
  }
  func.func @transform_3(%arg0: i32) -> (i32, i32, i32) {
    %c0_i32 = arith.constant 0 : i32
    %c0_i32_0 = arith.constant 0 : i32
    %c0_i32_1 = arith.constant 0 : i32
    return %arg0, %c0_i32, %c0_i32_0 : i32, i32, i32
  }
  func.func @transform_4(%arg0: i32) -> (i32, i32) {
    %c0_i32 = arith.constant 0 : i32
    %c0_i32_0 = arith.constant 0 : i32
    %c0_i32_1 = arith.constant 0 : i32
    return %c0_i32, %c0_i32_0 : i32, i32
  }
  func.func @transform_5(%arg0: i32) -> (i32, i32) {
    %c0_i32 = arith.constant 0 : i32
    %c0_i32_0 = arith.constant 0 : i32
    %c0_i32_1 = arith.constant 0 : i32
    return %c0_i32, %c0_i32_0 : i32, i32
  }
}

module attributes {stable_mosaic.version = 11 : i64} {
  func.func @kernel(%arg0: i32, %arg1: memref<1x328x128xf32, #tpu.memory_space<vmem>>, %arg2: memref<9x128x128xbf16, #tpu.memory_space<vmem>>, %arg3: memref<288x1xf32, #tpu.memory_space<vmem>>, %arg4: memref<1x288x128xf32, #tpu.memory_space<vmem>>, %arg5: memref<1x128xf32, #tpu.memory_space<vmem>>, %arg6: memref<1x128xf32, #tpu.memory_space<vmem>>) attributes {dimension_semantics = [#tpu.dimension_semantics<arbitrary>], iteration_bounds = array<i64: 2>, scalar_prefetch = 0 : i64, scratch_operands = 0 : i64, tpu.core_type = #tpu.core_type<tc>, window_params = [{transform_indices = @transform_0, window_bounds = array<i64: 1, 328, 128>}, {pipeline_mode = #tpu.pipeline_mode<synchronous>, transform_indices = @transform_1, window_bounds = array<i64: 9, 128, 128>}, {pipeline_mode = #tpu.pipeline_mode<synchronous>, transform_indices = @transform_2, window_bounds = array<i64: 288, 1>}, {transform_indices = @transform_3, window_bounds = array<i64: 1, 288, 128>}, {pipeline_mode = #tpu.pipeline_mode<synchronous>, transform_indices = @transform_4, window_bounds = array<i64: 1, 128>}, {pipeline_mode = #tpu.pipeline_mode<synchronous>, transform_indices = @transform_5, window_bounds = array<i64: 1, 128>}]} {
    %c0 = arith.constant 0 : index
    %c0_0 = arith.constant 0 : index
    %c0_1 = arith.constant 0 : index
    %0 = vector.load %arg1[%c0, %c0_0, %c0_1] : memref<1x328x128xf32, #tpu.memory_space<vmem>>, vector<1x288x128xf32>
    %1 = vector.shape_cast %0 : vector<1x288x128xf32> to vector<288x128xf32>
    %2 = arith.truncf %1 : vector<288x128xf32> to vector<288x128xbf16>
    %c0_2 = arith.constant 0 : index
    %c0_3 = arith.constant 0 : index
    %c0_4 = arith.constant 0 : index
    %3 = vector.load %arg2[%c0_2, %c0_3, %c0_4] : memref<9x128x128xbf16, #tpu.memory_space<vmem>>, vector<1x128x128xbf16>
    %4 = vector.shape_cast %3 : vector<1x128x128xbf16> to vector<128x128xbf16>
    %cst = arith.constant dense<0.000000e+00> : vector<288x128xf32>
    %5 = tpu.matmul %2, %4, %cst {dimension_numbers = #tpu.dot_dimension_numbers<[1], [0], [0], [1], [0, 0, 1, 1], [], []>} : vector<288x128xbf16>, vector<128x128xbf16>, vector<288x128xf32> -> vector<288x128xf32>
    %c0_5 = arith.constant 0 : index
    %c1 = arith.constant 1 : index
    %c0_6 = arith.constant 0 : index
    %6 = vector.load %arg1[%c0_5, %c1, %c0_6] : memref<1x328x128xf32, #tpu.memory_space<vmem>>, vector<1x288x128xf32>
    %7 = vector.shape_cast %6 : vector<1x288x128xf32> to vector<288x128xf32>
    %8 = arith.truncf %7 : vector<288x128xf32> to vector<288x128xbf16>
    %c1_7 = arith.constant 1 : index
    %c0_8 = arith.constant 0 : index
    %c0_9 = arith.constant 0 : index
    %9 = vector.load %arg2[%c1_7, %c0_8, %c0_9] : memref<9x128x128xbf16, #tpu.memory_space<vmem>>, vector<1x128x128xbf16>
    %10 = vector.shape_cast %9 : vector<1x128x128xbf16> to vector<128x128xbf16>
    %cst_10 = arith.constant dense<0.000000e+00> : vector<288x128xf32>
    %11 = tpu.matmul %8, %10, %cst_10 {dimension_numbers = #tpu.dot_dimension_numbers<[1], [0], [0], [1], [0, 0, 1, 1], [], []>} : vector<288x128xbf16>, vector<128x128xbf16>, vector<288x128xf32> -> vector<288x128xf32>
    %12 = arith.addf %5, %11 : vector<288x128xf32>
    %c0_11 = arith.constant 0 : index
    %c2 = arith.constant 2 : index
    %c0_12 = arith.constant 0 : index
    %13 = vector.load %arg1[%c0_11, %c2, %c0_12] : memref<1x328x128xf32, #tpu.memory_space<vmem>>, vector<1x288x128xf32>
    %14 = vector.shape_cast %13 : vector<1x288x128xf32> to vector<288x128xf32>
    %15 = arith.truncf %14 : vector<288x128xf32> to vector<288x128xbf16>
    %c2_13 = arith.constant 2 : index
    %c0_14 = arith.constant 0 : index
    %c0_15 = arith.constant 0 : index
    %16 = vector.load %arg2[%c2_13, %c0_14, %c0_15] : memref<9x128x128xbf16, #tpu.memory_space<vmem>>, vector<1x128x128xbf16>
    %17 = vector.shape_cast %16 : vector<1x128x128xbf16> to vector<128x128xbf16>
    %cst_16 = arith.constant dense<0.000000e+00> : vector<288x128xf32>
    %18 = tpu.matmul %15, %17, %cst_16 {dimension_numbers = #tpu.dot_dimension_numbers<[1], [0], [0], [1], [0, 0, 1, 1], [], []>} : vector<288x128xbf16>, vector<128x128xbf16>, vector<288x128xf32> -> vector<288x128xf32>
    %19 = arith.addf %12, %18 : vector<288x128xf32>
    %c0_17 = arith.constant 0 : index
    %c18 = arith.constant 18 : index
    %c0_18 = arith.constant 0 : index
    %20 = vector.load %arg1[%c0_17, %c18, %c0_18] : memref<1x328x128xf32, #tpu.memory_space<vmem>>, vector<1x288x128xf32>
    %21 = vector.shape_cast %20 : vector<1x288x128xf32> to vector<288x128xf32>
    %22 = arith.truncf %21 : vector<288x128xf32> to vector<288x128xbf16>
    %c3 = arith.constant 3 : index
    %c0_19 = arith.constant 0 : index
    %c0_20 = arith.constant 0 : index
    %23 = vector.load %arg2[%c3, %c0_19, %c0_20] : memref<9x128x128xbf16, #tpu.memory_space<vmem>>, vector<1x128x128xbf16>
    %24 = vector.shape_cast %23 : vector<1x128x128xbf16> to vector<128x128xbf16>
    %cst_21 = arith.constant dense<0.000000e+00> : vector<288x128xf32>
    %25 = tpu.matmul %22, %24, %cst_21 {dimension_numbers = #tpu.dot_dimension_numbers<[1], [0], [0], [1], [0, 0, 1, 1], [], []>} : vector<288x128xbf16>, vector<128x128xbf16>, vector<288x128xf32> -> vector<288x128xf32>
    %26 = arith.addf %19, %25 : vector<288x128xf32>
    %c0_22 = arith.constant 0 : index
    %c19 = arith.constant 19 : index
    %c0_23 = arith.constant 0 : index
    %27 = vector.load %arg1[%c0_22, %c19, %c0_23] : memref<1x328x128xf32, #tpu.memory_space<vmem>>, vector<1x288x128xf32>
    %28 = vector.shape_cast %27 : vector<1x288x128xf32> to vector<288x128xf32>
    %29 = arith.truncf %28 : vector<288x128xf32> to vector<288x128xbf16>
    %c4 = arith.constant 4 : index
    %c0_24 = arith.constant 0 : index
    %c0_25 = arith.constant 0 : index
    %30 = vector.load %arg2[%c4, %c0_24, %c0_25] : memref<9x128x128xbf16, #tpu.memory_space<vmem>>, vector<1x128x128xbf16>
    %31 = vector.shape_cast %30 : vector<1x128x128xbf16> to vector<128x128xbf16>
    %cst_26 = arith.constant dense<0.000000e+00> : vector<288x128xf32>
    %32 = tpu.matmul %29, %31, %cst_26 {dimension_numbers = #tpu.dot_dimension_numbers<[1], [0], [0], [1], [0, 0, 1, 1], [], []>} : vector<288x128xbf16>, vector<128x128xbf16>, vector<288x128xf32> -> vector<288x128xf32>
    %33 = arith.addf %26, %32 : vector<288x128xf32>
    %c0_27 = arith.constant 0 : index
    %c20 = arith.constant 20 : index
    %c0_28 = arith.constant 0 : index
    %34 = vector.load %arg1[%c0_27, %c20, %c0_28] : memref<1x328x128xf32, #tpu.memory_space<vmem>>, vector<1x288x128xf32>
    %35 = vector.shape_cast %34 : vector<1x288x128xf32> to vector<288x128xf32>
    %36 = arith.truncf %35 : vector<288x128xf32> to vector<288x128xbf16>
    %c5 = arith.constant 5 : index
    %c0_29 = arith.constant 0 : index
    %c0_30 = arith.constant 0 : index
    %37 = vector.load %arg2[%c5, %c0_29, %c0_30] : memref<9x128x128xbf16, #tpu.memory_space<vmem>>, vector<1x128x128xbf16>
    %38 = vector.shape_cast %37 : vector<1x128x128xbf16> to vector<128x128xbf16>
    %cst_31 = arith.constant dense<0.000000e+00> : vector<288x128xf32>
    %39 = tpu.matmul %36, %38, %cst_31 {dimension_numbers = #tpu.dot_dimension_numbers<[1], [0], [0], [1], [0, 0, 1, 1], [], []>} : vector<288x128xbf16>, vector<128x128xbf16>, vector<288x128xf32> -> vector<288x128xf32>
    %40 = arith.addf %33, %39 : vector<288x128xf32>
    %c0_32 = arith.constant 0 : index
    %c36 = arith.constant 36 : index
    %c0_33 = arith.constant 0 : index
    %41 = vector.load %arg1[%c0_32, %c36, %c0_33] : memref<1x328x128xf32, #tpu.memory_space<vmem>>, vector<1x288x128xf32>
    %42 = vector.shape_cast %41 : vector<1x288x128xf32> to vector<288x128xf32>
    %43 = arith.truncf %42 : vector<288x128xf32> to vector<288x128xbf16>
    %c6 = arith.constant 6 : index
    %c0_34 = arith.constant 0 : index
    %c0_35 = arith.constant 0 : index
    %44 = vector.load %arg2[%c6, %c0_34, %c0_35] : memref<9x128x128xbf16, #tpu.memory_space<vmem>>, vector<1x128x128xbf16>
    %45 = vector.shape_cast %44 : vector<1x128x128xbf16> to vector<128x128xbf16>
    %cst_36 = arith.constant dense<0.000000e+00> : vector<288x128xf32>
    %46 = tpu.matmul %43, %45, %cst_36 {dimension_numbers = #tpu.dot_dimension_numbers<[1], [0], [0], [1], [0, 0, 1, 1], [], []>} : vector<288x128xbf16>, vector<128x128xbf16>, vector<288x128xf32> -> vector<288x128xf32>
    %47 = arith.addf %40, %46 : vector<288x128xf32>
    %c0_37 = arith.constant 0 : index
    %c37 = arith.constant 37 : index
    %c0_38 = arith.constant 0 : index
    %48 = vector.load %arg1[%c0_37, %c37, %c0_38] : memref<1x328x128xf32, #tpu.memory_space<vmem>>, vector<1x288x128xf32>
    %49 = vector.shape_cast %48 : vector<1x288x128xf32> to vector<288x128xf32>
    %50 = arith.truncf %49 : vector<288x128xf32> to vector<288x128xbf16>
    %c7 = arith.constant 7 : index
    %c0_39 = arith.constant 0 : index
    %c0_40 = arith.constant 0 : index
    %51 = vector.load %arg2[%c7, %c0_39, %c0_40] : memref<9x128x128xbf16, #tpu.memory_space<vmem>>, vector<1x128x128xbf16>
    %52 = vector.shape_cast %51 : vector<1x128x128xbf16> to vector<128x128xbf16>
    %cst_41 = arith.constant dense<0.000000e+00> : vector<288x128xf32>
    %53 = tpu.matmul %50, %52, %cst_41 {dimension_numbers = #tpu.dot_dimension_numbers<[1], [0], [0], [1], [0, 0, 1, 1], [], []>} : vector<288x128xbf16>, vector<128x128xbf16>, vector<288x128xf32> -> vector<288x128xf32>
    %54 = arith.addf %47, %53 : vector<288x128xf32>
    %c0_42 = arith.constant 0 : index
    %c38 = arith.constant 38 : index
    %c0_43 = arith.constant 0 : index
    %55 = vector.load %arg1[%c0_42, %c38, %c0_43] : memref<1x328x128xf32, #tpu.memory_space<vmem>>, vector<1x288x128xf32>
    %56 = vector.shape_cast %55 : vector<1x288x128xf32> to vector<288x128xf32>
    %57 = arith.truncf %56 : vector<288x128xf32> to vector<288x128xbf16>
    %c8 = arith.constant 8 : index
    %c0_44 = arith.constant 0 : index
    %c0_45 = arith.constant 0 : index
    %58 = vector.load %arg2[%c8, %c0_44, %c0_45] : memref<9x128x128xbf16, #tpu.memory_space<vmem>>, vector<1x128x128xbf16>
    %59 = vector.shape_cast %58 : vector<1x128x128xbf16> to vector<128x128xbf16>
    %cst_46 = arith.constant dense<0.000000e+00> : vector<288x128xf32>
    %60 = tpu.matmul %57, %59, %cst_46 {dimension_numbers = #tpu.dot_dimension_numbers<[1], [0], [0], [1], [0, 0, 1, 1], [], []>} : vector<288x128xbf16>, vector<128x128xbf16>, vector<288x128xf32> -> vector<288x128xf32>
    %61 = arith.addf %54, %60 : vector<288x128xf32>
    %c0_47 = arith.constant 0 : index
    %c0_48 = arith.constant 0 : index
    %62 = vector.load %arg3[%c0_47, %c0_48] : memref<288x1xf32, #tpu.memory_space<vmem>>, vector<288x1xf32>
    %63 = vector.broadcast %62 : vector<288x1xf32> to vector<288x128xf32>
    %64 = arith.mulf %61, %63 : vector<288x128xf32>
    %c0_49 = arith.constant 0 : index
    %c0_50 = arith.constant 0 : index
    %c0_51 = arith.constant 0 : index
    %65 = vector.load %arg4[%c0_49, %c0_50, %c0_51] : memref<1x288x128xf32, #tpu.memory_space<vmem>>, vector<1x288x128xf32>
    %66 = vector.shape_cast %65 : vector<1x288x128xf32> to vector<288x128xf32>
    %67 = vector.shape_cast %64 : vector<288x128xf32> to vector<1x288x128xf32>
    tpu.vector_store %arg4[%c0_49, %c0_50, %c0_51], %67 {strides = array<i32>} : memref<1x288x128xf32, #tpu.memory_space<vmem>>, vector<1x288x128xf32>,
    %c0_i32 = arith.constant 0 : i32
    %68 = arith.cmpi eq, %arg0, %c0_i32 : i32
    %69 = arith.extui %68 : i1 to i32
    %c0_i32_52 = arith.constant 0 : i32
    %70 = arith.cmpi ne, %69, %c0_i32_52 : i32
    scf.if %70 {
      %cst_63 = arith.constant 0.000000e+00 : f32
      %82 = vector.broadcast %cst_63 : f32 to vector<1x128xf32>
      %c0_64 = arith.constant 0 : index
      %c0_65 = arith.constant 0 : index
      %83 = vector.load %arg5[%c0_64, %c0_65] : memref<1x128xf32, #tpu.memory_space<vmem>>, vector<1x128xf32>
      tpu.vector_store %arg5[%c0_64, %c0_65], %82 {strides = array<i32>} : memref<1x128xf32, #tpu.memory_space<vmem>>, vector<1x128xf32>,
      %cst_66 = arith.constant 0.000000e+00 : f32
      %84 = vector.broadcast %cst_66 : f32 to vector<1x128xf32>
      %c0_67 = arith.constant 0 : index
      %c0_68 = arith.constant 0 : index
      %85 = vector.load %arg6[%c0_67, %c0_68] : memref<1x128xf32, #tpu.memory_space<vmem>>, vector<1x128xf32>
      tpu.vector_store %arg6[%c0_67, %c0_68], %84 {strides = array<i32>} : memref<1x128xf32, #tpu.memory_space<vmem>>, vector<1x128xf32>,
    } else {
    }
    %c0_53 = arith.constant 0 : index
    %c0_54 = arith.constant 0 : index
    %71 = vector.load %arg5[%c0_53, %c0_54] : memref<1x128xf32, #tpu.memory_space<vmem>>, vector<1x128xf32>
    %cst_55 = arith.constant dense<0.000000e+00> : vector<128xf32>
    %72 = vector.multi_reduction <add>, %64, %cst_55 [0] : vector<288x128xf32> to vector<128xf32>
    %73 = vector.shape_cast %72 : vector<128xf32> to vector<1x128xf32>
    %74 = arith.addf %71, %73 : vector<1x128xf32>
    %c0_56 = arith.constant 0 : index
    %c0_57 = arith.constant 0 : index
    %75 = vector.load %arg5[%c0_56, %c0_57] : memref<1x128xf32, #tpu.memory_space<vmem>>, vector<1x128xf32>
    tpu.vector_store %arg5[%c0_56, %c0_57], %74 {strides = array<i32>} : memref<1x128xf32, #tpu.memory_space<vmem>>, vector<1x128xf32>,
    %c0_58 = arith.constant 0 : index
    %c0_59 = arith.constant 0 : index
    %76 = vector.load %arg6[%c0_58, %c0_59] : memref<1x128xf32, #tpu.memory_space<vmem>>, vector<1x128xf32>
    %77 = arith.mulf %64, %64 : vector<288x128xf32>
    %cst_60 = arith.constant dense<0.000000e+00> : vector<128xf32>
    %78 = vector.multi_reduction <add>, %77, %cst_60 [0] : vector<288x128xf32> to vector<128xf32>
    %79 = vector.shape_cast %78 : vector<128xf32> to vector<1x128xf32>
    %80 = arith.addf %76, %79 : vector<1x128xf32>
    %c0_61 = arith.constant 0 : index
    %c0_62 = arith.constant 0 : index
    %81 = vector.load %arg6[%c0_61, %c0_62] : memref<1x128xf32, #tpu.memory_space<vmem>>, vector<1x128xf32>
    tpu.vector_store %arg6[%c0_61, %c0_62], %80 {strides = array<i32>} : memref<1x128xf32, #tpu.memory_space<vmem>>, vector<1x128xf32>,
    return
  }
  func.func @transform_0(%arg0: i32) -> (i32, i32, i32) {
    %c0_i32 = arith.constant 0 : i32
    %c0_i32_0 = arith.constant 0 : i32
    %c0_i32_1 = arith.constant 0 : i32
    return %arg0, %c0_i32, %c0_i32_0 : i32, i32, i32
  }
  func.func @transform_1(%arg0: i32) -> (i32, i32, i32) {
    %c0_i32 = arith.constant 0 : i32
    %c0_i32_0 = arith.constant 0 : i32
    %c0_i32_1 = arith.constant 0 : i32
    %c0_i32_2 = arith.constant 0 : i32
    return %c0_i32, %c0_i32_0, %c0_i32_1 : i32, i32, i32
  }
  func.func @transform_2(%arg0: i32) -> (i32, i32) {
    %c0_i32 = arith.constant 0 : i32
    %c0_i32_0 = arith.constant 0 : i32
    %c0_i32_1 = arith.constant 0 : i32
    return %c0_i32, %c0_i32_0 : i32, i32
  }
  func.func @transform_3(%arg0: i32) -> (i32, i32, i32) {
    %c0_i32 = arith.constant 0 : i32
    %c0_i32_0 = arith.constant 0 : i32
    %c0_i32_1 = arith.constant 0 : i32
    return %arg0, %c0_i32, %c0_i32_0 : i32, i32, i32
  }
  func.func @transform_4(%arg0: i32) -> (i32, i32) {
    %c0_i32 = arith.constant 0 : i32
    %c0_i32_0 = arith.constant 0 : i32
    %c0_i32_1 = arith.constant 0 : i32
    return %c0_i32, %c0_i32_0 : i32, i32
  }
  func.func @transform_5(%arg0: i32) -> (i32, i32) {
    %c0_i32 = arith.constant 0 : i32
    %c0_i32_0 = arith.constant 0 : i32
    %c0_i32_1 = arith.constant 0 : i32
    return %c0_i32, %c0_i32_0 : i32, i32
  }
}

</mosaic_0001>

<llo_original>
// kernel: encoder_forward.17
$region0: #{encoder_forward.17}
  #allocation0 [shape = 'u32[]', space=smem, size = 0x4, offset = 0x4, fixed_abs, tag = 'smem constant byte address 0x4 - core index']
  #allocation1 [shape = 'u32[144,128]{1,0:T(1,128)}', space=vmem, size = 0x12000, scoped, tag = 'internal scratch']
  %s0 = inlined_call_operand.vmem [shape: f32[2,288,128], index: 0, kind: input, shape index: {}]
  %s1 = inlined_call_operand.vmem [shape: f32[1,128], index: 1, kind: input, shape index: {}]
  %s2 = inlined_call_operand.vmem [shape: f32[1,128], index: 2, kind: input, shape index: {}]
  %s3 = inlined_call_operand.vmem [shape: f32[288,1], index: 3, kind: input, shape index: {}]
  %s4 = inlined_call_operand.vmem [shape: f32[2,328,128], index: 4, kind: output, shape index: {}]
  %s5 = sld [smem:[#allocation0]]
  $region49: #{encoder_forward.17} parent=0
    _
  %s7 = ssub.s32 1, %s5
  %s8 = scalar_select 0, %s7, %s5
  loop: start=0, step=1, limit=4
  $region2: #{encoder_forward.17} parent=0 // loop_pre_header
    _
  $region3: #{encoder_forward.17} parent=0 // loop_header
    %s10 = sphi 0, %s14
    %p11 = scmp.ge.s32.totalorder %s10, 4
    %s20 = sphi 0, %s22
    %s23 = sphi 0, %s20
    %s24 = sphi 0, %s23
    %s40 = sphi 0, %s24
    %s44 = sphi 0, %s44
    %s46 = sphi 0, %s44
    %s47 = sphi 0, %s46
    %s61 = sphi 0, %s47
    %s65 = sphi 0, %s65
    %s67 = sphi 0, %s65
    %s68 = sphi 0, %s67
    %s82 = sphi 0, %s68
    %s86 = sphi 0, %s86
    %s88 = sphi 0, %s86
    %s89 = sphi 0, %s88
    %s103 = sphi 0, %s89
    %s109 = sphi 0, %s111
    %s112 = sphi 0, %s109
    %s113 = sphi 0, %s112
    %s129 = sphi 0, %s113
  $region4: #{encoder_forward.17} parent=0 // loop_header_branch
    %13 = sbr.rel (%p11) target = $region8
  $region5: #{encoder_forward.17} parent=0 // loop_body
    %s15 = ssub.s32 %s10, 1
    %s16 = ssub.s32 %s10, 2
    %s17 = sadd.s32 %s10, 1
    %s18 = ssub.s32 %s10, %s17
    %p19 = scmp.eq.s32.totalorder %s18, 0
    %s21 = sadd.s32 %s20, 1
    %s22 = scalar_select %p19, %s20, %s21
    %p25 = pneg %p19
    %p26 = scmp.eq.s32.totalorder %s10, 1
    %p27 = por %p25, %p26
    %p28 = scmp.ne.s32.totalorder %s20, %s23
    %p29 = scmp.eq.s32.totalorder %s10, 0
    %p30 = por %p28, %p29
    %p31 = scmp.ne.s32.totalorder %s20, %s23
    %p32 = scmp.eq.s32.totalorder %s15, 1
    %p33 = por %p31, %p32
    %p34 = scmp.ne.s32.totalorder %s23, %s24
    %p35 = scmp.eq.s32.totalorder %s15, 0
    %p36 = por %p34, %p35
    %p37 = scmp.ne.s32.totalorder %s23, %s24
    %p38 = scmp.eq.s32.totalorder %s16, 1
    %p39 = por %p37, %p38
    %p41 = scmp.ne.s32.totalorder %s24, %s40
    %p42 = scmp.eq.s32.totalorder %s16, 0
    %p43 = por %p41, %p42
    %s45 = sadd.s32 %s44, 1
    %p48 = scmp.eq.s32.totalorder %s10, 1
    %p49 = scmp.ne.s32.totalorder %s44, %s46
    %p50 = scmp.eq.s32.totalorder %s10, 0
    %p51 = por %p49, %p50
    %p52 = scmp.ne.s32.totalorder %s44, %s46
    %p53 = scmp.eq.s32.totalorder %s15, 1
    %p54 = por %p52, %p53
    %p55 = scmp.ne.s32.totalorder %s46, %s47
    %p56 = scmp.eq.s32.totalorder %s15, 0
    %p57 = por %p55, %p56
    %p58 = scmp.ne.s32.totalorder %s46, %s47
    %p59 = scmp.eq.s32.totalorder %s16, 1
    %p60 = por %p58, %p59
    %p62 = scmp.ne.s32.totalorder %s47, %s61
    %p63 = scmp.eq.s32.totalorder %s16, 0
    %p64 = por %p62, %p63
    %s66 = sadd.s32 %s65, 1
    %p69 = scmp.eq.s32.totalorder %s10, 1
    %p70 = scmp.ne.s32.totalorder %s65, %s67
    %p71 = scmp.eq.s32.totalorder %s10, 0
    %p72 = por %p70, %p71
    %p73 = scmp.ne.s32.totalorder %s65, %s67
    %p74 = scmp.eq.s32.totalorder %s15, 1
    %p75 = por %p73, %p74
    %p76 = scmp.ne.s32.totalorder %s67, %s68
    %p77 = scmp.eq.s32.totalorder %s15, 0
    %p78 = por %p76, %p77
    %p79 = scmp.ne.s32.totalorder %s67, %s68
    %p80 = scmp.eq.s32.totalorder %s16, 1
    %p81 = por %p79, %p80
    %p83 = scmp.ne.s32.totalorder %s68, %s82
    %p84 = scmp.eq.s32.totalorder %s16, 0
    %p85 = por %p83, %p84
    %s87 = sadd.s32 %s86, 1
    %p90 = scmp.eq.s32.totalorder %s10, 1
    %p91 = scmp.ne.s32.totalorder %s86, %s88
    %p92 = scmp.eq.s32.totalorder %s10, 0
    %p93 = por %p91, %p92
    %p94 = scmp.ne.s32.totalorder %s86, %s88
    %p95 = scmp.eq.s32.totalorder %s15, 1
    %p96 = por %p94, %p95
    %p97 = scmp.ne.s32.totalorder %s88, %s89
    %p98 = scmp.eq.s32.totalorder %s15, 0
    %p99 = por %p97, %p98
    %p100 = scmp.ne.s32.totalorder %s88, %s89
    %p101 = scmp.eq.s32.totalorder %s16, 1
    %p102 = por %p100, %p101
    %p104 = scmp.ne.s32.totalorder %s89, %s103
    %p105 = scmp.eq.s32.totalorder %s16, 0
    %p106 = por %p104, %p105
    %s107 = ssub.s32 %s10, %s17
    %p108 = scmp.eq.s32.totalorder %s107, 0
    %s110 = sadd.s32 %s109, 1
    %s111 = scalar_select %p108, %s109, %s110
    %p114 = pneg %p108
    %p115 = scmp.eq.s32.totalorder %s10, 1
    %p116 = por %p114, %p115
    %p117 = scmp.ne.s32.totalorder %s109, %s112
    %p118 = scmp.eq.s32.totalorder %s10, 0
    %p119 = por %p117, %p118
    %p120 = scmp.ne.s32.totalorder %s109, %s112
    %p121 = scmp.eq.s32.totalorder %s15, 1
    %p122 = por %p120, %p121
    %p123 = scmp.ne.s32.totalorder %s112, %s113
    %p124 = scmp.eq.s32.totalorder %s15, 0
    %p125 = por %p123, %p124
    %p126 = scmp.ne.s32.totalorder %s112, %s113
    %p127 = scmp.eq.s32.totalorder %s16, 1
    %p128 = por %p126, %p127
    %p130 = scmp.ne.s32.totalorder %s113, %s129
    %p131 = scmp.eq.s32.totalorder %s16, 0
    %p132 = por %p130, %p131
    %p133 = scmp.le.s32.totalorder 1, %s10
    %p134 = scmp.lt.s32.totalorder %s10, 3
    %p135 = pnand %p133, %p134
    %p136 = pneg %p135
    // Predicated region
    $region9: #{encoder_forward.17} parent=5 // pred_check
      _
    $region10: #{encoder_forward.17} parent=5 // pred_check_branch
      %138 = sbr.rel (%p135) target = $region12
    $region11: #{encoder_forward.17} parent=5 // pred_region
      %s139 = ssub.s32 %s10, 1
      // Predicated region
      $region13: #{encoder_forward.17} parent=11 // pred_check
        %p140 = pneg %p57
      $region14: #{encoder_forward.17} parent=11 // pred_check_branch
        %142 = sbr.rel (%p140) target = $region16
      $region15: #{encoder_forward.17} parent=11 // pred_region
        _
      $region16: #{encoder_forward.17} parent=11 // pred_fallthru
        _
      // Predicated region
      $region17: #{encoder_forward.17} parent=11 // pred_check
        %p143 = pneg %p78
      $region18: #{encoder_forward.17} parent=11 // pred_check_branch
        %145 = sbr.rel (%p143) target = $region20
      $region19: #{encoder_forward.17} parent=11 // pred_region
        _
      $region20: #{encoder_forward.17} parent=11 // pred_fallthru
        _
      // Predicated region
      $region21: #{encoder_forward.17} parent=11 // pred_check
        %p146 = pneg %p99
      $region22: #{encoder_forward.17} parent=11 // pred_check_branch
        %148 = sbr.rel (%p146) target = $region24
      $region23: #{encoder_forward.17} parent=11 // pred_region
        _
      $region24: #{encoder_forward.17} parent=11 // pred_fallthru
        _
    $region12: #{encoder_forward.17} parent=5 // pred_fallthru
      _
    %p149 = scmp.lt.s32.totalorder %s10, 2
    // Predicated region
    $region25: #{encoder_forward.17} parent=5 // pred_check
      %p150 = pneg %p149
    $region26: #{encoder_forward.17} parent=5 // pred_check_branch
      %152 = sbr.rel (%p150) target = $region28
    $region27: #{encoder_forward.17} parent=5 // pred_region
      // Predicated region
      $region29: #{encoder_forward.17} parent=27 // pred_check
        %p153 = pneg %p30
      $region30: #{encoder_forward.17} parent=27 // pred_check_branch
        %155 = sbr.rel (%p153) target = $region32
      $region31: #{encoder_forward.17} parent=27 // pred_region
        %p156 = scmp.lt.s32.totalorder %s10, 1
        %s157 = scalar_select %p156, %s10, 1
        %s158 = smul.addr %s157, 36
        %s159 = smul.addr %s158, 8
        %s160 = scalar_lea.vmem %s0, %s159
      $region32: #{encoder_forward.17} parent=27 // pred_fallthru
        _
    $region28: #{encoder_forward.17} parent=5 // pred_fallthru
      _
    %p161 = scmp.le.s32.totalorder 1, %s10
    %p162 = scmp.lt.s32.totalorder %s10, 3
    %p163 = pnand %p161, %p162
    %p164 = pneg %p163
    // Predicated region
    $region33: #{encoder_forward.17} parent=5 // pred_check
      _
    $region34: #{encoder_forward.17} parent=5 // pred_check_branch
      %166 = sbr.rel (%p163) target = $region36
    $region35: #{encoder_forward.17} parent=5 // pred_region
      %s167 = ssub.s32 %s10, 1
      %p168 = scmp.lt.s32.totalorder %s15, 1
      %s169 = scalar_select %p168, %s15, 1
      %s170 = smul.addr %s169, 36
      %s171 = smul.addr %s170, 8
      %s172 = scalar_lea.vmem %s0, %s171
      %p173 = pneg %p36
      %p174 = pneg %p33
      %p175 = pneg %p57
      %p176 = pneg %p54
      %p177 = pneg %p78
      %p178 = pneg %p75
      %p179 = pneg %p99
      %p180 = pneg %p96
      %p181 = pneg %p125
      %p182 = pneg %p122
      %p183 = scmp.lt.s32.totalorder %s15, 1
      %s184 = scalar_select %p183, %s15, 1
      %s185 = smul.addr %s184, 41
      %s186 = smul.addr %s185, 8
      %s187 = scalar_lea.vmem %s4, %s186
      %p188 = scmp.lt.s32.totalorder %s15, 1
      %s189 = scalar_select %p188, %s15, 1
      %s190 = smul.addr %s189, 36
      %s191 = smul.addr %s190, 8
      %s192 = scalar_lea.vmem %s0, %s191
      %p193 = scmp.lt.s32.totalorder %s15, 1
      %s194 = scalar_select %p193, %s15, 1
      %s195 = smul.addr %s194, 41
      %s196 = smul.addr %s195, 8
      %s197 = scalar_lea.vmem %s4, %s196
      %v198 = vld [vmem:[%s192] sm:$0xff]
      %v199 = vld [vmem:[%s192 + $0x8] sm:$0xff]
      %v200 = vld [vmem:[%s192 + $0x10] sm:$0xff]
      %v201 = vld [vmem:[%s192 + $0x18] sm:$0xff]
      %v202 = vld [vmem:[%s192 + $0x20] sm:$0xff]
      %v203 = vld [vmem:[%s192 + $0x28] sm:$0xff]
      %v204 = vld [vmem:[%s192 + $0x30] sm:$0xff]
      %v205 = vld [vmem:[%s192 + $0x38] sm:$0xff]
      %v206 = vld [vmem:[%s192 + $0x40] sm:$0xff]
      %v207 = vld [vmem:[%s192 + $0x48] sm:$0xff]
      %v208 = vld [vmem:[%s192 + $0x50] sm:$0xff]
      %v209 = vld [vmem:[%s192 + $0x58] sm:$0xff]
      %v210 = vld [vmem:[%s192 + $0x60] sm:$0xff]
      %v211 = vld [vmem:[%s192 + $0x68] sm:$0xff]
      %v212 = vld [vmem:[%s192 + $0x70] sm:$0xff]
      %v213 = vld [vmem:[%s192 + $0x78] sm:$0xff]
      %v214 = vld [vmem:[%s192 + $0x80] sm:$0xff]
      %v215 = vld [vmem:[%s192 + $0x88] sm:$0xff]
      %v216 = vld [vmem:[%s192 + $0x90] sm:$0xff]
      %v217 = vld [vmem:[%s192 + $0x98] sm:$0xff]
      %v218 = vld [vmem:[%s192 + $0xa0] sm:$0xff]
      %v219 = vld [vmem:[%s192 + $0xa8] sm:$0xff]
      %v220 = vld [vmem:[%s192 + $0xb0] sm:$0xff]
      %v221 = vld [vmem:[%s192 + $0xb8] sm:$0xff]
      %v222 = vld [vmem:[%s192 + $0xc0] sm:$0xff]
      %v223 = vld [vmem:[%s192 + $0xc8] sm:$0xff]
      %v224 = vld [vmem:[%s192 + $0xd0] sm:$0xff]
      %v225 = vld [vmem:[%s192 + $0xd8] sm:$0xff]
      %v226 = vld [vmem:[%s192 + $0xe0] sm:$0xff]
      %v227 = vld [vmem:[%s192 + $0xe8] sm:$0xff]
      %v228 = vld [vmem:[%s192 + $0xf0] sm:$0xff]
      %v229 = vld [vmem:[%s192 + $0xf8] sm:$0xff]
      %v230 = vld [vmem:[%s192 + $0x100] sm:$0xff]
      %v231 = vld [vmem:[%s192 + $0x108] sm:$0xff]
      %v232 = vld [vmem:[%s192 + $0x110] sm:$0xff]
      %v233 = vld [vmem:[%s192 + $0x118] sm:$0xff]
      %v234 = vld [vmem:[%s1] sm:$0x1]
      %v236 = vlaneseq
      %v237 = vshrl.u32 %v236, 7
      %v238 = vsub.s32 0, %v237
      %v239 = vrot.slane %v234, %v238
      %v241 = vmul.f32 %v198, %v239
      %v242 = vmul.f32 %v199, %v239
      %v243 = vmul.f32 %v200, %v239
      %v244 = vmul.f32 %v201, %v239
      %v245 = vmul.f32 %v202, %v239
      %v246 = vmul.f32 %v203, %v239
      %v247 = vmul.f32 %v204, %v239
      %v248 = vmul.f32 %v205, %v239
      %v249 = vmul.f32 %v206, %v239
      %v250 = vmul.f32 %v207, %v239
      %v251 = vmul.f32 %v208, %v239
      %v252 = vmul.f32 %v209, %v239
      %v253 = vmul.f32 %v210, %v239
      %v254 = vmul.f32 %v211, %v239
      %v255 = vmul.f32 %v212, %v239
      %v256 = vmul.f32 %v213, %v239
      %v257 = vmul.f32 %v214, %v239
      %v258 = vmul.f32 %v215, %v239
      %v259 = vmul.f32 %v216, %v239
      %v260 = vmul.f32 %v217, %v239
      %v261 = vmul.f32 %v218, %v239
      %v262 = vmul.f32 %v219, %v239
      %v263 = vmul.f32 %v220, %v239
      %v264 = vmul.f32 %v221, %v239
      %v265 = vmul.f32 %v222, %v239
      %v266 = vmul.f32 %v223, %v239
      %v267 = vmul.f32 %v224, %v239
      %v268 = vmul.f32 %v225, %v239
      %v269 = vmul.f32 %v226, %v239
      %v270 = vmul.f32 %v227, %v239
      %v271 = vmul.f32 %v228, %v239
      %v272 = vmul.f32 %v229, %v239
      %v273 = vmul.f32 %v230, %v239
      %v274 = vmul.f32 %v231, %v239
      %v275 = vmul.f32 %v232, %v239
      %v276 = vmul.f32 %v233, %v239
      %v277 = vld [vmem:[%s2] sm:$0x1]
      %v279 = vlaneseq
      %v280 = vshrl.u32 %v279, 7
      %v281 = vsub.s32 0, %v280
      %v282 = vrot.slane %v277, %v281
      %v284 = vadd.f32 %v241, %v282
      %v285 = vadd.f32 %v242, %v282
      %v286 = vadd.f32 %v243, %v282
      %v287 = vadd.f32 %v244, %v282
      %v288 = vadd.f32 %v245, %v282
      %v289 = vadd.f32 %v246, %v282
      %v290 = vadd.f32 %v247, %v282
      %v291 = vadd.f32 %v248, %v282
      %v292 = vadd.f32 %v249, %v282
      %v293 = vadd.f32 %v250, %v282
      %v294 = vadd.f32 %v251, %v282
      %v295 = vadd.f32 %v252, %v282
      %v296 = vadd.f32 %v253, %v282
      %v297 = vadd.f32 %v254, %v282
      %v298 = vadd.f32 %v255, %v282
      %v299 = vadd.f32 %v256, %v282
      %v300 = vadd.f32 %v257, %v282
      %v301 = vadd.f32 %v258, %v282
      %v302 = vadd.f32 %v259, %v282
      %v303 = vadd.f32 %v260, %v282
      %v304 = vadd.f32 %v261, %v282
      %v305 = vadd.f32 %v262, %v282
      %v306 = vadd.f32 %v263, %v282
      %v307 = vadd.f32 %v264, %v282
      %v308 = vadd.f32 %v265, %v282
      %v309 = vadd.f32 %v266, %v282
      %v310 = vadd.f32 %v267, %v282
      %v311 = vadd.f32 %v268, %v282
      %v312 = vadd.f32 %v269, %v282
      %v313 = vadd.f32 %v270, %v282
      %v314 = vadd.f32 %v271, %v282
      %v315 = vadd.f32 %v272, %v282
      %v316 = vadd.f32 %v273, %v282
      %v317 = vadd.f32 %v274, %v282
      %v318 = vadd.f32 %v275, %v282
      %v319 = vadd.f32 %v276, %v282
      %v320 = vmax.f32 %v284, 0.0
      %v321 = vmax.f32 %v285, 0.0
      %v322 = vmax.f32 %v286, 0.0
      %v323 = vmax.f32 %v287, 0.0
      %v324 = vmax.f32 %v288, 0.0
      %v325 = vmax.f32 %v289, 0.0
      %v326 = vmax.f32 %v290, 0.0
      %v327 = vmax.f32 %v291, 0.0
      %v328 = vmax.f32 %v292, 0.0
      %v329 = vmax.f32 %v293, 0.0
      %v330 = vmax.f32 %v294, 0.0
      %v331 = vmax.f32 %v295, 0.0
      %v332 = vmax.f32 %v296, 0.0
      %v333 = vmax.f32 %v297, 0.0
      %v334 = vmax.f32 %v298, 0.0
      %v335 = vmax.f32 %v299, 0.0
      %v336 = vmax.f32 %v300, 0.0
      %v337 = vmax.f32 %v301, 0.0
      %v338 = vmax.f32 %v302, 0.0
      %v339 = vmax.f32 %v303, 0.0
      %v340 = vmax.f32 %v304, 0.0
      %v341 = vmax.f32 %v305, 0.0
      %v342 = vmax.f32 %v306, 0.0
      %v343 = vmax.f32 %v307, 0.0
      %v344 = vmax.f32 %v308, 0.0
      %v345 = vmax.f32 %v309, 0.0
      %v346 = vmax.f32 %v310, 0.0
      %v347 = vmax.f32 %v311, 0.0
      %v348 = vmax.f32 %v312, 0.0
      %v349 = vmax.f32 %v313, 0.0
      %v350 = vmax.f32 %v314, 0.0
      %v351 = vmax.f32 %v315, 0.0
      %v352 = vmax.f32 %v316, 0.0
      %v353 = vmax.f32 %v317, 0.0
      %v354 = vmax.f32 %v318, 0.0
      %v355 = vmax.f32 %v319, 0.0
      %v356 = vld [vmem:[%s3] sm:$0xff]
      %v357 = vld [vmem:[%s3 + $0x8] sm:$0xff]
      %v358 = vld [vmem:[%s3 + $0x10] sm:$0xff]
      %v359 = vld [vmem:[%s3 + $0x18] sm:$0xff]
      %v360 = vld [vmem:[%s3 + $0x20] sm:$0xff]
      %v361 = vld [vmem:[%s3 + $0x28] sm:$0xff]
      %v362 = vld [vmem:[%s3 + $0x30] sm:$0xff]
      %v363 = vld [vmem:[%s3 + $0x38] sm:$0xff]
      %v364 = vld [vmem:[%s3 + $0x40] sm:$0xff]
      %v365 = vld [vmem:[%s3 + $0x48] sm:$0xff]
      %v366 = vld [vmem:[%s3 + $0x50] sm:$0xff]
      %v367 = vld [vmem:[%s3 + $0x58] sm:$0xff]
      %v368 = vld [vmem:[%s3 + $0x60] sm:$0xff]
      %v369 = vld [vmem:[%s3 + $0x68] sm:$0xff]
      %v370 = vld [vmem:[%s3 + $0x70] sm:$0xff]
      %v371 = vld [vmem:[%s3 + $0x78] sm:$0xff]
      %v372 = vld [vmem:[%s3 + $0x80] sm:$0xff]
      %v373 = vld [vmem:[%s3 + $0x88] sm:$0xff]
      %v374 = vld [vmem:[%s3 + $0x90] sm:$0xff]
      %v375 = vld [vmem:[%s3 + $0x98] sm:$0xff]
      %v376 = vld [vmem:[%s3 + $0xa0] sm:$0xff]
      %v377 = vld [vmem:[%s3 + $0xa8] sm:$0xff]
      %v378 = vld [vmem:[%s3 + $0xb0] sm:$0xff]
      %v379 = vld [vmem:[%s3 + $0xb8] sm:$0xff]
      %v380 = vld [vmem:[%s3 + $0xc0] sm:$0xff]
      %v381 = vld [vmem:[%s3 + $0xc8] sm:$0xff]
      %v382 = vld [vmem:[%s3 + $0xd0] sm:$0xff]
      %v383 = vld [vmem:[%s3 + $0xd8] sm:$0xff]
      %v384 = vld [vmem:[%s3 + $0xe0] sm:$0xff]
      %v385 = vld [vmem:[%s3 + $0xe8] sm:$0xff]
      %v386 = vld [vmem:[%s3 + $0xf0] sm:$0xff]
      %v387 = vld [vmem:[%s3 + $0xf8] sm:$0xff]
      %v388 = vld [vmem:[%s3 + $0x100] sm:$0xff]
      %v389 = vld [vmem:[%s3 + $0x108] sm:$0xff]
      %v390 = vld [vmem:[%s3 + $0x110] sm:$0xff]
      %v391 = vld [vmem:[%s3 + $0x118] sm:$0xff]
      %393 = vset.pattern.permute.xlu0 0
      %394 = vperm.xlu0 %393, %v356
      %v395 = vpop.permute.xlu0 %394
      %398 = vset.pattern.permute.xlu0 0
      %399 = vperm.xlu0 %398, %v357
      %v400 = vpop.permute.xlu0 %399
      %403 = vset.pattern.permute.xlu0 0
      %404 = vperm.xlu0 %403, %v358
      %v405 = vpop.permute.xlu0 %404
      %408 = vset.pattern.permute.xlu0 0
      %409 = vperm.xlu0 %408, %v359
      %v410 = vpop.permute.xlu0 %409
      %413 = vset.pattern.permute.xlu0 0
      %414 = vperm.xlu0 %413, %v360
      %v415 = vpop.permute.xlu0 %414
      %418 = vset.pattern.permute.xlu0 0
      %419 = vperm.xlu0 %418, %v361
      %v420 = vpop.permute.xlu0 %419
      %423 = vset.pattern.permute.xlu0 0
      %424 = vperm.xlu0 %423, %v362
      %v425 = vpop.permute.xlu0 %424
      %428 = vset.pattern.permute.xlu0 0
      %429 = vperm.xlu0 %428, %v363
      %v430 = vpop.permute.xlu0 %429
      %433 = vset.pattern.permute.xlu0 0
      %434 = vperm.xlu0 %433, %v364
      %v435 = vpop.permute.xlu0 %434
      %438 = vset.pattern.permute.xlu0 0
      %439 = vperm.xlu0 %438, %v365
      %v440 = vpop.permute.xlu0 %439
      %443 = vset.pattern.permute.xlu0 0
      %444 = vperm.xlu0 %443, %v366
      %v445 = vpop.permute.xlu0 %444
      %448 = vset.pattern.permute.xlu0 0
      %449 = vperm.xlu0 %448, %v367
      %v450 = vpop.permute.xlu0 %449
      %453 = vset.pattern.permute.xlu0 0
      %454 = vperm.xlu0 %453, %v368
      %v455 = vpop.permute.xlu0 %454
      %458 = vset.pattern.permute.xlu0 0
      %459 = vperm.xlu0 %458, %v369
      %v460 = vpop.permute.xlu0 %459
      %463 = vset.pattern.permute.xlu0 0
      %464 = vperm.xlu0 %463, %v370
      %v465 = vpop.permute.xlu0 %464
      %468 = vset.pattern.permute.xlu0 0
      %469 = vperm.xlu0 %468, %v371
      %v470 = vpop.permute.xlu0 %469
      %473 = vset.pattern.permute.xlu0 0
      %474 = vperm.xlu0 %473, %v372
      %v475 = vpop.permute.xlu0 %474
      %478 = vset.pattern.permute.xlu0 0
      %479 = vperm.xlu0 %478, %v373
      %v480 = vpop.permute.xlu0 %479
      %483 = vset.pattern.permute.xlu0 0
      %484 = vperm.xlu0 %483, %v374
      %v485 = vpop.permute.xlu0 %484
      %488 = vset.pattern.permute.xlu0 0
      %489 = vperm.xlu0 %488, %v375
      %v490 = vpop.permute.xlu0 %489
      %493 = vset.pattern.permute.xlu0 0
      %494 = vperm.xlu0 %493, %v376
      %v495 = vpop.permute.xlu0 %494
      %498 = vset.pattern.permute.xlu0 0
      %499 = vperm.xlu0 %498, %v377
      %v500 = vpop.permute.xlu0 %499
      %503 = vset.pattern.permute.xlu0 0
      %504 = vperm.xlu0 %503, %v378
      %v505 = vpop.permute.xlu0 %504
      %508 = vset.pattern.permute.xlu0 0
      %509 = vperm.xlu0 %508, %v379
      %v510 = vpop.permute.xlu0 %509
      %513 = vset.pattern.permute.xlu0 0
      %514 = vperm.xlu0 %513, %v380
      %v515 = vpop.permute.xlu0 %514
      %518 = vset.pattern.permute.xlu0 0
      %519 = vperm.xlu0 %518, %v381
      %v520 = vpop.permute.xlu0 %519
      %523 = vset.pattern.permute.xlu0 0
      %524 = vperm.xlu0 %523, %v382
      %v525 = vpop.permute.xlu0 %524
      %528 = vset.pattern.permute.xlu0 0
      %529 = vperm.xlu0 %528, %v383
      %v530 = vpop.permute.xlu0 %529
      %533 = vset.pattern.permute.xlu0 0
      %534 = vperm.xlu0 %533, %v384
      %v535 = vpop.permute.xlu0 %534
      %538 = vset.pattern.permute.xlu0 0
      %539 = vperm.xlu0 %538, %v385
      %v540 = vpop.permute.xlu0 %539
      %543 = vset.pattern.permute.xlu0 0
      %544 = vperm.xlu0 %543, %v386
      %v545 = vpop.permute.xlu0 %544
      %548 = vset.pattern.permute.xlu0 0
      %549 = vperm.xlu0 %548, %v387
      %v550 = vpop.permute.xlu0 %549
      %553 = vset.pattern.permute.xlu0 0
      %554 = vperm.xlu0 %553, %v388
      %v555 = vpop.permute.xlu0 %554
      %558 = vset.pattern.permute.xlu0 0
      %559 = vperm.xlu0 %558, %v389
      %v560 = vpop.permute.xlu0 %559
      %563 = vset.pattern.permute.xlu0 0
      %564 = vperm.xlu0 %563, %v390
      %v565 = vpop.permute.xlu0 %564
      %568 = vset.pattern.permute.xlu0 0
      %569 = vperm.xlu0 %568, %v391
      %v570 = vpop.permute.xlu0 %569
      %v572 = vmul.f32 %v320, %v395
      %v573 = vmul.f32 %v321, %v400
      %v574 = vmul.f32 %v322, %v405
      %v575 = vmul.f32 %v323, %v410
      %v576 = vmul.f32 %v324, %v415
      %v577 = vmul.f32 %v325, %v420
      %v578 = vmul.f32 %v326, %v425
      %v579 = vmul.f32 %v327, %v430
      %v580 = vmul.f32 %v328, %v435
      %v581 = vmul.f32 %v329, %v440
      %v582 = vmul.f32 %v330, %v445
      %v583 = vmul.f32 %v331, %v450
      %v584 = vmul.f32 %v332, %v455
      %v585 = vmul.f32 %v333, %v460
      %v586 = vmul.f32 %v334, %v465
      %v587 = vmul.f32 %v335, %v470
      %v588 = vmul.f32 %v336, %v475
      %v589 = vmul.f32 %v337, %v480
      %v590 = vmul.f32 %v338, %v485
      %v591 = vmul.f32 %v339, %v490
      %v592 = vmul.f32 %v340, %v495
      %v593 = vmul.f32 %v341, %v500
      %v594 = vmul.f32 %v342, %v505
      %v595 = vmul.f32 %v343, %v510
      %v596 = vmul.f32 %v344, %v515
      %v597 = vmul.f32 %v345, %v520
      %v598 = vmul.f32 %v346, %v525
      %v599 = vmul.f32 %v347, %v530
      %v600 = vmul.f32 %v348, %v535
      %v601 = vmul.f32 %v349, %v540
      %v602 = vmul.f32 %v350, %v545
      %v603 = vmul.f32 %v351, %v550
      %v604 = vmul.f32 %v352, %v555
      %v605 = vmul.f32 %v353, %v560
      %v606 = vmul.f32 %v354, %v565
      %v607 = vmul.f32 %v355, %v570
      %608 = vst [vmem:[%s197] sm:$0xff] 0.0
      %609 = vst [vmem:[%s197 + $0x8] sm:$0xff] 0.0
      %610 = vst [vmem:[%s197 + $0x10] sm:$0x7] 0.0
      %611 = vst [vmem:[%s197 + $0x13] sm:$0xff] %v572
      %612 = vst [vmem:[%s197 + $0x1b] sm:$0xff] %v573
      %613 = vst [vmem:[%s197 + $0x23] sm:$0xff] %v574
      %614 = vst [vmem:[%s197 + $0x2b] sm:$0xff] %v575
      %615 = vst [vmem:[%s197 + $0x33] sm:$0xff] %v576
      %616 = vst [vmem:[%s197 + $0x3b] sm:$0xff] %v577
      %617 = vst [vmem:[%s197 + $0x43] sm:$0xff] %v578
      %618 = vst [vmem:[%s197 + $0x4b] sm:$0xff] %v579
      %619 = vst [vmem:[%s197 + $0x53] sm:$0xff] %v580
      %620 = vst [vmem:[%s197 + $0x5b] sm:$0xff] %v581
      %621 = vst [vmem:[%s197 + $0x63] sm:$0xff] %v582
      %622 = vst [vmem:[%s197 + $0x6b] sm:$0xff] %v583
      %623 = vst [vmem:[%s197 + $0x73] sm:$0xff] %v584
      %624 = vst [vmem:[%s197 + $0x7b] sm:$0xff] %v585
      %625 = vst [vmem:[%s197 + $0x83] sm:$0xff] %v586
      %626 = vst [vmem:[%s197 + $0x8b] sm:$0xff] %v587
      %627 = vst [vmem:[%s197 + $0x93] sm:$0xff] %v588
      %628 = vst [vmem:[%s197 + $0x9b] sm:$0xff] %v589
      %629 = vst [vmem:[%s197 + $0xa3] sm:$0xff] %v590
      %630 = vst [vmem:[%s197 + $0xab] sm:$0xff] %v591
      %631 = vst [vmem:[%s197 + $0xb3] sm:$0xff] %v592
      %632 = vst [vmem:[%s197 + $0xbb] sm:$0xff] %v593
      %633 = vst [vmem:[%s197 + $0xc3] sm:$0xff] %v594
      %634 = vst [vmem:[%s197 + $0xcb] sm:$0xff] %v595
      %635 = vst [vmem:[%s197 + $0xd3] sm:$0xff] %v596
      %636 = vst [vmem:[%s197 + $0xdb] sm:$0xff] %v597
      %637 = vst [vmem:[%s197 + $0xe3] sm:$0xff] %v598
      %638 = vst [vmem:[%s197 + $0xeb] sm:$0xff] %v599
      %639 = vst [vmem:[%s197 + $0xf3] sm:$0xff] %v600
      %640 = vst [vmem:[%s197 + $0xfb] sm:$0xff] %v601
      %641 = vst [vmem:[%s197 + $0x103] sm:$0xff] %v602
      %642 = vst [vmem:[%s197 + $0x10b] sm:$0xff] %v603
      %643 = vst [vmem:[%s197 + $0x113] sm:$0xff] %v604
      %644 = vst [vmem:[%s197 + $0x11b] sm:$0xff] %v605
      %645 = vst [vmem:[%s197 + $0x123] sm:$0xff] %v606
      %646 = vst [vmem:[%s197 + $0x12b] sm:$0xff] %v607
      %647 = vst [vmem:[%s197 + $0x133] sm:$0xff] 0.0
      %648 = vst [vmem:[%s197 + $0x13b] sm:$0xff] 0.0
      %649 = vst [vmem:[%s197 + $0x143] sm:$0x1f] 0.0
      %p650 = scmp.lt.s32.totalorder %s15, 1
      %s651 = scalar_select %p650, %s15, 1
      %s652 = smul.addr %s651, 41
      %s653 = smul.addr %s652, 8
      %s654 = scalar_lea.vmem %s4, %s653
      // Predicated region
      $region37: #{encoder_forward.17} parent=35 // pred_check
        %p655 = pneg %p122
      $region38: #{encoder_forward.17} parent=35 // pred_check_branch
        %657 = sbr.rel (%p655) target = $region40
      $region39: #{encoder_forward.17} parent=35 // pred_region
        _
      $region40: #{encoder_forward.17} parent=35 // pred_fallthru
        _
    $region36: #{encoder_forward.17} parent=5 // pred_fallthru
      _
    %p658 = scmp.le.s32.totalorder 2, %s10
    // Predicated region
    $region41: #{encoder_forward.17} parent=5 // pred_check
      %p659 = pneg %p658
    $region42: #{encoder_forward.17} parent=5 // pred_check_branch
      %661 = sbr.rel (%p659) target = $region44
    $region43: #{encoder_forward.17} parent=5 // pred_region
      %s662 = ssub.s32 %s10, 2
      // Predicated region
      $region45: #{encoder_forward.17} parent=43 // pred_check
        %p663 = pneg %p128
      $region46: #{encoder_forward.17} parent=43 // pred_check_branch
        %665 = sbr.rel (%p663) target = $region48
      $region47: #{encoder_forward.17} parent=43 // pred_region
        %p666 = scmp.lt.s32.totalorder %s16, 1
        %s667 = scalar_select %p666, %s16, 1
        %s668 = smul.addr %s667, 41
        %s669 = smul.addr %s668, 8
        %s670 = scalar_lea.vmem %s4, %s669
      $region48: #{encoder_forward.17} parent=43 // pred_fallthru
        _
    $region44: #{encoder_forward.17} parent=5 // pred_fallthru
      _
  $region6: #{encoder_forward.17} parent=0 // loop_footer
    %s14 = sadd.s32 1, %s10
  $region7: #{encoder_forward.17} parent=0 // loop_footer_branch
    %9 = sbr.rel target = $region3
  $region8: #{encoder_forward.17} parent=0 // loop_exit
    _

// kernel: encoder_forward.16
$region0: #{encoder_forward.16}
  #allocation0 [shape = 'u32[]', space=smem, size = 0x4, offset = 0x4, fixed_abs, tag = 'smem constant byte address 0x4 - core index']
  #allocation1 [shape = 'u32[144,128]{1,0:T(1,128)}', space=vmem, size = 0x12000, scoped, tag = 'internal scratch']
  %s0 = inlined_call_operand.vmem [shape: f32[2,328,8], index: 0, kind: input, shape index: {}]
  %s1 = inlined_call_operand.vmem [shape: bf16[9,8,128], index: 1, kind: input, shape index: {}]
  %s2 = inlined_call_operand.vmem [shape: f32[288,1], index: 2, kind: input, shape index: {}]
  %s3 = inlined_call_operand.vmem [shape: f32[2,288,128], index: 3, kind: output, shape index: {0}]
  %s4 = inlined_call_operand.vmem [shape: f32[1,128], index: 4, kind: output, shape index: {1}]
  %s5 = inlined_call_operand.vmem [shape: f32[1,128], index: 5, kind: output, shape index: {2}]
  %6 = xla_tuple %s3, %s4, %s5
  %s7 = sld [smem:[#allocation0]]
  $region65: #{encoder_forward.16} parent=0
    _
  %s9 = ssub.s32 1, %s7
  %s10 = scalar_select 0, %s9, %s7
  loop: start=0, step=1, limit=4
  $region2: #{encoder_forward.16} parent=0 // loop_pre_header
    _
  $region3: #{encoder_forward.16} parent=0 // loop_header
    %s12 = sphi 0, %s16
    %p13 = scmp.ge.s32.totalorder %s12, 4
    %s22 = sphi 0, %s24
    %s25 = sphi 0, %s22
    %s26 = sphi 0, %s25
    %s42 = sphi 0, %s26
    %s46 = sphi 0, %s46
    %s48 = sphi 0, %s46
    %s49 = sphi 0, %s48
    %s63 = sphi 0, %s49
    %s67 = sphi 0, %s67
    %s69 = sphi 0, %s67
    %s70 = sphi 0, %s69
    %s84 = sphi 0, %s70
    %s90 = sphi 0, %s92
    %s93 = sphi 0, %s90
    %s94 = sphi 0, %s93
    %s110 = sphi 0, %s94
    %s114 = sphi 0, %s114
    %s116 = sphi 0, %s114
    %s117 = sphi 0, %s116
    %s131 = sphi 0, %s117
    %s135 = sphi 0, %s135
    %s137 = sphi 0, %s135
    %s138 = sphi 0, %s137
    %s152 = sphi 0, %s138
  $region4: #{encoder_forward.16} parent=0 // loop_header_branch
    %15 = sbr.rel (%p13) target = $region8
  $region5: #{encoder_forward.16} parent=0 // loop_body
    %s17 = ssub.s32 %s12, 1
    %s18 = ssub.s32 %s12, 2
    %s19 = sadd.s32 %s12, 1
    %s20 = ssub.s32 %s12, %s19
    %p21 = scmp.eq.s32.totalorder %s20, 0
    %s23 = sadd.s32 %s22, 1
    %s24 = scalar_select %p21, %s22, %s23
    %p27 = pneg %p21
    %p28 = scmp.eq.s32.totalorder %s12, 1
    %p29 = por %p27, %p28
    %p30 = scmp.ne.s32.totalorder %s22, %s25
    %p31 = scmp.eq.s32.totalorder %s12, 0
    %p32 = por %p30, %p31
    %p33 = scmp.ne.s32.totalorder %s22, %s25
    %p34 = scmp.eq.s32.totalorder %s17, 1
    %p35 = por %p33, %p34
    %p36 = scmp.ne.s32.totalorder %s25, %s26
    %p37 = scmp.eq.s32.totalorder %s17, 0
    %p38 = por %p36, %p37
    %p39 = scmp.ne.s32.totalorder %s25, %s26
    %p40 = scmp.eq.s32.totalorder %s18, 1
    %p41 = por %p39, %p40
    %p43 = scmp.ne.s32.totalorder %s26, %s42
    %p44 = scmp.eq.s32.totalorder %s18, 0
    %p45 = por %p43, %p44
    %s47 = sadd.s32 %s46, 1
    %p50 = scmp.eq.s32.totalorder %s12, 1
    %p51 = scmp.ne.s32.totalorder %s46, %s48
    %p52 = scmp.eq.s32.totalorder %s12, 0
    %p53 = por %p51, %p52
    %p54 = scmp.ne.s32.totalorder %s46, %s48
    %p55 = scmp.eq.s32.totalorder %s17, 1
    %p56 = por %p54, %p55
    %p57 = scmp.ne.s32.totalorder %s48, %s49
    %p58 = scmp.eq.s32.totalorder %s17, 0
    %p59 = por %p57, %p58
    %p60 = scmp.ne.s32.totalorder %s48, %s49
    %p61 = scmp.eq.s32.totalorder %s18, 1
    %p62 = por %p60, %p61
    %p64 = scmp.ne.s32.totalorder %s49, %s63
    %p65 = scmp.eq.s32.totalorder %s18, 0
    %p66 = por %p64, %p65
    %s68 = sadd.s32 %s67, 1
    %p71 = scmp.eq.s32.totalorder %s12, 1
    %p72 = scmp.ne.s32.totalorder %s67, %s69
    %p73 = scmp.eq.s32.totalorder %s12, 0
    %p74 = por %p72, %p73
    %p75 = scmp.ne.s32.totalorder %s67, %s69
    %p76 = scmp.eq.s32.totalorder %s17, 1
    %p77 = por %p75, %p76
    %p78 = scmp.ne.s32.totalorder %s69, %s70
    %p79 = scmp.eq.s32.totalorder %s17, 0
    %p80 = por %p78, %p79
    %p81 = scmp.ne.s32.totalorder %s69, %s70
    %p82 = scmp.eq.s32.totalorder %s18, 1
    %p83 = por %p81, %p82
    %p85 = scmp.ne.s32.totalorder %s70, %s84
    %p86 = scmp.eq.s32.totalorder %s18, 0
    %p87 = por %p85, %p86
    %s88 = ssub.s32 %s12, %s19
    %p89 = scmp.eq.s32.totalorder %s88, 0
    %s91 = sadd.s32 %s90, 1
    %s92 = scalar_select %p89, %s90, %s91
    %p95 = pneg %p89
    %p96 = scmp.eq.s32.totalorder %s12, 1
    %p97 = por %p95, %p96
    %p98 = scmp.ne.s32.totalorder %s90, %s93
    %p99 = scmp.eq.s32.totalorder %s12, 0
    %p100 = por %p98, %p99
    %p101 = scmp.ne.s32.totalorder %s90, %s93
    %p102 = scmp.eq.s32.totalorder %s17, 1
    %p103 = por %p101, %p102
    %p104 = scmp.ne.s32.totalorder %s93, %s94
    %p105 = scmp.eq.s32.totalorder %s17, 0
    %p106 = por %p104, %p105
    %p107 = scmp.ne.s32.totalorder %s93, %s94
    %p108 = scmp.eq.s32.totalorder %s18, 1
    %p109 = por %p107, %p108
    %p111 = scmp.ne.s32.totalorder %s94, %s110
    %p112 = scmp.eq.s32.totalorder %s18, 0
    %p113 = por %p111, %p112
    %s115 = sadd.s32 %s114, 1
    %p118 = scmp.eq.s32.totalorder %s12, 1
    %p119 = scmp.ne.s32.totalorder %s114, %s116
    %p120 = scmp.eq.s32.totalorder %s12, 0
    %p121 = por %p119, %p120
    %p122 = scmp.ne.s32.totalorder %s114, %s116
    %p123 = scmp.eq.s32.totalorder %s17, 1
    %p124 = por %p122, %p123
    %p125 = scmp.ne.s32.totalorder %s116, %s117
    %p126 = scmp.eq.s32.totalorder %s17, 0
    %p127 = por %p125, %p126
    %p128 = scmp.ne.s32.totalorder %s116, %s117
    %p129 = scmp.eq.s32.totalorder %s18, 1
    %p130 = por %p128, %p129
    %p132 = scmp.ne.s32.totalorder %s117, %s131
    %p133 = scmp.eq.s32.totalorder %s18, 0
    %p134 = por %p132, %p133
    %s136 = sadd.s32 %s135, 1
    %p139 = scmp.eq.s32.totalorder %s12, 1
    %p140 = scmp.ne.s32.totalorder %s135, %s137
    %p141 = scmp.eq.s32.totalorder %s12, 0
    %p142 = por %p140, %p141
    %p143 = scmp.ne.s32.totalorder %s135, %s137
    %p144 = scmp.eq.s32.totalorder %s17, 1
    %p145 = por %p143, %p144
    %p146 = scmp.ne.s32.totalorder %s137, %s138
    %p147 = scmp.eq.s32.totalorder %s17, 0
    %p148 = por %p146, %p147
    %p149 = scmp.ne.s32.totalorder %s137, %s138
    %p150 = scmp.eq.s32.totalorder %s18, 1
    %p151 = por %p149, %p150
    %p153 = scmp.ne.s32.totalorder %s138, %s152
    %p154 = scmp.eq.s32.totalorder %s18, 0
    %p155 = por %p153, %p154
    %p156 = scmp.le.s32.totalorder 1, %s12
    %p157 = scmp.lt.s32.totalorder %s12, 3
    %p158 = pnand %p156, %p157
    %p159 = pneg %p158
    // Predicated region
    $region9: #{encoder_forward.16} parent=5 // pred_check
      _
    $region10: #{encoder_forward.16} parent=5 // pred_check_branch
      %161 = sbr.rel (%p158) target = $region12
    $region11: #{encoder_forward.16} parent=5 // pred_region
      %s162 = ssub.s32 %s12, 1
      // Predicated region
      $region13: #{encoder_forward.16} parent=11 // pred_check
        %p163 = pneg %p59
      $region14: #{encoder_forward.16} parent=11 // pred_check_branch
        %165 = sbr.rel (%p163) target = $region16
      $region15: #{encoder_forward.16} parent=11 // pred_region
        _
      $region16: #{encoder_forward.16} parent=11 // pred_fallthru
        _
      // Predicated region
      $region17: #{encoder_forward.16} parent=11 // pred_check
        %p166 = pneg %p80
      $region18: #{encoder_forward.16} parent=11 // pred_check_branch
        %168 = sbr.rel (%p166) target = $region20
      $region19: #{encoder_forward.16} parent=11 // pred_region
        _
      $region20: #{encoder_forward.16} parent=11 // pred_fallthru
        _
    $region12: #{encoder_forward.16} parent=5 // pred_fallthru
      _
    %p169 = scmp.lt.s32.totalorder %s12, 2
    // Predicated region
    $region21: #{encoder_forward.16} parent=5 // pred_check
      %p170 = pneg %p169
    $region22: #{encoder_forward.16} parent=5 // pred_check_branch
      %172 = sbr.rel (%p170) target = $region24
    $region23: #{encoder_forward.16} parent=5 // pred_region
      // Predicated region
      $region25: #{encoder_forward.16} parent=23 // pred_check
        %p173 = pneg %p32
      $region26: #{encoder_forward.16} parent=23 // pred_check_branch
        %175 = sbr.rel (%p173) target = $region28
      $region27: #{encoder_forward.16} parent=23 // pred_region
        %p176 = scmp.lt.s32.totalorder %s12, 1
        %s177 = scalar_select %p176, %s12, 1
        %s178 = smul.addr %s177, 41
        %s179 = smul.addr %s178, 8
        %s180 = scalar_lea.vmem %s0, %s179
      $region28: #{encoder_forward.16} parent=23 // pred_fallthru
        _
    $region24: #{encoder_forward.16} parent=5 // pred_fallthru
      _
    %p181 = scmp.le.s32.totalorder 1, %s12
    %p182 = scmp.lt.s32.totalorder %s12, 3
    %p183 = pnand %p181, %p182
    %p184 = pneg %p183
    // Predicated region
    $region29: #{encoder_forward.16} parent=5 // pred_check
      _
    $region30: #{encoder_forward.16} parent=5 // pred_check_branch
      %186 = sbr.rel (%p183) target = $region32
    $region31: #{encoder_forward.16} parent=5 // pred_region
      %s187 = ssub.s32 %s12, 1
      %p188 = scmp.lt.s32.totalorder %s17, 1
      %s189 = scalar_select %p188, %s17, 1
      %s190 = smul.addr %s189, 41
      %s191 = smul.addr %s190, 8
      %s192 = scalar_lea.vmem %s0, %s191
      %p193 = pneg %p38
      %p194 = pneg %p35
      %p195 = pneg %p59
      %p196 = pneg %p56
      %p197 = pneg %p80
      %p198 = pneg %p77
      %p199 = pneg %p106
      %p200 = pneg %p103
      %p201 = scmp.lt.s32.totalorder %s17, 1
      %s202 = scalar_select %p201, %s17, 1
      %s203 = smul.addr %s202, 36
      %s204 = smul.addr %s203, 8
      %s205 = scalar_lea.vmem %s3, %s204
      %p206 = pneg %p127
      %p207 = pneg %p124
      %p208 = pneg %p148
      %p209 = pneg %p145
      %p210 = scmp.lt.s32.totalorder %s17, 1
      %s211 = scalar_select %p210, %s17, 1
      %s212 = smul.addr %s211, 41
      %s213 = smul.addr %s212, 8
      %s214 = scalar_lea.vmem %s0, %s213
      %p215 = scmp.lt.s32.totalorder %s17, 1
      %s216 = scalar_select %p215, %s17, 1
      %s217 = smul.addr %s216, 36
      %s218 = smul.addr %s217, 8
      %s219 = scalar_lea.vmem %s3, %s218
      %v221 = vld [vmem:[%s214] sm:$0xff]
      %v222 = vld [vmem:[%s214 + $0x8] sm:$0xff]
      %v223 = vld [vmem:[%s214 + $0x10] sm:$0xff]
      %v224 = vld [vmem:[%s214 + $0x18] sm:$0xff]
      %v225 = vld [vmem:[%s214 + $0x20] sm:$0xff]
      %v226 = vld [vmem:[%s214 + $0x28] sm:$0xff]
      %v227 = vld [vmem:[%s214 + $0x30] sm:$0xff]
      %v228 = vld [vmem:[%s214 + $0x38] sm:$0xff]
      %v229 = vld [vmem:[%s214 + $0x40] sm:$0xff]
      %v230 = vld [vmem:[%s214 + $0x48] sm:$0xff]
      %v231 = vld [vmem:[%s214 + $0x50] sm:$0xff]
      %v232 = vld [vmem:[%s214 + $0x58] sm:$0xff]
      %v233 = vld [vmem:[%s214 + $0x60] sm:$0xff]
      %v234 = vld [vmem:[%s214 + $0x68] sm:$0xff]
      %v235 = vld [vmem:[%s214 + $0x70] sm:$0xff]
      %v236 = vld [vmem:[%s214 + $0x78] sm:$0xff]
      %v237 = vld [vmem:[%s214 + $0x80] sm:$0xff]
      %v238 = vld [vmem:[%s214 + $0x88] sm:$0xff]
      %v239 = vld [vmem:[%s214 + $0x90] sm:$0xff]
      %v240 = vld [vmem:[%s214 + $0x98] sm:$0xff]
      %v241 = vld [vmem:[%s214 + $0xa0] sm:$0xff]
      %v242 = vld [vmem:[%s214 + $0xa8] sm:$0xff]
      %v243 = vld [vmem:[%s214 + $0xb0] sm:$0xff]
      %v244 = vld [vmem:[%s214 + $0xb8] sm:$0xff]
      %v245 = vld [vmem:[%s214 + $0xc0] sm:$0xff]
      %v246 = vld [vmem:[%s214 + $0xc8] sm:$0xff]
      %v247 = vld [vmem:[%s214 + $0xd0] sm:$0xff]
      %v248 = vld [vmem:[%s214 + $0xd8] sm:$0xff]
      %v249 = vld [vmem:[%s214 + $0xe0] sm:$0xff]
      %v250 = vld [vmem:[%s214 + $0xe8] sm:$0xff]
      %v251 = vld [vmem:[%s214 + $0xf0] sm:$0xff]
      %v252 = vld [vmem:[%s214 + $0xf8] sm:$0xff]
      %v253 = vld [vmem:[%s214 + $0x100] sm:$0xff]
      %v254 = vld [vmem:[%s214 + $0x108] sm:$0xff]
      %v255 = vld [vmem:[%s214 + $0x110] sm:$0xff]
      %v256 = vld [vmem:[%s214 + $0x118] sm:$0xff]
      %v257 = vpack.c.bf16 %v222, %v221
      %v258 = vpack.c.bf16 %v224, %v223
      %v259 = vpack.c.bf16 %v226, %v225
      %v260 = vpack.c.bf16 %v228, %v227
      %v261 = vpack.c.bf16 %v230, %v229
      %v262 = vpack.c.bf16 %v232, %v231
      %v263 = vpack.c.bf16 %v234, %v233
      %v264 = vpack.c.bf16 %v236, %v235
      %v265 = vpack.c.bf16 %v238, %v237
      %v266 = vpack.c.bf16 %v240, %v239
      %v267 = vpack.c.bf16 %v242, %v241
      %v268 = vpack.c.bf16 %v244, %v243
      %v269 = vpack.c.bf16 %v246, %v245
      %v270 = vpack.c.bf16 %v248, %v247
      %v271 = vpack.c.bf16 %v250, %v249
      %v272 = vpack.c.bf16 %v252, %v251
      %v273 = vpack.c.bf16 %v254, %v253
      %v274 = vpack.c.bf16 %v256, %v255
      %v275 = vld [vmem:[%s1] sm:$0xf]
      %v276 = vld [vmem:[%s214 + $0x1] sm:$0xff]
      %v277 = vld [vmem:[%s214 + $0x9] sm:$0xff]
      %v278 = vld [vmem:[%s214 + $0x11] sm:$0xff]
      %v279 = vld [vmem:[%s214 + $0x19] sm:$0xff]
      %v280 = vld [vmem:[%s214 + $0x21] sm:$0xff]
      %v281 = vld [vmem:[%s214 + $0x29] sm:$0xff]
      %v282 = vld [vmem:[%s214 + $0x31] sm:$0xff]
      %v283 = vld [vmem:[%s214 + $0x39] sm:$0xff]
      %v284 = vld [vmem:[%s214 + $0x41] sm:$0xff]
      %v285 = vld [vmem:[%s214 + $0x49] sm:$0xff]
      %v286 = vld [vmem:[%s214 + $0x51] sm:$0xff]
      %v287 = vld [vmem:[%s214 + $0x59] sm:$0xff]
      %v288 = vld [vmem:[%s214 + $0x61] sm:$0xff]
      %v289 = vld [vmem:[%s214 + $0x69] sm:$0xff]
      %v290 = vld [vmem:[%s214 + $0x71] sm:$0xff]
      %v291 = vld [vmem:[%s214 + $0x79] sm:$0xff]
      %v292 = vld [vmem:[%s214 + $0x81] sm:$0xff]
      %v293 = vld [vmem:[%s214 + $0x89] sm:$0xff]
      %v294 = vld [vmem:[%s214 + $0x91] sm:$0xff]
      %v295 = vld [vmem:[%s214 + $0x99] sm:$0xff]
      %v296 = vld [vmem:[%s214 + $0xa1] sm:$0xff]
      %v297 = vld [vmem:[%s214 + $0xa9] sm:$0xff]
      %v298 = vld [vmem:[%s214 + $0xb1] sm:$0xff]
      %v299 = vld [vmem:[%s214 + $0xb9] sm:$0xff]
      %v300 = vld [vmem:[%s214 + $0xc1] sm:$0xff]
      %v301 = vld [vmem:[%s214 + $0xc9] sm:$0xff]
      %v302 = vld [vmem:[%s214 + $0xd1] sm:$0xff]
      %v303 = vld [vmem:[%s214 + $0xd9] sm:$0xff]
      %v304 = vld [vmem:[%s214 + $0xe1] sm:$0xff]
      %v305 = vld [vmem:[%s214 + $0xe9] sm:$0xff]
      %v306 = vld [vmem:[%s214 + $0xf1] sm:$0xff]
      %v307 = vld [vmem:[%s214 + $0xf9] sm:$0xff]
      %v308 = vld [vmem:[%s214 + $0x101] sm:$0xff]
      %v309 = vld [vmem:[%s214 + $0x109] sm:$0xff]
      %v310 = vld [vmem:[%s214 + $0x111] sm:$0xff]
      %v311 = vld [vmem:[%s214 + $0x119] sm:$0xff]
      %v312 = vpack.c.bf16 %v277, %v276
      %v313 = vpack.c.bf16 %v279, %v278
      %v314 = vpack.c.bf16 %v281, %v280
      %v315 = vpack.c.bf16 %v283, %v282
      %v316 = vpack.c.bf16 %v285, %v284
      %v317 = vpack.c.bf16 %v287, %v286
      %v318 = vpack.c.bf16 %v289, %v288
      %v319 = vpack.c.bf16 %v291, %v290
      %v320 = vpack.c.bf16 %v293, %v292
      %v321 = vpack.c.bf16 %v295, %v294
      %v322 = vpack.c.bf16 %v297, %v296
      %v323 = vpack.c.bf16 %v299, %v298
      %v324 = vpack.c.bf16 %v301, %v300
      %v325 = vpack.c.bf16 %v303, %v302
      %v326 = vpack.c.bf16 %v305, %v304
      %v327 = vpack.c.bf16 %v307, %v306
      %v328 = vpack.c.bf16 %v309, %v308
      %v329 = vpack.c.bf16 %v311, %v310
      %s330 = scalar_lea.vmem %s1, 4
      %v331 = vld [vmem:[%s330] sm:$0xf]
      %vm332 = vcmask 64512
      %v334 = vsel %vm332, %v312, 0
      %v337 = vsel %vm332, %v313, 0
      %v340 = vsel %vm332, %v314, 0
      %v343 = vsel %vm332, %v315, 0
      %v346 = vsel %vm332, %v316, 0
      %v349 = vsel %vm332, %v317, 0
      %v352 = vsel %vm332, %v318, 0
      %v355 = vsel %vm332, %v319, 0
      %v358 = vsel %vm332, %v320, 0
      %v361 = vsel %vm332, %v321, 0
      %v364 = vsel %vm332, %v322, 0
      %v367 = vsel %vm332, %v323, 0
      %v370 = vsel %vm332, %v324, 0
      %v373 = vsel %vm332, %v325, 0
      %v376 = vsel %vm332, %v326, 0
      %v379 = vsel %vm332, %v327, 0
      %v382 = vsel %vm332, %v328, 0
      %v385 = vsel %vm332, %v329, 0
      %vm387 = vcmask 1043456
      %v389 = vsel %vm387, %v331, 0
      %391 = vmatprep.subr.bf16.mxu0 0
      %392 = vmatpush1.bf16.msra.mxu0 %v389
      %393 = vmatprep.subr.bf16.mxu0 0
      %394 = vmatpush1.bf16.msra.mxu0 0
      %395 = vmatprep.subr.bf16.mxu0 0
      %396 = vmatpush1.bf16.msra.mxu0 0
      %397 = vmatprep.subr.bf16.mxu0 0
      %398 = vmatpush1.bf16.msra.mxu0 0
      %399 = vmatprep.subr.bf16.mxu0 0
      %400 = vmatpush1.bf16.msra.mxu0 0
      %401 = vmatprep.subr.bf16.mxu0 0
      %402 = vmatpush1.bf16.msra.mxu0 0
      %403 = vmatprep.subr.bf16.mxu0 0
      %404 = vmatpush1.bf16.msra.mxu0 0
      %405 = vmatprep.subr.bf16.mxu0 0
      %406 = vmatpush1.bf16.msra.mxu0 0
      %407 = vmatprep.subr.bf16.mxu0 0
      %408 = vmatpush1.bf16.msra.mxu0 0
      %409 = vmatprep.subr.bf16.mxu0 0
      %410 = vmatpush1.bf16.msra.mxu0 0
      %411 = vmatprep.subr.bf16.mxu0 0
      %412 = vmatpush1.bf16.msra.mxu0 0
      %413 = vmatprep.subr.bf16.mxu0 0
      %414 = vmatpush1.bf16.msra.mxu0 0
      %415 = vmatprep.subr.bf16.mxu0 0
      %416 = vmatpush1.bf16.msra.mxu0 0
      %417 = vmatprep.subr.bf16.mxu0 0
      %418 = vmatpush1.bf16.msra.mxu0 0
      %419 = vmatprep.subr.bf16.mxu0 0
      %420 = vmatpush1.bf16.msra.mxu0 0
      %421 = vmatprep.subr.bf16.mxu0 0
      %422 = vmatpush1.bf16.msra.mxu0 0
      %423 = vmatprep.mubr.bf16.mxu0 0
      %424 = vmatmul.mubr.bf16.gmra.mrb[0].mxu0 %v334
      %v425 = vpop.f32.mrb[0].mxu0
      %v426 = vadd.f32 0.0, %v425
      %v427 = vpop.f32.mrb[0].mxu0
      %v428 = vpop.f32.mrb[0].mxu0
      %v429 = vadd.f32 0.0, %v428
      %v430 = vpop.f32.mrb[0].mxu0
      %431 = vmatprep.mubr.bf16.mxu0 0
      %432 = vmatmul.mubr.bf16.gmra.mrb[0].mxu0 %v337
      %v433 = vpop.f32.mrb[0].mxu0
      %v434 = vadd.f32 0.0, %v433
      %v435 = vpop.f32.mrb[0].mxu0
      %v436 = vpop.f32.mrb[0].mxu0
      %v437 = vadd.f32 0.0, %v436
      %v438 = vpop.f32.mrb[0].mxu0
      %439 = vmatprep.mubr.bf16.mxu0 0
      %440 = vmatmul.mubr.bf16.gmra.mrb[0].mxu0 %v340
      %v441 = vpop.f32.mrb[0].mxu0
      %v442 = vadd.f32 0.0, %v441
      %v443 = vpop.f32.mrb[0].mxu0
      %v444 = vpop.f32.mrb[0].mxu0
      %v445 = vadd.f32 0.0, %v444
      %v446 = vpop.f32.mrb[0].mxu0
      %447 = vmatprep.mubr.bf16.mxu0 0
      %448 = vmatmul.mubr.bf16.gmra.mrb[0].mxu0 %v343
      %v449 = vpop.f32.mrb[0].mxu0
      %v450 = vadd.f32 0.0, %v449
      %v451 = vpop.f32.mrb[0].mxu0
      %v452 = vpop.f32.mrb[0].mxu0
      %v453 = vadd.f32 0.0, %v452
      %v454 = vpop.f32.mrb[0].mxu0
      %455 = vmatprep.mubr.bf16.mxu0 0
      %456 = vmatmul.mubr.bf16.gmra.mrb[0].mxu0 %v346
      %v457 = vpop.f32.mrb[0].mxu0
      %v458 = vadd.f32 0.0, %v457
      %v459 = vpop.f32.mrb[0].mxu0
      %v460 = vpop.f32.mrb[0].mxu0
      %v461 = vadd.f32 0.0, %v460
      %v462 = vpop.f32.mrb[0].mxu0
      %463 = vmatprep.mubr.bf16.mxu0 0
      %464 = vmatmul.mubr.bf16.gmra.mrb[0].mxu0 %v349
      %v465 = vpop.f32.mrb[0].mxu0
      %v466 = vadd.f32 0.0, %v465
      %v467 = vpop.f32.mrb[0].mxu0
      %v468 = vpop.f32.mrb[0].mxu0
      %v469 = vadd.f32 0.0, %v468
      %v470 = vpop.f32.mrb[0].mxu0
      %471 = vmatprep.mubr.bf16.mxu0 0
      %472 = vmatmul.mubr.bf16.gmra.mrb[0].mxu0 %v352
      %v473 = vpop.f32.mrb[0].mxu0
      %v474 = vadd.f32 0.0, %v473
      %v475 = vpop.f32.mrb[0].mxu0
      %v476 = vpop.f32.mrb[0].mxu0
      %v477 = vadd.f32 0.0, %v476
      %v478 = vpop.f32.mrb[0].mxu0
      %479 = vmatprep.mubr.bf16.mxu0 0
      %480 = vmatmul.mubr.bf16.gmra.mrb[0].mxu0 %v355
      %v481 = vpop.f32.mrb[0].mxu0
      %v482 = vadd.f32 0.0, %v481
      %v483 = vpop.f32.mrb[0].mxu0
      %v484 = vpop.f32.mrb[0].mxu0
      %v485 = vadd.f32 0.0, %v484
      %v486 = vpop.f32.mrb[0].mxu0
      %487 = vmatprep.mubr.bf16.mxu0 0
      %488 = vmatmul.mubr.bf16.gmra.mrb[0].mxu0 %v358
      %v489 = vpop.f32.mrb[0].mxu0
      %v490 = vadd.f32 0.0, %v489
      %v491 = vpop.f32.mrb[0].mxu0
      %v492 = vpop.f32.mrb[0].mxu0
      %v493 = vadd.f32 0.0, %v492
      %v494 = vpop.f32.mrb[0].mxu0
      %495 = vmatprep.mubr.bf16.mxu0 0
      %496 = vmatmul.mubr.bf16.gmra.mrb[0].mxu0 %v361
      %v497 = vpop.f32.mrb[0].mxu0
      %v498 = vadd.f32 0.0, %v497
      %v499 = vpop.f32.mrb[0].mxu0
      %v500 = vpop.f32.mrb[0].mxu0
      %v501 = vadd.f32 0.0, %v500
      %v502 = vpop.f32.mrb[0].mxu0
      %503 = vmatprep.mubr.bf16.mxu0 0
      %504 = vmatmul.mubr.bf16.gmra.mrb[0].mxu0 %v364
      %v505 = vpop.f32.mrb[0].mxu0
      %v506 = vadd.f32 0.0, %v505
      %v507 = vpop.f32.mrb[0].mxu0
      %v508 = vpop.f32.mrb[0].mxu0
      %v509 = vadd.f32 0.0, %v508
      %v510 = vpop.f32.mrb[0].mxu0
      %511 = vmatprep.mubr.bf16.mxu0 0
      %512 = vmatmul.mubr.bf16.gmra.mrb[0].mxu0 %v367
      %v513 = vpop.f32.mrb[0].mxu0
      %v514 = vadd.f32 0.0, %v513
      %v515 = vpop.f32.mrb[0].mxu0
      %v516 = vpop.f32.mrb[0].mxu0
      %v517 = vadd.f32 0.0, %v516
      %v518 = vpop.f32.mrb[0].mxu0
      %519 = vmatprep.mubr.bf16.mxu0 0
      %520 = vmatmul.mubr.bf16.gmra.mrb[0].mxu0 %v370
      %v521 = vpop.f32.mrb[0].mxu0
      %v522 = vadd.f32 0.0, %v521
      %v523 = vpop.f32.mrb[0].mxu0
      %v524 = vpop.f32.mrb[0].mxu0
      %v525 = vadd.f32 0.0, %v524
      %v526 = vpop.f32.mrb[0].mxu0
      %527 = vmatprep.mubr.bf16.mxu0 0
      %528 = vmatmul.mubr.bf16.gmra.mrb[0].mxu0 %v373
      %v529 = vpop.f32.mrb[0].mxu0
      %v530 = vadd.f32 0.0, %v529
      %v531 = vpop.f32.mrb[0].mxu0
      %v532 = vpop.f32.mrb[0].mxu0
      %v533 = vadd.f32 0.0, %v532
      %v534 = vpop.f32.mrb[0].mxu0
      %535 = vmatprep.mubr.bf16.mxu0 0
      %536 = vmatmul.mubr.bf16.gmra.mrb[0].mxu0 %v376
      %v537 = vpop.f32.mrb[0].mxu0
      %v538 = vadd.f32 0.0, %v537
      %v539 = vpop.f32.mrb[0].mxu0
      %v540 = vpop.f32.mrb[0].mxu0
      %v541 = vadd.f32 0.0, %v540
      %v542 = vpop.f32.mrb[0].mxu0
      %543 = vmatprep.mubr.bf16.mxu0 0
      %544 = vmatmul.mubr.bf16.gmra.mrb[0].mxu0 %v379
      %v545 = vpop.f32.mrb[0].mxu0
      %v546 = vadd.f32 0.0, %v545
      %v547 = vpop.f32.mrb[0].mxu0
      %v548 = vpop.f32.mrb[0].mxu0
      %v549 = vadd.f32 0.0, %v548
      %v550 = vpop.f32.mrb[0].mxu0
      %551 = vmatprep.mubr.bf16.mxu0 0
      %552 = vmatmul.mubr.bf16.gmra.mrb[0].mxu0 %v382
      %v553 = vpop.f32.mrb[0].mxu0
      %v554 = vadd.f32 0.0, %v553
      %v555 = vpop.f32.mrb[0].mxu0
      %v556 = vpop.f32.mrb[0].mxu0
      %v557 = vadd.f32 0.0, %v556
      %v558 = vpop.f32.mrb[0].mxu0
      %559 = vmatprep.mubr.bf16.mxu0 0
      %560 = vmatmul.mubr.bf16.gmra.mrb[0].mxu0 %v385
      %v561 = vpop.f32.mrb[0].mxu0
      %v562 = vadd.f32 0.0, %v561
      %v563 = vpop.f32.mrb[0].mxu0
      %v564 = vpop.f32.mrb[0].mxu0
      %v565 = vadd.f32 0.0, %v564
      %v566 = vpop.f32.mrb[0].mxu0
      %567 = vdwg.mxu0
      %v569 = vsel %vm332, %v257, 0
      %v572 = vsel %vm332, %v258, 0
      %v575 = vsel %vm332, %v259, 0
      %v578 = vsel %vm332, %v260, 0
      %v581 = vsel %vm332, %v261, 0
      %v584 = vsel %vm332, %v262, 0
      %v587 = vsel %vm332, %v263, 0
      %v590 = vsel %vm332, %v264, 0
      %v593 = vsel %vm332, %v265, 0
      %v596 = vsel %vm332, %v266, 0
      %v599 = vsel %vm332, %v267, 0
      %v602 = vsel %vm332, %v268, 0
      %v605 = vsel %vm332, %v269, 0
      %v608 = vsel %vm332, %v270, 0
      %v611 = vsel %vm332, %v271, 0
      %v614 = vsel %vm332, %v272, 0
      %v617 = vsel %vm332, %v273, 0
      %v620 = vsel %vm332, %v274, 0
      %v623 = vsel %vm387, %v275, 0
      %625 = vmatprep.subr.bf16.mxu0 0
      %626 = vmatpush1.bf16.msra.mxu0 %v623
      %627 = vmatprep.subr.bf16.mxu0 0
      %628 = vmatpush1.bf16.msra.mxu0 0
      %629 = vmatprep.subr.bf16.mxu0 0
      %630 = vmatpush1.bf16.msra.mxu0 0
      %631 = vmatprep.subr.bf16.mxu0 0
      %632 = vmatpush1.bf16.msra.mxu0 0
      %633 = vmatprep.subr.bf16.mxu0 0
      %634 = vmatpush1.bf16.msra.mxu0 0
      %635 = vmatprep.subr.bf16.mxu0 0
      %636 = vmatpush1.bf16.msra.mxu0 0
      %637 = vmatprep.subr.bf16.mxu0 0
      %638 = vmatpush1.bf16.msra.mxu0 0
      %639 = vmatprep.subr.bf16.mxu0 0
      %640 = vmatpush1.bf16.msra.mxu0 0
      %641 = vmatprep.subr.bf16.mxu0 0
      %642 = vmatpush1.bf16.msra.mxu0 0
      %643 = vmatprep.subr.bf16.mxu0 0
      %644 = vmatpush1.bf16.msra.mxu0 0
      %645 = vmatprep.subr.bf16.mxu0 0
      %646 = vmatpush1.bf16.msra.mxu0 0
      %647 = vmatprep.subr.bf16.mxu0 0
      %648 = vmatpush1.bf16.msra.mxu0 0
      %649 = vmatprep.subr.bf16.mxu0 0
      %650 = vmatpush1.bf16.msra.mxu0 0
      %651 = vmatprep.subr.bf16.mxu0 0
      %652 = vmatpush1.bf16.msra.mxu0 0
      %653 = vmatprep.subr.bf16.mxu0 0
      %654 = vmatpush1.bf16.msra.mxu0 0
      %655 = vmatprep.subr.bf16.mxu0 0
      %656 = vmatpush1.bf16.msra.mxu0 0
      %657 = vmatprep.mubr.bf16.mxu0 0
      %658 = vmatmul.mubr.bf16.gmra.mrb[0].mxu0 %v569
      %v659 = vpop.f32.mrb[0].mxu0
      %v660 = vadd.f32 %v426, %v659
      %v661 = vpop.f32.mrb[0].mxu0
      %v662 = vpop.f32.mrb[0].mxu0
      %v663 = vadd.f32 %v429, %v662
      %v664 = vpop.f32.mrb[0].mxu0
      %665 = vmatprep.mubr.bf16.mxu0 0
      %666 = vmatmul.mubr.bf16.gmra.mrb[0].mxu0 %v572
      %v667 = vpop.f32.mrb[0].mxu0
      %v668 = vadd.f32 %v434, %v667
      %v669 = vpop.f32.mrb[0].mxu0
      %v670 = vpop.f32.mrb[0].mxu0
      %v671 = vadd.f32 %v437, %v670
      %v672 = vpop.f32.mrb[0].mxu0
      %673 = vmatprep.mubr.bf16.mxu0 0
      %674 = vmatmul.mubr.bf16.gmra.mrb[0].mxu0 %v575
      %v675 = vpop.f32.mrb[0].mxu0
      %v676 = vadd.f32 %v442, %v675
      %v677 = vpop.f32.mrb[0].mxu0
      %v678 = vpop.f32.mrb[0].mxu0
      %v679 = vadd.f32 %v445, %v678
      %v680 = vpop.f32.mrb[0].mxu0
      %681 = vmatprep.mubr.bf16.mxu0 0
      %682 = vmatmul.mubr.bf16.gmra.mrb[0].mxu0 %v578
      %v683 = vpop.f32.mrb[0].mxu0
      %v684 = vadd.f32 %v450, %v683
      %v685 = vpop.f32.mrb[0].mxu0
      %v686 = vpop.f32.mrb[0].mxu0
      %v687 = vadd.f32 %v453, %v686
      %v688 = vpop.f32.mrb[0].mxu0
      %689 = vmatprep.mubr.bf16.mxu0 0
      %690 = vmatmul.mubr.bf16.gmra.mrb[0].mxu0 %v581
      %v691 = vpop.f32.mrb[0].mxu0
      %v692 = vadd.f32 %v458, %v691
      %v693 = vpop.f32.mrb[0].mxu0
      %v694 = vpop.f32.mrb[0].mxu0
      %v695 = vadd.f32 %v461, %v694
      %v696 = vpop.f32.mrb[0].mxu0
      %697 = vmatprep.mubr.bf16.mxu0 0
      %698 = vmatmul.mubr.bf16.gmra.mrb[0].mxu0 %v584
      %v699 = vpop.f32.mrb[0].mxu0
      %v700 = vadd.f32 %v466, %v699
      %v701 = vpop.f32.mrb[0].mxu0
      %v702 = vpop.f32.mrb[0].mxu0
      %v703 = vadd.f32 %v469, %v702
      %v704 = vpop.f32.mrb[0].mxu0
      %705 = vmatprep.mubr.bf16.mxu0 0
      %706 = vmatmul.mubr.bf16.gmra.mrb[0].mxu0 %v587
      %v707 = vpop.f32.mrb[0].mxu0
      %v708 = vadd.f32 %v474, %v707
      %v709 = vpop.f32.mrb[0].mxu0
      %v710 = vpop.f32.mrb[0].mxu0
      %v711 = vadd.f32 %v477, %v710
      %v712 = vpop.f32.mrb[0].mxu0
      %713 = vmatprep.mubr.bf16.mxu0 0
      %714 = vmatmul.mubr.bf16.gmra.mrb[0].mxu0 %v590
      %v715 = vpop.f32.mrb[0].mxu0
      %v716 = vadd.f32 %v482, %v715
      %v717 = vpop.f32.mrb[0].mxu0
      %v718 = vpop.f32.mrb[0].mxu0
      %v719 = vadd.f32 %v485, %v718
      %v720 = vpop.f32.mrb[0].mxu0
      %721 = vmatprep.mubr.bf16.mxu0 0
      %722 = vmatmul.mubr.bf16.gmra.mrb[0].mxu0 %v593
      %v723 = vpop.f32.mrb[0].mxu0
      %v724 = vadd.f32 %v490, %v723
      %v725 = vpop.f32.mrb[0].mxu0
      %v726 = vpop.f32.mrb[0].mxu0
      %v727 = vadd.f32 %v493, %v726
      %v728 = vpop.f32.mrb[0].mxu0
      %729 = vmatprep.mubr.bf16.mxu0 0
      %730 = vmatmul.mubr.bf16.gmra.mrb[0].mxu0 %v596
      %v731 = vpop.f32.mrb[0].mxu0
      %v732 = vadd.f32 %v498, %v731
      %v733 = vpop.f32.mrb[0].mxu0
      %v734 = vpop.f32.mrb[0].mxu0
      %v735 = vadd.f32 %v501, %v734
      %v736 = vpop.f32.mrb[0].mxu0
      %737 = vmatprep.mubr.bf16.mxu0 0
      %738 = vmatmul.mubr.bf16.gmra.mrb[0].mxu0 %v599
      %v739 = vpop.f32.mrb[0].mxu0
      %v740 = vadd.f32 %v506, %v739
      %v741 = vpop.f32.mrb[0].mxu0
      %v742 = vpop.f32.mrb[0].mxu0
      %v743 = vadd.f32 %v509, %v742
      %v744 = vpop.f32.mrb[0].mxu0
      %745 = vmatprep.mubr.bf16.mxu0 0
      %746 = vmatmul.mubr.bf16.gmra.mrb[0].mxu0 %v602
      %v747 = vpop.f32.mrb[0].mxu0
      %v748 = vadd.f32 %v514, %v747
      %v749 = vpop.f32.mrb[0].mxu0
      %v750 = vpop.f32.mrb[0].mxu0
      %v751 = vadd.f32 %v517, %v750
      %v752 = vpop.f32.mrb[0].mxu0
      %753 = vmatprep.mubr.bf16.mxu0 0
      %754 = vmatmul.mubr.bf16.gmra.mrb[0].mxu0 %v605
      %v755 = vpop.f32.mrb[0].mxu0
      %v756 = vadd.f32 %v522, %v755
      %v757 = vpop.f32.mrb[0].mxu0
      %v758 = vpop.f32.mrb[0].mxu0
      %v759 = vadd.f32 %v525, %v758
      %v760 = vpop.f32.mrb[0].mxu0
      %761 = vmatprep.mubr.bf16.mxu0 0
      %762 = vmatmul.mubr.bf16.gmra.mrb[0].mxu0 %v608
      %v763 = vpop.f32.mrb[0].mxu0
      %v764 = vadd.f32 %v530, %v763
      %v765 = vpop.f32.mrb[0].mxu0
      %v766 = vpop.f32.mrb[0].mxu0
      %v767 = vadd.f32 %v533, %v766
      %v768 = vpop.f32.mrb[0].mxu0
      %769 = vmatprep.mubr.bf16.mxu0 0
      %770 = vmatmul.mubr.bf16.gmra.mrb[0].mxu0 %v611
      %v771 = vpop.f32.mrb[0].mxu0
      %v772 = vadd.f32 %v538, %v771
      %v773 = vpop.f32.mrb[0].mxu0
      %v774 = vpop.f32.mrb[0].mxu0
      %v775 = vadd.f32 %v541, %v774
      %v776 = vpop.f32.mrb[0].mxu0
      %777 = vmatprep.mubr.bf16.mxu0 0
      %778 = vmatmul.mubr.bf16.gmra.mrb[0].mxu0 %v614
      %v779 = vpop.f32.mrb[0].mxu0
      %v780 = vadd.f32 %v546, %v779
      %v781 = vpop.f32.mrb[0].mxu0
      %v782 = vpop.f32.mrb[0].mxu0
      %v783 = vadd.f32 %v549, %v782
      %v784 = vpop.f32.mrb[0].mxu0
      %785 = vmatprep.mubr.bf16.mxu0 0
      %786 = vmatmul.mubr.bf16.gmra.mrb[0].mxu0 %v617
      %v787 = vpop.f32.mrb[0].mxu0
      %v788 = vadd.f32 %v554, %v787
      %v789 = vpop.f32.mrb[0].mxu0
      %v790 = vpop.f32.mrb[0].mxu0
      %v791 = vadd.f32 %v557, %v790
      %v792 = vpop.f32.mrb[0].mxu0
      %793 = vmatprep.mubr.bf16.mxu0 0
      %794 = vmatmul.mubr.bf16.gmra.mrb[0].mxu0 %v620
      %v795 = vpop.f32.mrb[0].mxu0
      %v796 = vadd.f32 %v562, %v795
      %v797 = vpop.f32.mrb[0].mxu0
      %v798 = vpop.f32.mrb[0].mxu0
      %v799 = vadd.f32 %v565, %v798
      %v800 = vpop.f32.mrb[0].mxu0
      %801 = vdwg.mxu0
      %v802 = vld [vmem:[%s214 + $0x2] sm:$0xff]
      %v803 = vld [vmem:[%s214 + $0xa] sm:$0xff]
      %v804 = vld [vmem:[%s214 + $0x12] sm:$0xff]
      %v805 = vld [vmem:[%s214 + $0x1a] sm:$0xff]
      %v806 = vld [vmem:[%s214 + $0x22] sm:$0xff]
      %v807 = vld [vmem:[%s214 + $0x2a] sm:$0xff]
      %v808 = vld [vmem:[%s214 + $0x32] sm:$0xff]
      %v809 = vld [vmem:[%s214 + $0x3a] sm:$0xff]
      %v810 = vld [vmem:[%s214 + $0x42] sm:$0xff]
      %v811 = vld [vmem:[%s214 + $0x4a] sm:$0xff]
      %v812 = vld [vmem:[%s214 + $0x52] sm:$0xff]
      %v813 = vld [vmem:[%s214 + $0x5a] sm:$0xff]
      %v814 = vld [vmem:[%s214 + $0x62] sm:$0xff]
      %v815 = vld [vmem:[%s214 + $0x6a] sm:$0xff]
      %v816 = vld [vmem:[%s214 + $0x72] sm:$0xff]
      %v817 = vld [vmem:[%s214 + $0x7a] sm:$0xff]
      %v818 = vld [vmem:[%s214 + $0x82] sm:$0xff]
      %v819 = vld [vmem:[%s214 + $0x8a] sm:$0xff]
      %v820 = vld [vmem:[%s214 + $0x92] sm:$0xff]
      %v821 = vld [vmem:[%s214 + $0x9a] sm:$0xff]
      %v822 = vld [vmem:[%s214 + $0xa2] sm:$0xff]
      %v823 = vld [vmem:[%s214 + $0xaa] sm:$0xff]
      %v824 = vld [vmem:[%s214 + $0xb2] sm:$0xff]
      %v825 = vld [vmem:[%s214 + $0xba] sm:$0xff]
      %v826 = vld [vmem:[%s214 + $0xc2] sm:$0xff]
      %v827 = vld [vmem:[%s214 + $0xca] sm:$0xff]
      %v828 = vld [vmem:[%s214 + $0xd2] sm:$0xff]
      %v829 = vld [vmem:[%s214 + $0xda] sm:$0xff]
      %v830 = vld [vmem:[%s214 + $0xe2] sm:$0xff]
      %v831 = vld [vmem:[%s214 + $0xea] sm:$0xff]
      %v832 = vld [vmem:[%s214 + $0xf2] sm:$0xff]
      %v833 = vld [vmem:[%s214 + $0xfa] sm:$0xff]
      %v834 = vld [vmem:[%s214 + $0x102] sm:$0xff]
      %v835 = vld [vmem:[%s214 + $0x10a] sm:$0xff]
      %v836 = vld [vmem:[%s214 + $0x112] sm:$0xff]
      %v837 = vld [vmem:[%s214 + $0x11a] sm:$0xff]
      %v838 = vpack.c.bf16 %v803, %v802
      %v839 = vpack.c.bf16 %v805, %v804
      %v840 = vpack.c.bf16 %v807, %v806
      %v841 = vpack.c.bf16 %v809, %v808
      %v842 = vpack.c.bf16 %v811, %v810
      %v843 = vpack.c.bf16 %v813, %v812
      %v844 = vpack.c.bf16 %v815, %v814
      %v845 = vpack.c.bf16 %v817, %v816
      %v846 = vpack.c.bf16 %v819, %v818
      %v847 = vpack.c.bf16 %v821, %v820
      %v848 = vpack.c.bf16 %v823, %v822
      %v849 = vpack.c.bf16 %v825, %v824
      %v850 = vpack.c.bf16 %v827, %v826
      %v851 = vpack.c.bf16 %v829, %v828
      %v852 = vpack.c.bf16 %v831, %v830
      %v853 = vpack.c.bf16 %v833, %v832
      %v854 = vpack.c.bf16 %v835, %v834
      %v855 = vpack.c.bf16 %v837, %v836
      %s856 = scalar_lea.vmem %s1, 8
      %v857 = vld [vmem:[%s856] sm:$0xf]
      %v859 = vsel %vm332, %v838, 0
      %v862 = vsel %vm332, %v839, 0
      %v865 = vsel %vm332, %v840, 0
      %v868 = vsel %vm332, %v841, 0
      %v871 = vsel %vm332, %v842, 0
      %v874 = vsel %vm332, %v843, 0
      %v877 = vsel %vm332, %v844, 0
      %v880 = vsel %vm332, %v845, 0
      %v883 = vsel %vm332, %v846, 0
      %v886 = vsel %vm332, %v847, 0
      %v889 = vsel %vm332, %v848, 0
      %v892 = vsel %vm332, %v849, 0
      %v895 = vsel %vm332, %v850, 0
      %v898 = vsel %vm332, %v851, 0
      %v901 = vsel %vm332, %v852, 0
      %v904 = vsel %vm332, %v853, 0
      %v907 = vsel %vm332, %v854, 0
      %v910 = vsel %vm332, %v855, 0
      %v913 = vsel %vm387, %v857, 0
      %915 = vmatprep.subr.bf16.mxu0 0
      %916 = vmatpush1.bf16.msra.mxu0 %v913
      %917 = vmatprep.subr.bf16.mxu0 0
      %918 = vmatpush1.bf16.msra.mxu0 0
      %919 = vmatprep.subr.bf16.mxu0 0
      %920 = vmatpush1.bf16.msra.mxu0 0
      %921 = vmatprep.subr.bf16.mxu0 0
      %922 = vmatpush1.bf16.msra.mxu0 0
      %923 = vmatprep.subr.bf16.mxu0 0
      %924 = vmatpush1.bf16.msra.mxu0 0
      %925 = vmatprep.subr.bf16.mxu0 0
      %926 = vmatpush1.bf16.msra.mxu0 0
      %927 = vmatprep.subr.bf16.mxu0 0
      %928 = vmatpush1.bf16.msra.mxu0 0
      %929 = vmatprep.subr.bf16.mxu0 0
      %930 = vmatpush1.bf16.msra.mxu0 0
      %931 = vmatprep.subr.bf16.mxu0 0
      %932 = vmatpush1.bf16.msra.mxu0 0
      %933 = vmatprep.subr.bf16.mxu0 0
      %934 = vmatpush1.bf16.msra.mxu0 0
      %935 = vmatprep.subr.bf16.mxu0 0
      %936 = vmatpush1.bf16.msra.mxu0 0
      %937 = vmatprep.subr.bf16.mxu0 0
      %938 = vmatpush1.bf16.msra.mxu0 0
      %939 = vmatprep.subr.bf16.mxu0 0
      %940 = vmatpush1.bf16.msra.mxu0 0
      %941 = vmatprep.subr.bf16.mxu0 0
      %942 = vmatpush1.bf16.msra.mxu0 0
      %943 = vmatprep.subr.bf16.mxu0 0
      %944 = vmatpush1.bf16.msra.mxu0 0
      %945 = vmatprep.subr.bf16.mxu0 0
      %946 = vmatpush1.bf16.msra.mxu0 0
      %947 = vmatprep.mubr.bf16.mxu0 0
      %948 = vmatmul.mubr.bf16.gmra.mrb[0].mxu0 %v859
      %v949 = vpop.f32.mrb[0].mxu0
      %v950 = vadd.f32 0.0, %v949
      %v951 = vpop.f32.mrb[0].mxu0
      %v952 = vpop.f32.mrb[0].mxu0
      %v953 = vadd.f32 0.0, %v952
      %v954 = vpop.f32.mrb[0].mxu0
      %955 = vmatprep.mubr.bf16.mxu0 0
      %956 = vmatmul.mubr.bf16.gmra.mrb[0].mxu0 %v862
      %v957 = vpop.f32.mrb[0].mxu0
      %v958 = vadd.f32 0.0, %v957
      %v959 = vpop.f32.mrb[0].mxu0
      %v960 = vpop.f32.mrb[0].mxu0
      %v961 = vadd.f32 0.0, %v960
      %v962 = vpop.f32.mrb[0].mxu0
      %963 = vmatprep.mubr.bf16.mxu0 0
      %964 = vmatmul.mubr.bf16.gmra.mrb[0].mxu0 %v865
      %v965 = vpop.f32.mrb[0].mxu0
      %v966 = vadd.f32 0.0, %v965
      %v967 = vpop.f32.mrb[0].mxu0
      %v968 = vpop.f32.mrb[0].mxu0
      %v969 = vadd.f32 0.0, %v968
      %v970 = vpop.f32.mrb[0].mxu0
      %971 = vmatprep.mubr.bf16.mxu0 0
      %972 = vmatmul.mubr.bf16.gmra.mrb[0].mxu0 %v868
      %v973 = vpop.f32.mrb[0].mxu0
      %v974 = vadd.f32 0.0, %v973
      %v975 = vpop.f32.mrb[0].mxu0
      %v976 = vpop.f32.mrb[0].mxu0
      %v977 = vadd.f32 0.0, %v976
      %v978 = vpop.f32.mrb[0].mxu0
      %979 = vmatprep.mubr.bf16.mxu0 0
      %980 = vmatmul.mubr.bf16.gmra.mrb[0].mxu0 %v871
      %v981 = vpop.f32.mrb[0].mxu0
      %v982 = vadd.f32 0.0, %v981
      %v983 = vpop.f32.mrb[0].mxu0
      %v984 = vpop.f32.mrb[0].mxu0
      %v985 = vadd.f32 0.0, %v984
      %v986 = vpop.f32.mrb[0].mxu0
      %987 = vmatprep.mubr.bf16.mxu0 0
      %988 = vmatmul.mubr.bf16.gmra.mrb[0].mxu0 %v874
      %v989 = vpop.f32.mrb[0].mxu0
      %v990 = vadd.f32 0.0, %v989
      %v991 = vpop.f32.mrb[0].mxu0
      %v992 = vpop.f32.mrb[0].mxu0
      %v993 = vadd.f32 0.0, %v992
      %v994 = vpop.f32.mrb[0].mxu0
      %995 = vmatprep.mubr.bf16.mxu0 0
      %996 = vmatmul.mubr.bf16.gmra.mrb[0].mxu0 %v877
      %v997 = vpop.f32.mrb[0].mxu0
      %v998 = vadd.f32 0.0, %v997
      %v999 = vpop.f32.mrb[0].mxu0
      %v1000 = vpop.f32.mrb[0].mxu0
      %v1001 = vadd.f32 0.0, %v1000
      %v1002 = vpop.f32.mrb[0].mxu0
      %1003 = vmatprep.mubr.bf16.mxu0 0
      %1004 = vmatmul.mubr.bf16.gmra.mrb[0].mxu0 %v880
      %v1005 = vpop.f32.mrb[0].mxu0
      %v1006 = vadd.f32 0.0, %v1005
      %v1007 = vpop.f32.mrb[0].mxu0
      %v1008 = vpop.f32.mrb[0].mxu0
      %v1009 = vadd.f32 0.0, %v1008
      %v1010 = vpop.f32.mrb[0].mxu0
      %1011 = vmatprep.mubr.bf16.mxu0 0
      %1012 = vmatmul.mubr.bf16.gmra.mrb[0].mxu0 %v883
      %v1013 = vpop.f32.mrb[0].mxu0
      %v1014 = vadd.f32 0.0, %v1013
      %v1015 = vpop.f32.mrb[0].mxu0
      %v1016 = vpop.f32.mrb[0].mxu0
      %v1017 = vadd.f32 0.0, %v1016
      %v1018 = vpop.f32.mrb[0].mxu0
      %1019 = vmatprep.mubr.bf16.mxu0 0
      %1020 = vmatmul.mubr.bf16.gmra.mrb[0].mxu0 %v886
      %v1021 = vpop.f32.mrb[0].mxu0
      %v1022 = vadd.f32 0.0, %v1021
      %v1023 = vpop.f32.mrb[0].mxu0
      %v1024 = vpop.f32.mrb[0].mxu0
      %v1025 = vadd.f32 0.0, %v1024
      %v1026 = vpop.f32.mrb[0].mxu0
      %1027 = vmatprep.mubr.bf16.mxu0 0
      %1028 = vmatmul.mubr.bf16.gmra.mrb[0].mxu0 %v889
      %v1029 = vpop.f32.mrb[0].mxu0
      %v1030 = vadd.f32 0.0, %v1029
      %v1031 = vpop.f32.mrb[0].mxu0
      %v1032 = vpop.f32.mrb[0].mxu0
      %v1033 = vadd.f32 0.0, %v1032
      %v1034 = vpop.f32.mrb[0].mxu0
      %1035 = vmatprep.mubr.bf16.mxu0 0
      %1036 = vmatmul.mubr.bf16.gmra.mrb[0].mxu0 %v892
      %v1037 = vpop.f32.mrb[0].mxu0
      %v1038 = vadd.f32 0.0, %v1037
      %v1039 = vpop.f32.mrb[0].mxu0
      %v1040 = vpop.f32.mrb[0].mxu0
      %v1041 = vadd.f32 0.0, %v1040
      %v1042 = vpop.f32.mrb[0].mxu0
      %1043 = vmatprep.mubr.bf16.mxu0 0
      %1044 = vmatmul.mubr.bf16.gmra.mrb[0].mxu0 %v895
      %v1045 = vpop.f32.mrb[0].mxu0
      %v1046 = vadd.f32 0.0, %v1045
      %v1047 = vpop.f32.mrb[0].mxu0
      %v1048 = vpop.f32.mrb[0].mxu0
      %v1049 = vadd.f32 0.0, %v1048
      %v1050 = vpop.f32.mrb[0].mxu0
      %1051 = vmatprep.mubr.bf16.mxu0 0
      %1052 = vmatmul.mubr.bf16.gmra.mrb[0].mxu0 %v898
      %v1053 = vpop.f32.mrb[0].mxu0
      %v1054 = vadd.f32 0.0, %v1053
      %v1055 = vpop.f32.mrb[0].mxu0
      %v1056 = vpop.f32.mrb[0].mxu0
      %v1057 = vadd.f32 0.0, %v1056
      %v1058 = vpop.f32.mrb[0].mxu0
      %1059 = vmatprep.mubr.bf16.mxu0 0
      %1060 = vmatmul.mubr.bf16.gmra.mrb[0].mxu0 %v901
      %v1061 = vpop.f32.mrb[0].mxu0
      %v1062 = vadd.f32 0.0, %v1061
      %v1063 = vpop.f32.mrb[0].mxu0
      %v1064 = vpop.f32.mrb[0].mxu0
      %v1065 = vadd.f32 0.0, %v1064
      %v1066 = vpop.f32.mrb[0].mxu0
      %1067 = vmatprep.mubr.bf16.mxu0 0
      %1068 = vmatmul.mubr.bf16.gmra.mrb[0].mxu0 %v904
      %v1069 = vpop.f32.mrb[0].mxu0
      %v1070 = vadd.f32 0.0, %v1069
      %v1071 = vpop.f32.mrb[0].mxu0
      %v1072 = vpop.f32.mrb[0].mxu0
      %v1073 = vadd.f32 0.0, %v1072
      %v1074 = vpop.f32.mrb[0].mxu0
      %1075 = vmatprep.mubr.bf16.mxu0 0
      %1076 = vmatmul.mubr.bf16.gmra.mrb[0].mxu0 %v907
      %v1077 = vpop.f32.mrb[0].mxu0
      %v1078 = vadd.f32 0.0, %v1077
      %v1079 = vpop.f32.mrb[0].mxu0
      %v1080 = vpop.f32.mrb[0].mxu0
      %v1081 = vadd.f32 0.0, %v1080
      %v1082 = vpop.f32.mrb[0].mxu0
      %1083 = vmatprep.mubr.bf16.mxu0 0
      %1084 = vmatmul.mubr.bf16.gmra.mrb[0].mxu0 %v910
      %v1085 = vpop.f32.mrb[0].mxu0
      %v1086 = vadd.f32 0.0, %v1085
      %v1087 = vpop.f32.mrb[0].mxu0
      %v1088 = vpop.f32.mrb[0].mxu0
      %v1089 = vadd.f32 0.0, %v1088
      %v1090 = vpop.f32.mrb[0].mxu0
      %1091 = vdwg.mxu0
      %v1092 = vadd.f32 %v660, %v950
      %v1093 = vadd.f32 %v663, %v953
      %v1094 = vadd.f32 %v668, %v958
      %v1095 = vadd.f32 %v671, %v961
      %v1096 = vadd.f32 %v676, %v966
      %v1097 = vadd.f32 %v679, %v969
      %v1098 = vadd.f32 %v684, %v974
      %v1099 = vadd.f32 %v687, %v977
      %v1100 = vadd.f32 %v692, %v982
      %v1101 = vadd.f32 %v695, %v985
      %v1102 = vadd.f32 %v700, %v990
      %v1103 = vadd.f32 %v703, %v993
      %v1104 = vadd.f32 %v708, %v998
      %v1105 = vadd.f32 %v711, %v1001
      %v1106 = vadd.f32 %v716, %v1006
      %v1107 = vadd.f32 %v719, %v1009
      %v1108 = vadd.f32 %v724, %v1014
      %v1109 = vadd.f32 %v727, %v1017
      %v1110 = vadd.f32 %v732, %v1022
      %v1111 = vadd.f32 %v735, %v1025
      %v1112 = vadd.f32 %v740, %v1030
      %v1113 = vadd.f32 %v743, %v1033
      %v1114 = vadd.f32 %v748, %v1038
      %v1115 = vadd.f32 %v751, %v1041
      %v1116 = vadd.f32 %v756, %v1046
      %v1117 = vadd.f32 %v759, %v1049
      %v1118 = vadd.f32 %v764, %v1054
      %v1119 = vadd.f32 %v767, %v1057
      %v1120 = vadd.f32 %v772, %v1062
      %v1121 = vadd.f32 %v775, %v1065
      %v1122 = vadd.f32 %v780, %v1070
      %v1123 = vadd.f32 %v783, %v1073
      %v1124 = vadd.f32 %v788, %v1078
      %v1125 = vadd.f32 %v791, %v1081
      %v1126 = vadd.f32 %v796, %v1086
      %v1127 = vadd.f32 %v799, %v1089
      %v1128 = vld [vmem:[%s214 + $0x12] sm:$0xff]
      %v1129 = vld [vmem:[%s214 + $0x1a] sm:$0xff]
      %v1130 = vld [vmem:[%s214 + $0x22] sm:$0xff]
      %v1131 = vld [vmem:[%s214 + $0x2a] sm:$0xff]
      %v1132 = vld [vmem:[%s214 + $0x32] sm:$0xff]
      %v1133 = vld [vmem:[%s214 + $0x3a] sm:$0xff]
      %v1134 = vld [vmem:[%s214 + $0x42] sm:$0xff]
      %v1135 = vld [vmem:[%s214 + $0x4a] sm:$0xff]
      %v1136 = vld [vmem:[%s214 + $0x52] sm:$0xff]
      %v1137 = vld [vmem:[%s214 + $0x5a] sm:$0xff]
      %v1138 = vld [vmem:[%s214 + $0x62] sm:$0xff]
      %v1139 = vld [vmem:[%s214 + $0x6a] sm:$0xff]
      %v1140 = vld [vmem:[%s214 + $0x72] sm:$0xff]
      %v1141 = vld [vmem:[%s214 + $0x7a] sm:$0xff]
      %v1142 = vld [vmem:[%s214 + $0x82] sm:$0xff]
      %v1143 = vld [vmem:[%s214 + $0x8a] sm:$0xff]
      %v1144 = vld [vmem:[%s214 + $0x92] sm:$0xff]
      %v1145 = vld [vmem:[%s214 + $0x9a] sm:$0xff]
      %v1146 = vld [vmem:[%s214 + $0xa2] sm:$0xff]
      %v1147 = vld [vmem:[%s214 + $0xaa] sm:$0xff]
      %v1148 = vld [vmem:[%s214 + $0xb2] sm:$0xff]
      %v1149 = vld [vmem:[%s214 + $0xba] sm:$0xff]
      %v1150 = vld [vmem:[%s214 + $0xc2] sm:$0xff]
      %v1151 = vld [vmem:[%s214 + $0xca] sm:$0xff]
      %v1152 = vld [vmem:[%s214 + $0xd2] sm:$0xff]
      %v1153 = vld [vmem:[%s214 + $0xda] sm:$0xff]
      %v1154 = vld [vmem:[%s214 + $0xe2] sm:$0xff]
      %v1155 = vld [vmem:[%s214 + $0xea] sm:$0xff]
      %v1156 = vld [vmem:[%s214 + $0xf2] sm:$0xff]
      %v1157 = vld [vmem:[%s214 + $0xfa] sm:$0xff]
      %v1158 = vld [vmem:[%s214 + $0x102] sm:$0xff]
      %v1159 = vld [vmem:[%s214 + $0x10a] sm:$0xff]
      %v1160 = vld [vmem:[%s214 + $0x112] sm:$0xff]
      %v1161 = vld [vmem:[%s214 + $0x11a] sm:$0xff]
      %v1162 = vld [vmem:[%s214 + $0x122] sm:$0xff]
      %v1163 = vld [vmem:[%s214 + $0x12a] sm:$0xff]
      %v1164 = vpack.c.bf16 %v1129, %v1128
      %v1165 = vpack.c.bf16 %v1131, %v1130
      %v1166 = vpack.c.bf16 %v1133, %v1132
      %v1167 = vpack.c.bf16 %v1135, %v1134
      %v1168 = vpack.c.bf16 %v1137, %v1136
      %v1169 = vpack.c.bf16 %v1139, %v1138
      %v1170 = vpack.c.bf16 %v1141, %v1140
      %v1171 = vpack.c.bf16 %v1143, %v1142
      %v1172 = vpack.c.bf16 %v1145, %v1144
      %v1173 = vpack.c.bf16 %v1147, %v1146
      %v1174 = vpack.c.bf16 %v1149, %v1148
      %v1175 = vpack.c.bf16 %v1151, %v1150
      %v1176 = vpack.c.bf16 %v1153, %v1152
      %v1177 = vpack.c.bf16 %v1155, %v1154
      %v1178 = vpack.c.bf16 %v1157, %v1156
      %v1179 = vpack.c.bf16 %v1159, %v1158
      %v1180 = vpack.c.bf16 %v1161, %v1160
      %v1181 = vpack.c.bf16 %v1163, %v1162
      %s1182 = scalar_lea.vmem %s1, 12
      %v1183 = vld [vmem:[%s1182] sm:$0xf]
      %v1185 = vsel %vm332, %v1164, 0
      %v1188 = vsel %vm332, %v1165, 0
      %v1191 = vsel %vm332, %v1166, 0
      %v1194 = vsel %vm332, %v1167, 0
      %v1197 = vsel %vm332, %v1168, 0
      %v1200 = vsel %vm332, %v1169, 0
      %v1203 = vsel %vm332, %v1170, 0
      %v1206 = vsel %vm332, %v1171, 0
      %v1209 = vsel %vm332, %v1172, 0
      %v1212 = vsel %vm332, %v1173, 0
      %v1215 = vsel %vm332, %v1174, 0
      %v1218 = vsel %vm332, %v1175, 0
      %v1221 = vsel %vm332, %v1176, 0
      %v1224 = vsel %vm332, %v1177, 0
      %v1227 = vsel %vm332, %v1178, 0
      %v1230 = vsel %vm332, %v1179, 0
      %v1233 = vsel %vm332, %v1180, 0
      %v1236 = vsel %vm332, %v1181, 0
      %v1239 = vsel %vm387, %v1183, 0
      %1241 = vmatprep.subr.bf16.mxu0 0
      %1242 = vmatpush1.bf16.msra.mxu0 %v1239
      %1243 = vmatprep.subr.bf16.mxu0 0
      %1244 = vmatpush1.bf16.msra.mxu0 0
      %1245 = vmatprep.subr.bf16.mxu0 0
      %1246 = vmatpush1.bf16.msra.mxu0 0
      %1247 = vmatprep.subr.bf16.mxu0 0
      %1248 = vmatpush1.bf16.msra.mxu0 0
      %1249 = vmatprep.subr.bf16.mxu0 0
      %1250 = vmatpush1.bf16.msra.mxu0 0
      %1251 = vmatprep.subr.bf16.mxu0 0
      %1252 = vmatpush1.bf16.msra.mxu0 0
      %1253 = vmatprep.subr.bf16.mxu0 0
      %1254 = vmatpush1.bf16.msra.mxu0 0
      %1255 = vmatprep.subr.bf16.mxu0 0
      %1256 = vmatpush1.bf16.msra.mxu0 0
      %1257 = vmatprep.subr.bf16.mxu0 0
      %1258 = vmatpush1.bf16.msra.mxu0 0
      %1259 = vmatprep.subr.bf16.mxu0 0
      %1260 = vmatpush1.bf16.msra.mxu0 0
      %1261 = vmatprep.subr.bf16.mxu0 0
      %1262 = vmatpush1.bf16.msra.mxu0 0
      %1263 = vmatprep.subr.bf16.mxu0 0
      %1264 = vmatpush1.bf16.msra.mxu0 0
      %1265 = vmatprep.subr.bf16.mxu0 0
      %1266 = vmatpush1.bf16.msra.mxu0 0
      %1267 = vmatprep.subr.bf16.mxu0 0
      %1268 = vmatpush1.bf16.msra.mxu0 0
      %1269 = vmatprep.subr.bf16.mxu0 0
      %1270 = vmatpush1.bf16.msra.mxu0 0
      %1271 = vmatprep.subr.bf16.mxu0 0
      %1272 = vmatpush1.bf16.msra.mxu0 0
      %1273 = vmatprep.mubr.bf16.mxu0 0
      %1274 = vmatmul.mubr.bf16.gmra.mrb[0].mxu0 %v1185
      %v1275 = vpop.f32.mrb[0].mxu0
      %v1276 = vadd.f32 0.0, %v1275
      %v1277 = vpop.f32.mrb[0].mxu0
      %v1278 = vpop.f32.mrb[0].mxu0
      %v1279 = vadd.f32 0.0, %v1278
      %v1280 = vpop.f32.mrb[0].mxu0
      %1281 = vmatprep.mubr.bf16.mxu0 0
      %1282 = vmatmul.mubr.bf16.gmra.mrb[0].mxu0 %v1188
      %v1283 = vpop.f32.mrb[0].mxu0
      %v1284 = vadd.f32 0.0, %v1283
      %v1285 = vpop.f32.mrb[0].mxu0
      %v1286 = vpop.f32.mrb[0].mxu0
      %v1287 = vadd.f32 0.0, %v1286
      %v1288 = vpop.f32.mrb[0].mxu0
      %1289 = vmatprep.mubr.bf16.mxu0 0
      %1290 = vmatmul.mubr.bf16.gmra.mrb[0].mxu0 %v1191
      %v1291 = vpop.f32.mrb[0].mxu0
      %v1292 = vadd.f32 0.0, %v1291
      %v1293 = vpop.f32.mrb[0].mxu0
      %v1294 = vpop.f32.mrb[0].mxu0
      %v1295 = vadd.f32 0.0, %v1294
      %v1296 = vpop.f32.mrb[0].mxu0
      %1297 = vmatprep.mubr.bf16.mxu0 0
      %1298 = vmatmul.mubr.bf16.gmra.mrb[0].mxu0 %v1194
      %v1299 = vpop.f32.mrb[0].mxu0
      %v1300 = vadd.f32 0.0, %v1299
      %v1301 = vpop.f32.mrb[0].mxu0
      %v1302 = vpop.f32.mrb[0].mxu0
      %v1303 = vadd.f32 0.0, %v1302
      %v1304 = vpop.f32.mrb[0].mxu0
      %1305 = vmatprep.mubr.bf16.mxu0 0
      %1306 = vmatmul.mubr.bf16.gmra.mrb[0].mxu0 %v1197
      %v1307 = vpop.f32.mrb[0].mxu0
      %v1308 = vadd.f32 0.0, %v1307
      %v1309 = vpop.f32.mrb[0].mxu0
      %v1310 = vpop.f32.mrb[0].mxu0
      %v1311 = vadd.f32 0.0, %v1310
      %v1312 = vpop.f32.mrb[0].mxu0
      %1313 = vmatprep.mubr.bf16.mxu0 0
      %1314 = vmatmul.mubr.bf16.gmra.mrb[0].mxu0 %v1200
      %v1315 = vpop.f32.mrb[0].mxu0
      %v1316 = vadd.f32 0.0, %v1315
      %v1317 = vpop.f32.mrb[0].mxu0
      %v1318 = vpop.f32.mrb[0].mxu0
      %v1319 = vadd.f32 0.0, %v1318
      %v1320 = vpop.f32.mrb[0].mxu0
      %1321 = vmatprep.mubr.bf16.mxu0 0
      %1322 = vmatmul.mubr.bf16.gmra.mrb[0].mxu0 %v1203
      %v1323 = vpop.f32.mrb[0].mxu0
      %v1324 = vadd.f32 0.0, %v1323
      %v1325 = vpop.f32.mrb[0].mxu0
      %v1326 = vpop.f32.mrb[0].mxu0
      %v1327 = vadd.f32 0.0, %v1326
      %v1328 = vpop.f32.mrb[0].mxu0
      %1329 = vmatprep.mubr.bf16.mxu0 0
      %1330 = vmatmul.mubr.bf16.gmra.mrb[0].mxu0 %v1206
      %v1331 = vpop.f32.mrb[0].mxu0
      %v1332 = vadd.f32 0.0, %v1331
      %v1333 = vpop.f32.mrb[0].mxu0
      %v1334 = vpop.f32.mrb[0].mxu0
      %v1335 = vadd.f32 0.0, %v1334
      %v1336 = vpop.f32.mrb[0].mxu0
      %1337 = vmatprep.mubr.bf16.mxu0 0
      %1338 = vmatmul.mubr.bf16.gmra.mrb[0].mxu0 %v1209
      %v1339 = vpop.f32.mrb[0].mxu0
      %v1340 = vadd.f32 0.0, %v1339
      %v1341 = vpop.f32.mrb[0].mxu0
      %v1342 = vpop.f32.mrb[0].mxu0
      %v1343 = vadd.f32 0.0, %v1342
      %v1344 = vpop.f32.mrb[0].mxu0
      %1345 = vmatprep.mubr.bf16.mxu0 0
      %1346 = vmatmul.mubr.bf16.gmra.mrb[0].mxu0 %v1212
      %v1347 = vpop.f32.mrb[0].mxu0
      %v1348 = vadd.f32 0.0, %v1347
      %v1349 = vpop.f32.mrb[0].mxu0
      %v1350 = vpop.f32.mrb[0].mxu0
      %v1351 = vadd.f32 0.0, %v1350
      %v1352 = vpop.f32.mrb[0].mxu0
      %1353 = vmatprep.mubr.bf16.mxu0 0
      %1354 = vmatmul.mubr.bf16.gmra.mrb[0].mxu0 %v1215
      %v1355 = vpop.f32.mrb[0].mxu0
      %v1356 = vadd.f32 0.0, %v1355
      %v1357 = vpop.f32.mrb[0].mxu0
      %v1358 = vpop.f32.mrb[0].mxu0
      %v1359 = vadd.f32 0.0, %v1358
      %v1360 = vpop.f32.mrb[0].mxu0
      %1361 = vmatprep.mubr.bf16.mxu0 0
      %1362 = vmatmul.mubr.bf16.gmra.mrb[0].mxu0 %v1218
      %v1363 = vpop.f32.mrb[0].mxu0
      %v1364 = vadd.f32 0.0, %v1363
      %v1365 = vpop.f32.mrb[0].mxu0
      %v1366 = vpop.f32.mrb[0].mxu0
      %v1367 = vadd.f32 0.0, %v1366
      %v1368 = vpop.f32.mrb[0].mxu0
      %1369 = vmatprep.mubr.bf16.mxu0 0
      %1370 = vmatmul.mubr.bf16.gmra.mrb[0].mxu0 %v1221
      %v1371 = vpop.f32.mrb[0].mxu0
      %v1372 = vadd.f32 0.0, %v1371
      %v1373 = vpop.f32.mrb[0].mxu0
      %v1374 = vpop.f32.mrb[0].mxu0
      %v1375 = vadd.f32 0.0, %v1374
      %v1376 = vpop.f32.mrb[0].mxu0
      %1377 = vmatprep.mubr.bf16.mxu0 0
      %1378 = vmatmul.mubr.bf16.gmra.mrb[0].mxu0 %v1224
      %v1379 = vpop.f32.mrb[0].mxu0
      %v1380 = vadd.f32 0.0, %v1379
      %v1381 = vpop.f32.mrb[0].mxu0
      %v1382 = vpop.f32.mrb[0].mxu0
      %v1383 = vadd.f32 0.0, %v1382
      %v1384 = vpop.f32.mrb[0].mxu0
      %1385 = vmatprep.mubr.bf16.mxu0 0
      %1386 = vmatmul.mubr.bf16.gmra.mrb[0].mxu0 %v1227
      %v1387 = vpop.f32.mrb[0].mxu0
      %v1388 = vadd.f32 0.0, %v1387
      %v1389 = vpop.f32.mrb[0].mxu0
      %v1390 = vpop.f32.mrb[0].mxu0
      %v1391 = vadd.f32 0.0, %v1390
      %v1392 = vpop.f32.mrb[0].mxu0
      %1393 = vmatprep.mubr.bf16.mxu0 0
      %1394 = vmatmul.mubr.bf16.gmra.mrb[0].mxu0 %v1230
      %v1395 = vpop.f32.mrb[0].mxu0
      %v1396 = vadd.f32 0.0, %v1395
      %v1397 = vpop.f32.mrb[0].mxu0
      %v1398 = vpop.f32.mrb[0].mxu0
      %v1399 = vadd.f32 0.0, %v1398
      %v1400 = vpop.f32.mrb[0].mxu0
      %1401 = vmatprep.mubr.bf16.mxu0 0
      %1402 = vmatmul.mubr.bf16.gmra.mrb[0].mxu0 %v1233
      %v1403 = vpop.f32.mrb[0].mxu0
      %v1404 = vadd.f32 0.0, %v1403
      %v1405 = vpop.f32.mrb[0].mxu0
      %v1406 = vpop.f32.mrb[0].mxu0
      %v1407 = vadd.f32 0.0, %v1406
      %v1408 = vpop.f32.mrb[0].mxu0
      %1409 = vmatprep.mubr.bf16.mxu0 0
      %1410 = vmatmul.mubr.bf16.gmra.mrb[0].mxu0 %v1236
      %v1411 = vpop.f32.mrb[0].mxu0
      %v1412 = vadd.f32 0.0, %v1411
      %v1413 = vpop.f32.mrb[0].mxu0
      %v1414 = vpop.f32.mrb[0].mxu0
      %v1415 = vadd.f32 0.0, %v1414
      %v1416 = vpop.f32.mrb[0].mxu0
      %1417 = vdwg.mxu0
      %v1418 = vadd.f32 %v1092, %v1276
      %v1419 = vadd.f32 %v1093, %v1279
      %v1420 = vadd.f32 %v1094, %v1284
      %v1421 = vadd.f32 %v1095, %v1287
      %v1422 = vadd.f32 %v1096, %v1292
      %v1423 = vadd.f32 %v1097, %v1295
      %v1424 = vadd.f32 %v1098, %v1300
      %v1425 = vadd.f32 %v1099, %v1303
      %v1426 = vadd.f32 %v1100, %v1308
      %v1427 = vadd.f32 %v1101, %v1311
      %v1428 = vadd.f32 %v1102, %v1316
      %v1429 = vadd.f32 %v1103, %v1319
      %v1430 = vadd.f32 %v1104, %v1324
      %v1431 = vadd.f32 %v1105, %v1327
      %v1432 = vadd.f32 %v1106, %v1332
      %v1433 = vadd.f32 %v1107, %v1335
      %v1434 = vadd.f32 %v1108, %v1340
      %v1435 = vadd.f32 %v1109, %v1343
      %v1436 = vadd.f32 %v1110, %v1348
      %v1437 = vadd.f32 %v1111, %v1351
      %v1438 = vadd.f32 %v1112, %v1356
      %v1439 = vadd.f32 %v1113, %v1359
      %v1440 = vadd.f32 %v1114, %v1364
      %v1441 = vadd.f32 %v1115, %v1367
      %v1442 = vadd.f32 %v1116, %v1372
      %v1443 = vadd.f32 %v1117, %v1375
      %v1444 = vadd.f32 %v1118, %v1380
      %v1445 = vadd.f32 %v1119, %v1383
      %v1446 = vadd.f32 %v1120, %v1388
      %v1447 = vadd.f32 %v1121, %v1391
      %v1448 = vadd.f32 %v1122, %v1396
      %v1449 = vadd.f32 %v1123, %v1399
      %v1450 = vadd.f32 %v1124, %v1404
      %v1451 = vadd.f32 %v1125, %v1407
      %v1452 = vadd.f32 %v1126, %v1412
      %v1453 = vadd.f32 %v1127, %v1415
      %v1454 = vld [vmem:[%s214 + $0x13] sm:$0xff]
      %v1455 = vld [vmem:[%s214 + $0x1b] sm:$0xff]
      %v1456 = vld [vmem:[%s214 + $0x23] sm:$0xff]
      %v1457 = vld [vmem:[%s214 + $0x2b] sm:$0xff]
      %v1458 = vld [vmem:[%s214 + $0x33] sm:$0xff]
      %v1459 = vld [vmem:[%s214 + $0x3b] sm:$0xff]
      %v1460 = vld [vmem:[%s214 + $0x43] sm:$0xff]
      %v1461 = vld [vmem:[%s214 + $0x4b] sm:$0xff]
      %v1462 = vld [vmem:[%s214 + $0x53] sm:$0xff]
      %v1463 = vld [vmem:[%s214 + $0x5b] sm:$0xff]
      %v1464 = vld [vmem:[%s214 + $0x63] sm:$0xff]
      %v1465 = vld [vmem:[%s214 + $0x6b] sm:$0xff]
      %v1466 = vld [vmem:[%s214 + $0x73] sm:$0xff]
      %v1467 = vld [vmem:[%s214 + $0x7b] sm:$0xff]
      %v1468 = vld [vmem:[%s214 + $0x83] sm:$0xff]
      %v1469 = vld [vmem:[%s214 + $0x8b] sm:$0xff]
      %v1470 = vld [vmem:[%s214 + $0x93] sm:$0xff]
      %v1471 = vld [vmem:[%s214 + $0x9b] sm:$0xff]
      %v1472 = vld [vmem:[%s214 + $0xa3] sm:$0xff]
      %v1473 = vld [vmem:[%s214 + $0xab] sm:$0xff]
      %v1474 = vld [vmem:[%s214 + $0xb3] sm:$0xff]
      %v1475 = vld [vmem:[%s214 + $0xbb] sm:$0xff]
      %v1476 = vld [vmem:[%s214 + $0xc3] sm:$0xff]
      %v1477 = vld [vmem:[%s214 + $0xcb] sm:$0xff]
      %v1478 = vld [vmem:[%s214 + $0xd3] sm:$0xff]
      %v1479 = vld [vmem:[%s214 + $0xdb] sm:$0xff]
      %v1480 = vld [vmem:[%s214 + $0xe3] sm:$0xff]
      %v1481 = vld [vmem:[%s214 + $0xeb] sm:$0xff]
      %v1482 = vld [vmem:[%s214 + $0xf3] sm:$0xff]
      %v1483 = vld [vmem:[%s214 + $0xfb] sm:$0xff]
      %v1484 = vld [vmem:[%s214 + $0x103] sm:$0xff]
      %v1485 = vld [vmem:[%s214 + $0x10b] sm:$0xff]
      %v1486 = vld [vmem:[%s214 + $0x113] sm:$0xff]
      %v1487 = vld [vmem:[%s214 + $0x11b] sm:$0xff]
      %v1488 = vld [vmem:[%s214 + $0x123] sm:$0xff]
      %v1489 = vld [vmem:[%s214 + $0x12b] sm:$0xff]
      %v1490 = vpack.c.bf16 %v1455, %v1454
      %v1491 = vpack.c.bf16 %v1457, %v1456
      %v1492 = vpack.c.bf16 %v1459, %v1458
      %v1493 = vpack.c.bf16 %v1461, %v1460
      %v1494 = vpack.c.bf16 %v1463, %v1462
      %v1495 = vpack.c.bf16 %v1465, %v1464
      %v1496 = vpack.c.bf16 %v1467, %v1466
      %v1497 = vpack.c.bf16 %v1469, %v1468
      %v1498 = vpack.c.bf16 %v1471, %v1470
      %v1499 = vpack.c.bf16 %v1473, %v1472
      %v1500 = vpack.c.bf16 %v1475, %v1474
      %v1501 = vpack.c.bf16 %v1477, %v1476
      %v1502 = vpack.c.bf16 %v1479, %v1478
      %v1503 = vpack.c.bf16 %v1481, %v1480
      %v1504 = vpack.c.bf16 %v1483, %v1482
      %v1505 = vpack.c.bf16 %v1485, %v1484
      %v1506 = vpack.c.bf16 %v1487, %v1486
      %v1507 = vpack.c.bf16 %v1489, %v1488
      %s1508 = scalar_lea.vmem %s1, 16
      %v1509 = vld [vmem:[%s1508] sm:$0xf]
      %v1511 = vsel %vm332, %v1490, 0
      %v1514 = vsel %vm332, %v1491, 0
      %v1517 = vsel %vm332, %v1492, 0
      %v1520 = vsel %vm332, %v1493, 0
      %v1523 = vsel %vm332, %v1494, 0
      %v1526 = vsel %vm332, %v1495, 0
      %v1529 = vsel %vm332, %v1496, 0
      %v1532 = vsel %vm332, %v1497, 0
      %v1535 = vsel %vm332, %v1498, 0
      %v1538 = vsel %vm332, %v1499, 0
      %v1541 = vsel %vm332, %v1500, 0
      %v1544 = vsel %vm332, %v1501, 0
      %v1547 = vsel %vm332, %v1502, 0
      %v1550 = vsel %vm332, %v1503, 0
      %v1553 = vsel %vm332, %v1504, 0
      %v1556 = vsel %vm332, %v1505, 0
      %v1559 = vsel %vm332, %v1506, 0
      %v1562 = vsel %vm332, %v1507, 0
      %v1565 = vsel %vm387, %v1509, 0
      %1567 = vmatprep.subr.bf16.mxu0 0
      %1568 = vmatpush1.bf16.msra.mxu0 %v1565
      %1569 = vmatprep.subr.bf16.mxu0 0
      %1570 = vmatpush1.bf16.msra.mxu0 0
      %1571 = vmatprep.subr.bf16.mxu0 0
      %1572 = vmatpush1.bf16.msra.mxu0 0
      %1573 = vmatprep.subr.bf16.mxu0 0
      %1574 = vmatpush1.bf16.msra.mxu0 0
      %1575 = vmatprep.subr.bf16.mxu0 0
      %1576 = vmatpush1.bf16.msra.mxu0 0
      %1577 = vmatprep.subr.bf16.mxu0 0
      %1578 = vmatpush1.bf16.msra.mxu0 0
      %1579 = vmatprep.subr.bf16.mxu0 0
      %1580 = vmatpush1.bf16.msra.mxu0 0
      %1581 = vmatprep.subr.bf16.mxu0 0
      %1582 = vmatpush1.bf16.msra.mxu0 0
      %1583 = vmatprep.subr.bf16.mxu0 0
      %1584 = vmatpush1.bf16.msra.mxu0 0
      %1585 = vmatprep.subr.bf16.mxu0 0
      %1586 = vmatpush1.bf16.msra.mxu0 0
      %1587 = vmatprep.subr.bf16.mxu0 0
      %1588 = vmatpush1.bf16.msra.mxu0 0
      %1589 = vmatprep.subr.bf16.mxu0 0
      %1590 = vmatpush1.bf16.msra.mxu0 0
      %1591 = vmatprep.subr.bf16.mxu0 0
      %1592 = vmatpush1.bf16.msra.mxu0 0
      %1593 = vmatprep.subr.bf16.mxu0 0
      %1594 = vmatpush1.bf16.msra.mxu0 0
      %1595 = vmatprep.subr.bf16.mxu0 0
      %1596 = vmatpush1.bf16.msra.mxu0 0
      %1597 = vmatprep.subr.bf16.mxu0 0
      %1598 = vmatpush1.bf16.msra.mxu0 0
      %1599 = vmatprep.mubr.bf16.mxu0 0
      %1600 = vmatmul.mubr.bf16.gmra.mrb[0].mxu0 %v1511
      %v1601 = vpop.f32.mrb[0].mxu0
      %v1602 = vadd.f32 0.0, %v1601
      %v1603 = vpop.f32.mrb[0].mxu0
      %v1604 = vpop.f32.mrb[0].mxu0
      %v1605 = vadd.f32 0.0, %v1604
      %v1606 = vpop.f32.mrb[0].mxu0
      %1607 = vmatprep.mubr.bf16.mxu0 0
      %1608 = vmatmul.mubr.bf16.gmra.mrb[0].mxu0 %v1514
      %v1609 = vpop.f32.mrb[0].mxu0
      %v1610 = vadd.f32 0.0, %v1609
      %v1611 = vpop.f32.mrb[0].mxu0
      %v1612 = vpop.f32.mrb[0].mxu0
      %v1613 = vadd.f32 0.0, %v1612
      %v1614 = vpop.f32.mrb[0].mxu0
      %1615 = vmatprep.mubr.bf16.mxu0 0
      %1616 = vmatmul.mubr.bf16.gmra.mrb[0].mxu0 %v1517
      %v1617 = vpop.f32.mrb[0].mxu0
      %v1618 = vadd.f32 0.0, %v1617
      %v1619 = vpop.f32.mrb[0].mxu0
      %v1620 = vpop.f32.mrb[0].mxu0
      %v1621 = vadd.f32 0.0, %v1620
      %v1622 = vpop.f32.mrb[0].mxu0
      %1623 = vmatprep.mubr.bf16.mxu0 0
      %1624 = vmatmul.mubr.bf16.gmra.mrb[0].mxu0 %v1520
      %v1625 = vpop.f32.mrb[0].mxu0
      %v1626 = vadd.f32 0.0, %v1625
      %v1627 = vpop.f32.mrb[0].mxu0
      %v1628 = vpop.f32.mrb[0].mxu0
      %v1629 = vadd.f32 0.0, %v1628
      %v1630 = vpop.f32.mrb[0].mxu0
      %1631 = vmatprep.mubr.bf16.mxu0 0
      %1632 = vmatmul.mubr.bf16.gmra.mrb[0].mxu0 %v1523
      %v1633 = vpop.f32.mrb[0].mxu0
      %v1634 = vadd.f32 0.0, %v1633
      %v1635 = vpop.f32.mrb[0].mxu0
      %v1636 = vpop.f32.mrb[0].mxu0
      %v1637 = vadd.f32 0.0, %v1636
      %v1638 = vpop.f32.mrb[0].mxu0
      %1639 = vmatprep.mubr.bf16.mxu0 0
      %1640 = vmatmul.mubr.bf16.gmra.mrb[0].mxu0 %v1526
      %v1641 = vpop.f32.mrb[0].mxu0
      %v1642 = vadd.f32 0.0, %v1641
      %v1643 = vpop.f32.mrb[0].mxu0
      %v1644 = vpop.f32.mrb[0].mxu0
      %v1645 = vadd.f32 0.0, %v1644
      %v1646 = vpop.f32.mrb[0].mxu0
      %1647 = vmatprep.mubr.bf16.mxu0 0
      %1648 = vmatmul.mubr.bf16.gmra.mrb[0].mxu0 %v1529
      %v1649 = vpop.f32.mrb[0].mxu0
      %v1650 = vadd.f32 0.0, %v1649
      %v1651 = vpop.f32.mrb[0].mxu0
      %v1652 = vpop.f32.mrb[0].mxu0
      %v1653 = vadd.f32 0.0, %v1652
      %v1654 = vpop.f32.mrb[0].mxu0
      %1655 = vmatprep.mubr.bf16.mxu0 0
      %1656 = vmatmul.mubr.bf16.gmra.mrb[0].mxu0 %v1532
      %v1657 = vpop.f32.mrb[0].mxu0
      %v1658 = vadd.f32 0.0, %v1657
      %v1659 = vpop.f32.mrb[0].mxu0
      %v1660 = vpop.f32.mrb[0].mxu0
      %v1661 = vadd.f32 0.0, %v1660
      %v1662 = vpop.f32.mrb[0].mxu0
      %1663 = vmatprep.mubr.bf16.mxu0 0
      %1664 = vmatmul.mubr.bf16.gmra.mrb[0].mxu0 %v1535
      %v1665 = vpop.f32.mrb[0].mxu0
      %v1666 = vadd.f32 0.0, %v1665
      %v1667 = vpop.f32.mrb[0].mxu0
      %v1668 = vpop.f32.mrb[0].mxu0
      %v1669 = vadd.f32 0.0, %v1668
      %v1670 = vpop.f32.mrb[0].mxu0
      %1671 = vmatprep.mubr.bf16.mxu0 0
      %1672 = vmatmul.mubr.bf16.gmra.mrb[0].mxu0 %v1538
      %v1673 = vpop.f32.mrb[0].mxu0
      %v1674 = vadd.f32 0.0, %v1673
      %v1675 = vpop.f32.mrb[0].mxu0
      %v1676 = vpop.f32.mrb[0].mxu0
      %v1677 = vadd.f32 0.0, %v1676
      %v1678 = vpop.f32.mrb[0].mxu0
      %1679 = vmatprep.mubr.bf16.mxu0 0
      %1680 = vmatmul.mubr.bf16.gmra.mrb[0].mxu0 %v1541
      %v1681 = vpop.f32.mrb[0].mxu0
      %v1682 = vadd.f32 0.0, %v1681
      %v1683 = vpop.f32.mrb[0].mxu0
      %v1684 = vpop.f32.mrb[0].mxu0
      %v1685 = vadd.f32 0.0, %v1684
      %v1686 = vpop.f32.mrb[0].mxu0
      %1687 = vmatprep.mubr.bf16.mxu0 0
      %1688 = vmatmul.mubr.bf16.gmra.mrb[0].mxu0 %v1544
      %v1689 = vpop.f32.mrb[0].mxu0
      %v1690 = vadd.f32 0.0, %v1689
      %v1691 = vpop.f32.mrb[0].mxu0
      %v1692 = vpop.f32.mrb[0].mxu0
      %v1693 = vadd.f32 0.0, %v1692
      %v1694 = vpop.f32.mrb[0].mxu0
      %1695 = vmatprep.mubr.bf16.mxu0 0
      %1696 = vmatmul.mubr.bf16.gmra.mrb[0].mxu0 %v1547
      %v1697 = vpop.f32.mrb[0].mxu0
      %v1698 = vadd.f32 0.0, %v1697
      %v1699 = vpop.f32.mrb[0].mxu0
      %v1700 = vpop.f32.mrb[0].mxu0
      %v1701 = vadd.f32 0.0, %v1700
      %v1702 = vpop.f32.mrb[0].mxu0
      %1703 = vmatprep.mubr.bf16.mxu0 0
      %1704 = vmatmul.mubr.bf16.gmra.mrb[0].mxu0 %v1550
      %v1705 = vpop.f32.mrb[0].mxu0
      %v1706 = vadd.f32 0.0, %v1705
      %v1707 = vpop.f32.mrb[0].mxu0
      %v1708 = vpop.f32.mrb[0].mxu0
      %v1709 = vadd.f32 0.0, %v1708
      %v1710 = vpop.f32.mrb[0].mxu0
      %1711 = vmatprep.mubr.bf16.mxu0 0
      %1712 = vmatmul.mubr.bf16.gmra.mrb[0].mxu0 %v1553
      %v1713 = vpop.f32.mrb[0].mxu0
      %v1714 = vadd.f32 0.0, %v1713
      %v1715 = vpop.f32.mrb[0].mxu0
      %v1716 = vpop.f32.mrb[0].mxu0
      %v1717 = vadd.f32 0.0, %v1716
      %v1718 = vpop.f32.mrb[0].mxu0
      %1719 = vmatprep.mubr.bf16.mxu0 0
      %1720 = vmatmul.mubr.bf16.gmra.mrb[0].mxu0 %v1556
      %v1721 = vpop.f32.mrb[0].mxu0
      %v1722 = vadd.f32 0.0, %v1721
      %v1723 = vpop.f32.mrb[0].mxu0
      %v1724 = vpop.f32.mrb[0].mxu0
      %v1725 = vadd.f32 0.0, %v1724
      %v1726 = vpop.f32.mrb[0].mxu0
      %1727 = vmatprep.mubr.bf16.mxu0 0
      %1728 = vmatmul.mubr.bf16.gmra.mrb[0].mxu0 %v1559
      %v1729 = vpop.f32.mrb[0].mxu0
      %v1730 = vadd.f32 0.0, %v1729
      %v1731 = vpop.f32.mrb[0].mxu0
      %v1732 = vpop.f32.mrb[0].mxu0
      %v1733 = vadd.f32 0.0, %v1732
      %v1734 = vpop.f32.mrb[0].mxu0
      %1735 = vmatprep.mubr.bf16.mxu0 0
      %1736 = vmatmul.mubr.bf16.gmra.mrb[0].mxu0 %v1562
      %v1737 = vpop.f32.mrb[0].mxu0
      %v1738 = vadd.f32 0.0, %v1737
      %v1739 = vpop.f32.mrb[0].mxu0
      %v1740 = vpop.f32.mrb[0].mxu0
      %v1741 = vadd.f32 0.0, %v1740
      %v1742 = vpop.f32.mrb[0].mxu0
      %1743 = vdwg.mxu0
      %v1744 = vadd.f32 %v1418, %v1602
      %v1745 = vadd.f32 %v1419, %v1605
      %v1746 = vadd.f32 %v1420, %v1610
      %v1747 = vadd.f32 %v1421, %v1613
      %v1748 = vadd.f32 %v1422, %v1618
      %v1749 = vadd.f32 %v1423, %v1621
      %v1750 = vadd.f32 %v1424, %v1626
      %v1751 = vadd.f32 %v1425, %v1629
      %v1752 = vadd.f32 %v1426, %v1634
      %v1753 = vadd.f32 %v1427, %v1637
      %v1754 = vadd.f32 %v1428, %v1642
      %v1755 = vadd.f32 %v1429, %v1645
      %v1756 = vadd.f32 %v1430, %v1650
      %v1757 = vadd.f32 %v1431, %v1653
      %v1758 = vadd.f32 %v1432, %v1658
      %v1759 = vadd.f32 %v1433, %v1661
      %v1760 = vadd.f32 %v1434, %v1666
      %v1761 = vadd.f32 %v1435, %v1669
      %v1762 = vadd.f32 %v1436, %v1674
      %v1763 = vadd.f32 %v1437, %v1677
      %v1764 = vadd.f32 %v1438, %v1682
      %v1765 = vadd.f32 %v1439, %v1685
      %v1766 = vadd.f32 %v1440, %v1690
      %v1767 = vadd.f32 %v1441, %v1693
      %v1768 = vadd.f32 %v1442, %v1698
      %v1769 = vadd.f32 %v1443, %v1701
      %v1770 = vadd.f32 %v1444, %v1706
      %v1771 = vadd.f32 %v1445, %v1709
      %v1772 = vadd.f32 %v1446, %v1714
      %v1773 = vadd.f32 %v1447, %v1717
      %v1774 = vadd.f32 %v1448, %v1722
      %v1775 = vadd.f32 %v1449, %v1725
      %v1776 = vadd.f32 %v1450, %v1730
      %v1777 = vadd.f32 %v1451, %v1733
      %v1778 = vadd.f32 %v1452, %v1738
      %v1779 = vadd.f32 %v1453, %v1741
      %v1780 = vld [vmem:[%s214 + $0x14] sm:$0xff]
      %v1781 = vld [vmem:[%s214 + $0x1c] sm:$0xff]
      %v1782 = vld [vmem:[%s214 + $0x24] sm:$0xff]
      %v1783 = vld [vmem:[%s214 + $0x2c] sm:$0xff]
      %v1784 = vld [vmem:[%s214 + $0x34] sm:$0xff]
      %v1785 = vld [vmem:[%s214 + $0x3c] sm:$0xff]
      %v1786 = vld [vmem:[%s214 + $0x44] sm:$0xff]
      %v1787 = vld [vmem:[%s214 + $0x4c] sm:$0xff]
      %v1788 = vld [vmem:[%s214 + $0x54] sm:$0xff]
      %v1789 = vld [vmem:[%s214 + $0x5c] sm:$0xff]
      %v1790 = vld [vmem:[%s214 + $0x64] sm:$0xff]
      %v1791 = vld [vmem:[%s214 + $0x6c] sm:$0xff]
      %v1792 = vld [vmem:[%s214 + $0x74] sm:$0xff]
      %v1793 = vld [vmem:[%s214 + $0x7c] sm:$0xff]
      %v1794 = vld [vmem:[%s214 + $0x84] sm:$0xff]
      %v1795 = vld [vmem:[%s214 + $0x8c] sm:$0xff]
      %v1796 = vld [vmem:[%s214 + $0x94] sm:$0xff]
      %v1797 = vld [vmem:[%s214 + $0x9c] sm:$0xff]
      %v1798 = vld [vmem:[%s214 + $0xa4] sm:$0xff]
      %v1799 = vld [vmem:[%s214 + $0xac] sm:$0xff]
      %v1800 = vld [vmem:[%s214 + $0xb4] sm:$0xff]
      %v1801 = vld [vmem:[%s214 + $0xbc] sm:$0xff]
      %v1802 = vld [vmem:[%s214 + $0xc4] sm:$0xff]
      %v1803 = vld [vmem:[%s214 + $0xcc] sm:$0xff]
      %v1804 = vld [vmem:[%s214 + $0xd4] sm:$0xff]
      %v1805 = vld [vmem:[%s214 + $0xdc] sm:$0xff]
      %v1806 = vld [vmem:[%s214 + $0xe4] sm:$0xff]
      %v1807 = vld [vmem:[%s214 + $0xec] sm:$0xff]
      %v1808 = vld [vmem:[%s214 + $0xf4] sm:$0xff]
      %v1809 = vld [vmem:[%s214 + $0xfc] sm:$0xff]
      %v1810 = vld [vmem:[%s214 + $0x104] sm:$0xff]
      %v1811 = vld [vmem:[%s214 + $0x10c] sm:$0xff]
      %v1812 = vld [vmem:[%s214 + $0x114] sm:$0xff]
      %v1813 = vld [vmem:[%s214 + $0x11c] sm:$0xff]
      %v1814 = vld [vmem:[%s214 + $0x124] sm:$0xff]
      %v1815 = vld [vmem:[%s214 + $0x12c] sm:$0xff]
      %v1816 = vpack.c.bf16 %v1781, %v1780
      %v1817 = vpack.c.bf16 %v1783, %v1782
      %v1818 = vpack.c.bf16 %v1785, %v1784
      %v1819 = vpack.c.bf16 %v1787, %v1786
      %v1820 = vpack.c.bf16 %v1789, %v1788
      %v1821 = vpack.c.bf16 %v1791, %v1790
      %v1822 = vpack.c.bf16 %v1793, %v1792
      %v1823 = vpack.c.bf16 %v1795, %v1794
      %v1824 = vpack.c.bf16 %v1797, %v1796
      %v1825 = vpack.c.bf16 %v1799, %v1798
      %v1826 = vpack.c.bf16 %v1801, %v1800
      %v1827 = vpack.c.bf16 %v1803, %v1802
      %v1828 = vpack.c.bf16 %v1805, %v1804
      %v1829 = vpack.c.bf16 %v1807, %v1806
      %v1830 = vpack.c.bf16 %v1809, %v1808
      %v1831 = vpack.c.bf16 %v1811, %v1810
      %v1832 = vpack.c.bf16 %v1813, %v1812
      %v1833 = vpack.c.bf16 %v1815, %v1814
      %s1834 = scalar_lea.vmem %s1, 20
      %v1835 = vld [vmem:[%s1834] sm:$0xf]
      %v1837 = vsel %vm332, %v1816, 0
      %v1840 = vsel %vm332, %v1817, 0
      %v1843 = vsel %vm332, %v1818, 0
      %v1846 = vsel %vm332, %v1819, 0
      %v1849 = vsel %vm332, %v1820, 0
      %v1852 = vsel %vm332, %v1821, 0
      %v1855 = vsel %vm332, %v1822, 0
      %v1858 = vsel %vm332, %v1823, 0
      %v1861 = vsel %vm332, %v1824, 0
      %v1864 = vsel %vm332, %v1825, 0
      %v1867 = vsel %vm332, %v1826, 0
      %v1870 = vsel %vm332, %v1827, 0
      %v1873 = vsel %vm332, %v1828, 0
      %v1876 = vsel %vm332, %v1829, 0
      %v1879 = vsel %vm332, %v1830, 0
      %v1882 = vsel %vm332, %v1831, 0
      %v1885 = vsel %vm332, %v1832, 0
      %v1888 = vsel %vm332, %v1833, 0
      %v1891 = vsel %vm387, %v1835, 0
      %1893 = vmatprep.subr.bf16.mxu0 0
      %1894 = vmatpush1.bf16.msra.mxu0 %v1891
      %1895 = vmatprep.subr.bf16.mxu0 0
      %1896 = vmatpush1.bf16.msra.mxu0 0
      %1897 = vmatprep.subr.bf16.mxu0 0
      %1898 = vmatpush1.bf16.msra.mxu0 0
      %1899 = vmatprep.subr.bf16.mxu0 0
      %1900 = vmatpush1.bf16.msra.mxu0 0
      %1901 = vmatprep.subr.bf16.mxu0 0
      %1902 = vmatpush1.bf16.msra.mxu0 0
      %1903 = vmatprep.subr.bf16.mxu0 0
      %1904 = vmatpush1.bf16.msra.mxu0 0
      %1905 = vmatprep.subr.bf16.mxu0 0
      %1906 = vmatpush1.bf16.msra.mxu0 0
      %1907 = vmatprep.subr.bf16.mxu0 0
      %1908 = vmatpush1.bf16.msra.mxu0 0
      %1909 = vmatprep.subr.bf16.mxu0 0
      %1910 = vmatpush1.bf16.msra.mxu0 0
      %1911 = vmatprep.subr.bf16.mxu0 0
      %1912 = vmatpush1.bf16.msra.mxu0 0
      %1913 = vmatprep.subr.bf16.mxu0 0
      %1914 = vmatpush1.bf16.msra.mxu0 0
      %1915 = vmatprep.subr.bf16.mxu0 0
      %1916 = vmatpush1.bf16.msra.mxu0 0
      %1917 = vmatprep.subr.bf16.mxu0 0
      %1918 = vmatpush1.bf16.msra.mxu0 0
      %1919 = vmatprep.subr.bf16.mxu0 0
      %1920 = vmatpush1.bf16.msra.mxu0 0
      %1921 = vmatprep.subr.bf16.mxu0 0
      %1922 = vmatpush1.bf16.msra.mxu0 0
      %1923 = vmatprep.subr.bf16.mxu0 0
      %1924 = vmatpush1.bf16.msra.mxu0 0
      %1925 = vmatprep.mubr.bf16.mxu0 0
      %1926 = vmatmul.mubr.bf16.gmra.mrb[0].mxu0 %v1837
      %v1927 = vpop.f32.mrb[0].mxu0
      %v1928 = vadd.f32 0.0, %v1927
      %v1929 = vpop.f32.mrb[0].mxu0
      %v1930 = vpop.f32.mrb[0].mxu0
      %v1931 = vadd.f32 0.0, %v1930
      %v1932 = vpop.f32.mrb[0].mxu0
      %1933 = vmatprep.mubr.bf16.mxu0 0
      %1934 = vmatmul.mubr.bf16.gmra.mrb[0].mxu0 %v1840
      %v1935 = vpop.f32.mrb[0].mxu0
      %v1936 = vadd.f32 0.0, %v1935
      %v1937 = vpop.f32.mrb[0].mxu0
      %v1938 = vpop.f32.mrb[0].mxu0
      %v1939 = vadd.f32 0.0, %v1938
      %v1940 = vpop.f32.mrb[0].mxu0
      %1941 = vmatprep.mubr.bf16.mxu0 0
      %1942 = vmatmul.mubr.bf16.gmra.mrb[0].mxu0 %v1843
      %v1943 = vpop.f32.mrb[0].mxu0
      %v1944 = vadd.f32 0.0, %v1943
      %v1945 = vpop.f32.mrb[0].mxu0
      %v1946 = vpop.f32.mrb[0].mxu0
      %v1947 = vadd.f32 0.0, %v1946
      %v1948 = vpop.f32.mrb[0].mxu0
      %1949 = vmatprep.mubr.bf16.mxu0 0
      %1950 = vmatmul.mubr.bf16.gmra.mrb[0].mxu0 %v1846
      %v1951 = vpop.f32.mrb[0].mxu0
      %v1952 = vadd.f32 0.0, %v1951
      %v1953 = vpop.f32.mrb[0].mxu0
      %v1954 = vpop.f32.mrb[0].mxu0
      %v1955 = vadd.f32 0.0, %v1954
      %v1956 = vpop.f32.mrb[0].mxu0
      %1957 = vmatprep.mubr.bf16.mxu0 0
      %1958 = vmatmul.mubr.bf16.gmra.mrb[0].mxu0 %v1849
      %v1959 = vpop.f32.mrb[0].mxu0
      %v1960 = vadd.f32 0.0, %v1959
      %v1961 = vpop.f32.mrb[0].mxu0
      %v1962 = vpop.f32.mrb[0].mxu0
      %v1963 = vadd.f32 0.0, %v1962
      %v1964 = vpop.f32.mrb[0].mxu0
      %1965 = vmatprep.mubr.bf16.mxu0 0
      %1966 = vmatmul.mubr.bf16.gmra.mrb[0].mxu0 %v1852
      %v1967 = vpop.f32.mrb[0].mxu0
      %v1968 = vadd.f32 0.0, %v1967
      %v1969 = vpop.f32.mrb[0].mxu0
      %v1970 = vpop.f32.mrb[0].mxu0
      %v1971 = vadd.f32 0.0, %v1970
      %v1972 = vpop.f32.mrb[0].mxu0
      %1973 = vmatprep.mubr.bf16.mxu0 0
      %1974 = vmatmul.mubr.bf16.gmra.mrb[0].mxu0 %v1855
      %v1975 = vpop.f32.mrb[0].mxu0
      %v1976 = vadd.f32 0.0, %v1975
      %v1977 = vpop.f32.mrb[0].mxu0
      %v1978 = vpop.f32.mrb[0].mxu0
      %v1979 = vadd.f32 0.0, %v1978
      %v1980 = vpop.f32.mrb[0].mxu0
      %1981 = vmatprep.mubr.bf16.mxu0 0
      %1982 = vmatmul.mubr.bf16.gmra.mrb[0].mxu0 %v1858
      %v1983 = vpop.f32.mrb[0].mxu0
      %v1984 = vadd.f32 0.0, %v1983
      %v1985 = vpop.f32.mrb[0].mxu0
      %v1986 = vpop.f32.mrb[0].mxu0
      %v1987 = vadd.f32 0.0, %v1986
      %v1988 = vpop.f32.mrb[0].mxu0
      %1989 = vmatprep.mubr.bf16.mxu0 0
      %1990 = vmatmul.mubr.bf16.gmra.mrb[0].mxu0 %v1861
      %v1991 = vpop.f32.mrb[0].mxu0
      %v1992 = vadd.f32 0.0, %v1991
      %v1993 = vpop.f32.mrb[0].mxu0
      %v1994 = vpop.f32.mrb[0].mxu0
      %v1995 = vadd.f32 0.0, %v1994
      %v1996 = vpop.f32.mrb[0].mxu0
      %1997 = vmatprep.mubr.bf16.mxu0 0
      %1998 = vmatmul.mubr.bf16.gmra.mrb[0].mxu0 %v1864
      %v1999 = vpop.f32.mrb[0].mxu0
      %v2000 = vadd.f32 0.0, %v1999
      %v2001 = vpop.f32.mrb[0].mxu0
      %v2002 = vpop.f32.mrb[0].mxu0
      %v2003 = vadd.f32 0.0, %v2002
      %v2004 = vpop.f32.mrb[0].mxu0
      %2005 = vmatprep.mubr.bf16.mxu0 0
      %2006 = vmatmul.mubr.bf16.gmra.mrb[0].mxu0 %v1867
      %v2007 = vpop.f32.mrb[0].mxu0
      %v2008 = vadd.f32 0.0, %v2007
      %v2009 = vpop.f32.mrb[0].mxu0
      %v2010 = vpop.f32.mrb[0].mxu0
      %v2011 = vadd.f32 0.0, %v2010
      %v2012 = vpop.f32.mrb[0].mxu0
      %2013 = vmatprep.mubr.bf16.mxu0 0
      %2014 = vmatmul.mubr.bf16.gmra.mrb[0].mxu0 %v1870
      %v2015 = vpop.f32.mrb[0].mxu0
      %v2016 = vadd.f32 0.0, %v2015
      %v2017 = vpop.f32.mrb[0].mxu0
      %v2018 = vpop.f32.mrb[0].mxu0
      %v2019 = vadd.f32 0.0, %v2018
      %v2020 = vpop.f32.mrb[0].mxu0
      %2021 = vmatprep.mubr.bf16.mxu0 0
      %2022 = vmatmul.mubr.bf16.gmra.mrb[0].mxu0 %v1873
      %v2023 = vpop.f32.mrb[0].mxu0
      %v2024 = vadd.f32 0.0, %v2023
      %v2025 = vpop.f32.mrb[0].mxu0
      %v2026 = vpop.f32.mrb[0].mxu0
      %v2027 = vadd.f32 0.0, %v2026
      %v2028 = vpop.f32.mrb[0].mxu0
      %2029 = vmatprep.mubr.bf16.mxu0 0
      %2030 = vmatmul.mubr.bf16.gmra.mrb[0].mxu0 %v1876
      %v2031 = vpop.f32.mrb[0].mxu0
      %v2032 = vadd.f32 0.0, %v2031
      %v2033 = vpop.f32.mrb[0].mxu0
      %v2034 = vpop.f32.mrb[0].mxu0
      %v2035 = vadd.f32 0.0, %v2034
      %v2036 = vpop.f32.mrb[0].mxu0
      %2037 = vmatprep.mubr.bf16.mxu0 0
      %2038 = vmatmul.mubr.bf16.gmra.mrb[0].mxu0 %v1879
      %v2039 = vpop.f32.mrb[0].mxu0
      %v2040 = vadd.f32 0.0, %v2039
      %v2041 = vpop.f32.mrb[0].mxu0
      %v2042 = vpop.f32.mrb[0].mxu0
      %v2043 = vadd.f32 0.0, %v2042
      %v2044 = vpop.f32.mrb[0].mxu0
      %2045 = vmatprep.mubr.bf16.mxu0 0
      %2046 = vmatmul.mubr.bf16.gmra.mrb[0].mxu0 %v1882
      %v2047 = vpop.f32.mrb[0].mxu0
      %v2048 = vadd.f32 0.0, %v2047
      %v2049 = vpop.f32.mrb[0].mxu0
      %v2050 = vpop.f32.mrb[0].mxu0
      %v2051 = vadd.f32 0.0, %v2050
      %v2052 = vpop.f32.mrb[0].mxu0
      %2053 = vmatprep.mubr.bf16.mxu0 0
      %2054 = vmatmul.mubr.bf16.gmra.mrb[0].mxu0 %v1885
      %v2055 = vpop.f32.mrb[0].mxu0
      %v2056 = vadd.f32 0.0, %v2055
      %v2057 = vpop.f32.mrb[0].mxu0
      %v2058 = vpop.f32.mrb[0].mxu0
      %v2059 = vadd.f32 0.0, %v2058
      %v2060 = vpop.f32.mrb[0].mxu0
      %2061 = vmatprep.mubr.bf16.mxu0 0
      %2062 = vmatmul.mubr.bf16.gmra.mrb[0].mxu0 %v1888
      %v2063 = vpop.f32.mrb[0].mxu0
      %v2064 = vadd.f32 0.0, %v2063
      %v2065 = vpop.f32.mrb[0].mxu0
      %v2066 = vpop.f32.mrb[0].mxu0
      %v2067 = vadd.f32 0.0, %v2066
      %v2068 = vpop.f32.mrb[0].mxu0
      %2069 = vdwg.mxu0
      %v2070 = vadd.f32 %v1744, %v1928
      %v2071 = vadd.f32 %v1745, %v1931
      %v2072 = vadd.f32 %v1746, %v1936
      %v2073 = vadd.f32 %v1747, %v1939
      %v2074 = vadd.f32 %v1748, %v1944
      %v2075 = vadd.f32 %v1749, %v1947
      %v2076 = vadd.f32 %v1750, %v1952
      %v2077 = vadd.f32 %v1751, %v1955
      %v2078 = vadd.f32 %v1752, %v1960
      %v2079 = vadd.f32 %v1753, %v1963
      %v2080 = vadd.f32 %v1754, %v1968
      %v2081 = vadd.f32 %v1755, %v1971
      %v2082 = vadd.f32 %v1756, %v1976
      %v2083 = vadd.f32 %v1757, %v1979
      %v2084 = vadd.f32 %v1758, %v1984
      %v2085 = vadd.f32 %v1759, %v1987
      %v2086 = vadd.f32 %v1760, %v1992
      %v2087 = vadd.f32 %v1761, %v1995
      %v2088 = vadd.f32 %v1762, %v2000
      %v2089 = vadd.f32 %v1763, %v2003
      %v2090 = vadd.f32 %v1764, %v2008
      %v2091 = vadd.f32 %v1765, %v2011
      %v2092 = vadd.f32 %v1766, %v2016
      %v2093 = vadd.f32 %v1767, %v2019
      %v2094 = vadd.f32 %v1768, %v2024
      %v2095 = vadd.f32 %v1769, %v2027
      %v2096 = vadd.f32 %v1770, %v2032
      %v2097 = vadd.f32 %v1771, %v2035
      %v2098 = vadd.f32 %v1772, %v2040
      %v2099 = vadd.f32 %v1773, %v2043
      %v2100 = vadd.f32 %v1774, %v2048
      %v2101 = vadd.f32 %v1775, %v2051
      %v2102 = vadd.f32 %v1776, %v2056
      %v2103 = vadd.f32 %v1777, %v2059
      %v2104 = vadd.f32 %v1778, %v2064
      %v2105 = vadd.f32 %v1779, %v2067
      %v2106 = vld [vmem:[%s214 + $0x24] sm:$0xff]
      %v2107 = vld [vmem:[%s214 + $0x2c] sm:$0xff]
      %v2108 = vld [vmem:[%s214 + $0x34] sm:$0xff]
      %v2109 = vld [vmem:[%s214 + $0x3c] sm:$0xff]
      %v2110 = vld [vmem:[%s214 + $0x44] sm:$0xff]
      %v2111 = vld [vmem:[%s214 + $0x4c] sm:$0xff]
      %v2112 = vld [vmem:[%s214 + $0x54] sm:$0xff]
      %v2113 = vld [vmem:[%s214 + $0x5c] sm:$0xff]
      %v2114 = vld [vmem:[%s214 + $0x64] sm:$0xff]
      %v2115 = vld [vmem:[%s214 + $0x6c] sm:$0xff]
      %v2116 = vld [vmem:[%s214 + $0x74] sm:$0xff]
      %v2117 = vld [vmem:[%s214 + $0x7c] sm:$0xff]
      %v2118 = vld [vmem:[%s214 + $0x84] sm:$0xff]
      %v2119 = vld [vmem:[%s214 + $0x8c] sm:$0xff]
      %v2120 = vld [vmem:[%s214 + $0x94] sm:$0xff]
      %v2121 = vld [vmem:[%s214 + $0x9c] sm:$0xff]
      %v2122 = vld [vmem:[%s214 + $0xa4] sm:$0xff]
      %v2123 = vld [vmem:[%s214 + $0xac] sm:$0xff]
      %v2124 = vld [vmem:[%s214 + $0xb4] sm:$0xff]
      %v2125 = vld [vmem:[%s214 + $0xbc] sm:$0xff]
      %v2126 = vld [vmem:[%s214 + $0xc4] sm:$0xff]
      %v2127 = vld [vmem:[%s214 + $0xcc] sm:$0xff]
      %v2128 = vld [vmem:[%s214 + $0xd4] sm:$0xff]
      %v2129 = vld [vmem:[%s214 + $0xdc] sm:$0xff]
      %v2130 = vld [vmem:[%s214 + $0xe4] sm:$0xff]
      %v2131 = vld [vmem:[%s214 + $0xec] sm:$0xff]
      %v2132 = vld [vmem:[%s214 + $0xf4] sm:$0xff]
      %v2133 = vld [vmem:[%s214 + $0xfc] sm:$0xff]
      %v2134 = vld [vmem:[%s214 + $0x104] sm:$0xff]
      %v2135 = vld [vmem:[%s214 + $0x10c] sm:$0xff]
      %v2136 = vld [vmem:[%s214 + $0x114] sm:$0xff]
      %v2137 = vld [vmem:[%s214 + $0x11c] sm:$0xff]
      %v2138 = vld [vmem:[%s214 + $0x124] sm:$0xff]
      %v2139 = vld [vmem:[%s214 + $0x12c] sm:$0xff]
      %v2140 = vld [vmem:[%s214 + $0x134] sm:$0xff]
      %v2141 = vld [vmem:[%s214 + $0x13c] sm:$0xff]
      %v2142 = vpack.c.bf16 %v2107, %v2106
      %v2143 = vpack.c.bf16 %v2109, %v2108
      %v2144 = vpack.c.bf16 %v2111, %v2110
      %v2145 = vpack.c.bf16 %v2113, %v2112
      %v2146 = vpack.c.bf16 %v2115, %v2114
      %v2147 = vpack.c.bf16 %v2117, %v2116
      %v2148 = vpack.c.bf16 %v2119, %v2118
      %v2149 = vpack.c.bf16 %v2121, %v2120
      %v2150 = vpack.c.bf16 %v2123, %v2122
      %v2151 = vpack.c.bf16 %v2125, %v2124
      %v2152 = vpack.c.bf16 %v2127, %v2126
      %v2153 = vpack.c.bf16 %v2129, %v2128
      %v2154 = vpack.c.bf16 %v2131, %v2130
      %v2155 = vpack.c.bf16 %v2133, %v2132
      %v2156 = vpack.c.bf16 %v2135, %v2134
      %v2157 = vpack.c.bf16 %v2137, %v2136
      %v2158 = vpack.c.bf16 %v2139, %v2138
      %v2159 = vpack.c.bf16 %v2141, %v2140
      %s2160 = scalar_lea.vmem %s1, 24
      %v2161 = vld [vmem:[%s2160] sm:$0xf]
      %v2163 = vsel %vm332, %v2142, 0
      %v2166 = vsel %vm332, %v2143, 0
      %v2169 = vsel %vm332, %v2144, 0
      %v2172 = vsel %vm332, %v2145, 0
      %v2175 = vsel %vm332, %v2146, 0
      %v2178 = vsel %vm332, %v2147, 0
      %v2181 = vsel %vm332, %v2148, 0
      %v2184 = vsel %vm332, %v2149, 0
      %v2187 = vsel %vm332, %v2150, 0
      %v2190 = vsel %vm332, %v2151, 0
      %v2193 = vsel %vm332, %v2152, 0
      %v2196 = vsel %vm332, %v2153, 0
      %v2199 = vsel %vm332, %v2154, 0
      %v2202 = vsel %vm332, %v2155, 0
      %v2205 = vsel %vm332, %v2156, 0
      %v2208 = vsel %vm332, %v2157, 0
      %v2211 = vsel %vm332, %v2158, 0
      %v2214 = vsel %vm332, %v2159, 0
      %v2217 = vsel %vm387, %v2161, 0
      %2219 = vmatprep.subr.bf16.mxu0 0
      %2220 = vmatpush1.bf16.msra.mxu0 %v2217
      %2221 = vmatprep.subr.bf16.mxu0 0
      %2222 = vmatpush1.bf16.msra.mxu0 0
      %2223 = vmatprep.subr.bf16.mxu0 0
      %2224 = vmatpush1.bf16.msra.mxu0 0
      %2225 = vmatprep.subr.bf16.mxu0 0
      %2226 = vmatpush1.bf16.msra.mxu0 0
      %2227 = vmatprep.subr.bf16.mxu0 0
      %2228 = vmatpush1.bf16.msra.mxu0 0
      %2229 = vmatprep.subr.bf16.mxu0 0
      %2230 = vmatpush1.bf16.msra.mxu0 0
      %2231 = vmatprep.subr.bf16.mxu0 0
      %2232 = vmatpush1.bf16.msra.mxu0 0
      %2233 = vmatprep.subr.bf16.mxu0 0
      %2234 = vmatpush1.bf16.msra.mxu0 0
      %2235 = vmatprep.subr.bf16.mxu0 0
      %2236 = vmatpush1.bf16.msra.mxu0 0
      %2237 = vmatprep.subr.bf16.mxu0 0
      %2238 = vmatpush1.bf16.msra.mxu0 0
      %2239 = vmatprep.subr.bf16.mxu0 0
      %2240 = vmatpush1.bf16.msra.mxu0 0
      %2241 = vmatprep.subr.bf16.mxu0 0
      %2242 = vmatpush1.bf16.msra.mxu0 0
      %2243 = vmatprep.subr.bf16.mxu0 0
      %2244 = vmatpush1.bf16.msra.mxu0 0
      %2245 = vmatprep.subr.bf16.mxu0 0
      %2246 = vmatpush1.bf16.msra.mxu0 0
      %2247 = vmatprep.subr.bf16.mxu0 0
      %2248 = vmatpush1.bf16.msra.mxu0 0
      %2249 = vmatprep.subr.bf16.mxu0 0
      %2250 = vmatpush1.bf16.msra.mxu0 0
      %2251 = vmatprep.mubr.bf16.mxu0 0
      %2252 = vmatmul.mubr.bf16.gmra.mrb[0].mxu0 %v2163
      %v2253 = vpop.f32.mrb[0].mxu0
      %v2254 = vadd.f32 0.0, %v2253
      %v2255 = vpop.f32.mrb[0].mxu0
      %v2256 = vpop.f32.mrb[0].mxu0
      %v2257 = vadd.f32 0.0, %v2256
      %v2258 = vpop.f32.mrb[0].mxu0
      %2259 = vmatprep.mubr.bf16.mxu0 0
      %2260 = vmatmul.mubr.bf16.gmra.mrb[0].mxu0 %v2166
      %v2261 = vpop.f32.mrb[0].mxu0
      %v2262 = vadd.f32 0.0, %v2261
      %v2263 = vpop.f32.mrb[0].mxu0
      %v2264 = vpop.f32.mrb[0].mxu0
      %v2265 = vadd.f32 0.0, %v2264
      %v2266 = vpop.f32.mrb[0].mxu0
      %2267 = vmatprep.mubr.bf16.mxu0 0
      %2268 = vmatmul.mubr.bf16.gmra.mrb[0].mxu0 %v2169
      %v2269 = vpop.f32.mrb[0].mxu0
      %v2270 = vadd.f32 0.0, %v2269
      %v2271 = vpop.f32.mrb[0].mxu0
      %v2272 = vpop.f32.mrb[0].mxu0
      %v2273 = vadd.f32 0.0, %v2272
      %v2274 = vpop.f32.mrb[0].mxu0
      %2275 = vmatprep.mubr.bf16.mxu0 0
      %2276 = vmatmul.mubr.bf16.gmra.mrb[0].mxu0 %v2172
      %v2277 = vpop.f32.mrb[0].mxu0
      %v2278 = vadd.f32 0.0, %v2277
      %v2279 = vpop.f32.mrb[0].mxu0
      %v2280 = vpop.f32.mrb[0].mxu0
      %v2281 = vadd.f32 0.0, %v2280
      %v2282 = vpop.f32.mrb[0].mxu0
      %2283 = vmatprep.mubr.bf16.mxu0 0
      %2284 = vmatmul.mubr.bf16.gmra.mrb[0].mxu0 %v2175
      %v2285 = vpop.f32.mrb[0].mxu0
      %v2286 = vadd.f32 0.0, %v2285
      %v2287 = vpop.f32.mrb[0].mxu0
      %v2288 = vpop.f32.mrb[0].mxu0
      %v2289 = vadd.f32 0.0, %v2288
      %v2290 = vpop.f32.mrb[0].mxu0
      %2291 = vmatprep.mubr.bf16.mxu0 0
      %2292 = vmatmul.mubr.bf16.gmra.mrb[0].mxu0 %v2178
      %v2293 = vpop.f32.mrb[0].mxu0
      %v2294 = vadd.f32 0.0, %v2293
      %v2295 = vpop.f32.mrb[0].mxu0
      %v2296 = vpop.f32.mrb[0].mxu0
      %v2297 = vadd.f32 0.0, %v2296
      %v2298 = vpop.f32.mrb[0].mxu0
      %2299 = vmatprep.mubr.bf16.mxu0 0
      %2300 = vmatmul.mubr.bf16.gmra.mrb[0].mxu0 %v2181
      %v2301 = vpop.f32.mrb[0].mxu0
      %v2302 = vadd.f32 0.0, %v2301
      %v2303 = vpop.f32.mrb[0].mxu0
      %v2304 = vpop.f32.mrb[0].mxu0
      %v2305 = vadd.f32 0.0, %v2304
      %v2306 = vpop.f32.mrb[0].mxu0
      %2307 = vmatprep.mubr.bf16.mxu0 0
      %2308 = vmatmul.mubr.bf16.gmra.mrb[0].mxu0 %v2184
      %v2309 = vpop.f32.mrb[0].mxu0
      %v2310 = vadd.f32 0.0, %v2309
      %v2311 = vpop.f32.mrb[0].mxu0
      %v2312 = vpop.f32.mrb[0].mxu0
      %v2313 = vadd.f32 0.0, %v2312
      %v2314 = vpop.f32.mrb[0].mxu0
      %2315 = vmatprep.mubr.bf16.mxu0 0
      %2316 = vmatmul.mubr.bf16.gmra.mrb[0].mxu0 %v2187
      %v2317 = vpop.f32.mrb[0].mxu0
      %v2318 = vadd.f32 0.0, %v2317
      %v2319 = vpop.f32.mrb[0].mxu0
      %v2320 = vpop.f32.mrb[0].mxu0
      %v2321 = vadd.f32 0.0, %v2320
      %v2322 = vpop.f32.mrb[0].mxu0
      %2323 = vmatprep.mubr.bf16.mxu0 0
      %2324 = vmatmul.mubr.bf16.gmra.mrb[0].mxu0 %v2190
      %v2325 = vpop.f32.mrb[0].mxu0
      %v2326 = vadd.f32 0.0, %v2325
      %v2327 = vpop.f32.mrb[0].mxu0
      %v2328 = vpop.f32.mrb[0].mxu0
      %v2329 = vadd.f32 0.0, %v2328
      %v2330 = vpop.f32.mrb[0].mxu0
      %2331 = vmatprep.mubr.bf16.mxu0 0
      %2332 = vmatmul.mubr.bf16.gmra.mrb[0].mxu0 %v2193
      %v2333 = vpop.f32.mrb[0].mxu0
      %v2334 = vadd.f32 0.0, %v2333
      %v2335 = vpop.f32.mrb[0].mxu0
      %v2336 = vpop.f32.mrb[0].mxu0
      %v2337 = vadd.f32 0.0, %v2336
      %v2338 = vpop.f32.mrb[0].mxu0
      %2339 = vmatprep.mubr.bf16.mxu0 0
      %2340 = vmatmul.mubr.bf16.gmra.mrb[0].mxu0 %v2196
      %v2341 = vpop.f32.mrb[0].mxu0
      %v2342 = vadd.f32 0.0, %v2341
      %v2343 = vpop.f32.mrb[0].mxu0
      %v2344 = vpop.f32.mrb[0].mxu0
      %v2345 = vadd.f32 0.0, %v2344
      %v2346 = vpop.f32.mrb[0].mxu0
      %2347 = vmatprep.mubr.bf16.mxu0 0
      %2348 = vmatmul.mubr.bf16.gmra.mrb[0].mxu0 %v2199
      %v2349 = vpop.f32.mrb[0].mxu0
      %v2350 = vadd.f32 0.0, %v2349
      %v2351 = vpop.f32.mrb[0].mxu0
      %v2352 = vpop.f32.mrb[0].mxu0
      %v2353 = vadd.f32 0.0, %v2352
      %v2354 = vpop.f32.mrb[0].mxu0
      %2355 = vmatprep.mubr.bf16.mxu0 0
      %2356 = vmatmul.mubr.bf16.gmra.mrb[0].mxu0 %v2202
      %v2357 = vpop.f32.mrb[0].mxu0
      %v2358 = vadd.f32 0.0, %v2357
      %v2359 = vpop.f32.mrb[0].mxu0
      %v2360 = vpop.f32.mrb[0].mxu0
      %v2361 = vadd.f32 0.0, %v2360
      %v2362 = vpop.f32.mrb[0].mxu0
      %2363 = vmatprep.mubr.bf16.mxu0 0
      %2364 = vmatmul.mubr.bf16.gmra.mrb[0].mxu0 %v2205
      %v2365 = vpop.f32.mrb[0].mxu0
      %v2366 = vadd.f32 0.0, %v2365
      %v2367 = vpop.f32.mrb[0].mxu0
      %v2368 = vpop.f32.mrb[0].mxu0
      %v2369 = vadd.f32 0.0, %v2368
      %v2370 = vpop.f32.mrb[0].mxu0
      %2371 = vmatprep.mubr.bf16.mxu0 0
      %2372 = vmatmul.mubr.bf16.gmra.mrb[0].mxu0 %v2208
      %v2373 = vpop.f32.mrb[0].mxu0
      %v2374 = vadd.f32 0.0, %v2373
      %v2375 = vpop.f32.mrb[0].mxu0
      %v2376 = vpop.f32.mrb[0].mxu0
      %v2377 = vadd.f32 0.0, %v2376
      %v2378 = vpop.f32.mrb[0].mxu0
      %2379 = vmatprep.mubr.bf16.mxu0 0
      %2380 = vmatmul.mubr.bf16.gmra.mrb[0].mxu0 %v2211
      %v2381 = vpop.f32.mrb[0].mxu0
      %v2382 = vadd.f32 0.0, %v2381
      %v2383 = vpop.f32.mrb[0].mxu0
      %v2384 = vpop.f32.mrb[0].mxu0
      %v2385 = vadd.f32 0.0, %v2384
      %v2386 = vpop.f32.mrb[0].mxu0
      %2387 = vmatprep.mubr.bf16.mxu0 0
      %2388 = vmatmul.mubr.bf16.gmra.mrb[0].mxu0 %v2214
      %v2389 = vpop.f32.mrb[0].mxu0
      %v2390 = vadd.f32 0.0, %v2389
      %v2391 = vpop.f32.mrb[0].mxu0
      %v2392 = vpop.f32.mrb[0].mxu0
      %v2393 = vadd.f32 0.0, %v2392
      %v2394 = vpop.f32.mrb[0].mxu0
      %2395 = vdwg.mxu0
      %v2396 = vadd.f32 %v2070, %v2254
      %v2397 = vadd.f32 %v2071, %v2257
      %v2398 = vadd.f32 %v2072, %v2262
      %v2399 = vadd.f32 %v2073, %v2265
      %v2400 = vadd.f32 %v2074, %v2270
      %v2401 = vadd.f32 %v2075, %v2273
      %v2402 = vadd.f32 %v2076, %v2278
      %v2403 = vadd.f32 %v2077, %v2281
      %v2404 = vadd.f32 %v2078, %v2286
      %v2405 = vadd.f32 %v2079, %v2289
      %v2406 = vadd.f32 %v2080, %v2294
      %v2407 = vadd.f32 %v2081, %v2297
      %v2408 = vadd.f32 %v2082, %v2302
      %v2409 = vadd.f32 %v2083, %v2305
      %v2410 = vadd.f32 %v2084, %v2310
      %v2411 = vadd.f32 %v2085, %v2313
      %v2412 = vadd.f32 %v2086, %v2318
      %v2413 = vadd.f32 %v2087, %v2321
      %v2414 = vadd.f32 %v2088, %v2326
      %v2415 = vadd.f32 %v2089, %v2329
      %v2416 = vadd.f32 %v2090, %v2334
      %v2417 = vadd.f32 %v2091, %v2337
      %v2418 = vadd.f32 %v2092, %v2342
      %v2419 = vadd.f32 %v2093, %v2345
      %v2420 = vadd.f32 %v2094, %v2350
      %v2421 = vadd.f32 %v2095, %v2353
      %v2422 = vadd.f32 %v2096, %v2358
      %v2423 = vadd.f32 %v2097, %v2361
      %v2424 = vadd.f32 %v2098, %v2366
      %v2425 = vadd.f32 %v2099, %v2369
      %v2426 = vadd.f32 %v2100, %v2374
      %v2427 = vadd.f32 %v2101, %v2377
      %v2428 = vadd.f32 %v2102, %v2382
      %v2429 = vadd.f32 %v2103, %v2385
      %v2430 = vadd.f32 %v2104, %v2390
      %v2431 = vadd.f32 %v2105, %v2393
      %v2432 = vld [vmem:[%s214 + $0x25] sm:$0xff]
      %v2433 = vld [vmem:[%s214 + $0x2d] sm:$0xff]
      %v2434 = vld [vmem:[%s214 + $0x35] sm:$0xff]
      %v2435 = vld [vmem:[%s214 + $0x3d] sm:$0xff]
      %v2436 = vld [vmem:[%s214 + $0x45] sm:$0xff]
      %v2437 = vld [vmem:[%s214 + $0x4d] sm:$0xff]
      %v2438 = vld [vmem:[%s214 + $0x55] sm:$0xff]
      %v2439 = vld [vmem:[%s214 + $0x5d] sm:$0xff]
      %v2440 = vld [vmem:[%s214 + $0x65] sm:$0xff]
      %v2441 = vld [vmem:[%s214 + $0x6d] sm:$0xff]
      %v2442 = vld [vmem:[%s214 + $0x75] sm:$0xff]
      %v2443 = vld [vmem:[%s214 + $0x7d] sm:$0xff]
      %v2444 = vld [vmem:[%s214 + $0x85] sm:$0xff]
      %v2445 = vld [vmem:[%s214 + $0x8d] sm:$0xff]
      %v2446 = vld [vmem:[%s214 + $0x95] sm:$0xff]
      %v2447 = vld [vmem:[%s214 + $0x9d] sm:$0xff]
      %v2448 = vld [vmem:[%s214 + $0xa5] sm:$0xff]
      %v2449 = vld [vmem:[%s214 + $0xad] sm:$0xff]
      %v2450 = vld [vmem:[%s214 + $0xb5] sm:$0xff]
      %v2451 = vld [vmem:[%s214 + $0xbd] sm:$0xff]
      %v2452 = vld [vmem:[%s214 + $0xc5] sm:$0xff]
      %v2453 = vld [vmem:[%s214 + $0xcd] sm:$0xff]
      %v2454 = vld [vmem:[%s214 + $0xd5] sm:$0xff]
      %v2455 = vld [vmem:[%s214 + $0xdd] sm:$0xff]
      %v2456 = vld [vmem:[%s214 + $0xe5] sm:$0xff]
      %v2457 = vld [vmem:[%s214 + $0xed] sm:$0xff]
      %v2458 = vld [vmem:[%s214 + $0xf5] sm:$0xff]
      %v2459 = vld [vmem:[%s214 + $0xfd] sm:$0xff]
      %v2460 = vld [vmem:[%s214 + $0x105] sm:$0xff]
      %v2461 = vld [vmem:[%s214 + $0x10d] sm:$0xff]
      %v2462 = vld [vmem:[%s214 + $0x115] sm:$0xff]
      %v2463 = vld [vmem:[%s214 + $0x11d] sm:$0xff]
      %v2464 = vld [vmem:[%s214 + $0x125] sm:$0xff]
      %v2465 = vld [vmem:[%s214 + $0x12d] sm:$0xff]
      %v2466 = vld [vmem:[%s214 + $0x135] sm:$0xff]
      %v2467 = vld [vmem:[%s214 + $0x13d] sm:$0xff]
      %v2468 = vpack.c.bf16 %v2433, %v2432
      %v2469 = vpack.c.bf16 %v2435, %v2434
      %v2470 = vpack.c.bf16 %v2437, %v2436
      %v2471 = vpack.c.bf16 %v2439, %v2438
      %v2472 = vpack.c.bf16 %v2441, %v2440
      %v2473 = vpack.c.bf16 %v2443, %v2442
      %v2474 = vpack.c.bf16 %v2445, %v2444
      %v2475 = vpack.c.bf16 %v2447, %v2446
      %v2476 = vpack.c.bf16 %v2449, %v2448
      %v2477 = vpack.c.bf16 %v2451, %v2450
      %v2478 = vpack.c.bf16 %v2453, %v2452
      %v2479 = vpack.c.bf16 %v2455, %v2454
      %v2480 = vpack.c.bf16 %v2457, %v2456
      %v2481 = vpack.c.bf16 %v2459, %v2458
      %v2482 = vpack.c.bf16 %v2461, %v2460
      %v2483 = vpack.c.bf16 %v2463, %v2462
      %v2484 = vpack.c.bf16 %v2465, %v2464
      %v2485 = vpack.c.bf16 %v2467, %v2466
      %s2486 = scalar_lea.vmem %s1, 28
      %v2487 = vld [vmem:[%s2486] sm:$0xf]
      %v2489 = vsel %vm332, %v2468, 0
      %v2492 = vsel %vm332, %v2469, 0
      %v2495 = vsel %vm332, %v2470, 0
      %v2498 = vsel %vm332, %v2471, 0
      %v2501 = vsel %vm332, %v2472, 0
      %v2504 = vsel %vm332, %v2473, 0
      %v2507 = vsel %vm332, %v2474, 0
      %v2510 = vsel %vm332, %v2475, 0
      %v2513 = vsel %vm332, %v2476, 0
      %v2516 = vsel %vm332, %v2477, 0
      %v2519 = vsel %vm332, %v2478, 0
      %v2522 = vsel %vm332, %v2479, 0
      %v2525 = vsel %vm332, %v2480, 0
      %v2528 = vsel %vm332, %v2481, 0
      %v2531 = vsel %vm332, %v2482, 0
      %v2534 = vsel %vm332, %v2483, 0
      %v2537 = vsel %vm332, %v2484, 0
      %v2540 = vsel %vm332, %v2485, 0
      %v2543 = vsel %vm387, %v2487, 0
      %2545 = vmatprep.subr.bf16.mxu0 0
      %2546 = vmatpush1.bf16.msra.mxu0 %v2543
      %2547 = vmatprep.subr.bf16.mxu0 0
      %2548 = vmatpush1.bf16.msra.mxu0 0
      %2549 = vmatprep.subr.bf16.mxu0 0
      %2550 = vmatpush1.bf16.msra.mxu0 0
      %2551 = vmatprep.subr.bf16.mxu0 0
      %2552 = vmatpush1.bf16.msra.mxu0 0
      %2553 = vmatprep.subr.bf16.mxu0 0
      %2554 = vmatpush1.bf16.msra.mxu0 0
      %2555 = vmatprep.subr.bf16.mxu0 0
      %2556 = vmatpush1.bf16.msra.mxu0 0
      %2557 = vmatprep.subr.bf16.mxu0 0
      %2558 = vmatpush1.bf16.msra.mxu0 0
      %2559 = vmatprep.subr.bf16.mxu0 0
      %2560 = vmatpush1.bf16.msra.mxu0 0
      %2561 = vmatprep.subr.bf16.mxu0 0
      %2562 = vmatpush1.bf16.msra.mxu0 0
      %2563 = vmatprep.subr.bf16.mxu0 0
      %2564 = vmatpush1.bf16.msra.mxu0 0
      %2565 = vmatprep.subr.bf16.mxu0 0
      %2566 = vmatpush1.bf16.msra.mxu0 0
      %2567 = vmatprep.subr.bf16.mxu0 0
      %2568 = vmatpush1.bf16.msra.mxu0 0
      %2569 = vmatprep.subr.bf16.mxu0 0
      %2570 = vmatpush1.bf16.msra.mxu0 0
      %2571 = vmatprep.subr.bf16.mxu0 0
      %2572 = vmatpush1.bf16.msra.mxu0 0
      %2573 = vmatprep.subr.bf16.mxu0 0
      %2574 = vmatpush1.bf16.msra.mxu0 0
      %2575 = vmatprep.subr.bf16.mxu0 0
      %2576 = vmatpush1.bf16.msra.mxu0 0
      %2577 = vmatprep.mubr.bf16.mxu0 0
      %2578 = vmatmul.mubr.bf16.gmra.mrb[0].mxu0 %v2489
      %v2579 = vpop.f32.mrb[0].mxu0
      %v2580 = vadd.f32 0.0, %v2579
      %v2581 = vpop.f32.mrb[0].mxu0
      %v2582 = vpop.f32.mrb[0].mxu0
      %v2583 = vadd.f32 0.0, %v2582
      %v2584 = vpop.f32.mrb[0].mxu0
      %2585 = vmatprep.mubr.bf16.mxu0 0
      %2586 = vmatmul.mubr.bf16.gmra.mrb[0].mxu0 %v2492
      %v2587 = vpop.f32.mrb[0].mxu0
      %v2588 = vadd.f32 0.0, %v2587
      %v2589 = vpop.f32.mrb[0].mxu0
      %v2590 = vpop.f32.mrb[0].mxu0
      %v2591 = vadd.f32 0.0, %v2590
      %v2592 = vpop.f32.mrb[0].mxu0
      %2593 = vmatprep.mubr.bf16.mxu0 0
      %2594 = vmatmul.mubr.bf16.gmra.mrb[0].mxu0 %v2495
      %v2595 = vpop.f32.mrb[0].mxu0
      %v2596 = vadd.f32 0.0, %v2595
      %v2597 = vpop.f32.mrb[0].mxu0
      %v2598 = vpop.f32.mrb[0].mxu0
      %v2599 = vadd.f32 0.0, %v2598
      %v2600 = vpop.f32.mrb[0].mxu0
      %2601 = vmatprep.mubr.bf16.mxu0 0
      %2602 = vmatmul.mubr.bf16.gmra.mrb[0].mxu0 %v2498
      %v2603 = vpop.f32.mrb[0].mxu0
      %v2604 = vadd.f32 0.0, %v2603
      %v2605 = vpop.f32.mrb[0].mxu0
      %v2606 = vpop.f32.mrb[0].mxu0
      %v2607 = vadd.f32 0.0, %v2606
      %v2608 = vpop.f32.mrb[0].mxu0
      %2609 = vmatprep.mubr.bf16.mxu0 0
      %2610 = vmatmul.mubr.bf16.gmra.mrb[0].mxu0 %v2501
      %v2611 = vpop.f32.mrb[0].mxu0
      %v2612 = vadd.f32 0.0, %v2611
      %v2613 = vpop.f32.mrb[0].mxu0
      %v2614 = vpop.f32.mrb[0].mxu0
      %v2615 = vadd.f32 0.0, %v2614
      %v2616 = vpop.f32.mrb[0].mxu0
      %2617 = vmatprep.mubr.bf16.mxu0 0
      %2618 = vmatmul.mubr.bf16.gmra.mrb[0].mxu0 %v2504
      %v2619 = vpop.f32.mrb[0].mxu0
      %v2620 = vadd.f32 0.0, %v2619
      %v2621 = vpop.f32.mrb[0].mxu0
      %v2622 = vpop.f32.mrb[0].mxu0
      %v2623 = vadd.f32 0.0, %v2622
      %v2624 = vpop.f32.mrb[0].mxu0
      %2625 = vmatprep.mubr.bf16.mxu0 0
      %2626 = vmatmul.mubr.bf16.gmra.mrb[0].mxu0 %v2507
      %v2627 = vpop.f32.mrb[0].mxu0
      %v2628 = vadd.f32 0.0, %v2627
      %v2629 = vpop.f32.mrb[0].mxu0
      %v2630 = vpop.f32.mrb[0].mxu0
      %v2631 = vadd.f32 0.0, %v2630
      %v2632 = vpop.f32.mrb[0].mxu0
      %2633 = vmatprep.mubr.bf16.mxu0 0
      %2634 = vmatmul.mubr.bf16.gmra.mrb[0].mxu0 %v2510
      %v2635 = vpop.f32.mrb[0].mxu0
      %v2636 = vadd.f32 0.0, %v2635
      %v2637 = vpop.f32.mrb[0].mxu0
      %v2638 = vpop.f32.mrb[0].mxu0
      %v2639 = vadd.f32 0.0, %v2638
      %v2640 = vpop.f32.mrb[0].mxu0
      %2641 = vmatprep.mubr.bf16.mxu0 0
      %2642 = vmatmul.mubr.bf16.gmra.mrb[0].mxu0 %v2513
      %v2643 = vpop.f32.mrb[0].mxu0
      %v2644 = vadd.f32 0.0, %v2643
      %v2645 = vpop.f32.mrb[0].mxu0
      %v2646 = vpop.f32.mrb[0].mxu0
      %v2647 = vadd.f32 0.0, %v2646
      %v2648 = vpop.f32.mrb[0].mxu0
      %2649 = vmatprep.mubr.bf16.mxu0 0
      %2650 = vmatmul.mubr.bf16.gmra.mrb[0].mxu0 %v2516
      %v2651 = vpop.f32.mrb[0].mxu0
      %v2652 = vadd.f32 0.0, %v2651
      %v2653 = vpop.f32.mrb[0].mxu0
      %v2654 = vpop.f32.mrb[0].mxu0
      %v2655 = vadd.f32 0.0, %v2654
      %v2656 = vpop.f32.mrb[0].mxu0
      %2657 = vmatprep.mubr.bf16.mxu0 0
      %2658 = vmatmul.mubr.bf16.gmra.mrb[0].mxu0 %v2519
      %v2659 = vpop.f32.mrb[0].mxu0
      %v2660 = vadd.f32 0.0, %v2659
      %v2661 = vpop.f32.mrb[0].mxu0
      %v2662 = vpop.f32.mrb[0].mxu0
      %v2663 = vadd.f32 0.0, %v2662
      %v2664 = vpop.f32.mrb[0].mxu0
      %2665 = vmatprep.mubr.bf16.mxu0 0
      %2666 = vmatmul.mubr.bf16.gmra.mrb[0].mxu0 %v2522
      %v2667 = vpop.f32.mrb[0].mxu0
      %v2668 = vadd.f32 0.0, %v2667
      %v2669 = vpop.f32.mrb[0].mxu0
      %v2670 = vpop.f32.mrb[0].mxu0
      %v2671 = vadd.f32 0.0, %v2670
      %v2672 = vpop.f32.mrb[0].mxu0
      %2673 = vmatprep.mubr.bf16.mxu0 0
      %2674 = vmatmul.mubr.bf16.gmra.mrb[0].mxu0 %v2525
      %v2675 = vpop.f32.mrb[0].mxu0
      %v2676 = vadd.f32 0.0, %v2675
      %v2677 = vpop.f32.mrb[0].mxu0
      %v2678 = vpop.f32.mrb[0].mxu0
      %v2679 = vadd.f32 0.0, %v2678
      %v2680 = vpop.f32.mrb[0].mxu0
      %2681 = vmatprep.mubr.bf16.mxu0 0
      %2682 = vmatmul.mubr.bf16.gmra.mrb[0].mxu0 %v2528
      %v2683 = vpop.f32.mrb[0].mxu0
      %v2684 = vadd.f32 0.0, %v2683
      %v2685 = vpop.f32.mrb[0].mxu0
      %v2686 = vpop.f32.mrb[0].mxu0
      %v2687 = vadd.f32 0.0, %v2686
      %v2688 = vpop.f32.mrb[0].mxu0
      %2689 = vmatprep.mubr.bf16.mxu0 0
      %2690 = vmatmul.mubr.bf16.gmra.mrb[0].mxu0 %v2531
      %v2691 = vpop.f32.mrb[0].mxu0
      %v2692 = vadd.f32 0.0, %v2691
      %v2693 = vpop.f32.mrb[0].mxu0
      %v2694 = vpop.f32.mrb[0].mxu0
      %v2695 = vadd.f32 0.0, %v2694
      %v2696 = vpop.f32.mrb[0].mxu0
      %2697 = vmatprep.mubr.bf16.mxu0 0
      %2698 = vmatmul.mubr.bf16.gmra.mrb[0].mxu0 %v2534
      %v2699 = vpop.f32.mrb[0].mxu0
      %v2700 = vadd.f32 0.0, %v2699
      %v2701 = vpop.f32.mrb[0].mxu0
      %v2702 = vpop.f32.mrb[0].mxu0
      %v2703 = vadd.f32 0.0, %v2702
      %v2704 = vpop.f32.mrb[0].mxu0
      %2705 = vmatprep.mubr.bf16.mxu0 0
      %2706 = vmatmul.mubr.bf16.gmra.mrb[0].mxu0 %v2537
      %v2707 = vpop.f32.mrb[0].mxu0
      %v2708 = vadd.f32 0.0, %v2707
      %v2709 = vpop.f32.mrb[0].mxu0
      %v2710 = vpop.f32.mrb[0].mxu0
      %v2711 = vadd.f32 0.0, %v2710
      %v2712 = vpop.f32.mrb[0].mxu0
      %2713 = vmatprep.mubr.bf16.mxu0 0
      %2714 = vmatmul.mubr.bf16.gmra.mrb[0].mxu0 %v2540
      %v2715 = vpop.f32.mrb[0].mxu0
      %v2716 = vadd.f32 0.0, %v2715
      %v2717 = vpop.f32.mrb[0].mxu0
      %v2718 = vpop.f32.mrb[0].mxu0
      %v2719 = vadd.f32 0.0, %v2718
      %v2720 = vpop.f32.mrb[0].mxu0
      %2721 = vdwg.mxu0
      %v2722 = vadd.f32 %v2396, %v2580
      %v2723 = vadd.f32 %v2397, %v2583
      %v2724 = vadd.f32 %v2398, %v2588
      %v2725 = vadd.f32 %v2399, %v2591
      %v2726 = vadd.f32 %v2400, %v2596
      %v2727 = vadd.f32 %v2401, %v2599
      %v2728 = vadd.f32 %v2402, %v2604
      %v2729 = vadd.f32 %v2403, %v2607
      %v2730 = vadd.f32 %v2404, %v2612
      %v2731 = vadd.f32 %v2405, %v2615
      %v2732 = vadd.f32 %v2406, %v2620
      %v2733 = vadd.f32 %v2407, %v2623
      %v2734 = vadd.f32 %v2408, %v2628
      %v2735 = vadd.f32 %v2409, %v2631
      %v2736 = vadd.f32 %v2410, %v2636
      %v2737 = vadd.f32 %v2411, %v2639
      %v2738 = vadd.f32 %v2412, %v2644
      %v2739 = vadd.f32 %v2413, %v2647
      %v2740 = vadd.f32 %v2414, %v2652
      %v2741 = vadd.f32 %v2415, %v2655
      %v2742 = vadd.f32 %v2416, %v2660
      %v2743 = vadd.f32 %v2417, %v2663
      %v2744 = vadd.f32 %v2418, %v2668
      %v2745 = vadd.f32 %v2419, %v2671
      %v2746 = vadd.f32 %v2420, %v2676
      %v2747 = vadd.f32 %v2421, %v2679
      %v2748 = vadd.f32 %v2422, %v2684
      %v2749 = vadd.f32 %v2423, %v2687
      %v2750 = vadd.f32 %v2424, %v2692
      %v2751 = vadd.f32 %v2425, %v2695
      %v2752 = vadd.f32 %v2426, %v2700
      %v2753 = vadd.f32 %v2427, %v2703
      %v2754 = vadd.f32 %v2428, %v2708
      %v2755 = vadd.f32 %v2429, %v2711
      %v2756 = vadd.f32 %v2430, %v2716
      %v2757 = vadd.f32 %v2431, %v2719
      %v2758 = vld [vmem:[%s214 + $0x26] sm:$0xff]
      %v2759 = vld [vmem:[%s214 + $0x2e] sm:$0xff]
      %v2760 = vld [vmem:[%s214 + $0x36] sm:$0xff]
      %v2761 = vld [vmem:[%s214 + $0x3e] sm:$0xff]
      %v2762 = vld [vmem:[%s214 + $0x46] sm:$0xff]
      %v2763 = vld [vmem:[%s214 + $0x4e] sm:$0xff]
      %v2764 = vld [vmem:[%s214 + $0x56] sm:$0xff]
      %v2765 = vld [vmem:[%s214 + $0x5e] sm:$0xff]
      %v2766 = vld [vmem:[%s214 + $0x66] sm:$0xff]
      %v2767 = vld [vmem:[%s214 + $0x6e] sm:$0xff]
      %v2768 = vld [vmem:[%s214 + $0x76] sm:$0xff]
      %v2769 = vld [vmem:[%s214 + $0x7e] sm:$0xff]
      %v2770 = vld [vmem:[%s214 + $0x86] sm:$0xff]
      %v2771 = vld [vmem:[%s214 + $0x8e] sm:$0xff]
      %v2772 = vld [vmem:[%s214 + $0x96] sm:$0xff]
      %v2773 = vld [vmem:[%s214 + $0x9e] sm:$0xff]
      %v2774 = vld [vmem:[%s214 + $0xa6] sm:$0xff]
      %v2775 = vld [vmem:[%s214 + $0xae] sm:$0xff]
      %v2776 = vld [vmem:[%s214 + $0xb6] sm:$0xff]
      %v2777 = vld [vmem:[%s214 + $0xbe] sm:$0xff]
      %v2778 = vld [vmem:[%s214 + $0xc6] sm:$0xff]
      %v2779 = vld [vmem:[%s214 + $0xce] sm:$0xff]
      %v2780 = vld [vmem:[%s214 + $0xd6] sm:$0xff]
      %v2781 = vld [vmem:[%s214 + $0xde] sm:$0xff]
      %v2782 = vld [vmem:[%s214 + $0xe6] sm:$0xff]
      %v2783 = vld [vmem:[%s214 + $0xee] sm:$0xff]
      %v2784 = vld [vmem:[%s214 + $0xf6] sm:$0xff]
      %v2785 = vld [vmem:[%s214 + $0xfe] sm:$0xff]
      %v2786 = vld [vmem:[%s214 + $0x106] sm:$0xff]
      %v2787 = vld [vmem:[%s214 + $0x10e] sm:$0xff]
      %v2788 = vld [vmem:[%s214 + $0x116] sm:$0xff]
      %v2789 = vld [vmem:[%s214 + $0x11e] sm:$0xff]
      %v2790 = vld [vmem:[%s214 + $0x126] sm:$0xff]
      %v2791 = vld [vmem:[%s214 + $0x12e] sm:$0xff]
      %v2792 = vld [vmem:[%s214 + $0x136] sm:$0xff]
      %v2793 = vld [vmem:[%s214 + $0x13e] sm:$0xff]
      %v2794 = vpack.c.bf16 %v2759, %v2758
      %v2795 = vpack.c.bf16 %v2761, %v2760
      %v2796 = vpack.c.bf16 %v2763, %v2762
      %v2797 = vpack.c.bf16 %v2765, %v2764
      %v2798 = vpack.c.bf16 %v2767, %v2766
      %v2799 = vpack.c.bf16 %v2769, %v2768
      %v2800 = vpack.c.bf16 %v2771, %v2770
      %v2801 = vpack.c.bf16 %v2773, %v2772
      %v2802 = vpack.c.bf16 %v2775, %v2774
      %v2803 = vpack.c.bf16 %v2777, %v2776
      %v2804 = vpack.c.bf16 %v2779, %v2778
      %v2805 = vpack.c.bf16 %v2781, %v2780
      %v2806 = vpack.c.bf16 %v2783, %v2782
      %v2807 = vpack.c.bf16 %v2785, %v2784
      %v2808 = vpack.c.bf16 %v2787, %v2786
      %v2809 = vpack.c.bf16 %v2789, %v2788
      %v2810 = vpack.c.bf16 %v2791, %v2790
      %v2811 = vpack.c.bf16 %v2793, %v2792
      %s2812 = scalar_lea.vmem %s1, 32
      %v2813 = vld [vmem:[%s2812] sm:$0xf]
      %v2815 = vsel %vm332, %v2794, 0
      %v2818 = vsel %vm332, %v2795, 0
      %v2821 = vsel %vm332, %v2796, 0
      %v2824 = vsel %vm332, %v2797, 0
      %v2827 = vsel %vm332, %v2798, 0
      %v2830 = vsel %vm332, %v2799, 0
      %v2833 = vsel %vm332, %v2800, 0
      %v2836 = vsel %vm332, %v2801, 0
      %v2839 = vsel %vm332, %v2802, 0
      %v2842 = vsel %vm332, %v2803, 0
      %v2845 = vsel %vm332, %v2804, 0
      %v2848 = vsel %vm332, %v2805, 0
      %v2851 = vsel %vm332, %v2806, 0
      %v2854 = vsel %vm332, %v2807, 0
      %v2857 = vsel %vm332, %v2808, 0
      %v2860 = vsel %vm332, %v2809, 0
      %v2863 = vsel %vm332, %v2810, 0
      %v2866 = vsel %vm332, %v2811, 0
      %v2869 = vsel %vm387, %v2813, 0
      %2871 = vmatprep.subr.bf16.mxu0 0
      %2872 = vmatpush1.bf16.msra.mxu0 %v2869
      %2873 = vmatprep.subr.bf16.mxu0 0
      %2874 = vmatpush1.bf16.msra.mxu0 0
      %2875 = vmatprep.subr.bf16.mxu0 0
      %2876 = vmatpush1.bf16.msra.mxu0 0
      %2877 = vmatprep.subr.bf16.mxu0 0
      %2878 = vmatpush1.bf16.msra.mxu0 0
      %2879 = vmatprep.subr.bf16.mxu0 0
      %2880 = vmatpush1.bf16.msra.mxu0 0
      %2881 = vmatprep.subr.bf16.mxu0 0
      %2882 = vmatpush1.bf16.msra.mxu0 0
      %2883 = vmatprep.subr.bf16.mxu0 0
      %2884 = vmatpush1.bf16.msra.mxu0 0
      %2885 = vmatprep.subr.bf16.mxu0 0
      %2886 = vmatpush1.bf16.msra.mxu0 0
      %2887 = vmatprep.subr.bf16.mxu0 0
      %2888 = vmatpush1.bf16.msra.mxu0 0
      %2889 = vmatprep.subr.bf16.mxu0 0
      %2890 = vmatpush1.bf16.msra.mxu0 0
      %2891 = vmatprep.subr.bf16.mxu0 0
      %2892 = vmatpush1.bf16.msra.mxu0 0
      %2893 = vmatprep.subr.bf16.mxu0 0
      %2894 = vmatpush1.bf16.msra.mxu0 0
      %2895 = vmatprep.subr.bf16.mxu0 0
      %2896 = vmatpush1.bf16.msra.mxu0 0
      %2897 = vmatprep.subr.bf16.mxu0 0
      %2898 = vmatpush1.bf16.msra.mxu0 0
      %2899 = vmatprep.subr.bf16.mxu0 0
      %2900 = vmatpush1.bf16.msra.mxu0 0
      %2901 = vmatprep.subr.bf16.mxu0 0
      %2902 = vmatpush1.bf16.msra.mxu0 0
      %2903 = vmatprep.mubr.bf16.mxu0 0
      %2904 = vmatmul.mubr.bf16.gmra.mrb[0].mxu0 %v2815
      %v2905 = vpop.f32.mrb[0].mxu0
      %v2906 = vadd.f32 0.0, %v2905
      %v2907 = vpop.f32.mrb[0].mxu0
      %v2908 = vpop.f32.mrb[0].mxu0
      %v2909 = vadd.f32 0.0, %v2908
      %v2910 = vpop.f32.mrb[0].mxu0
      %2911 = vmatprep.mubr.bf16.mxu0 0
      %2912 = vmatmul.mubr.bf16.gmra.mrb[0].mxu0 %v2818
      %v2913 = vpop.f32.mrb[0].mxu0
      %v2914 = vadd.f32 0.0, %v2913
      %v2915 = vpop.f32.mrb[0].mxu0
      %v2916 = vpop.f32.mrb[0].mxu0
      %v2917 = vadd.f32 0.0, %v2916
      %v2918 = vpop.f32.mrb[0].mxu0
      %2919 = vmatprep.mubr.bf16.mxu0 0
      %2920 = vmatmul.mubr.bf16.gmra.mrb[0].mxu0 %v2821
      %v2921 = vpop.f32.mrb[0].mxu0
      %v2922 = vadd.f32 0.0, %v2921
      %v2923 = vpop.f32.mrb[0].mxu0
      %v2924 = vpop.f32.mrb[0].mxu0
      %v2925 = vadd.f32 0.0, %v2924
      %v2926 = vpop.f32.mrb[0].mxu0
      %2927 = vmatprep.mubr.bf16.mxu0 0
      %2928 = vmatmul.mubr.bf16.gmra.mrb[0].mxu0 %v2824
      %v2929 = vpop.f32.mrb[0].mxu0
      %v2930 = vadd.f32 0.0, %v2929
      %v2931 = vpop.f32.mrb[0].mxu0
      %v2932 = vpop.f32.mrb[0].mxu0
      %v2933 = vadd.f32 0.0, %v2932
      %v2934 = vpop.f32.mrb[0].mxu0
      %2935 = vmatprep.mubr.bf16.mxu0 0
      %2936 = vmatmul.mubr.bf16.gmra.mrb[0].mxu0 %v2827
      %v2937 = vpop.f32.mrb[0].mxu0
      %v2938 = vadd.f32 0.0, %v2937
      %v2939 = vpop.f32.mrb[0].mxu0
      %v2940 = vpop.f32.mrb[0].mxu0
      %v2941 = vadd.f32 0.0, %v2940
      %v2942 = vpop.f32.mrb[0].mxu0
      %2943 = vmatprep.mubr.bf16.mxu0 0
      %2944 = vmatmul.mubr.bf16.gmra.mrb[0].mxu0 %v2830
      %v2945 = vpop.f32.mrb[0].mxu0
      %v2946 = vadd.f32 0.0, %v2945
      %v2947 = vpop.f32.mrb[0].mxu0
      %v2948 = vpop.f32.mrb[0].mxu0
      %v2949 = vadd.f32 0.0, %v2948
      %v2950 = vpop.f32.mrb[0].mxu0
      %2951 = vmatprep.mubr.bf16.mxu0 0
      %2952 = vmatmul.mubr.bf16.gmra.mrb[0].mxu0 %v2833
      %v2953 = vpop.f32.mrb[0].mxu0
      %v2954 = vadd.f32 0.0, %v2953
      %v2955 = vpop.f32.mrb[0].mxu0
      %v2956 = vpop.f32.mrb[0].mxu0
      %v2957 = vadd.f32 0.0, %v2956
      %v2958 = vpop.f32.mrb[0].mxu0
      %2959 = vmatprep.mubr.bf16.mxu0 0
      %2960 = vmatmul.mubr.bf16.gmra.mrb[0].mxu0 %v2836
      %v2961 = vpop.f32.mrb[0].mxu0
      %v2962 = vadd.f32 0.0, %v2961
      %v2963 = vpop.f32.mrb[0].mxu0
      %v2964 = vpop.f32.mrb[0].mxu0
      %v2965 = vadd.f32 0.0, %v2964
      %v2966 = vpop.f32.mrb[0].mxu0
      %2967 = vmatprep.mubr.bf16.mxu0 0
      %2968 = vmatmul.mubr.bf16.gmra.mrb[0].mxu0 %v2839
      %v2969 = vpop.f32.mrb[0].mxu0
      %v2970 = vadd.f32 0.0, %v2969
      %v2971 = vpop.f32.mrb[0].mxu0
      %v2972 = vpop.f32.mrb[0].mxu0
      %v2973 = vadd.f32 0.0, %v2972
      %v2974 = vpop.f32.mrb[0].mxu0
      %2975 = vmatprep.mubr.bf16.mxu0 0
      %2976 = vmatmul.mubr.bf16.gmra.mrb[0].mxu0 %v2842
      %v2977 = vpop.f32.mrb[0].mxu0
      %v2978 = vadd.f32 0.0, %v2977
      %v2979 = vpop.f32.mrb[0].mxu0
      %v2980 = vpop.f32.mrb[0].mxu0
      %v2981 = vadd.f32 0.0, %v2980
      %v2982 = vpop.f32.mrb[0].mxu0
      %2983 = vmatprep.mubr.bf16.mxu0 0
      %2984 = vmatmul.mubr.bf16.gmra.mrb[0].mxu0 %v2845
      %v2985 = vpop.f32.mrb[0].mxu0
      %v2986 = vadd.f32 0.0, %v2985
      %v2987 = vpop.f32.mrb[0].mxu0
      %v2988 = vpop.f32.mrb[0].mxu0
      %v2989 = vadd.f32 0.0, %v2988
      %v2990 = vpop.f32.mrb[0].mxu0
      %2991 = vmatprep.mubr.bf16.mxu0 0
      %2992 = vmatmul.mubr.bf16.gmra.mrb[0].mxu0 %v2848
      %v2993 = vpop.f32.mrb[0].mxu0
      %v2994 = vadd.f32 0.0, %v2993
      %v2995 = vpop.f32.mrb[0].mxu0
      %v2996 = vpop.f32.mrb[0].mxu0
      %v2997 = vadd.f32 0.0, %v2996
      %v2998 = vpop.f32.mrb[0].mxu0
      %2999 = vmatprep.mubr.bf16.mxu0 0
      %3000 = vmatmul.mubr.bf16.gmra.mrb[0].mxu0 %v2851
      %v3001 = vpop.f32.mrb[0].mxu0
      %v3002 = vadd.f32 0.0, %v3001
      %v3003 = vpop.f32.mrb[0].mxu0
      %v3004 = vpop.f32.mrb[0].mxu0
      %v3005 = vadd.f32 0.0, %v3004
      %v3006 = vpop.f32.mrb[0].mxu0
      %3007 = vmatprep.mubr.bf16.mxu0 0
      %3008 = vmatmul.mubr.bf16.gmra.mrb[0].mxu0 %v2854
      %v3009 = vpop.f32.mrb[0].mxu0
      %v3010 = vadd.f32 0.0, %v3009
      %v3011 = vpop.f32.mrb[0].mxu0
      %v3012 = vpop.f32.mrb[0].mxu0
      %v3013 = vadd.f32 0.0, %v3012
      %v3014 = vpop.f32.mrb[0].mxu0
      %3015 = vmatprep.mubr.bf16.mxu0 0
      %3016 = vmatmul.mubr.bf16.gmra.mrb[0].mxu0 %v2857
      %v3017 = vpop.f32.mrb[0].mxu0
      %v3018 = vadd.f32 0.0, %v3017
      %v3019 = vpop.f32.mrb[0].mxu0
      %v3020 = vpop.f32.mrb[0].mxu0
      %v3021 = vadd.f32 0.0, %v3020
      %v3022 = vpop.f32.mrb[0].mxu0
      %3023 = vmatprep.mubr.bf16.mxu0 0
      %3024 = vmatmul.mubr.bf16.gmra.mrb[0].mxu0 %v2860
      %v3025 = vpop.f32.mrb[0].mxu0
      %v3026 = vadd.f32 0.0, %v3025
      %v3027 = vpop.f32.mrb[0].mxu0
      %v3028 = vpop.f32.mrb[0].mxu0
      %v3029 = vadd.f32 0.0, %v3028
      %v3030 = vpop.f32.mrb[0].mxu0
      %3031 = vmatprep.mubr.bf16.mxu0 0
      %3032 = vmatmul.mubr.bf16.gmra.mrb[0].mxu0 %v2863
      %v3033 = vpop.f32.mrb[0].mxu0
      %v3034 = vadd.f32 0.0, %v3033
      %v3035 = vpop.f32.mrb[0].mxu0
      %v3036 = vpop.f32.mrb[0].mxu0
      %v3037 = vadd.f32 0.0, %v3036
      %v3038 = vpop.f32.mrb[0].mxu0
      %3039 = vmatprep.mubr.bf16.mxu0 0
      %3040 = vmatmul.mubr.bf16.gmra.mrb[0].mxu0 %v2866
      %v3041 = vpop.f32.mrb[0].mxu0
      %v3042 = vadd.f32 0.0, %v3041
      %v3043 = vpop.f32.mrb[0].mxu0
      %v3044 = vpop.f32.mrb[0].mxu0
      %v3045 = vadd.f32 0.0, %v3044
      %v3046 = vpop.f32.mrb[0].mxu0
      %3047 = vdwg.mxu0
      %v3048 = vadd.f32 %v2722, %v2906
      %v3049 = vadd.f32 %v2723, %v2909
      %v3050 = vadd.f32 %v2724, %v2914
      %v3051 = vadd.f32 %v2725, %v2917
      %v3052 = vadd.f32 %v2726, %v2922
      %v3053 = vadd.f32 %v2727, %v2925
      %v3054 = vadd.f32 %v2728, %v2930
      %v3055 = vadd.f32 %v2729, %v2933
      %v3056 = vadd.f32 %v2730, %v2938
      %v3057 = vadd.f32 %v2731, %v2941
      %v3058 = vadd.f32 %v2732, %v2946
      %v3059 = vadd.f32 %v2733, %v2949
      %v3060 = vadd.f32 %v2734, %v2954
      %v3061 = vadd.f32 %v2735, %v2957
      %v3062 = vadd.f32 %v2736, %v2962
      %v3063 = vadd.f32 %v2737, %v2965
      %v3064 = vadd.f32 %v2738, %v2970
      %v3065 = vadd.f32 %v2739, %v2973
      %v3066 = vadd.f32 %v2740, %v2978
      %v3067 = vadd.f32 %v2741, %v2981
      %v3068 = vadd.f32 %v2742, %v2986
      %v3069 = vadd.f32 %v2743, %v2989
      %v3070 = vadd.f32 %v2744, %v2994
      %v3071 = vadd.f32 %v2745, %v2997
      %v3072 = vadd.f32 %v2746, %v3002
      %v3073 = vadd.f32 %v2747, %v3005
      %v3074 = vadd.f32 %v2748, %v3010
      %v3075 = vadd.f32 %v2749, %v3013
      %v3076 = vadd.f32 %v2750, %v3018
      %v3077 = vadd.f32 %v2751, %v3021
      %v3078 = vadd.f32 %v2752, %v3026
      %v3079 = vadd.f32 %v2753, %v3029
      %v3080 = vadd.f32 %v2754, %v3034
      %v3081 = vadd.f32 %v2755, %v3037
      %v3082 = vadd.f32 %v2756, %v3042
      %v3083 = vadd.f32 %v2757, %v3045
      %v3084 = vld [vmem:[%s2] sm:$0xff]
      %v3085 = vld [vmem:[%s2 + $0x8] sm:$0xff]
      %v3086 = vld [vmem:[%s2 + $0x10] sm:$0xff]
      %v3087 = vld [vmem:[%s2 + $0x18] sm:$0xff]
      %v3088 = vld [vmem:[%s2 + $0x20] sm:$0xff]
      %v3089 = vld [vmem:[%s2 + $0x28] sm:$0xff]
      %v3090 = vld [vmem:[%s2 + $0x30] sm:$0xff]
      %v3091 = vld [vmem:[%s2 + $0x38] sm:$0xff]
      %v3092 = vld [vmem:[%s2 + $0x40] sm:$0xff]
      %v3093 = vld [vmem:[%s2 + $0x48] sm:$0xff]
      %v3094 = vld [vmem:[%s2 + $0x50] sm:$0xff]
      %v3095 = vld [vmem:[%s2 + $0x58] sm:$0xff]
      %v3096 = vld [vmem:[%s2 + $0x60] sm:$0xff]
      %v3097 = vld [vmem:[%s2 + $0x68] sm:$0xff]
      %v3098 = vld [vmem:[%s2 + $0x70] sm:$0xff]
      %v3099 = vld [vmem:[%s2 + $0x78] sm:$0xff]
      %v3100 = vld [vmem:[%s2 + $0x80] sm:$0xff]
      %v3101 = vld [vmem:[%s2 + $0x88] sm:$0xff]
      %v3102 = vld [vmem:[%s2 + $0x90] sm:$0xff]
      %v3103 = vld [vmem:[%s2 + $0x98] sm:$0xff]
      %v3104 = vld [vmem:[%s2 + $0xa0] sm:$0xff]
      %v3105 = vld [vmem:[%s2 + $0xa8] sm:$0xff]
      %v3106 = vld [vmem:[%s2 + $0xb0] sm:$0xff]
      %v3107 = vld [vmem:[%s2 + $0xb8] sm:$0xff]
      %v3108 = vld [vmem:[%s2 + $0xc0] sm:$0xff]
      %v3109 = vld [vmem:[%s2 + $0xc8] sm:$0xff]
      %v3110 = vld [vmem:[%s2 + $0xd0] sm:$0xff]
      %v3111 = vld [vmem:[%s2 + $0xd8] sm:$0xff]
      %v3112 = vld [vmem:[%s2 + $0xe0] sm:$0xff]
      %v3113 = vld [vmem:[%s2 + $0xe8] sm:$0xff]
      %v3114 = vld [vmem:[%s2 + $0xf0] sm:$0xff]
      %v3115 = vld [vmem:[%s2 + $0xf8] sm:$0xff]
      %v3116 = vld [vmem:[%s2 + $0x100] sm:$0xff]
      %v3117 = vld [vmem:[%s2 + $0x108] sm:$0xff]
      %v3118 = vld [vmem:[%s2 + $0x110] sm:$0xff]
      %v3119 = vld [vmem:[%s2 + $0x118] sm:$0xff]
      %3121 = vset.pattern.permute.xlu0 0
      %3122 = vperm.xlu0 %3121, %v3084
      %v3123 = vpop.permute.xlu0 %3122
      %3126 = vset.pattern.permute.xlu0 0
      %3127 = vperm.xlu0 %3126, %v3085
      %v3128 = vpop.permute.xlu0 %3127
      %3131 = vset.pattern.permute.xlu0 0
      %3132 = vperm.xlu0 %3131, %v3086
      %v3133 = vpop.permute.xlu0 %3132
      %3136 = vset.pattern.permute.xlu0 0
      %3137 = vperm.xlu0 %3136, %v3087
      %v3138 = vpop.permute.xlu0 %3137
      %3141 = vset.pattern.permute.xlu0 0
      %3142 = vperm.xlu0 %3141, %v3088
      %v3143 = vpop.permute.xlu0 %3142
      %3146 = vset.pattern.permute.xlu0 0
      %3147 = vperm.xlu0 %3146, %v3089
      %v3148 = vpop.permute.xlu0 %3147
      %3151 = vset.pattern.permute.xlu0 0
      %3152 = vperm.xlu0 %3151, %v3090
      %v3153 = vpop.permute.xlu0 %3152
      %3156 = vset.pattern.permute.xlu0 0
      %3157 = vperm.xlu0 %3156, %v3091
      %v3158 = vpop.permute.xlu0 %3157
      %3161 = vset.pattern.permute.xlu0 0
      %3162 = vperm.xlu0 %3161, %v3092
      %v3163 = vpop.permute.xlu0 %3162
      %3166 = vset.pattern.permute.xlu0 0
      %3167 = vperm.xlu0 %3166, %v3093
      %v3168 = vpop.permute.xlu0 %3167
      %3171 = vset.pattern.permute.xlu0 0
      %3172 = vperm.xlu0 %3171, %v3094
      %v3173 = vpop.permute.xlu0 %3172
      %3176 = vset.pattern.permute.xlu0 0
      %3177 = vperm.xlu0 %3176, %v3095
      %v3178 = vpop.permute.xlu0 %3177
      %3181 = vset.pattern.permute.xlu0 0
      %3182 = vperm.xlu0 %3181, %v3096
      %v3183 = vpop.permute.xlu0 %3182
      %3186 = vset.pattern.permute.xlu0 0
      %3187 = vperm.xlu0 %3186, %v3097
      %v3188 = vpop.permute.xlu0 %3187
      %3191 = vset.pattern.permute.xlu0 0
      %3192 = vperm.xlu0 %3191, %v3098
      %v3193 = vpop.permute.xlu0 %3192
      %3196 = vset.pattern.permute.xlu0 0
      %3197 = vperm.xlu0 %3196, %v3099
      %v3198 = vpop.permute.xlu0 %3197
      %3201 = vset.pattern.permute.xlu0 0
      %3202 = vperm.xlu0 %3201, %v3100
      %v3203 = vpop.permute.xlu0 %3202
      %3206 = vset.pattern.permute.xlu0 0
      %3207 = vperm.xlu0 %3206, %v3101
      %v3208 = vpop.permute.xlu0 %3207
      %3211 = vset.pattern.permute.xlu0 0
      %3212 = vperm.xlu0 %3211, %v3102
      %v3213 = vpop.permute.xlu0 %3212
      %3216 = vset.pattern.permute.xlu0 0
      %3217 = vperm.xlu0 %3216, %v3103
      %v3218 = vpop.permute.xlu0 %3217
      %3221 = vset.pattern.permute.xlu0 0
      %3222 = vperm.xlu0 %3221, %v3104
      %v3223 = vpop.permute.xlu0 %3222
      %3226 = vset.pattern.permute.xlu0 0
      %3227 = vperm.xlu0 %3226, %v3105
      %v3228 = vpop.permute.xlu0 %3227
      %3231 = vset.pattern.permute.xlu0 0
      %3232 = vperm.xlu0 %3231, %v3106
      %v3233 = vpop.permute.xlu0 %3232
      %3236 = vset.pattern.permute.xlu0 0
      %3237 = vperm.xlu0 %3236, %v3107
      %v3238 = vpop.permute.xlu0 %3237
      %3241 = vset.pattern.permute.xlu0 0
      %3242 = vperm.xlu0 %3241, %v3108
      %v3243 = vpop.permute.xlu0 %3242
      %3246 = vset.pattern.permute.xlu0 0
      %3247 = vperm.xlu0 %3246, %v3109
      %v3248 = vpop.permute.xlu0 %3247
      %3251 = vset.pattern.permute.xlu0 0
      %3252 = vperm.xlu0 %3251, %v3110
      %v3253 = vpop.permute.xlu0 %3252
      %3256 = vset.pattern.permute.xlu0 0
      %3257 = vperm.xlu0 %3256, %v3111
      %v3258 = vpop.permute.xlu0 %3257
      %3261 = vset.pattern.permute.xlu0 0
      %3262 = vperm.xlu0 %3261, %v3112
      %v3263 = vpop.permute.xlu0 %3262
      %3266 = vset.pattern.permute.xlu0 0
      %3267 = vperm.xlu0 %3266, %v3113
      %v3268 = vpop.permute.xlu0 %3267
      %3271 = vset.pattern.permute.xlu0 0
      %3272 = vperm.xlu0 %3271, %v3114
      %v3273 = vpop.permute.xlu0 %3272
      %3276 = vset.pattern.permute.xlu0 0
      %3277 = vperm.xlu0 %3276, %v3115
      %v3278 = vpop.permute.xlu0 %3277
      %3281 = vset.pattern.permute.xlu0 0
      %3282 = vperm.xlu0 %3281, %v3116
      %v3283 = vpop.permute.xlu0 %3282
      %3286 = vset.pattern.permute.xlu0 0
      %3287 = vperm.xlu0 %3286, %v3117
      %v3288 = vpop.permute.xlu0 %3287
      %3291 = vset.pattern.permute.xlu0 0
      %3292 = vperm.xlu0 %3291, %v3118
      %v3293 = vpop.permute.xlu0 %3292
      %3296 = vset.pattern.permute.xlu0 0
      %3297 = vperm.xlu0 %3296, %v3119
      %v3298 = vpop.permute.xlu0 %3297
      %v3300 = vmul.f32 %v3048, %v3123
      %v3301 = vmul.f32 %v3049, %v3128
      %v3302 = vmul.f32 %v3050, %v3133
      %v3303 = vmul.f32 %v3051, %v3138
      %v3304 = vmul.f32 %v3052, %v3143
      %v3305 = vmul.f32 %v3053, %v3148
      %v3306 = vmul.f32 %v3054, %v3153
      %v3307 = vmul.f32 %v3055, %v3158
      %v3308 = vmul.f32 %v3056, %v3163
      %v3309 = vmul.f32 %v3057, %v3168
      %v3310 = vmul.f32 %v3058, %v3173
      %v3311 = vmul.f32 %v3059, %v3178
      %v3312 = vmul.f32 %v3060, %v3183
      %v3313 = vmul.f32 %v3061, %v3188
      %v3314 = vmul.f32 %v3062, %v3193
      %v3315 = vmul.f32 %v3063, %v3198
      %v3316 = vmul.f32 %v3064, %v3203
      %v3317 = vmul.f32 %v3065, %v3208
      %v3318 = vmul.f32 %v3066, %v3213
      %v3319 = vmul.f32 %v3067, %v3218
      %v3320 = vmul.f32 %v3068, %v3223
      %v3321 = vmul.f32 %v3069, %v3228
      %v3322 = vmul.f32 %v3070, %v3233
      %v3323 = vmul.f32 %v3071, %v3238
      %v3324 = vmul.f32 %v3072, %v3243
      %v3325 = vmul.f32 %v3073, %v3248
      %v3326 = vmul.f32 %v3074, %v3253
      %v3327 = vmul.f32 %v3075, %v3258
      %v3328 = vmul.f32 %v3076, %v3263
      %v3329 = vmul.f32 %v3077, %v3268
      %v3330 = vmul.f32 %v3078, %v3273
      %v3331 = vmul.f32 %v3079, %v3278
      %v3332 = vmul.f32 %v3080, %v3283
      %v3333 = vmul.f32 %v3081, %v3288
      %v3334 = vmul.f32 %v3082, %v3293
      %v3335 = vmul.f32 %v3083, %v3298
      %3336 = vst [vmem:[%s219] sm:$0xff] %v3300
      %3337 = vst [vmem:[%s219 + $0x8] sm:$0xff] %v3301
      %3338 = vst [vmem:[%s219 + $0x10] sm:$0xff] %v3302
      %3339 = vst [vmem:[%s219 + $0x18] sm:$0xff] %v3303
      %3340 = vst [vmem:[%s219 + $0x20] sm:$0xff] %v3304
      %3341 = vst [vmem:[%s219 + $0x28] sm:$0xff] %v3305
      %3342 = vst [vmem:[%s219 + $0x30] sm:$0xff] %v3306
      %3343 = vst [vmem:[%s219 + $0x38] sm:$0xff] %v3307
      %3344 = vst [vmem:[%s219 + $0x40] sm:$0xff] %v3308
      %3345 = vst [vmem:[%s219 + $0x48] sm:$0xff] %v3309
      %3346 = vst [vmem:[%s219 + $0x50] sm:$0xff] %v3310
      %3347 = vst [vmem:[%s219 + $0x58] sm:$0xff] %v3311
      %3348 = vst [vmem:[%s219 + $0x60] sm:$0xff] %v3312
      %3349 = vst [vmem:[%s219 + $0x68] sm:$0xff] %v3313
      %3350 = vst [vmem:[%s219 + $0x70] sm:$0xff] %v3314
      %3351 = vst [vmem:[%s219 + $0x78] sm:$0xff] %v3315
      %3352 = vst [vmem:[%s219 + $0x80] sm:$0xff] %v3316
      %3353 = vst [vmem:[%s219 + $0x88] sm:$0xff] %v3317
      %3354 = vst [vmem:[%s219 + $0x90] sm:$0xff] %v3318
      %3355 = vst [vmem:[%s219 + $0x98] sm:$0xff] %v3319
      %3356 = vst [vmem:[%s219 + $0xa0] sm:$0xff] %v3320
      %3357 = vst [vmem:[%s219 + $0xa8] sm:$0xff] %v3321
      %3358 = vst [vmem:[%s219 + $0xb0] sm:$0xff] %v3322
      %3359 = vst [vmem:[%s219 + $0xb8] sm:$0xff] %v3323
      %3360 = vst [vmem:[%s219 + $0xc0] sm:$0xff] %v3324
      %3361 = vst [vmem:[%s219 + $0xc8] sm:$0xff] %v3325
      %3362 = vst [vmem:[%s219 + $0xd0] sm:$0xff] %v3326
      %3363 = vst [vmem:[%s219 + $0xd8] sm:$0xff] %v3327
      %3364 = vst [vmem:[%s219 + $0xe0] sm:$0xff] %v3328
      %3365 = vst [vmem:[%s219 + $0xe8] sm:$0xff] %v3329
      %3366 = vst [vmem:[%s219 + $0xf0] sm:$0xff] %v3330
      %3367 = vst [vmem:[%s219 + $0xf8] sm:$0xff] %v3331
      %3368 = vst [vmem:[%s219 + $0x100] sm:$0xff] %v3332
      %3369 = vst [vmem:[%s219 + $0x108] sm:$0xff] %v3333
      %3370 = vst [vmem:[%s219 + $0x110] sm:$0xff] %v3334
      %3371 = vst [vmem:[%s219 + $0x118] sm:$0xff] %v3335
      %p3372 = scmp.eq.s32.totalorder %s17, 0
      // Predicated region
      $region33: #{encoder_forward.16} parent=31 // pred_check
        %p3373 = pneg %p3372
      $region34: #{encoder_forward.16} parent=31 // pred_check_branch
        %3375 = sbr.rel (%p3373) target = $region36
      $region35: #{encoder_forward.16} parent=31 // pred_region
        %3376 = vst [vmem:[%s4] sm:$0x1] 0.0
        %3377 = vst [vmem:[%s5] sm:$0x1] 0.0
      $region36: #{encoder_forward.16} parent=31 // pred_fallthru
        _
      %v3378 = vld [vmem:[%s4] sm:$0x1]
      %v3379 = vadd.f32 %v3300, %v3301
      %v3380 = vadd.f32 %v3379, %v3302
      %v3381 = vadd.f32 %v3380, %v3303
      %v3382 = vadd.f32 %v3381, %v3304
      %v3383 = vadd.f32 %v3382, %v3305
      %v3384 = vadd.f32 %v3383, %v3306
      %v3385 = vadd.f32 %v3384, %v3307
      %v3386 = vadd.f32 %v3385, %v3308
      %v3387 = vadd.f32 %v3386, %v3309
      %v3388 = vadd.f32 %v3387, %v3310
      %v3389 = vadd.f32 %v3388, %v3311
      %v3390 = vadd.f32 %v3389, %v3312
      %v3391 = vadd.f32 %v3390, %v3313
      %v3392 = vadd.f32 %v3391, %v3314
      %v3393 = vadd.f32 %v3392, %v3315
      %v3394 = vadd.f32 %v3393, %v3316
      %v3395 = vadd.f32 %v3394, %v3317
      %v3396 = vadd.f32 %v3395, %v3318
      %v3397 = vadd.f32 %v3396, %v3319
      %v3398 = vadd.f32 %v3397, %v3320
      %v3399 = vadd.f32 %v3398, %v3321
      %v3400 = vadd.f32 %v3399, %v3322
      %v3401 = vadd.f32 %v3400, %v3323
      %v3402 = vadd.f32 %v3401, %v3324
      %v3403 = vadd.f32 %v3402, %v3325
      %v3404 = vadd.f32 %v3403, %v3326
      %v3405 = vadd.f32 %v3404, %v3327
      %v3406 = vadd.f32 %v3405, %v3328
      %v3407 = vadd.f32 %v3406, %v3329
      %v3408 = vadd.f32 %v3407, %v3330
      %v3409 = vadd.f32 %v3408, %v3331
      %v3410 = vadd.f32 %v3409, %v3332
      %v3411 = vadd.f32 %v3410, %v3333
      %v3412 = vadd.f32 %v3411, %v3334
      %v3413 = vadd.f32 %v3412, %v3335
      %v3414 = vrot.slane %v3413, 4
      %v3415 = vadd.f32 %v3413, %v3414
      %v3416 = vrot.slane %v3415, 2
      %v3417 = vadd.f32 %v3415, %v3416
      %v3418 = vrot.slane %v3417, 1
      %v3419 = vadd.f32 %v3417, %v3418
      %v3420 = vadd.f32 %v3378, %v3419
      %3421 = vst [vmem:[%s4] sm:$0x1] %v3420
      %v3422 = vld [vmem:[%s5] sm:$0x1]
      %v3423 = vmul.f32 %v3300, %v3300
      %v3424 = vmul.f32 %v3301, %v3301
      %v3425 = vmul.f32 %v3302, %v3302
      %v3426 = vmul.f32 %v3303, %v3303
      %v3427 = vmul.f32 %v3304, %v3304
      %v3428 = vmul.f32 %v3305, %v3305
      %v3429 = vmul.f32 %v3306, %v3306
      %v3430 = vmul.f32 %v3307, %v3307
      %v3431 = vmul.f32 %v3308, %v3308
      %v3432 = vmul.f32 %v3309, %v3309
      %v3433 = vmul.f32 %v3310, %v3310
      %v3434 = vmul.f32 %v3311, %v3311
      %v3435 = vmul.f32 %v3312, %v3312
      %v3436 = vmul.f32 %v3313, %v3313
      %v3437 = vmul.f32 %v3314, %v3314
      %v3438 = vmul.f32 %v3315, %v3315
      %v3439 = vmul.f32 %v3316, %v3316
      %v3440 = vmul.f32 %v3317, %v3317
      %v3441 = vmul.f32 %v3318, %v3318
      %v3442 = vmul.f32 %v3319, %v3319
      %v3443 = vmul.f32 %v3320, %v3320
      %v3444 = vmul.f32 %v3321, %v3321
      %v3445 = vmul.f32 %v3322, %v3322
      %v3446 = vmul.f32 %v3323, %v3323
      %v3447 = vmul.f32 %v3324, %v3324
      %v3448 = vmul.f32 %v3325, %v3325
      %v3449 = vmul.f32 %v3326, %v3326
      %v3450 = vmul.f32 %v3327, %v3327
      %v3451 = vmul.f32 %v3328, %v3328
      %v3452 = vmul.f32 %v3329, %v3329
      %v3453 = vmul.f32 %v3330, %v3330
      %v3454 = vmul.f32 %v3331, %v3331
      %v3455 = vmul.f32 %v3332, %v3332
      %v3456 = vmul.f32 %v3333, %v3333
      %v3457 = vmul.f32 %v3334, %v3334
      %v3458 = vmul.f32 %v3335, %v3335
      %v3459 = vadd.f32 %v3423, %v3424
      %v3460 = vadd.f32 %v3459, %v3425
      %v3461 = vadd.f32 %v3460, %v3426
      %v3462 = vadd.f32 %v3461, %v3427
      %v3463 = vadd.f32 %v3462, %v3428
      %v3464 = vadd.f32 %v3463, %v3429
      %v3465 = vadd.f32 %v3464, %v3430
      %v3466 = vadd.f32 %v3465, %v3431
      %v3467 = vadd.f32 %v3466, %v3432
      %v3468 = vadd.f32 %v3467, %v3433
      %v3469 = vadd.f32 %v3468, %v3434
      %v3470 = vadd.f32 %v3469, %v3435
      %v3471 = vadd.f32 %v3470, %v3436
      %v3472 = vadd.f32 %v3471, %v3437
      %v3473 = vadd.f32 %v3472, %v3438
      %v3474 = vadd.f32 %v3473, %v3439
      %v3475 = vadd.f32 %v3474, %v3440
      %v3476 = vadd.f32 %v3475, %v3441
      %v3477 = vadd.f32 %v3476, %v3442
      %v3478 = vadd.f32 %v3477, %v3443
      %v3479 = vadd.f32 %v3478, %v3444
      %v3480 = vadd.f32 %v3479, %v3445
      %v3481 = vadd.f32 %v3480, %v3446
      %v3482 = vadd.f32 %v3481, %v3447
      %v3483 = vadd.f32 %v3482, %v3448
      %v3484 = vadd.f32 %v3483, %v3449
      %v3485 = vadd.f32 %v3484, %v3450
      %v3486 = vadd.f32 %v3485, %v3451
      %v3487 = vadd.f32 %v3486, %v3452
      %v3488 = vadd.f32 %v3487, %v3453
      %v3489 = vadd.f32 %v3488, %v3454
      %v3490 = vadd.f32 %v3489, %v3455
      %v3491 = vadd.f32 %v3490, %v3456
      %v3492 = vadd.f32 %v3491, %v3457
      %v3493 = vadd.f32 %v3492, %v3458
      %v3494 = vrot.slane %v3493, 4
      %v3495 = vadd.f32 %v3493, %v3494
      %v3496 = vrot.slane %v3495, 2
      %v3497 = vadd.f32 %v3495, %v3496
      %v3498 = vrot.slane %v3497, 1
      %v3499 = vadd.f32 %v3497, %v3498
      %v3500 = vadd.f32 %v3422, %v3499
      %3501 = vst [vmem:[%s5] sm:$0x1] %v3500
      %p3502 = scmp.lt.s32.totalorder %s17, 1
      %s3503 = scalar_select %p3502, %s17, 1
      %s3504 = smul.addr %s3503, 36
      %s3505 = smul.addr %s3504, 8
      %s3506 = scalar_lea.vmem %s3, %s3505
      // Predicated region
      $region37: #{encoder_forward.16} parent=31 // pred_check
        %p3507 = pneg %p103
      $region38: #{encoder_forward.16} parent=31 // pred_check_branch
        %3509 = sbr.rel (%p3507) target = $region40
      $region39: #{encoder_forward.16} parent=31 // pred_region
        _
      $region40: #{encoder_forward.16} parent=31 // pred_fallthru
        _
      // Predicated region
      $region41: #{encoder_forward.16} parent=31 // pred_check
        %p3510 = pneg %p124
      $region42: #{encoder_forward.16} parent=31 // pred_check_branch
        %3512 = sbr.rel (%p3510) target = $region44
      $region43: #{encoder_forward.16} parent=31 // pred_region
        _
      $region44: #{encoder_forward.16} parent=31 // pred_fallthru
        _
      // Predicated region
      $region45: #{encoder_forward.16} parent=31 // pred_check
        %p3513 = pneg %p145
      $region46: #{encoder_forward.16} parent=31 // pred_check_branch
        %3515 = sbr.rel (%p3513) target = $region48
      $region47: #{encoder_forward.16} parent=31 // pred_region
        _
      $region48: #{encoder_forward.16} parent=31 // pred_fallthru
        _
      // Predicated region
      $region49: #{encoder_forward.16} parent=31 // pred_check
        %p3516 = pneg %p124
      $region50: #{encoder_forward.16} parent=31 // pred_check_branch
        %3518 = sbr.rel (%p3516) target = $region52
      $region51: #{encoder_forward.16} parent=31 // pred_region
        _
      $region52: #{encoder_forward.16} parent=31 // pred_fallthru
        _
      // Predicated region
      $region53: #{encoder_forward.16} parent=31 // pred_check
        %p3519 = pneg %p145
      $region54: #{encoder_forward.16} parent=31 // pred_check_branch
        %3521 = sbr.rel (%p3519) target = $region56
      $region55: #{encoder_forward.16} parent=31 // pred_region
        _
      $region56: #{encoder_forward.16} parent=31 // pred_fallthru
        _
    $region32: #{encoder_forward.16} parent=5 // pred_fallthru
      _
    %p3522 = scmp.le.s32.totalorder 2, %s12
    // Predicated region
    $region57: #{encoder_forward.16} parent=5 // pred_check
      %p3523 = pneg %p3522
    $region58: #{encoder_forward.16} parent=5 // pred_check_branch
      %3525 = sbr.rel (%p3523) target = $region60
    $region59: #{encoder_forward.16} parent=5 // pred_region
      %s3526 = ssub.s32 %s12, 2
      // Predicated region
      $region61: #{encoder_forward.16} parent=59 // pred_check
        %p3527 = pneg %p109
      $region62: #{encoder_forward.16} parent=59 // pred_check_branch
        %3529 = sbr.rel (%p3527) target = $region64
      $region63: #{encoder_forward.16} parent=59 // pred_region
        %p3530 = scmp.lt.s32.totalorder %s18, 1
        %s3531 = scalar_select %p3530, %s18, 1
        %s3532 = smul.addr %s3531, 36
        %s3533 = smul.addr %s3532, 8
        %s3534 = scalar_lea.vmem %s3, %s3533
      $region64: #{encoder_forward.16} parent=59 // pred_fallthru
        _
    $region60: #{encoder_forward.16} parent=5 // pred_fallthru
      _
  $region6: #{encoder_forward.16} parent=0 // loop_footer
    %s16 = sadd.s32 1, %s12
  $region7: #{encoder_forward.16} parent=0 // loop_footer_branch
    %11 = sbr.rel target = $region3
  $region8: #{encoder_forward.16} parent=0 // loop_exit
    _

// kernel: encoder_forward.18
$region0: #{encoder_forward.18}
  #allocation0 [shape = 'u32[]', space=smem, size = 0x4, offset = 0x4, fixed_abs, tag = 'smem constant byte address 0x4 - core index']
  #allocation1 [shape = 'u32[144,128]{1,0:T(1,128)}', space=vmem, size = 0x12000, scoped, tag = 'internal scratch']
  %s0 = inlined_call_operand.vmem [shape: f32[2,328,128], index: 0, kind: input, shape index: {}]
  %s1 = inlined_call_operand.vmem [shape: bf16[9,128,128], index: 1, kind: input, shape index: {}]
  %s2 = inlined_call_operand.vmem [shape: f32[288,1], index: 2, kind: input, shape index: {}]
  %s3 = inlined_call_operand.vmem [shape: f32[2,288,128], index: 3, kind: output, shape index: {0}]
  %s4 = inlined_call_operand.vmem [shape: f32[1,128], index: 4, kind: output, shape index: {1}]
  %s5 = inlined_call_operand.vmem [shape: f32[1,128], index: 5, kind: output, shape index: {2}]
  %6 = xla_tuple %s3, %s4, %s5
  %s7 = sld [smem:[#allocation0]]
  $region65: #{encoder_forward.18} parent=0
    _
  %s9 = ssub.s32 1, %s7
  %s10 = scalar_select 0, %s9, %s7
  loop: start=0, step=1, limit=4
  $region2: #{encoder_forward.18} parent=0 // loop_pre_header
    _
  $region3: #{encoder_forward.18} parent=0 // loop_header
    %s12 = sphi 0, %s16
    %p13 = scmp.ge.s32.totalorder %s12, 4
    %s22 = sphi 0, %s24
    %s25 = sphi 0, %s22
    %s26 = sphi 0, %s25
    %s42 = sphi 0, %s26
    %s46 = sphi 0, %s46
    %s48 = sphi 0, %s46
    %s49 = sphi 0, %s48
    %s63 = sphi 0, %s49
    %s67 = sphi 0, %s67
    %s69 = sphi 0, %s67
    %s70 = sphi 0, %s69
    %s84 = sphi 0, %s70
    %s90 = sphi 0, %s92
    %s93 = sphi 0, %s90
    %s94 = sphi 0, %s93
    %s110 = sphi 0, %s94
    %s114 = sphi 0, %s114
    %s116 = sphi 0, %s114
    %s117 = sphi 0, %s116
    %s131 = sphi 0, %s117
    %s135 = sphi 0, %s135
    %s137 = sphi 0, %s135
    %s138 = sphi 0, %s137
    %s152 = sphi 0, %s138
  $region4: #{encoder_forward.18} parent=0 // loop_header_branch
    %15 = sbr.rel (%p13) target = $region8
  $region5: #{encoder_forward.18} parent=0 // loop_body
    %s17 = ssub.s32 %s12, 1
    %s18 = ssub.s32 %s12, 2
    %s19 = sadd.s32 %s12, 1
    %s20 = ssub.s32 %s12, %s19
    %p21 = scmp.eq.s32.totalorder %s20, 0
    %s23 = sadd.s32 %s22, 1
    %s24 = scalar_select %p21, %s22, %s23
    %p27 = pneg %p21
    %p28 = scmp.eq.s32.totalorder %s12, 1
    %p29 = por %p27, %p28
    %p30 = scmp.ne.s32.totalorder %s22, %s25
    %p31 = scmp.eq.s32.totalorder %s12, 0
    %p32 = por %p30, %p31
    %p33 = scmp.ne.s32.totalorder %s22, %s25
    %p34 = scmp.eq.s32.totalorder %s17, 1
    %p35 = por %p33, %p34
    %p36 = scmp.ne.s32.totalorder %s25, %s26
    %p37 = scmp.eq.s32.totalorder %s17, 0
    %p38 = por %p36, %p37
    %p39 = scmp.ne.s32.totalorder %s25, %s26
    %p40 = scmp.eq.s32.totalorder %s18, 1
    %p41 = por %p39, %p40
    %p43 = scmp.ne.s32.totalorder %s26, %s42
    %p44 = scmp.eq.s32.totalorder %s18, 0
    %p45 = por %p43, %p44
    %s47 = sadd.s32 %s46, 1
    %p50 = scmp.eq.s32.totalorder %s12, 1
    %p51 = scmp.ne.s32.totalorder %s46, %s48
    %p52 = scmp.eq.s32.totalorder %s12, 0
    %p53 = por %p51, %p52
    %p54 = scmp.ne.s32.totalorder %s46, %s48
    %p55 = scmp.eq.s32.totalorder %s17, 1
    %p56 = por %p54, %p55
    %p57 = scmp.ne.s32.totalorder %s48, %s49
    %p58 = scmp.eq.s32.totalorder %s17, 0
    %p59 = por %p57, %p58
    %p60 = scmp.ne.s32.totalorder %s48, %s49
    %p61 = scmp.eq.s32.totalorder %s18, 1
    %p62 = por %p60, %p61
    %p64 = scmp.ne.s32.totalorder %s49, %s63
    %p65 = scmp.eq.s32.totalorder %s18, 0
    %p66 = por %p64, %p65
    %s68 = sadd.s32 %s67, 1
    %p71 = scmp.eq.s32.totalorder %s12, 1
    %p72 = scmp.ne.s32.totalorder %s67, %s69
    %p73 = scmp.eq.s32.totalorder %s12, 0
    %p74 = por %p72, %p73
    %p75 = scmp.ne.s32.totalorder %s67, %s69
    %p76 = scmp.eq.s32.totalorder %s17, 1
    %p77 = por %p75, %p76
    %p78 = scmp.ne.s32.totalorder %s69, %s70
    %p79 = scmp.eq.s32.totalorder %s17, 0
    %p80 = por %p78, %p79
    %p81 = scmp.ne.s32.totalorder %s69, %s70
    %p82 = scmp.eq.s32.totalorder %s18, 1
    %p83 = por %p81, %p82
    %p85 = scmp.ne.s32.totalorder %s70, %s84
    %p86 = scmp.eq.s32.totalorder %s18, 0
    %p87 = por %p85, %p86
    %s88 = ssub.s32 %s12, %s19
    %p89 = scmp.eq.s32.totalorder %s88, 0
    %s91 = sadd.s32 %s90, 1
    %s92 = scalar_select %p89, %s90, %s91
    %p95 = pneg %p89
    %p96 = scmp.eq.s32.totalorder %s12, 1
    %p97 = por %p95, %p96
    %p98 = scmp.ne.s32.totalorder %s90, %s93
    %p99 = scmp.eq.s32.totalorder %s12, 0
    %p100 = por %p98, %p99
    %p101 = scmp.ne.s32.totalorder %s90, %s93
    %p102 = scmp.eq.s32.totalorder %s17, 1
    %p103 = por %p101, %p102
    %p104 = scmp.ne.s32.totalorder %s93, %s94
    %p105 = scmp.eq.s32.totalorder %s17, 0
    %p106 = por %p104, %p105
    %p107 = scmp.ne.s32.totalorder %s93, %s94
    %p108 = scmp.eq.s32.totalorder %s18, 1
    %p109 = por %p107, %p108
    %p111 = scmp.ne.s32.totalorder %s94, %s110
    %p112 = scmp.eq.s32.totalorder %s18, 0
    %p113 = por %p111, %p112
    %s115 = sadd.s32 %s114, 1
    %p118 = scmp.eq.s32.totalorder %s12, 1
    %p119 = scmp.ne.s32.totalorder %s114, %s116
    %p120 = scmp.eq.s32.totalorder %s12, 0
    %p121 = por %p119, %p120
    %p122 = scmp.ne.s32.totalorder %s114, %s116
    %p123 = scmp.eq.s32.totalorder %s17, 1
    %p124 = por %p122, %p123
    %p125 = scmp.ne.s32.totalorder %s116, %s117
    %p126 = scmp.eq.s32.totalorder %s17, 0
    %p127 = por %p125, %p126
    %p128 = scmp.ne.s32.totalorder %s116, %s117
    %p129 = scmp.eq.s32.totalorder %s18, 1
    %p130 = por %p128, %p129
    %p132 = scmp.ne.s32.totalorder %s117, %s131
    %p133 = scmp.eq.s32.totalorder %s18, 0
    %p134 = por %p132, %p133
    %s136 = sadd.s32 %s135, 1
    %p139 = scmp.eq.s32.totalorder %s12, 1
    %p140 = scmp.ne.s32.totalorder %s135, %s137
    %p141 = scmp.eq.s32.totalorder %s12, 0
    %p142 = por %p140, %p141
    %p143 = scmp.ne.s32.totalorder %s135, %s137
    %p144 = scmp.eq.s32.totalorder %s17, 1
    %p145 = por %p143, %p144
    %p146 = scmp.ne.s32.totalorder %s137, %s138
    %p147 = scmp.eq.s32.totalorder %s17, 0
    %p148 = por %p146, %p147
    %p149 = scmp.ne.s32.totalorder %s137, %s138
    %p150 = scmp.eq.s32.totalorder %s18, 1
    %p151 = por %p149, %p150
    %p153 = scmp.ne.s32.totalorder %s138, %s152
    %p154 = scmp.eq.s32.totalorder %s18, 0
    %p155 = por %p153, %p154
    %p156 = scmp.le.s32.totalorder 1, %s12
    %p157 = scmp.lt.s32.totalorder %s12, 3
    %p158 = pnand %p156, %p157
    %p159 = pneg %p158
    // Predicated region
    $region9: #{encoder_forward.18} parent=5 // pred_check
      _
    $region10: #{encoder_forward.18} parent=5 // pred_check_branch
      %161 = sbr.rel (%p158) target = $region12
    $region11: #{encoder_forward.18} parent=5 // pred_region
      %s162 = ssub.s32 %s12, 1
      // Predicated region
      $region13: #{encoder_forward.18} parent=11 // pred_check
        %p163 = pneg %p59
      $region14: #{encoder_forward.18} parent=11 // pred_check_branch
        %165 = sbr.rel (%p163) target = $region16
      $region15: #{encoder_forward.18} parent=11 // pred_region
        _
      $region16: #{encoder_forward.18} parent=11 // pred_fallthru
        _
      // Predicated region
      $region17: #{encoder_forward.18} parent=11 // pred_check
        %p166 = pneg %p80
      $region18: #{encoder_forward.18} parent=11 // pred_check_branch
        %168 = sbr.rel (%p166) target = $region20
      $region19: #{encoder_forward.18} parent=11 // pred_region
        _
      $region20: #{encoder_forward.18} parent=11 // pred_fallthru
        _
    $region12: #{encoder_forward.18} parent=5 // pred_fallthru
      _
    %p169 = scmp.lt.s32.totalorder %s12, 2
    // Predicated region
    $region21: #{encoder_forward.18} parent=5 // pred_check
      %p170 = pneg %p169
    $region22: #{encoder_forward.18} parent=5 // pred_check_branch
      %172 = sbr.rel (%p170) target = $region24
    $region23: #{encoder_forward.18} parent=5 // pred_region
      // Predicated region
      $region25: #{encoder_forward.18} parent=23 // pred_check
        %p173 = pneg %p32
      $region26: #{encoder_forward.18} parent=23 // pred_check_branch
        %175 = sbr.rel (%p173) target = $region28
      $region27: #{encoder_forward.18} parent=23 // pred_region
        %p176 = scmp.lt.s32.totalorder %s12, 1
        %s177 = scalar_select %p176, %s12, 1
        %s178 = smul.addr %s177, 41
        %s179 = smul.addr %s178, 8
        %s180 = scalar_lea.vmem %s0, %s179
      $region28: #{encoder_forward.18} parent=23 // pred_fallthru
        _
    $region24: #{encoder_forward.18} parent=5 // pred_fallthru
      _
    %p181 = scmp.le.s32.totalorder 1, %s12
    %p182 = scmp.lt.s32.totalorder %s12, 3
    %p183 = pnand %p181, %p182
    %p184 = pneg %p183
    // Predicated region
    $region29: #{encoder_forward.18} parent=5 // pred_check
      _
    $region30: #{encoder_forward.18} parent=5 // pred_check_branch
      %186 = sbr.rel (%p183) target = $region32
    $region31: #{encoder_forward.18} parent=5 // pred_region
      %s187 = ssub.s32 %s12, 1
      %p188 = scmp.lt.s32.totalorder %s17, 1
      %s189 = scalar_select %p188, %s17, 1
      %s190 = smul.addr %s189, 41
      %s191 = smul.addr %s190, 8
      %s192 = scalar_lea.vmem %s0, %s191
      %p193 = pneg %p38
      %p194 = pneg %p35
      %p195 = pneg %p59
      %p196 = pneg %p56
      %p197 = pneg %p80
      %p198 = pneg %p77
      %p199 = pneg %p106
      %p200 = pneg %p103
      %p201 = scmp.lt.s32.totalorder %s17, 1
      %s202 = scalar_select %p201, %s17, 1
      %s203 = smul.addr %s202, 36
      %s204 = smul.addr %s203, 8
      %s205 = scalar_lea.vmem %s3, %s204
      %p206 = pneg %p127
      %p207 = pneg %p124
      %p208 = pneg %p148
      %p209 = pneg %p145
      %p210 = scmp.lt.s32.totalorder %s17, 1
      %s211 = scalar_select %p210, %s17, 1
      %s212 = smul.addr %s211, 41
      %s213 = smul.addr %s212, 8
      %s214 = scalar_lea.vmem %s0, %s213
      %p215 = scmp.lt.s32.totalorder %s17, 1
      %s216 = scalar_select %p215, %s17, 1
      %s217 = smul.addr %s216, 36
      %s218 = smul.addr %s217, 8
      %s219 = scalar_lea.vmem %s3, %s218
      %v221 = vld [vmem:[%s214] sm:$0xff]
      %v222 = vld [vmem:[%s214 + $0x8] sm:$0xff]
      %v223 = vld [vmem:[%s214 + $0x10] sm:$0xff]
      %v224 = vld [vmem:[%s214 + $0x18] sm:$0xff]
      %v225 = vld [vmem:[%s214 + $0x20] sm:$0xff]
      %v226 = vld [vmem:[%s214 + $0x28] sm:$0xff]
      %v227 = vld [vmem:[%s214 + $0x30] sm:$0xff]
      %v228 = vld [vmem:[%s214 + $0x38] sm:$0xff]
      %v229 = vld [vmem:[%s214 + $0x40] sm:$0xff]
      %v230 = vld [vmem:[%s214 + $0x48] sm:$0xff]
      %v231 = vld [vmem:[%s214 + $0x50] sm:$0xff]
      %v232 = vld [vmem:[%s214 + $0x58] sm:$0xff]
      %v233 = vld [vmem:[%s214 + $0x60] sm:$0xff]
      %v234 = vld [vmem:[%s214 + $0x68] sm:$0xff]
      %v235 = vld [vmem:[%s214 + $0x70] sm:$0xff]
      %v236 = vld [vmem:[%s214 + $0x78] sm:$0xff]
      %v237 = vld [vmem:[%s214 + $0x80] sm:$0xff]
      %v238 = vld [vmem:[%s214 + $0x88] sm:$0xff]
      %v239 = vld [vmem:[%s214 + $0x90] sm:$0xff]
      %v240 = vld [vmem:[%s214 + $0x98] sm:$0xff]
      %v241 = vld [vmem:[%s214 + $0xa0] sm:$0xff]
      %v242 = vld [vmem:[%s214 + $0xa8] sm:$0xff]
      %v243 = vld [vmem:[%s214 + $0xb0] sm:$0xff]
      %v244 = vld [vmem:[%s214 + $0xb8] sm:$0xff]
      %v245 = vld [vmem:[%s214 + $0xc0] sm:$0xff]
      %v246 = vld [vmem:[%s214 + $0xc8] sm:$0xff]
      %v247 = vld [vmem:[%s214 + $0xd0] sm:$0xff]
      %v248 = vld [vmem:[%s214 + $0xd8] sm:$0xff]
      %v249 = vld [vmem:[%s214 + $0xe0] sm:$0xff]
      %v250 = vld [vmem:[%s214 + $0xe8] sm:$0xff]
      %v251 = vld [vmem:[%s214 + $0xf0] sm:$0xff]
      %v252 = vld [vmem:[%s214 + $0xf8] sm:$0xff]
      %v253 = vld [vmem:[%s214 + $0x100] sm:$0xff]
      %v254 = vld [vmem:[%s214 + $0x108] sm:$0xff]
      %v255 = vld [vmem:[%s214 + $0x110] sm:$0xff]
      %v256 = vld [vmem:[%s214 + $0x118] sm:$0xff]
      %v257 = vpack.c.bf16 %v222, %v221
      %v258 = vpack.c.bf16 %v224, %v223
      %v259 = vpack.c.bf16 %v226, %v225
      %v260 = vpack.c.bf16 %v228, %v227
      %v261 = vpack.c.bf16 %v230, %v229
      %v262 = vpack.c.bf16 %v232, %v231
      %v263 = vpack.c.bf16 %v234, %v233
      %v264 = vpack.c.bf16 %v236, %v235
      %v265 = vpack.c.bf16 %v238, %v237
      %v266 = vpack.c.bf16 %v240, %v239
      %v267 = vpack.c.bf16 %v242, %v241
      %v268 = vpack.c.bf16 %v244, %v243
      %v269 = vpack.c.bf16 %v246, %v245
      %v270 = vpack.c.bf16 %v248, %v247
      %v271 = vpack.c.bf16 %v250, %v249
      %v272 = vpack.c.bf16 %v252, %v251
      %v273 = vpack.c.bf16 %v254, %v253
      %v274 = vpack.c.bf16 %v256, %v255
      %v275 = vld [vmem:[%s1] sm:$0xf]
      %v276 = vld [vmem:[%s1 + $0x4] sm:$0xf]
      %v277 = vld [vmem:[%s1 + $0x8] sm:$0xf]
      %v278 = vld [vmem:[%s1 + $0xc] sm:$0xf]
      %v279 = vld [vmem:[%s1 + $0x10] sm:$0xf]
      %v280 = vld [vmem:[%s1 + $0x14] sm:$0xf]
      %v281 = vld [vmem:[%s1 + $0x18] sm:$0xf]
      %v282 = vld [vmem:[%s1 + $0x1c] sm:$0xf]
      %v283 = vld [vmem:[%s1 + $0x20] sm:$0xf]
      %v284 = vld [vmem:[%s1 + $0x24] sm:$0xf]
      %v285 = vld [vmem:[%s1 + $0x28] sm:$0xf]
      %v286 = vld [vmem:[%s1 + $0x2c] sm:$0xf]
      %v287 = vld [vmem:[%s1 + $0x30] sm:$0xf]
      %v288 = vld [vmem:[%s1 + $0x34] sm:$0xf]
      %v289 = vld [vmem:[%s1 + $0x38] sm:$0xf]
      %v290 = vld [vmem:[%s1 + $0x3c] sm:$0xf]
      %v291 = vld [vmem:[%s214 + $0x1] sm:$0xff]
      %v292 = vld [vmem:[%s214 + $0x9] sm:$0xff]
      %v293 = vld [vmem:[%s214 + $0x11] sm:$0xff]
      %v294 = vld [vmem:[%s214 + $0x19] sm:$0xff]
      %v295 = vld [vmem:[%s214 + $0x21] sm:$0xff]
      %v296 = vld [vmem:[%s214 + $0x29] sm:$0xff]
      %v297 = vld [vmem:[%s214 + $0x31] sm:$0xff]
      %v298 = vld [vmem:[%s214 + $0x39] sm:$0xff]
      %v299 = vld [vmem:[%s214 + $0x41] sm:$0xff]
      %v300 = vld [vmem:[%s214 + $0x49] sm:$0xff]
      %v301 = vld [vmem:[%s214 + $0x51] sm:$0xff]
      %v302 = vld [vmem:[%s214 + $0x59] sm:$0xff]
      %v303 = vld [vmem:[%s214 + $0x61] sm:$0xff]
      %v304 = vld [vmem:[%s214 + $0x69] sm:$0xff]
      %v305 = vld [vmem:[%s214 + $0x71] sm:$0xff]
      %v306 = vld [vmem:[%s214 + $0x79] sm:$0xff]
      %v307 = vld [vmem:[%s214 + $0x81] sm:$0xff]
      %v308 = vld [vmem:[%s214 + $0x89] sm:$0xff]
      %v309 = vld [vmem:[%s214 + $0x91] sm:$0xff]
      %v310 = vld [vmem:[%s214 + $0x99] sm:$0xff]
      %v311 = vld [vmem:[%s214 + $0xa1] sm:$0xff]
      %v312 = vld [vmem:[%s214 + $0xa9] sm:$0xff]
      %v313 = vld [vmem:[%s214 + $0xb1] sm:$0xff]
      %v314 = vld [vmem:[%s214 + $0xb9] sm:$0xff]
      %v315 = vld [vmem:[%s214 + $0xc1] sm:$0xff]
      %v316 = vld [vmem:[%s214 + $0xc9] sm:$0xff]
      %v317 = vld [vmem:[%s214 + $0xd1] sm:$0xff]
      %v318 = vld [vmem:[%s214 + $0xd9] sm:$0xff]
      %v319 = vld [vmem:[%s214 + $0xe1] sm:$0xff]
      %v320 = vld [vmem:[%s214 + $0xe9] sm:$0xff]
      %v321 = vld [vmem:[%s214 + $0xf1] sm:$0xff]
      %v322 = vld [vmem:[%s214 + $0xf9] sm:$0xff]
      %v323 = vld [vmem:[%s214 + $0x101] sm:$0xff]
      %v324 = vld [vmem:[%s214 + $0x109] sm:$0xff]
      %v325 = vld [vmem:[%s214 + $0x111] sm:$0xff]
      %v326 = vld [vmem:[%s214 + $0x119] sm:$0xff]
      %v327 = vpack.c.bf16 %v292, %v291
      %v328 = vpack.c.bf16 %v294, %v293
      %v329 = vpack.c.bf16 %v296, %v295
      %v330 = vpack.c.bf16 %v298, %v297
      %v331 = vpack.c.bf16 %v300, %v299
      %v332 = vpack.c.bf16 %v302, %v301
      %v333 = vpack.c.bf16 %v304, %v303
      %v334 = vpack.c.bf16 %v306, %v305
      %v335 = vpack.c.bf16 %v308, %v307
      %v336 = vpack.c.bf16 %v310, %v309
      %v337 = vpack.c.bf16 %v312, %v311
      %v338 = vpack.c.bf16 %v314, %v313
      %v339 = vpack.c.bf16 %v316, %v315
      %v340 = vpack.c.bf16 %v318, %v317
      %v341 = vpack.c.bf16 %v320, %v319
      %v342 = vpack.c.bf16 %v322, %v321
      %v343 = vpack.c.bf16 %v324, %v323
      %v344 = vpack.c.bf16 %v326, %v325
      %s345 = scalar_lea.vmem %s1, 64
      %v346 = vld [vmem:[%s345] sm:$0xf]
      %v347 = vld [vmem:[%s345 + $0x4] sm:$0xf]
      %v348 = vld [vmem:[%s345 + $0x8] sm:$0xf]
      %v349 = vld [vmem:[%s345 + $0xc] sm:$0xf]
      %v350 = vld [vmem:[%s345 + $0x10] sm:$0xf]
      %v351 = vld [vmem:[%s345 + $0x14] sm:$0xf]
      %v352 = vld [vmem:[%s345 + $0x18] sm:$0xf]
      %v353 = vld [vmem:[%s345 + $0x1c] sm:$0xf]
      %v354 = vld [vmem:[%s345 + $0x20] sm:$0xf]
      %v355 = vld [vmem:[%s345 + $0x24] sm:$0xf]
      %v356 = vld [vmem:[%s345 + $0x28] sm:$0xf]
      %v357 = vld [vmem:[%s345 + $0x2c] sm:$0xf]
      %v358 = vld [vmem:[%s345 + $0x30] sm:$0xf]
      %v359 = vld [vmem:[%s345 + $0x34] sm:$0xf]
      %v360 = vld [vmem:[%s345 + $0x38] sm:$0xf]
      %v361 = vld [vmem:[%s345 + $0x3c] sm:$0xf]
      %v378 = vunpack.c.l.b16 %v346
      %v379 = vunpack.c.l.b16 %v347
      %v380 = vunpack.c.l.b16 %v348
      %v381 = vunpack.c.l.b16 %v349
      %v382 = vunpack.c.l.b16 %v350
      %v383 = vunpack.c.l.b16 %v351
      %v384 = vunpack.c.l.b16 %v352
      %v385 = vunpack.c.l.b16 %v353
      %v386 = vunpack.c.l.b16 %v354
      %v387 = vunpack.c.l.b16 %v355
      %v388 = vunpack.c.l.b16 %v356
      %v389 = vunpack.c.l.b16 %v357
      %v390 = vunpack.c.l.b16 %v358
      %v391 = vunpack.c.l.b16 %v359
      %v392 = vunpack.c.l.b16 %v360
      %v393 = vunpack.c.l.b16 %v361
      %v394 = vpack.c.b16 %v379, %v378
      %v395 = vpack.c.b16 %v381, %v380
      %v396 = vpack.c.b16 %v383, %v382
      %v397 = vpack.c.b16 %v385, %v384
      %v398 = vpack.c.b16 %v387, %v386
      %v399 = vpack.c.b16 %v389, %v388
      %v400 = vpack.c.b16 %v391, %v390
      %v401 = vpack.c.b16 %v393, %v392
      %410 = vmatprep.subr.bf16.mxu0 0
      %411 = vmatpush1.bf16.msra.mxu0 %v394
      %412 = vmatprep.subr.bf16.mxu0 0
      %413 = vmatpush1.bf16.msra.mxu0 %v395
      %414 = vmatprep.subr.bf16.mxu0 0
      %415 = vmatpush1.bf16.msra.mxu0 %v396
      %416 = vmatprep.subr.bf16.mxu0 0
      %417 = vmatpush1.bf16.msra.mxu0 %v397
      %418 = vmatprep.subr.bf16.mxu0 0
      %419 = vmatpush1.bf16.msra.mxu0 %v398
      %420 = vmatprep.subr.bf16.mxu0 0
      %421 = vmatpush1.bf16.msra.mxu0 %v399
      %422 = vmatprep.subr.bf16.mxu0 0
      %423 = vmatpush1.bf16.msra.mxu0 %v400
      %424 = vmatprep.subr.bf16.mxu0 0
      %425 = vmatpush1.bf16.msra.mxu0 %v401
      %426 = vmatprep.subr.bf16.mxu0 0
      %427 = vmatpush1.bf16.msra.mxu0 0
      %428 = vmatprep.subr.bf16.mxu0 0
      %429 = vmatpush1.bf16.msra.mxu0 0
      %430 = vmatprep.subr.bf16.mxu0 0
      %431 = vmatpush1.bf16.msra.mxu0 0
      %432 = vmatprep.subr.bf16.mxu0 0
      %433 = vmatpush1.bf16.msra.mxu0 0
      %434 = vmatprep.subr.bf16.mxu0 0
      %435 = vmatpush1.bf16.msra.mxu0 0
      %436 = vmatprep.subr.bf16.mxu0 0
      %437 = vmatpush1.bf16.msra.mxu0 0
      %438 = vmatprep.subr.bf16.mxu0 0
      %439 = vmatpush1.bf16.msra.mxu0 0
      %440 = vmatprep.subr.bf16.mxu0 0
      %441 = vmatpush1.bf16.msra.mxu0 0
      %442 = vmatprep.mubr.bf16.mxu0 0
      %443 = vmatmul.mubr.bf16.gmra.mrb[0].mxu0 %v327
      %v444 = vpop.f32.mrb[0].mxu0
      %v445 = vadd.f32 0.0, %v444
      %v446 = vpop.f32.mrb[0].mxu0
      %v447 = vpop.f32.mrb[0].mxu0
      %v448 = vadd.f32 0.0, %v447
      %v449 = vpop.f32.mrb[0].mxu0
      %450 = vmatprep.mubr.bf16.mxu0 0
      %451 = vmatmul.mubr.bf16.gmra.mrb[0].mxu0 %v328
      %v452 = vpop.f32.mrb[0].mxu0
      %v453 = vadd.f32 0.0, %v452
      %v454 = vpop.f32.mrb[0].mxu0
      %v455 = vpop.f32.mrb[0].mxu0
      %v456 = vadd.f32 0.0, %v455
      %v457 = vpop.f32.mrb[0].mxu0
      %458 = vmatprep.mubr.bf16.mxu0 0
      %459 = vmatmul.mubr.bf16.gmra.mrb[0].mxu0 %v329
      %v460 = vpop.f32.mrb[0].mxu0
      %v461 = vadd.f32 0.0, %v460
      %v462 = vpop.f32.mrb[0].mxu0
      %v463 = vpop.f32.mrb[0].mxu0
      %v464 = vadd.f32 0.0, %v463
      %v465 = vpop.f32.mrb[0].mxu0
      %466 = vmatprep.mubr.bf16.mxu0 0
      %467 = vmatmul.mubr.bf16.gmra.mrb[0].mxu0 %v330
      %v468 = vpop.f32.mrb[0].mxu0
      %v469 = vadd.f32 0.0, %v468
      %v470 = vpop.f32.mrb[0].mxu0
      %v471 = vpop.f32.mrb[0].mxu0
      %v472 = vadd.f32 0.0, %v471
      %v473 = vpop.f32.mrb[0].mxu0
      %474 = vmatprep.mubr.bf16.mxu0 0
      %475 = vmatmul.mubr.bf16.gmra.mrb[0].mxu0 %v331
      %v476 = vpop.f32.mrb[0].mxu0
      %v477 = vadd.f32 0.0, %v476
      %v478 = vpop.f32.mrb[0].mxu0
      %v479 = vpop.f32.mrb[0].mxu0
      %v480 = vadd.f32 0.0, %v479
      %v481 = vpop.f32.mrb[0].mxu0
      %482 = vmatprep.mubr.bf16.mxu0 0
      %483 = vmatmul.mubr.bf16.gmra.mrb[0].mxu0 %v332
      %v484 = vpop.f32.mrb[0].mxu0
      %v485 = vadd.f32 0.0, %v484
      %v486 = vpop.f32.mrb[0].mxu0
      %v487 = vpop.f32.mrb[0].mxu0
      %v488 = vadd.f32 0.0, %v487
      %v489 = vpop.f32.mrb[0].mxu0
      %490 = vmatprep.mubr.bf16.mxu0 0
      %491 = vmatmul.mubr.bf16.gmra.mrb[0].mxu0 %v333
      %v492 = vpop.f32.mrb[0].mxu0
      %v493 = vadd.f32 0.0, %v492
      %v494 = vpop.f32.mrb[0].mxu0
      %v495 = vpop.f32.mrb[0].mxu0
      %v496 = vadd.f32 0.0, %v495
      %v497 = vpop.f32.mrb[0].mxu0
      %498 = vmatprep.mubr.bf16.mxu0 0
      %499 = vmatmul.mubr.bf16.gmra.mrb[0].mxu0 %v334
      %v500 = vpop.f32.mrb[0].mxu0
      %v501 = vadd.f32 0.0, %v500
      %v502 = vpop.f32.mrb[0].mxu0
      %v503 = vpop.f32.mrb[0].mxu0
      %v504 = vadd.f32 0.0, %v503
      %v505 = vpop.f32.mrb[0].mxu0
      %506 = vmatprep.mubr.bf16.mxu0 0
      %507 = vmatmul.mubr.bf16.gmra.mrb[0].mxu0 %v335
      %v508 = vpop.f32.mrb[0].mxu0
      %v509 = vadd.f32 0.0, %v508
      %v510 = vpop.f32.mrb[0].mxu0
      %v511 = vpop.f32.mrb[0].mxu0
      %v512 = vadd.f32 0.0, %v511
      %v513 = vpop.f32.mrb[0].mxu0
      %514 = vmatprep.mubr.bf16.mxu0 0
      %515 = vmatmul.mubr.bf16.gmra.mrb[0].mxu0 %v336
      %v516 = vpop.f32.mrb[0].mxu0
      %v517 = vadd.f32 0.0, %v516
      %v518 = vpop.f32.mrb[0].mxu0
      %v519 = vpop.f32.mrb[0].mxu0
      %v520 = vadd.f32 0.0, %v519
      %v521 = vpop.f32.mrb[0].mxu0
      %522 = vmatprep.mubr.bf16.mxu0 0
      %523 = vmatmul.mubr.bf16.gmra.mrb[0].mxu0 %v337
      %v524 = vpop.f32.mrb[0].mxu0
      %v525 = vadd.f32 0.0, %v524
      %v526 = vpop.f32.mrb[0].mxu0
      %v527 = vpop.f32.mrb[0].mxu0
      %v528 = vadd.f32 0.0, %v527
      %v529 = vpop.f32.mrb[0].mxu0
      %530 = vmatprep.mubr.bf16.mxu0 0
      %531 = vmatmul.mubr.bf16.gmra.mrb[0].mxu0 %v338
      %v532 = vpop.f32.mrb[0].mxu0
      %v533 = vadd.f32 0.0, %v532
      %v534 = vpop.f32.mrb[0].mxu0
      %v535 = vpop.f32.mrb[0].mxu0
      %v536 = vadd.f32 0.0, %v535
      %v537 = vpop.f32.mrb[0].mxu0
      %538 = vmatprep.mubr.bf16.mxu0 0
      %539 = vmatmul.mubr.bf16.gmra.mrb[0].mxu0 %v339
      %v540 = vpop.f32.mrb[0].mxu0
      %v541 = vadd.f32 0.0, %v540
      %v542 = vpop.f32.mrb[0].mxu0
      %v543 = vpop.f32.mrb[0].mxu0
      %v544 = vadd.f32 0.0, %v543
      %v545 = vpop.f32.mrb[0].mxu0
      %546 = vmatprep.mubr.bf16.mxu0 0
      %547 = vmatmul.mubr.bf16.gmra.mrb[0].mxu0 %v340
      %v548 = vpop.f32.mrb[0].mxu0
      %v549 = vadd.f32 0.0, %v548
      %v550 = vpop.f32.mrb[0].mxu0
      %v551 = vpop.f32.mrb[0].mxu0
      %v552 = vadd.f32 0.0, %v551
      %v553 = vpop.f32.mrb[0].mxu0
      %554 = vmatprep.mubr.bf16.mxu0 0
      %555 = vmatmul.mubr.bf16.gmra.mrb[0].mxu0 %v341
      %v556 = vpop.f32.mrb[0].mxu0
      %v557 = vadd.f32 0.0, %v556
      %v558 = vpop.f32.mrb[0].mxu0
      %v559 = vpop.f32.mrb[0].mxu0
      %v560 = vadd.f32 0.0, %v559
      %v561 = vpop.f32.mrb[0].mxu0
      %562 = vmatprep.mubr.bf16.mxu0 0
      %563 = vmatmul.mubr.bf16.gmra.mrb[0].mxu0 %v342
      %v564 = vpop.f32.mrb[0].mxu0
      %v565 = vadd.f32 0.0, %v564
      %v566 = vpop.f32.mrb[0].mxu0
      %v567 = vpop.f32.mrb[0].mxu0
      %v568 = vadd.f32 0.0, %v567
      %v569 = vpop.f32.mrb[0].mxu0
      %570 = vmatprep.mubr.bf16.mxu0 0
      %571 = vmatmul.mubr.bf16.gmra.mrb[0].mxu0 %v343
      %v572 = vpop.f32.mrb[0].mxu0
      %v573 = vadd.f32 0.0, %v572
      %v574 = vpop.f32.mrb[0].mxu0
      %v575 = vpop.f32.mrb[0].mxu0
      %v576 = vadd.f32 0.0, %v575
      %v577 = vpop.f32.mrb[0].mxu0
      %578 = vmatprep.mubr.bf16.mxu0 0
      %579 = vmatmul.mubr.bf16.gmra.mrb[0].mxu0 %v344
      %v580 = vpop.f32.mrb[0].mxu0
      %v581 = vadd.f32 0.0, %v580
      %v582 = vpop.f32.mrb[0].mxu0
      %v583 = vpop.f32.mrb[0].mxu0
      %v584 = vadd.f32 0.0, %v583
      %v585 = vpop.f32.mrb[0].mxu0
      %586 = vdwg.mxu0
      %v603 = vunpack.c.l.b16 %v275
      %v604 = vunpack.c.l.b16 %v276
      %v605 = vunpack.c.l.b16 %v277
      %v606 = vunpack.c.l.b16 %v278
      %v607 = vunpack.c.l.b16 %v279
      %v608 = vunpack.c.l.b16 %v280
      %v609 = vunpack.c.l.b16 %v281
      %v610 = vunpack.c.l.b16 %v282
      %v611 = vunpack.c.l.b16 %v283
      %v612 = vunpack.c.l.b16 %v284
      %v613 = vunpack.c.l.b16 %v285
      %v614 = vunpack.c.l.b16 %v286
      %v615 = vunpack.c.l.b16 %v287
      %v616 = vunpack.c.l.b16 %v288
      %v617 = vunpack.c.l.b16 %v289
      %v618 = vunpack.c.l.b16 %v290
      %v619 = vpack.c.b16 %v604, %v603
      %v620 = vpack.c.b16 %v606, %v605
      %v621 = vpack.c.b16 %v608, %v607
      %v622 = vpack.c.b16 %v610, %v609
      %v623 = vpack.c.b16 %v612, %v611
      %v624 = vpack.c.b16 %v614, %v613
      %v625 = vpack.c.b16 %v616, %v615
      %v626 = vpack.c.b16 %v618, %v617
      %635 = vmatprep.subr.bf16.mxu0 0
      %636 = vmatpush1.bf16.msra.mxu0 %v619
      %637 = vmatprep.subr.bf16.mxu0 0
      %638 = vmatpush1.bf16.msra.mxu0 %v620
      %639 = vmatprep.subr.bf16.mxu0 0
      %640 = vmatpush1.bf16.msra.mxu0 %v621
      %641 = vmatprep.subr.bf16.mxu0 0
      %642 = vmatpush1.bf16.msra.mxu0 %v622
      %643 = vmatprep.subr.bf16.mxu0 0
      %644 = vmatpush1.bf16.msra.mxu0 %v623
      %645 = vmatprep.subr.bf16.mxu0 0
      %646 = vmatpush1.bf16.msra.mxu0 %v624
      %647 = vmatprep.subr.bf16.mxu0 0
      %648 = vmatpush1.bf16.msra.mxu0 %v625
      %649 = vmatprep.subr.bf16.mxu0 0
      %650 = vmatpush1.bf16.msra.mxu0 %v626
      %651 = vmatprep.subr.bf16.mxu0 0
      %652 = vmatpush1.bf16.msra.mxu0 0
      %653 = vmatprep.subr.bf16.mxu0 0
      %654 = vmatpush1.bf16.msra.mxu0 0
      %655 = vmatprep.subr.bf16.mxu0 0
      %656 = vmatpush1.bf16.msra.mxu0 0
      %657 = vmatprep.subr.bf16.mxu0 0
      %658 = vmatpush1.bf16.msra.mxu0 0
      %659 = vmatprep.subr.bf16.mxu0 0
      %660 = vmatpush1.bf16.msra.mxu0 0
      %661 = vmatprep.subr.bf16.mxu0 0
      %662 = vmatpush1.bf16.msra.mxu0 0
      %663 = vmatprep.subr.bf16.mxu0 0
      %664 = vmatpush1.bf16.msra.mxu0 0
      %665 = vmatprep.subr.bf16.mxu0 0
      %666 = vmatpush1.bf16.msra.mxu0 0
      %667 = vmatprep.mubr.bf16.mxu0 0
      %668 = vmatmul.mubr.bf16.gmra.mrb[0].mxu0 %v257
      %v669 = vpop.f32.mrb[0].mxu0
      %v670 = vadd.f32 %v445, %v669
      %v671 = vpop.f32.mrb[0].mxu0
      %v672 = vpop.f32.mrb[0].mxu0
      %v673 = vadd.f32 %v448, %v672
      %v674 = vpop.f32.mrb[0].mxu0
      %675 = vmatprep.mubr.bf16.mxu0 0
      %676 = vmatmul.mubr.bf16.gmra.mrb[0].mxu0 %v258
      %v677 = vpop.f32.mrb[0].mxu0
      %v678 = vadd.f32 %v453, %v677
      %v679 = vpop.f32.mrb[0].mxu0
      %v680 = vpop.f32.mrb[0].mxu0
      %v681 = vadd.f32 %v456, %v680
      %v682 = vpop.f32.mrb[0].mxu0
      %683 = vmatprep.mubr.bf16.mxu0 0
      %684 = vmatmul.mubr.bf16.gmra.mrb[0].mxu0 %v259
      %v685 = vpop.f32.mrb[0].mxu0
      %v686 = vadd.f32 %v461, %v685
      %v687 = vpop.f32.mrb[0].mxu0
      %v688 = vpop.f32.mrb[0].mxu0
      %v689 = vadd.f32 %v464, %v688
      %v690 = vpop.f32.mrb[0].mxu0
      %691 = vmatprep.mubr.bf16.mxu0 0
      %692 = vmatmul.mubr.bf16.gmra.mrb[0].mxu0 %v260
      %v693 = vpop.f32.mrb[0].mxu0
      %v694 = vadd.f32 %v469, %v693
      %v695 = vpop.f32.mrb[0].mxu0
      %v696 = vpop.f32.mrb[0].mxu0
      %v697 = vadd.f32 %v472, %v696
      %v698 = vpop.f32.mrb[0].mxu0
      %699 = vmatprep.mubr.bf16.mxu0 0
      %700 = vmatmul.mubr.bf16.gmra.mrb[0].mxu0 %v261
      %v701 = vpop.f32.mrb[0].mxu0
      %v702 = vadd.f32 %v477, %v701
      %v703 = vpop.f32.mrb[0].mxu0
      %v704 = vpop.f32.mrb[0].mxu0
      %v705 = vadd.f32 %v480, %v704
      %v706 = vpop.f32.mrb[0].mxu0
      %707 = vmatprep.mubr.bf16.mxu0 0
      %708 = vmatmul.mubr.bf16.gmra.mrb[0].mxu0 %v262
      %v709 = vpop.f32.mrb[0].mxu0
      %v710 = vadd.f32 %v485, %v709
      %v711 = vpop.f32.mrb[0].mxu0
      %v712 = vpop.f32.mrb[0].mxu0
      %v713 = vadd.f32 %v488, %v712
      %v714 = vpop.f32.mrb[0].mxu0
      %715 = vmatprep.mubr.bf16.mxu0 0
      %716 = vmatmul.mubr.bf16.gmra.mrb[0].mxu0 %v263
      %v717 = vpop.f32.mrb[0].mxu0
      %v718 = vadd.f32 %v493, %v717
      %v719 = vpop.f32.mrb[0].mxu0
      %v720 = vpop.f32.mrb[0].mxu0
      %v721 = vadd.f32 %v496, %v720
      %v722 = vpop.f32.mrb[0].mxu0
      %723 = vmatprep.mubr.bf16.mxu0 0
      %724 = vmatmul.mubr.bf16.gmra.mrb[0].mxu0 %v264
      %v725 = vpop.f32.mrb[0].mxu0
      %v726 = vadd.f32 %v501, %v725
      %v727 = vpop.f32.mrb[0].mxu0
      %v728 = vpop.f32.mrb[0].mxu0
      %v729 = vadd.f32 %v504, %v728
      %v730 = vpop.f32.mrb[0].mxu0
      %731 = vmatprep.mubr.bf16.mxu0 0
      %732 = vmatmul.mubr.bf16.gmra.mrb[0].mxu0 %v265
      %v733 = vpop.f32.mrb[0].mxu0
      %v734 = vadd.f32 %v509, %v733
      %v735 = vpop.f32.mrb[0].mxu0
      %v736 = vpop.f32.mrb[0].mxu0
      %v737 = vadd.f32 %v512, %v736
      %v738 = vpop.f32.mrb[0].mxu0
      %739 = vmatprep.mubr.bf16.mxu0 0
      %740 = vmatmul.mubr.bf16.gmra.mrb[0].mxu0 %v266
      %v741 = vpop.f32.mrb[0].mxu0
      %v742 = vadd.f32 %v517, %v741
      %v743 = vpop.f32.mrb[0].mxu0
      %v744 = vpop.f32.mrb[0].mxu0
      %v745 = vadd.f32 %v520, %v744
      %v746 = vpop.f32.mrb[0].mxu0
      %747 = vmatprep.mubr.bf16.mxu0 0
      %748 = vmatmul.mubr.bf16.gmra.mrb[0].mxu0 %v267
      %v749 = vpop.f32.mrb[0].mxu0
      %v750 = vadd.f32 %v525, %v749
      %v751 = vpop.f32.mrb[0].mxu0
      %v752 = vpop.f32.mrb[0].mxu0
      %v753 = vadd.f32 %v528, %v752
      %v754 = vpop.f32.mrb[0].mxu0
      %755 = vmatprep.mubr.bf16.mxu0 0
      %756 = vmatmul.mubr.bf16.gmra.mrb[0].mxu0 %v268
      %v757 = vpop.f32.mrb[0].mxu0
      %v758 = vadd.f32 %v533, %v757
      %v759 = vpop.f32.mrb[0].mxu0
      %v760 = vpop.f32.mrb[0].mxu0
      %v761 = vadd.f32 %v536, %v760
      %v762 = vpop.f32.mrb[0].mxu0
      %763 = vmatprep.mubr.bf16.mxu0 0
      %764 = vmatmul.mubr.bf16.gmra.mrb[0].mxu0 %v269
      %v765 = vpop.f32.mrb[0].mxu0
      %v766 = vadd.f32 %v541, %v765
      %v767 = vpop.f32.mrb[0].mxu0
      %v768 = vpop.f32.mrb[0].mxu0
      %v769 = vadd.f32 %v544, %v768
      %v770 = vpop.f32.mrb[0].mxu0
      %771 = vmatprep.mubr.bf16.mxu0 0
      %772 = vmatmul.mubr.bf16.gmra.mrb[0].mxu0 %v270
      %v773 = vpop.f32.mrb[0].mxu0
      %v774 = vadd.f32 %v549, %v773
      %v775 = vpop.f32.mrb[0].mxu0
      %v776 = vpop.f32.mrb[0].mxu0
      %v777 = vadd.f32 %v552, %v776
      %v778 = vpop.f32.mrb[0].mxu0
      %779 = vmatprep.mubr.bf16.mxu0 0
      %780 = vmatmul.mubr.bf16.gmra.mrb[0].mxu0 %v271
      %v781 = vpop.f32.mrb[0].mxu0
      %v782 = vadd.f32 %v557, %v781
      %v783 = vpop.f32.mrb[0].mxu0
      %v784 = vpop.f32.mrb[0].mxu0
      %v785 = vadd.f32 %v560, %v784
      %v786 = vpop.f32.mrb[0].mxu0
      %787 = vmatprep.mubr.bf16.mxu0 0
      %788 = vmatmul.mubr.bf16.gmra.mrb[0].mxu0 %v272
      %v789 = vpop.f32.mrb[0].mxu0
      %v790 = vadd.f32 %v565, %v789
      %v791 = vpop.f32.mrb[0].mxu0
      %v792 = vpop.f32.mrb[0].mxu0
      %v793 = vadd.f32 %v568, %v792
      %v794 = vpop.f32.mrb[0].mxu0
      %795 = vmatprep.mubr.bf16.mxu0 0
      %796 = vmatmul.mubr.bf16.gmra.mrb[0].mxu0 %v273
      %v797 = vpop.f32.mrb[0].mxu0
      %v798 = vadd.f32 %v573, %v797
      %v799 = vpop.f32.mrb[0].mxu0
      %v800 = vpop.f32.mrb[0].mxu0
      %v801 = vadd.f32 %v576, %v800
      %v802 = vpop.f32.mrb[0].mxu0
      %803 = vmatprep.mubr.bf16.mxu0 0
      %804 = vmatmul.mubr.bf16.gmra.mrb[0].mxu0 %v274
      %v805 = vpop.f32.mrb[0].mxu0
      %v806 = vadd.f32 %v581, %v805
      %v807 = vpop.f32.mrb[0].mxu0
      %v808 = vpop.f32.mrb[0].mxu0
      %v809 = vadd.f32 %v584, %v808
      %v810 = vpop.f32.mrb[0].mxu0
      %811 = vdwg.mxu0
      %v812 = vld [vmem:[%s214 + $0x2] sm:$0xff]
      %v813 = vld [vmem:[%s214 + $0xa] sm:$0xff]
      %v814 = vld [vmem:[%s214 + $0x12] sm:$0xff]
      %v815 = vld [vmem:[%s214 + $0x1a] sm:$0xff]
      %v816 = vld [vmem:[%s214 + $0x22] sm:$0xff]
      %v817 = vld [vmem:[%s214 + $0x2a] sm:$0xff]
      %v818 = vld [vmem:[%s214 + $0x32] sm:$0xff]
      %v819 = vld [vmem:[%s214 + $0x3a] sm:$0xff]
      %v820 = vld [vmem:[%s214 + $0x42] sm:$0xff]
      %v821 = vld [vmem:[%s214 + $0x4a] sm:$0xff]
      %v822 = vld [vmem:[%s214 + $0x52] sm:$0xff]
      %v823 = vld [vmem:[%s214 + $0x5a] sm:$0xff]
      %v824 = vld [vmem:[%s214 + $0x62] sm:$0xff]
      %v825 = vld [vmem:[%s214 + $0x6a] sm:$0xff]
      %v826 = vld [vmem:[%s214 + $0x72] sm:$0xff]
      %v827 = vld [vmem:[%s214 + $0x7a] sm:$0xff]
      %v828 = vld [vmem:[%s214 + $0x82] sm:$0xff]
      %v829 = vld [vmem:[%s214 + $0x8a] sm:$0xff]
      %v830 = vld [vmem:[%s214 + $0x92] sm:$0xff]
      %v831 = vld [vmem:[%s214 + $0x9a] sm:$0xff]
      %v832 = vld [vmem:[%s214 + $0xa2] sm:$0xff]
      %v833 = vld [vmem:[%s214 + $0xaa] sm:$0xff]
      %v834 = vld [vmem:[%s214 + $0xb2] sm:$0xff]
      %v835 = vld [vmem:[%s214 + $0xba] sm:$0xff]
      %v836 = vld [vmem:[%s214 + $0xc2] sm:$0xff]
      %v837 = vld [vmem:[%s214 + $0xca] sm:$0xff]
      %v838 = vld [vmem:[%s214 + $0xd2] sm:$0xff]
      %v839 = vld [vmem:[%s214 + $0xda] sm:$0xff]
      %v840 = vld [vmem:[%s214 + $0xe2] sm:$0xff]
      %v841 = vld [vmem:[%s214 + $0xea] sm:$0xff]
      %v842 = vld [vmem:[%s214 + $0xf2] sm:$0xff]
      %v843 = vld [vmem:[%s214 + $0xfa] sm:$0xff]
      %v844 = vld [vmem:[%s214 + $0x102] sm:$0xff]
      %v845 = vld [vmem:[%s214 + $0x10a] sm:$0xff]
      %v846 = vld [vmem:[%s214 + $0x112] sm:$0xff]
      %v847 = vld [vmem:[%s214 + $0x11a] sm:$0xff]
      %v848 = vpack.c.bf16 %v813, %v812
      %v849 = vpack.c.bf16 %v815, %v814
      %v850 = vpack.c.bf16 %v817, %v816
      %v851 = vpack.c.bf16 %v819, %v818
      %v852 = vpack.c.bf16 %v821, %v820
      %v853 = vpack.c.bf16 %v823, %v822
      %v854 = vpack.c.bf16 %v825, %v824
      %v855 = vpack.c.bf16 %v827, %v826
      %v856 = vpack.c.bf16 %v829, %v828
      %v857 = vpack.c.bf16 %v831, %v830
      %v858 = vpack.c.bf16 %v833, %v832
      %v859 = vpack.c.bf16 %v835, %v834
      %v860 = vpack.c.bf16 %v837, %v836
      %v861 = vpack.c.bf16 %v839, %v838
      %v862 = vpack.c.bf16 %v841, %v840
      %v863 = vpack.c.bf16 %v843, %v842
      %v864 = vpack.c.bf16 %v845, %v844
      %v865 = vpack.c.bf16 %v847, %v846
      %s866 = scalar_lea.vmem %s1, 128
      %v867 = vld [vmem:[%s866] sm:$0xf]
      %v868 = vld [vmem:[%s866 + $0x4] sm:$0xf]
      %v869 = vld [vmem:[%s866 + $0x8] sm:$0xf]
      %v870 = vld [vmem:[%s866 + $0xc] sm:$0xf]
      %v871 = vld [vmem:[%s866 + $0x10] sm:$0xf]
      %v872 = vld [vmem:[%s866 + $0x14] sm:$0xf]
      %v873 = vld [vmem:[%s866 + $0x18] sm:$0xf]
      %v874 = vld [vmem:[%s866 + $0x1c] sm:$0xf]
      %v875 = vld [vmem:[%s866 + $0x20] sm:$0xf]
      %v876 = vld [vmem:[%s866 + $0x24] sm:$0xf]
      %v877 = vld [vmem:[%s866 + $0x28] sm:$0xf]
      %v878 = vld [vmem:[%s866 + $0x2c] sm:$0xf]
      %v879 = vld [vmem:[%s866 + $0x30] sm:$0xf]
      %v880 = vld [vmem:[%s866 + $0x34] sm:$0xf]
      %v881 = vld [vmem:[%s866 + $0x38] sm:$0xf]
      %v882 = vld [vmem:[%s866 + $0x3c] sm:$0xf]
      %v899 = vunpack.c.l.b16 %v867
      %v900 = vunpack.c.l.b16 %v868
      %v901 = vunpack.c.l.b16 %v869
      %v902 = vunpack.c.l.b16 %v870
      %v903 = vunpack.c.l.b16 %v871
      %v904 = vunpack.c.l.b16 %v872
      %v905 = vunpack.c.l.b16 %v873
      %v906 = vunpack.c.l.b16 %v874
      %v907 = vunpack.c.l.b16 %v875
      %v908 = vunpack.c.l.b16 %v876
      %v909 = vunpack.c.l.b16 %v877
      %v910 = vunpack.c.l.b16 %v878
      %v911 = vunpack.c.l.b16 %v879
      %v912 = vunpack.c.l.b16 %v880
      %v913 = vunpack.c.l.b16 %v881
      %v914 = vunpack.c.l.b16 %v882
      %v915 = vpack.c.b16 %v900, %v899
      %v916 = vpack.c.b16 %v902, %v901
      %v917 = vpack.c.b16 %v904, %v903
      %v918 = vpack.c.b16 %v906, %v905
      %v919 = vpack.c.b16 %v908, %v907
      %v920 = vpack.c.b16 %v910, %v909
      %v921 = vpack.c.b16 %v912, %v911
      %v922 = vpack.c.b16 %v914, %v913
      %931 = vmatprep.subr.bf16.mxu0 0
      %932 = vmatpush1.bf16.msra.mxu0 %v915
      %933 = vmatprep.subr.bf16.mxu0 0
      %934 = vmatpush1.bf16.msra.mxu0 %v916
      %935 = vmatprep.subr.bf16.mxu0 0
      %936 = vmatpush1.bf16.msra.mxu0 %v917
      %937 = vmatprep.subr.bf16.mxu0 0
      %938 = vmatpush1.bf16.msra.mxu0 %v918
      %939 = vmatprep.subr.bf16.mxu0 0
      %940 = vmatpush1.bf16.msra.mxu0 %v919
      %941 = vmatprep.subr.bf16.mxu0 0
      %942 = vmatpush1.bf16.msra.mxu0 %v920
      %943 = vmatprep.subr.bf16.mxu0 0
      %944 = vmatpush1.bf16.msra.mxu0 %v921
      %945 = vmatprep.subr.bf16.mxu0 0
      %946 = vmatpush1.bf16.msra.mxu0 %v922
      %947 = vmatprep.subr.bf16.mxu0 0
      %948 = vmatpush1.bf16.msra.mxu0 0
      %949 = vmatprep.subr.bf16.mxu0 0
      %950 = vmatpush1.bf16.msra.mxu0 0
      %951 = vmatprep.subr.bf16.mxu0 0
      %952 = vmatpush1.bf16.msra.mxu0 0
      %953 = vmatprep.subr.bf16.mxu0 0
      %954 = vmatpush1.bf16.msra.mxu0 0
      %955 = vmatprep.subr.bf16.mxu0 0
      %956 = vmatpush1.bf16.msra.mxu0 0
      %957 = vmatprep.subr.bf16.mxu0 0
      %958 = vmatpush1.bf16.msra.mxu0 0
      %959 = vmatprep.subr.bf16.mxu0 0
      %960 = vmatpush1.bf16.msra.mxu0 0
      %961 = vmatprep.subr.bf16.mxu0 0
      %962 = vmatpush1.bf16.msra.mxu0 0
      %963 = vmatprep.mubr.bf16.mxu0 0
      %964 = vmatmul.mubr.bf16.gmra.mrb[0].mxu0 %v848
      %v965 = vpop.f32.mrb[0].mxu0
      %v966 = vadd.f32 0.0, %v965
      %v967 = vpop.f32.mrb[0].mxu0
      %v968 = vpop.f32.mrb[0].mxu0
      %v969 = vadd.f32 0.0, %v968
      %v970 = vpop.f32.mrb[0].mxu0
      %971 = vmatprep.mubr.bf16.mxu0 0
      %972 = vmatmul.mubr.bf16.gmra.mrb[0].mxu0 %v849
      %v973 = vpop.f32.mrb[0].mxu0
      %v974 = vadd.f32 0.0, %v973
      %v975 = vpop.f32.mrb[0].mxu0
      %v976 = vpop.f32.mrb[0].mxu0
      %v977 = vadd.f32 0.0, %v976
      %v978 = vpop.f32.mrb[0].mxu0
      %979 = vmatprep.mubr.bf16.mxu0 0
      %980 = vmatmul.mubr.bf16.gmra.mrb[0].mxu0 %v850
      %v981 = vpop.f32.mrb[0].mxu0
      %v982 = vadd.f32 0.0, %v981
      %v983 = vpop.f32.mrb[0].mxu0
      %v984 = vpop.f32.mrb[0].mxu0
      %v985 = vadd.f32 0.0, %v984
      %v986 = vpop.f32.mrb[0].mxu0
      %987 = vmatprep.mubr.bf16.mxu0 0
      %988 = vmatmul.mubr.bf16.gmra.mrb[0].mxu0 %v851
      %v989 = vpop.f32.mrb[0].mxu0
      %v990 = vadd.f32 0.0, %v989
      %v991 = vpop.f32.mrb[0].mxu0
      %v992 = vpop.f32.mrb[0].mxu0
      %v993 = vadd.f32 0.0, %v992
      %v994 = vpop.f32.mrb[0].mxu0
      %995 = vmatprep.mubr.bf16.mxu0 0
      %996 = vmatmul.mubr.bf16.gmra.mrb[0].mxu0 %v852
      %v997 = vpop.f32.mrb[0].mxu0
      %v998 = vadd.f32 0.0, %v997
      %v999 = vpop.f32.mrb[0].mxu0
      %v1000 = vpop.f32.mrb[0].mxu0
      %v1001 = vadd.f32 0.0, %v1000
      %v1002 = vpop.f32.mrb[0].mxu0
      %1003 = vmatprep.mubr.bf16.mxu0 0
      %1004 = vmatmul.mubr.bf16.gmra.mrb[0].mxu0 %v853
      %v1005 = vpop.f32.mrb[0].mxu0
      %v1006 = vadd.f32 0.0, %v1005
      %v1007 = vpop.f32.mrb[0].mxu0
      %v1008 = vpop.f32.mrb[0].mxu0
      %v1009 = vadd.f32 0.0, %v1008
      %v1010 = vpop.f32.mrb[0].mxu0
      %1011 = vmatprep.mubr.bf16.mxu0 0
      %1012 = vmatmul.mubr.bf16.gmra.mrb[0].mxu0 %v854
      %v1013 = vpop.f32.mrb[0].mxu0
      %v1014 = vadd.f32 0.0, %v1013
      %v1015 = vpop.f32.mrb[0].mxu0
      %v1016 = vpop.f32.mrb[0].mxu0
      %v1017 = vadd.f32 0.0, %v1016
      %v1018 = vpop.f32.mrb[0].mxu0
      %1019 = vmatprep.mubr.bf16.mxu0 0
      %1020 = vmatmul.mubr.bf16.gmra.mrb[0].mxu0 %v855
      %v1021 = vpop.f32.mrb[0].mxu0
      %v1022 = vadd.f32 0.0, %v1021
      %v1023 = vpop.f32.mrb[0].mxu0
      %v1024 = vpop.f32.mrb[0].mxu0
      %v1025 = vadd.f32 0.0, %v1024
      %v1026 = vpop.f32.mrb[0].mxu0
      %1027 = vmatprep.mubr.bf16.mxu0 0
      %1028 = vmatmul.mubr.bf16.gmra.mrb[0].mxu0 %v856
      %v1029 = vpop.f32.mrb[0].mxu0
      %v1030 = vadd.f32 0.0, %v1029
      %v1031 = vpop.f32.mrb[0].mxu0
      %v1032 = vpop.f32.mrb[0].mxu0
      %v1033 = vadd.f32 0.0, %v1032
      %v1034 = vpop.f32.mrb[0].mxu0
      %1035 = vmatprep.mubr.bf16.mxu0 0
      %1036 = vmatmul.mubr.bf16.gmra.mrb[0].mxu0 %v857
      %v1037 = vpop.f32.mrb[0].mxu0
      %v1038 = vadd.f32 0.0, %v1037
      %v1039 = vpop.f32.mrb[0].mxu0
      %v1040 = vpop.f32.mrb[0].mxu0
      %v1041 = vadd.f32 0.0, %v1040
      %v1042 = vpop.f32.mrb[0].mxu0
      %1043 = vmatprep.mubr.bf16.mxu0 0
      %1044 = vmatmul.mubr.bf16.gmra.mrb[0].mxu0 %v858
      %v1045 = vpop.f32.mrb[0].mxu0
      %v1046 = vadd.f32 0.0, %v1045
      %v1047 = vpop.f32.mrb[0].mxu0
      %v1048 = vpop.f32.mrb[0].mxu0
      %v1049 = vadd.f32 0.0, %v1048
      %v1050 = vpop.f32.mrb[0].mxu0
      %1051 = vmatprep.mubr.bf16.mxu0 0
      %1052 = vmatmul.mubr.bf16.gmra.mrb[0].mxu0 %v859
      %v1053 = vpop.f32.mrb[0].mxu0
      %v1054 = vadd.f32 0.0, %v1053
      %v1055 = vpop.f32.mrb[0].mxu0
      %v1056 = vpop.f32.mrb[0].mxu0
      %v1057 = vadd.f32 0.0, %v1056
      %v1058 = vpop.f32.mrb[0].mxu0
      %1059 = vmatprep.mubr.bf16.mxu0 0
      %1060 = vmatmul.mubr.bf16.gmra.mrb[0].mxu0 %v860
      %v1061 = vpop.f32.mrb[0].mxu0
      %v1062 = vadd.f32 0.0, %v1061
      %v1063 = vpop.f32.mrb[0].mxu0
      %v1064 = vpop.f32.mrb[0].mxu0
      %v1065 = vadd.f32 0.0, %v1064
      %v1066 = vpop.f32.mrb[0].mxu0
      %1067 = vmatprep.mubr.bf16.mxu0 0
      %1068 = vmatmul.mubr.bf16.gmra.mrb[0].mxu0 %v861
      %v1069 = vpop.f32.mrb[0].mxu0
      %v1070 = vadd.f32 0.0, %v1069
      %v1071 = vpop.f32.mrb[0].mxu0
      %v1072 = vpop.f32.mrb[0].mxu0
      %v1073 = vadd.f32 0.0, %v1072
      %v1074 = vpop.f32.mrb[0].mxu0
      %1075 = vmatprep.mubr.bf16.mxu0 0
      %1076 = vmatmul.mubr.bf16.gmra.mrb[0].mxu0 %v862
      %v1077 = vpop.f32.mrb[0].mxu0
      %v1078 = vadd.f32 0.0, %v1077
      %v1079 = vpop.f32.mrb[0].mxu0
      %v1080 = vpop.f32.mrb[0].mxu0
      %v1081 = vadd.f32 0.0, %v1080
      %v1082 = vpop.f32.mrb[0].mxu0
      %1083 = vmatprep.mubr.bf16.mxu0 0
      %1084 = vmatmul.mubr.bf16.gmra.mrb[0].mxu0 %v863
      %v1085 = vpop.f32.mrb[0].mxu0
      %v1086 = vadd.f32 0.0, %v1085
      %v1087 = vpop.f32.mrb[0].mxu0
      %v1088 = vpop.f32.mrb[0].mxu0
      %v1089 = vadd.f32 0.0, %v1088
      %v1090 = vpop.f32.mrb[0].mxu0
      %1091 = vmatprep.mubr.bf16.mxu0 0
      %1092 = vmatmul.mubr.bf16.gmra.mrb[0].mxu0 %v864
      %v1093 = vpop.f32.mrb[0].mxu0
      %v1094 = vadd.f32 0.0, %v1093
      %v1095 = vpop.f32.mrb[0].mxu0
      %v1096 = vpop.f32.mrb[0].mxu0
      %v1097 = vadd.f32 0.0, %v1096
      %v1098 = vpop.f32.mrb[0].mxu0
      %1099 = vmatprep.mubr.bf16.mxu0 0
      %1100 = vmatmul.mubr.bf16.gmra.mrb[0].mxu0 %v865
      %v1101 = vpop.f32.mrb[0].mxu0
      %v1102 = vadd.f32 0.0, %v1101
      %v1103 = vpop.f32.mrb[0].mxu0
      %v1104 = vpop.f32.mrb[0].mxu0
      %v1105 = vadd.f32 0.0, %v1104
      %v1106 = vpop.f32.mrb[0].mxu0
      %1107 = vdwg.mxu0
      %v1108 = vadd.f32 %v670, %v966
      %v1109 = vadd.f32 %v673, %v969
      %v1110 = vadd.f32 %v678, %v974
      %v1111 = vadd.f32 %v681, %v977
      %v1112 = vadd.f32 %v686, %v982
      %v1113 = vadd.f32 %v689, %v985
      %v1114 = vadd.f32 %v694, %v990
      %v1115 = vadd.f32 %v697, %v993
      %v1116 = vadd.f32 %v702, %v998
      %v1117 = vadd.f32 %v705, %v1001
      %v1118 = vadd.f32 %v710, %v1006
      %v1119 = vadd.f32 %v713, %v1009
      %v1120 = vadd.f32 %v718, %v1014
      %v1121 = vadd.f32 %v721, %v1017
      %v1122 = vadd.f32 %v726, %v1022
      %v1123 = vadd.f32 %v729, %v1025
      %v1124 = vadd.f32 %v734, %v1030
      %v1125 = vadd.f32 %v737, %v1033
      %v1126 = vadd.f32 %v742, %v1038
      %v1127 = vadd.f32 %v745, %v1041
      %v1128 = vadd.f32 %v750, %v1046
      %v1129 = vadd.f32 %v753, %v1049
      %v1130 = vadd.f32 %v758, %v1054
      %v1131 = vadd.f32 %v761, %v1057
      %v1132 = vadd.f32 %v766, %v1062
      %v1133 = vadd.f32 %v769, %v1065
      %v1134 = vadd.f32 %v774, %v1070
      %v1135 = vadd.f32 %v777, %v1073
      %v1136 = vadd.f32 %v782, %v1078
      %v1137 = vadd.f32 %v785, %v1081
      %v1138 = vadd.f32 %v790, %v1086
      %v1139 = vadd.f32 %v793, %v1089
      %v1140 = vadd.f32 %v798, %v1094
      %v1141 = vadd.f32 %v801, %v1097
      %v1142 = vadd.f32 %v806, %v1102
      %v1143 = vadd.f32 %v809, %v1105
      %v1144 = vld [vmem:[%s214 + $0x12] sm:$0xff]
      %v1145 = vld [vmem:[%s214 + $0x1a] sm:$0xff]
      %v1146 = vld [vmem:[%s214 + $0x22] sm:$0xff]
      %v1147 = vld [vmem:[%s214 + $0x2a] sm:$0xff]
      %v1148 = vld [vmem:[%s214 + $0x32] sm:$0xff]
      %v1149 = vld [vmem:[%s214 + $0x3a] sm:$0xff]
      %v1150 = vld [vmem:[%s214 + $0x42] sm:$0xff]
      %v1151 = vld [vmem:[%s214 + $0x4a] sm:$0xff]
      %v1152 = vld [vmem:[%s214 + $0x52] sm:$0xff]
      %v1153 = vld [vmem:[%s214 + $0x5a] sm:$0xff]
      %v1154 = vld [vmem:[%s214 + $0x62] sm:$0xff]
      %v1155 = vld [vmem:[%s214 + $0x6a] sm:$0xff]
      %v1156 = vld [vmem:[%s214 + $0x72] sm:$0xff]
      %v1157 = vld [vmem:[%s214 + $0x7a] sm:$0xff]
      %v1158 = vld [vmem:[%s214 + $0x82] sm:$0xff]
      %v1159 = vld [vmem:[%s214 + $0x8a] sm:$0xff]
      %v1160 = vld [vmem:[%s214 + $0x92] sm:$0xff]
      %v1161 = vld [vmem:[%s214 + $0x9a] sm:$0xff]
      %v1162 = vld [vmem:[%s214 + $0xa2] sm:$0xff]
      %v1163 = vld [vmem:[%s214 + $0xaa] sm:$0xff]
      %v1164 = vld [vmem:[%s214 + $0xb2] sm:$0xff]
      %v1165 = vld [vmem:[%s214 + $0xba] sm:$0xff]
      %v1166 = vld [vmem:[%s214 + $0xc2] sm:$0xff]
      %v1167 = vld [vmem:[%s214 + $0xca] sm:$0xff]
      %v1168 = vld [vmem:[%s214 + $0xd2] sm:$0xff]
      %v1169 = vld [vmem:[%s214 + $0xda] sm:$0xff]
      %v1170 = vld [vmem:[%s214 + $0xe2] sm:$0xff]
      %v1171 = vld [vmem:[%s214 + $0xea] sm:$0xff]
      %v1172 = vld [vmem:[%s214 + $0xf2] sm:$0xff]
      %v1173 = vld [vmem:[%s214 + $0xfa] sm:$0xff]
      %v1174 = vld [vmem:[%s214 + $0x102] sm:$0xff]
      %v1175 = vld [vmem:[%s214 + $0x10a] sm:$0xff]
      %v1176 = vld [vmem:[%s214 + $0x112] sm:$0xff]
      %v1177 = vld [vmem:[%s214 + $0x11a] sm:$0xff]
      %v1178 = vld [vmem:[%s214 + $0x122] sm:$0xff]
      %v1179 = vld [vmem:[%s214 + $0x12a] sm:$0xff]
      %v1180 = vpack.c.bf16 %v1145, %v1144
      %v1181 = vpack.c.bf16 %v1147, %v1146
      %v1182 = vpack.c.bf16 %v1149, %v1148
      %v1183 = vpack.c.bf16 %v1151, %v1150
      %v1184 = vpack.c.bf16 %v1153, %v1152
      %v1185 = vpack.c.bf16 %v1155, %v1154
      %v1186 = vpack.c.bf16 %v1157, %v1156
      %v1187 = vpack.c.bf16 %v1159, %v1158
      %v1188 = vpack.c.bf16 %v1161, %v1160
      %v1189 = vpack.c.bf16 %v1163, %v1162
      %v1190 = vpack.c.bf16 %v1165, %v1164
      %v1191 = vpack.c.bf16 %v1167, %v1166
      %v1192 = vpack.c.bf16 %v1169, %v1168
      %v1193 = vpack.c.bf16 %v1171, %v1170
      %v1194 = vpack.c.bf16 %v1173, %v1172
      %v1195 = vpack.c.bf16 %v1175, %v1174
      %v1196 = vpack.c.bf16 %v1177, %v1176
      %v1197 = vpack.c.bf16 %v1179, %v1178
      %s1198 = scalar_lea.vmem %s1, 192
      %v1199 = vld [vmem:[%s1198] sm:$0xf]
      %v1200 = vld [vmem:[%s1198 + $0x4] sm:$0xf]
      %v1201 = vld [vmem:[%s1198 + $0x8] sm:$0xf]
      %v1202 = vld [vmem:[%s1198 + $0xc] sm:$0xf]
      %v1203 = vld [vmem:[%s1198 + $0x10] sm:$0xf]
      %v1204 = vld [vmem:[%s1198 + $0x14] sm:$0xf]
      %v1205 = vld [vmem:[%s1198 + $0x18] sm:$0xf]
      %v1206 = vld [vmem:[%s1198 + $0x1c] sm:$0xf]
      %v1207 = vld [vmem:[%s1198 + $0x20] sm:$0xf]
      %v1208 = vld [vmem:[%s1198 + $0x24] sm:$0xf]
      %v1209 = vld [vmem:[%s1198 + $0x28] sm:$0xf]
      %v1210 = vld [vmem:[%s1198 + $0x2c] sm:$0xf]
      %v1211 = vld [vmem:[%s1198 + $0x30] sm:$0xf]
      %v1212 = vld [vmem:[%s1198 + $0x34] sm:$0xf]
      %v1213 = vld [vmem:[%s1198 + $0x38] sm:$0xf]
      %v1214 = vld [vmem:[%s1198 + $0x3c] sm:$0xf]
      %v1231 = vunpack.c.l.b16 %v1199
      %v1232 = vunpack.c.l.b16 %v1200
      %v1233 = vunpack.c.l.b16 %v1201
      %v1234 = vunpack.c.l.b16 %v1202
      %v1235 = vunpack.c.l.b16 %v1203
      %v1236 = vunpack.c.l.b16 %v1204
      %v1237 = vunpack.c.l.b16 %v1205
      %v1238 = vunpack.c.l.b16 %v1206
      %v1239 = vunpack.c.l.b16 %v1207
      %v1240 = vunpack.c.l.b16 %v1208
      %v1241 = vunpack.c.l.b16 %v1209
      %v1242 = vunpack.c.l.b16 %v1210
      %v1243 = vunpack.c.l.b16 %v1211
      %v1244 = vunpack.c.l.b16 %v1212
      %v1245 = vunpack.c.l.b16 %v1213
      %v1246 = vunpack.c.l.b16 %v1214
      %v1247 = vpack.c.b16 %v1232, %v1231
      %v1248 = vpack.c.b16 %v1234, %v1233
      %v1249 = vpack.c.b16 %v1236, %v1235
      %v1250 = vpack.c.b16 %v1238, %v1237
      %v1251 = vpack.c.b16 %v1240, %v1239
      %v1252 = vpack.c.b16 %v1242, %v1241
      %v1253 = vpack.c.b16 %v1244, %v1243
      %v1254 = vpack.c.b16 %v1246, %v1245
      %1263 = vmatprep.subr.bf16.mxu0 0
      %1264 = vmatpush1.bf16.msra.mxu0 %v1247
      %1265 = vmatprep.subr.bf16.mxu0 0
      %1266 = vmatpush1.bf16.msra.mxu0 %v1248
      %1267 = vmatprep.subr.bf16.mxu0 0
      %1268 = vmatpush1.bf16.msra.mxu0 %v1249
      %1269 = vmatprep.subr.bf16.mxu0 0
      %1270 = vmatpush1.bf16.msra.mxu0 %v1250
      %1271 = vmatprep.subr.bf16.mxu0 0
      %1272 = vmatpush1.bf16.msra.mxu0 %v1251
      %1273 = vmatprep.subr.bf16.mxu0 0
      %1274 = vmatpush1.bf16.msra.mxu0 %v1252
      %1275 = vmatprep.subr.bf16.mxu0 0
      %1276 = vmatpush1.bf16.msra.mxu0 %v1253
      %1277 = vmatprep.subr.bf16.mxu0 0
      %1278 = vmatpush1.bf16.msra.mxu0 %v1254
      %1279 = vmatprep.subr.bf16.mxu0 0
      %1280 = vmatpush1.bf16.msra.mxu0 0
      %1281 = vmatprep.subr.bf16.mxu0 0
      %1282 = vmatpush1.bf16.msra.mxu0 0
      %1283 = vmatprep.subr.bf16.mxu0 0
      %1284 = vmatpush1.bf16.msra.mxu0 0
      %1285 = vmatprep.subr.bf16.mxu0 0
      %1286 = vmatpush1.bf16.msra.mxu0 0
      %1287 = vmatprep.subr.bf16.mxu0 0
      %1288 = vmatpush1.bf16.msra.mxu0 0
      %1289 = vmatprep.subr.bf16.mxu0 0
      %1290 = vmatpush1.bf16.msra.mxu0 0
      %1291 = vmatprep.subr.bf16.mxu0 0
      %1292 = vmatpush1.bf16.msra.mxu0 0
      %1293 = vmatprep.subr.bf16.mxu0 0
      %1294 = vmatpush1.bf16.msra.mxu0 0
      %1295 = vmatprep.mubr.bf16.mxu0 0
      %1296 = vmatmul.mubr.bf16.gmra.mrb[0].mxu0 %v1180
      %v1297 = vpop.f32.mrb[0].mxu0
      %v1298 = vadd.f32 0.0, %v1297
      %v1299 = vpop.f32.mrb[0].mxu0
      %v1300 = vpop.f32.mrb[0].mxu0
      %v1301 = vadd.f32 0.0, %v1300
      %v1302 = vpop.f32.mrb[0].mxu0
      %1303 = vmatprep.mubr.bf16.mxu0 0
      %1304 = vmatmul.mubr.bf16.gmra.mrb[0].mxu0 %v1181
      %v1305 = vpop.f32.mrb[0].mxu0
      %v1306 = vadd.f32 0.0, %v1305
      %v1307 = vpop.f32.mrb[0].mxu0
      %v1308 = vpop.f32.mrb[0].mxu0
      %v1309 = vadd.f32 0.0, %v1308
      %v1310 = vpop.f32.mrb[0].mxu0
      %1311 = vmatprep.mubr.bf16.mxu0 0
      %1312 = vmatmul.mubr.bf16.gmra.mrb[0].mxu0 %v1182
      %v1313 = vpop.f32.mrb[0].mxu0
      %v1314 = vadd.f32 0.0, %v1313
      %v1315 = vpop.f32.mrb[0].mxu0
      %v1316 = vpop.f32.mrb[0].mxu0
      %v1317 = vadd.f32 0.0, %v1316
      %v1318 = vpop.f32.mrb[0].mxu0
      %1319 = vmatprep.mubr.bf16.mxu0 0
      %1320 = vmatmul.mubr.bf16.gmra.mrb[0].mxu0 %v1183
      %v1321 = vpop.f32.mrb[0].mxu0
      %v1322 = vadd.f32 0.0, %v1321
      %v1323 = vpop.f32.mrb[0].mxu0
      %v1324 = vpop.f32.mrb[0].mxu0
      %v1325 = vadd.f32 0.0, %v1324
      %v1326 = vpop.f32.mrb[0].mxu0
      %1327 = vmatprep.mubr.bf16.mxu0 0
      %1328 = vmatmul.mubr.bf16.gmra.mrb[0].mxu0 %v1184
      %v1329 = vpop.f32.mrb[0].mxu0
      %v1330 = vadd.f32 0.0, %v1329
      %v1331 = vpop.f32.mrb[0].mxu0
      %v1332 = vpop.f32.mrb[0].mxu0
      %v1333 = vadd.f32 0.0, %v1332
      %v1334 = vpop.f32.mrb[0].mxu0
      %1335 = vmatprep.mubr.bf16.mxu0 0
      %1336 = vmatmul.mubr.bf16.gmra.mrb[0].mxu0 %v1185
      %v1337 = vpop.f32.mrb[0].mxu0
      %v1338 = vadd.f32 0.0, %v1337
      %v1339 = vpop.f32.mrb[0].mxu0
      %v1340 = vpop.f32.mrb[0].mxu0
      %v1341 = vadd.f32 0.0, %v1340
      %v1342 = vpop.f32.mrb[0].mxu0
      %1343 = vmatprep.mubr.bf16.mxu0 0
      %1344 = vmatmul.mubr.bf16.gmra.mrb[0].mxu0 %v1186
      %v1345 = vpop.f32.mrb[0].mxu0
      %v1346 = vadd.f32 0.0, %v1345
      %v1347 = vpop.f32.mrb[0].mxu0
      %v1348 = vpop.f32.mrb[0].mxu0
      %v1349 = vadd.f32 0.0, %v1348
      %v1350 = vpop.f32.mrb[0].mxu0
      %1351 = vmatprep.mubr.bf16.mxu0 0
      %1352 = vmatmul.mubr.bf16.gmra.mrb[0].mxu0 %v1187
      %v1353 = vpop.f32.mrb[0].mxu0
      %v1354 = vadd.f32 0.0, %v1353
      %v1355 = vpop.f32.mrb[0].mxu0
      %v1356 = vpop.f32.mrb[0].mxu0
      %v1357 = vadd.f32 0.0, %v1356
      %v1358 = vpop.f32.mrb[0].mxu0
      %1359 = vmatprep.mubr.bf16.mxu0 0
      %1360 = vmatmul.mubr.bf16.gmra.mrb[0].mxu0 %v1188
      %v1361 = vpop.f32.mrb[0].mxu0
      %v1362 = vadd.f32 0.0, %v1361
      %v1363 = vpop.f32.mrb[0].mxu0
      %v1364 = vpop.f32.mrb[0].mxu0
      %v1365 = vadd.f32 0.0, %v1364
      %v1366 = vpop.f32.mrb[0].mxu0
      %1367 = vmatprep.mubr.bf16.mxu0 0
      %1368 = vmatmul.mubr.bf16.gmra.mrb[0].mxu0 %v1189
      %v1369 = vpop.f32.mrb[0].mxu0
      %v1370 = vadd.f32 0.0, %v1369
      %v1371 = vpop.f32.mrb[0].mxu0
      %v1372 = vpop.f32.mrb[0].mxu0
      %v1373 = vadd.f32 0.0, %v1372
      %v1374 = vpop.f32.mrb[0].mxu0
      %1375 = vmatprep.mubr.bf16.mxu0 0
      %1376 = vmatmul.mubr.bf16.gmra.mrb[0].mxu0 %v1190
      %v1377 = vpop.f32.mrb[0].mxu0
      %v1378 = vadd.f32 0.0, %v1377
      %v1379 = vpop.f32.mrb[0].mxu0
      %v1380 = vpop.f32.mrb[0].mxu0
      %v1381 = vadd.f32 0.0, %v1380
      %v1382 = vpop.f32.mrb[0].mxu0
      %1383 = vmatprep.mubr.bf16.mxu0 0
      %1384 = vmatmul.mubr.bf16.gmra.mrb[0].mxu0 %v1191
      %v1385 = vpop.f32.mrb[0].mxu0
      %v1386 = vadd.f32 0.0, %v1385
      %v1387 = vpop.f32.mrb[0].mxu0
      %v1388 = vpop.f32.mrb[0].mxu0
      %v1389 = vadd.f32 0.0, %v1388
      %v1390 = vpop.f32.mrb[0].mxu0
      %1391 = vmatprep.mubr.bf16.mxu0 0
      %1392 = vmatmul.mubr.bf16.gmra.mrb[0].mxu0 %v1192
      %v1393 = vpop.f32.mrb[0].mxu0
      %v1394 = vadd.f32 0.0, %v1393
      %v1395 = vpop.f32.mrb[0].mxu0
      %v1396 = vpop.f32.mrb[0].mxu0
      %v1397 = vadd.f32 0.0, %v1396
      %v1398 = vpop.f32.mrb[0].mxu0
      %1399 = vmatprep.mubr.bf16.mxu0 0
      %1400 = vmatmul.mubr.bf16.gmra.mrb[0].mxu0 %v1193
      %v1401 = vpop.f32.mrb[0].mxu0
      %v1402 = vadd.f32 0.0, %v1401
      %v1403 = vpop.f32.mrb[0].mxu0
      %v1404 = vpop.f32.mrb[0].mxu0
      %v1405 = vadd.f32 0.0, %v1404
      %v1406 = vpop.f32.mrb[0].mxu0
      %1407 = vmatprep.mubr.bf16.mxu0 0
      %1408 = vmatmul.mubr.bf16.gmra.mrb[0].mxu0 %v1194
      %v1409 = vpop.f32.mrb[0].mxu0
      %v1410 = vadd.f32 0.0, %v1409
      %v1411 = vpop.f32.mrb[0].mxu0
      %v1412 = vpop.f32.mrb[0].mxu0
      %v1413 = vadd.f32 0.0, %v1412
      %v1414 = vpop.f32.mrb[0].mxu0
      %1415 = vmatprep.mubr.bf16.mxu0 0
      %1416 = vmatmul.mubr.bf16.gmra.mrb[0].mxu0 %v1195
      %v1417 = vpop.f32.mrb[0].mxu0
      %v1418 = vadd.f32 0.0, %v1417
      %v1419 = vpop.f32.mrb[0].mxu0
      %v1420 = vpop.f32.mrb[0].mxu0
      %v1421 = vadd.f32 0.0, %v1420
      %v1422 = vpop.f32.mrb[0].mxu0
      %1423 = vmatprep.mubr.bf16.mxu0 0
      %1424 = vmatmul.mubr.bf16.gmra.mrb[0].mxu0 %v1196
      %v1425 = vpop.f32.mrb[0].mxu0
      %v1426 = vadd.f32 0.0, %v1425
      %v1427 = vpop.f32.mrb[0].mxu0
      %v1428 = vpop.f32.mrb[0].mxu0
      %v1429 = vadd.f32 0.0, %v1428
      %v1430 = vpop.f32.mrb[0].mxu0
      %1431 = vmatprep.mubr.bf16.mxu0 0
      %1432 = vmatmul.mubr.bf16.gmra.mrb[0].mxu0 %v1197
      %v1433 = vpop.f32.mrb[0].mxu0
      %v1434 = vadd.f32 0.0, %v1433
      %v1435 = vpop.f32.mrb[0].mxu0
      %v1436 = vpop.f32.mrb[0].mxu0
      %v1437 = vadd.f32 0.0, %v1436
      %v1438 = vpop.f32.mrb[0].mxu0
      %1439 = vdwg.mxu0
      %v1440 = vadd.f32 %v1108, %v1298
      %v1441 = vadd.f32 %v1109, %v1301
      %v1442 = vadd.f32 %v1110, %v1306
      %v1443 = vadd.f32 %v1111, %v1309
      %v1444 = vadd.f32 %v1112, %v1314
      %v1445 = vadd.f32 %v1113, %v1317
      %v1446 = vadd.f32 %v1114, %v1322
      %v1447 = vadd.f32 %v1115, %v1325
      %v1448 = vadd.f32 %v1116, %v1330
      %v1449 = vadd.f32 %v1117, %v1333
      %v1450 = vadd.f32 %v1118, %v1338
      %v1451 = vadd.f32 %v1119, %v1341
      %v1452 = vadd.f32 %v1120, %v1346
      %v1453 = vadd.f32 %v1121, %v1349
      %v1454 = vadd.f32 %v1122, %v1354
      %v1455 = vadd.f32 %v1123, %v1357
      %v1456 = vadd.f32 %v1124, %v1362
      %v1457 = vadd.f32 %v1125, %v1365
      %v1458 = vadd.f32 %v1126, %v1370
      %v1459 = vadd.f32 %v1127, %v1373
      %v1460 = vadd.f32 %v1128, %v1378
      %v1461 = vadd.f32 %v1129, %v1381
      %v1462 = vadd.f32 %v1130, %v1386
      %v1463 = vadd.f32 %v1131, %v1389
      %v1464 = vadd.f32 %v1132, %v1394
      %v1465 = vadd.f32 %v1133, %v1397
      %v1466 = vadd.f32 %v1134, %v1402
      %v1467 = vadd.f32 %v1135, %v1405
      %v1468 = vadd.f32 %v1136, %v1410
      %v1469 = vadd.f32 %v1137, %v1413
      %v1470 = vadd.f32 %v1138, %v1418
      %v1471 = vadd.f32 %v1139, %v1421
      %v1472 = vadd.f32 %v1140, %v1426
      %v1473 = vadd.f32 %v1141, %v1429
      %v1474 = vadd.f32 %v1142, %v1434
      %v1475 = vadd.f32 %v1143, %v1437
      %v1476 = vld [vmem:[%s214 + $0x13] sm:$0xff]
      %v1477 = vld [vmem:[%s214 + $0x1b] sm:$0xff]
      %v1478 = vld [vmem:[%s214 + $0x23] sm:$0xff]
      %v1479 = vld [vmem:[%s214 + $0x2b] sm:$0xff]
      %v1480 = vld [vmem:[%s214 + $0x33] sm:$0xff]
      %v1481 = vld [vmem:[%s214 + $0x3b] sm:$0xff]
      %v1482 = vld [vmem:[%s214 + $0x43] sm:$0xff]
      %v1483 = vld [vmem:[%s214 + $0x4b] sm:$0xff]
      %v1484 = vld [vmem:[%s214 + $0x53] sm:$0xff]
      %v1485 = vld [vmem:[%s214 + $0x5b] sm:$0xff]
      %v1486 = vld [vmem:[%s214 + $0x63] sm:$0xff]
      %v1487 = vld [vmem:[%s214 + $0x6b] sm:$0xff]
      %v1488 = vld [vmem:[%s214 + $0x73] sm:$0xff]
      %v1489 = vld [vmem:[%s214 + $0x7b] sm:$0xff]
      %v1490 = vld [vmem:[%s214 + $0x83] sm:$0xff]
      %v1491 = vld [vmem:[%s214 + $0x8b] sm:$0xff]
      %v1492 = vld [vmem:[%s214 + $0x93] sm:$0xff]
      %v1493 = vld [vmem:[%s214 + $0x9b] sm:$0xff]
      %v1494 = vld [vmem:[%s214 + $0xa3] sm:$0xff]
      %v1495 = vld [vmem:[%s214 + $0xab] sm:$0xff]
      %v1496 = vld [vmem:[%s214 + $0xb3] sm:$0xff]
      %v1497 = vld [vmem:[%s214 + $0xbb] sm:$0xff]
      %v1498 = vld [vmem:[%s214 + $0xc3] sm:$0xff]
      %v1499 = vld [vmem:[%s214 + $0xcb] sm:$0xff]
      %v1500 = vld [vmem:[%s214 + $0xd3] sm:$0xff]
      %v1501 = vld [vmem:[%s214 + $0xdb] sm:$0xff]
      %v1502 = vld [vmem:[%s214 + $0xe3] sm:$0xff]
      %v1503 = vld [vmem:[%s214 + $0xeb] sm:$0xff]
      %v1504 = vld [vmem:[%s214 + $0xf3] sm:$0xff]
      %v1505 = vld [vmem:[%s214 + $0xfb] sm:$0xff]
      %v1506 = vld [vmem:[%s214 + $0x103] sm:$0xff]
      %v1507 = vld [vmem:[%s214 + $0x10b] sm:$0xff]
      %v1508 = vld [vmem:[%s214 + $0x113] sm:$0xff]
      %v1509 = vld [vmem:[%s214 + $0x11b] sm:$0xff]
      %v1510 = vld [vmem:[%s214 + $0x123] sm:$0xff]
      %v1511 = vld [vmem:[%s214 + $0x12b] sm:$0xff]
      %v1512 = vpack.c.bf16 %v1477, %v1476
      %v1513 = vpack.c.bf16 %v1479, %v1478
      %v1514 = vpack.c.bf16 %v1481, %v1480
      %v1515 = vpack.c.bf16 %v1483, %v1482
      %v1516 = vpack.c.bf16 %v1485, %v1484
      %v1517 = vpack.c.bf16 %v1487, %v1486
      %v1518 = vpack.c.bf16 %v1489, %v1488
      %v1519 = vpack.c.bf16 %v1491, %v1490
      %v1520 = vpack.c.bf16 %v1493, %v1492
      %v1521 = vpack.c.bf16 %v1495, %v1494
      %v1522 = vpack.c.bf16 %v1497, %v1496
      %v1523 = vpack.c.bf16 %v1499, %v1498
      %v1524 = vpack.c.bf16 %v1501, %v1500
      %v1525 = vpack.c.bf16 %v1503, %v1502
      %v1526 = vpack.c.bf16 %v1505, %v1504
      %v1527 = vpack.c.bf16 %v1507, %v1506
      %v1528 = vpack.c.bf16 %v1509, %v1508
      %v1529 = vpack.c.bf16 %v1511, %v1510
      %s1530 = scalar_lea.vmem %s1, 256
      %v1531 = vld [vmem:[%s1530] sm:$0xf]
      %v1532 = vld [vmem:[%s1530 + $0x4] sm:$0xf]
      %v1533 = vld [vmem:[%s1530 + $0x8] sm:$0xf]
      %v1534 = vld [vmem:[%s1530 + $0xc] sm:$0xf]
      %v1535 = vld [vmem:[%s1530 + $0x10] sm:$0xf]
      %v1536 = vld [vmem:[%s1530 + $0x14] sm:$0xf]
      %v1537 = vld [vmem:[%s1530 + $0x18] sm:$0xf]
      %v1538 = vld [vmem:[%s1530 + $0x1c] sm:$0xf]
      %v1539 = vld [vmem:[%s1530 + $0x20] sm:$0xf]
      %v1540 = vld [vmem:[%s1530 + $0x24] sm:$0xf]
      %v1541 = vld [vmem:[%s1530 + $0x28] sm:$0xf]
      %v1542 = vld [vmem:[%s1530 + $0x2c] sm:$0xf]
      %v1543 = vld [vmem:[%s1530 + $0x30] sm:$0xf]
      %v1544 = vld [vmem:[%s1530 + $0x34] sm:$0xf]
      %v1545 = vld [vmem:[%s1530 + $0x38] sm:$0xf]
      %v1546 = vld [vmem:[%s1530 + $0x3c] sm:$0xf]
      %v1563 = vunpack.c.l.b16 %v1531
      %v1564 = vunpack.c.l.b16 %v1532
      %v1565 = vunpack.c.l.b16 %v1533
      %v1566 = vunpack.c.l.b16 %v1534
      %v1567 = vunpack.c.l.b16 %v1535
      %v1568 = vunpack.c.l.b16 %v1536
      %v1569 = vunpack.c.l.b16 %v1537
      %v1570 = vunpack.c.l.b16 %v1538
      %v1571 = vunpack.c.l.b16 %v1539
      %v1572 = vunpack.c.l.b16 %v1540
      %v1573 = vunpack.c.l.b16 %v1541
      %v1574 = vunpack.c.l.b16 %v1542
      %v1575 = vunpack.c.l.b16 %v1543
      %v1576 = vunpack.c.l.b16 %v1544
      %v1577 = vunpack.c.l.b16 %v1545
      %v1578 = vunpack.c.l.b16 %v1546
      %v1579 = vpack.c.b16 %v1564, %v1563
      %v1580 = vpack.c.b16 %v1566, %v1565
      %v1581 = vpack.c.b16 %v1568, %v1567
      %v1582 = vpack.c.b16 %v1570, %v1569
      %v1583 = vpack.c.b16 %v1572, %v1571
      %v1584 = vpack.c.b16 %v1574, %v1573
      %v1585 = vpack.c.b16 %v1576, %v1575
      %v1586 = vpack.c.b16 %v1578, %v1577
      %1595 = vmatprep.subr.bf16.mxu0 0
      %1596 = vmatpush1.bf16.msra.mxu0 %v1579
      %1597 = vmatprep.subr.bf16.mxu0 0
      %1598 = vmatpush1.bf16.msra.mxu0 %v1580
      %1599 = vmatprep.subr.bf16.mxu0 0
      %1600 = vmatpush1.bf16.msra.mxu0 %v1581
      %1601 = vmatprep.subr.bf16.mxu0 0
      %1602 = vmatpush1.bf16.msra.mxu0 %v1582
      %1603 = vmatprep.subr.bf16.mxu0 0
      %1604 = vmatpush1.bf16.msra.mxu0 %v1583
      %1605 = vmatprep.subr.bf16.mxu0 0
      %1606 = vmatpush1.bf16.msra.mxu0 %v1584
      %1607 = vmatprep.subr.bf16.mxu0 0
      %1608 = vmatpush1.bf16.msra.mxu0 %v1585
      %1609 = vmatprep.subr.bf16.mxu0 0
      %1610 = vmatpush1.bf16.msra.mxu0 %v1586
      %1611 = vmatprep.subr.bf16.mxu0 0
      %1612 = vmatpush1.bf16.msra.mxu0 0
      %1613 = vmatprep.subr.bf16.mxu0 0
      %1614 = vmatpush1.bf16.msra.mxu0 0
      %1615 = vmatprep.subr.bf16.mxu0 0
      %1616 = vmatpush1.bf16.msra.mxu0 0
      %1617 = vmatprep.subr.bf16.mxu0 0
      %1618 = vmatpush1.bf16.msra.mxu0 0
      %1619 = vmatprep.subr.bf16.mxu0 0
      %1620 = vmatpush1.bf16.msra.mxu0 0
      %1621 = vmatprep.subr.bf16.mxu0 0
      %1622 = vmatpush1.bf16.msra.mxu0 0
      %1623 = vmatprep.subr.bf16.mxu0 0
      %1624 = vmatpush1.bf16.msra.mxu0 0
      %1625 = vmatprep.subr.bf16.mxu0 0
      %1626 = vmatpush1.bf16.msra.mxu0 0
      %1627 = vmatprep.mubr.bf16.mxu0 0
      %1628 = vmatmul.mubr.bf16.gmra.mrb[0].mxu0 %v1512
      %v1629 = vpop.f32.mrb[0].mxu0
      %v1630 = vadd.f32 0.0, %v1629
      %v1631 = vpop.f32.mrb[0].mxu0
      %v1632 = vpop.f32.mrb[0].mxu0
      %v1633 = vadd.f32 0.0, %v1632
      %v1634 = vpop.f32.mrb[0].mxu0
      %1635 = vmatprep.mubr.bf16.mxu0 0
      %1636 = vmatmul.mubr.bf16.gmra.mrb[0].mxu0 %v1513
      %v1637 = vpop.f32.mrb[0].mxu0
      %v1638 = vadd.f32 0.0, %v1637
      %v1639 = vpop.f32.mrb[0].mxu0
      %v1640 = vpop.f32.mrb[0].mxu0
      %v1641 = vadd.f32 0.0, %v1640
      %v1642 = vpop.f32.mrb[0].mxu0
      %1643 = vmatprep.mubr.bf16.mxu0 0
      %1644 = vmatmul.mubr.bf16.gmra.mrb[0].mxu0 %v1514
      %v1645 = vpop.f32.mrb[0].mxu0
      %v1646 = vadd.f32 0.0, %v1645
      %v1647 = vpop.f32.mrb[0].mxu0
      %v1648 = vpop.f32.mrb[0].mxu0
      %v1649 = vadd.f32 0.0, %v1648
      %v1650 = vpop.f32.mrb[0].mxu0
      %1651 = vmatprep.mubr.bf16.mxu0 0
      %1652 = vmatmul.mubr.bf16.gmra.mrb[0].mxu0 %v1515
      %v1653 = vpop.f32.mrb[0].mxu0
      %v1654 = vadd.f32 0.0, %v1653
      %v1655 = vpop.f32.mrb[0].mxu0
      %v1656 = vpop.f32.mrb[0].mxu0
      %v1657 = vadd.f32 0.0, %v1656
      %v1658 = vpop.f32.mrb[0].mxu0
      %1659 = vmatprep.mubr.bf16.mxu0 0
      %1660 = vmatmul.mubr.bf16.gmra.mrb[0].mxu0 %v1516
      %v1661 = vpop.f32.mrb[0].mxu0
      %v1662 = vadd.f32 0.0, %v1661
      %v1663 = vpop.f32.mrb[0].mxu0
      %v1664 = vpop.f32.mrb[0].mxu0
      %v1665 = vadd.f32 0.0, %v1664
      %v1666 = vpop.f32.mrb[0].mxu0
      %1667 = vmatprep.mubr.bf16.mxu0 0
      %1668 = vmatmul.mubr.bf16.gmra.mrb[0].mxu0 %v1517
      %v1669 = vpop.f32.mrb[0].mxu0
      %v1670 = vadd.f32 0.0, %v1669
      %v1671 = vpop.f32.mrb[0].mxu0
      %v1672 = vpop.f32.mrb[0].mxu0
      %v1673 = vadd.f32 0.0, %v1672
      %v1674 = vpop.f32.mrb[0].mxu0
      %1675 = vmatprep.mubr.bf16.mxu0 0
      %1676 = vmatmul.mubr.bf16.gmra.mrb[0].mxu0 %v1518
      %v1677 = vpop.f32.mrb[0].mxu0
      %v1678 = vadd.f32 0.0, %v1677
      %v1679 = vpop.f32.mrb[0].mxu0
      %v1680 = vpop.f32.mrb[0].mxu0
      %v1681 = vadd.f32 0.0, %v1680
      %v1682 = vpop.f32.mrb[0].mxu0
      %1683 = vmatprep.mubr.bf16.mxu0 0
      %1684 = vmatmul.mubr.bf16.gmra.mrb[0].mxu0 %v1519
      %v1685 = vpop.f32.mrb[0].mxu0
      %v1686 = vadd.f32 0.0, %v1685
      %v1687 = vpop.f32.mrb[0].mxu0
      %v1688 = vpop.f32.mrb[0].mxu0
      %v1689 = vadd.f32 0.0, %v1688
      %v1690 = vpop.f32.mrb[0].mxu0
      %1691 = vmatprep.mubr.bf16.mxu0 0
      %1692 = vmatmul.mubr.bf16.gmra.mrb[0].mxu0 %v1520
      %v1693 = vpop.f32.mrb[0].mxu0
      %v1694 = vadd.f32 0.0, %v1693
      %v1695 = vpop.f32.mrb[0].mxu0
      %v1696 = vpop.f32.mrb[0].mxu0
      %v1697 = vadd.f32 0.0, %v1696
      %v1698 = vpop.f32.mrb[0].mxu0
      %1699 = vmatprep.mubr.bf16.mxu0 0
      %1700 = vmatmul.mubr.bf16.gmra.mrb[0].mxu0 %v1521
      %v1701 = vpop.f32.mrb[0].mxu0
      %v1702 = vadd.f32 0.0, %v1701
      %v1703 = vpop.f32.mrb[0].mxu0
      %v1704 = vpop.f32.mrb[0].mxu0
      %v1705 = vadd.f32 0.0, %v1704
      %v1706 = vpop.f32.mrb[0].mxu0
      %1707 = vmatprep.mubr.bf16.mxu0 0
      %1708 = vmatmul.mubr.bf16.gmra.mrb[0].mxu0 %v1522
      %v1709 = vpop.f32.mrb[0].mxu0
      %v1710 = vadd.f32 0.0, %v1709
      %v1711 = vpop.f32.mrb[0].mxu0
      %v1712 = vpop.f32.mrb[0].mxu0
      %v1713 = vadd.f32 0.0, %v1712
      %v1714 = vpop.f32.mrb[0].mxu0
      %1715 = vmatprep.mubr.bf16.mxu0 0
      %1716 = vmatmul.mubr.bf16.gmra.mrb[0].mxu0 %v1523
      %v1717 = vpop.f32.mrb[0].mxu0
      %v1718 = vadd.f32 0.0, %v1717
      %v1719 = vpop.f32.mrb[0].mxu0
      %v1720 = vpop.f32.mrb[0].mxu0
      %v1721 = vadd.f32 0.0, %v1720
      %v1722 = vpop.f32.mrb[0].mxu0
      %1723 = vmatprep.mubr.bf16.mxu0 0
      %1724 = vmatmul.mubr.bf16.gmra.mrb[0].mxu0 %v1524
      %v1725 = vpop.f32.mrb[0].mxu0
      %v1726 = vadd.f32 0.0, %v1725
      %v1727 = vpop.f32.mrb[0].mxu0
      %v1728 = vpop.f32.mrb[0].mxu0
      %v1729 = vadd.f32 0.0, %v1728
      %v1730 = vpop.f32.mrb[0].mxu0
      %1731 = vmatprep.mubr.bf16.mxu0 0
      %1732 = vmatmul.mubr.bf16.gmra.mrb[0].mxu0 %v1525
      %v1733 = vpop.f32.mrb[0].mxu0
      %v1734 = vadd.f32 0.0, %v1733
      %v1735 = vpop.f32.mrb[0].mxu0
      %v1736 = vpop.f32.mrb[0].mxu0
      %v1737 = vadd.f32 0.0, %v1736
      %v1738 = vpop.f32.mrb[0].mxu0
      %1739 = vmatprep.mubr.bf16.mxu0 0
      %1740 = vmatmul.mubr.bf16.gmra.mrb[0].mxu0 %v1526
      %v1741 = vpop.f32.mrb[0].mxu0
      %v1742 = vadd.f32 0.0, %v1741
      %v1743 = vpop.f32.mrb[0].mxu0
      %v1744 = vpop.f32.mrb[0].mxu0
      %v1745 = vadd.f32 0.0, %v1744
      %v1746 = vpop.f32.mrb[0].mxu0
      %1747 = vmatprep.mubr.bf16.mxu0 0
      %1748 = vmatmul.mubr.bf16.gmra.mrb[0].mxu0 %v1527
      %v1749 = vpop.f32.mrb[0].mxu0
      %v1750 = vadd.f32 0.0, %v1749
      %v1751 = vpop.f32.mrb[0].mxu0
      %v1752 = vpop.f32.mrb[0].mxu0
      %v1753 = vadd.f32 0.0, %v1752
      %v1754 = vpop.f32.mrb[0].mxu0
      %1755 = vmatprep.mubr.bf16.mxu0 0
      %1756 = vmatmul.mubr.bf16.gmra.mrb[0].mxu0 %v1528
      %v1757 = vpop.f32.mrb[0].mxu0
      %v1758 = vadd.f32 0.0, %v1757
      %v1759 = vpop.f32.mrb[0].mxu0
      %v1760 = vpop.f32.mrb[0].mxu0
      %v1761 = vadd.f32 0.0, %v1760
      %v1762 = vpop.f32.mrb[0].mxu0
      %1763 = vmatprep.mubr.bf16.mxu0 0
      %1764 = vmatmul.mubr.bf16.gmra.mrb[0].mxu0 %v1529
      %v1765 = vpop.f32.mrb[0].mxu0
      %v1766 = vadd.f32 0.0, %v1765
      %v1767 = vpop.f32.mrb[0].mxu0
      %v1768 = vpop.f32.mrb[0].mxu0
      %v1769 = vadd.f32 0.0, %v1768
      %v1770 = vpop.f32.mrb[0].mxu0
      %1771 = vdwg.mxu0
      %v1772 = vadd.f32 %v1440, %v1630
      %v1773 = vadd.f32 %v1441, %v1633
      %v1774 = vadd.f32 %v1442, %v1638
      %v1775 = vadd.f32 %v1443, %v1641
      %v1776 = vadd.f32 %v1444, %v1646
      %v1777 = vadd.f32 %v1445, %v1649
      %v1778 = vadd.f32 %v1446, %v1654
      %v1779 = vadd.f32 %v1447, %v1657
      %v1780 = vadd.f32 %v1448, %v1662
      %v1781 = vadd.f32 %v1449, %v1665
      %v1782 = vadd.f32 %v1450, %v1670
      %v1783 = vadd.f32 %v1451, %v1673
      %v1784 = vadd.f32 %v1452, %v1678
      %v1785 = vadd.f32 %v1453, %v1681
      %v1786 = vadd.f32 %v1454, %v1686
      %v1787 = vadd.f32 %v1455, %v1689
      %v1788 = vadd.f32 %v1456, %v1694
      %v1789 = vadd.f32 %v1457, %v1697
      %v1790 = vadd.f32 %v1458, %v1702
      %v1791 = vadd.f32 %v1459, %v1705
      %v1792 = vadd.f32 %v1460, %v1710
      %v1793 = vadd.f32 %v1461, %v1713
      %v1794 = vadd.f32 %v1462, %v1718
      %v1795 = vadd.f32 %v1463, %v1721
      %v1796 = vadd.f32 %v1464, %v1726
      %v1797 = vadd.f32 %v1465, %v1729
      %v1798 = vadd.f32 %v1466, %v1734
      %v1799 = vadd.f32 %v1467, %v1737
      %v1800 = vadd.f32 %v1468, %v1742
      %v1801 = vadd.f32 %v1469, %v1745
      %v1802 = vadd.f32 %v1470, %v1750
      %v1803 = vadd.f32 %v1471, %v1753
      %v1804 = vadd.f32 %v1472, %v1758
      %v1805 = vadd.f32 %v1473, %v1761
      %v1806 = vadd.f32 %v1474, %v1766
      %v1807 = vadd.f32 %v1475, %v1769
      %v1808 = vld [vmem:[%s214 + $0x14] sm:$0xff]
      %v1809 = vld [vmem:[%s214 + $0x1c] sm:$0xff]
      %v1810 = vld [vmem:[%s214 + $0x24] sm:$0xff]
      %v1811 = vld [vmem:[%s214 + $0x2c] sm:$0xff]
      %v1812 = vld [vmem:[%s214 + $0x34] sm:$0xff]
      %v1813 = vld [vmem:[%s214 + $0x3c] sm:$0xff]
      %v1814 = vld [vmem:[%s214 + $0x44] sm:$0xff]
      %v1815 = vld [vmem:[%s214 + $0x4c] sm:$0xff]
      %v1816 = vld [vmem:[%s214 + $0x54] sm:$0xff]
      %v1817 = vld [vmem:[%s214 + $0x5c] sm:$0xff]
      %v1818 = vld [vmem:[%s214 + $0x64] sm:$0xff]
      %v1819 = vld [vmem:[%s214 + $0x6c] sm:$0xff]
      %v1820 = vld [vmem:[%s214 + $0x74] sm:$0xff]
      %v1821 = vld [vmem:[%s214 + $0x7c] sm:$0xff]
      %v1822 = vld [vmem:[%s214 + $0x84] sm:$0xff]
      %v1823 = vld [vmem:[%s214 + $0x8c] sm:$0xff]
      %v1824 = vld [vmem:[%s214 + $0x94] sm:$0xff]
      %v1825 = vld [vmem:[%s214 + $0x9c] sm:$0xff]
      %v1826 = vld [vmem:[%s214 + $0xa4] sm:$0xff]
      %v1827 = vld [vmem:[%s214 + $0xac] sm:$0xff]
      %v1828 = vld [vmem:[%s214 + $0xb4] sm:$0xff]
      %v1829 = vld [vmem:[%s214 + $0xbc] sm:$0xff]
      %v1830 = vld [vmem:[%s214 + $0xc4] sm:$0xff]
      %v1831 = vld [vmem:[%s214 + $0xcc] sm:$0xff]
      %v1832 = vld [vmem:[%s214 + $0xd4] sm:$0xff]
      %v1833 = vld [vmem:[%s214 + $0xdc] sm:$0xff]
      %v1834 = vld [vmem:[%s214 + $0xe4] sm:$0xff]
      %v1835 = vld [vmem:[%s214 + $0xec] sm:$0xff]
      %v1836 = vld [vmem:[%s214 + $0xf4] sm:$0xff]
      %v1837 = vld [vmem:[%s214 + $0xfc] sm:$0xff]
      %v1838 = vld [vmem:[%s214 + $0x104] sm:$0xff]
      %v1839 = vld [vmem:[%s214 + $0x10c] sm:$0xff]
      %v1840 = vld [vmem:[%s214 + $0x114] sm:$0xff]
      %v1841 = vld [vmem:[%s214 + $0x11c] sm:$0xff]
      %v1842 = vld [vmem:[%s214 + $0x124] sm:$0xff]
      %v1843 = vld [vmem:[%s214 + $0x12c] sm:$0xff]
      %v1844 = vpack.c.bf16 %v1809, %v1808
      %v1845 = vpack.c.bf16 %v1811, %v1810
      %v1846 = vpack.c.bf16 %v1813, %v1812
      %v1847 = vpack.c.bf16 %v1815, %v1814
      %v1848 = vpack.c.bf16 %v1817, %v1816
      %v1849 = vpack.c.bf16 %v1819, %v1818
      %v1850 = vpack.c.bf16 %v1821, %v1820
      %v1851 = vpack.c.bf16 %v1823, %v1822
      %v1852 = vpack.c.bf16 %v1825, %v1824
      %v1853 = vpack.c.bf16 %v1827, %v1826
      %v1854 = vpack.c.bf16 %v1829, %v1828
      %v1855 = vpack.c.bf16 %v1831, %v1830
      %v1856 = vpack.c.bf16 %v1833, %v1832
      %v1857 = vpack.c.bf16 %v1835, %v1834
      %v1858 = vpack.c.bf16 %v1837, %v1836
      %v1859 = vpack.c.bf16 %v1839, %v1838
      %v1860 = vpack.c.bf16 %v1841, %v1840
      %v1861 = vpack.c.bf16 %v1843, %v1842
      %s1862 = scalar_lea.vmem %s1, 320
      %v1863 = vld [vmem:[%s1862] sm:$0xf]
      %v1864 = vld [vmem:[%s1862 + $0x4] sm:$0xf]
      %v1865 = vld [vmem:[%s1862 + $0x8] sm:$0xf]
      %v1866 = vld [vmem:[%s1862 + $0xc] sm:$0xf]
      %v1867 = vld [vmem:[%s1862 + $0x10] sm:$0xf]
      %v1868 = vld [vmem:[%s1862 + $0x14] sm:$0xf]
      %v1869 = vld [vmem:[%s1862 + $0x18] sm:$0xf]
      %v1870 = vld [vmem:[%s1862 + $0x1c] sm:$0xf]
      %v1871 = vld [vmem:[%s1862 + $0x20] sm:$0xf]
      %v1872 = vld [vmem:[%s1862 + $0x24] sm:$0xf]
      %v1873 = vld [vmem:[%s1862 + $0x28] sm:$0xf]
      %v1874 = vld [vmem:[%s1862 + $0x2c] sm:$0xf]
      %v1875 = vld [vmem:[%s1862 + $0x30] sm:$0xf]
      %v1876 = vld [vmem:[%s1862 + $0x34] sm:$0xf]
      %v1877 = vld [vmem:[%s1862 + $0x38] sm:$0xf]
      %v1878 = vld [vmem:[%s1862 + $0x3c] sm:$0xf]
      %v1895 = vunpack.c.l.b16 %v1863
      %v1896 = vunpack.c.l.b16 %v1864
      %v1897 = vunpack.c.l.b16 %v1865
      %v1898 = vunpack.c.l.b16 %v1866
      %v1899 = vunpack.c.l.b16 %v1867
      %v1900 = vunpack.c.l.b16 %v1868
      %v1901 = vunpack.c.l.b16 %v1869
      %v1902 = vunpack.c.l.b16 %v1870
      %v1903 = vunpack.c.l.b16 %v1871
      %v1904 = vunpack.c.l.b16 %v1872
      %v1905 = vunpack.c.l.b16 %v1873
      %v1906 = vunpack.c.l.b16 %v1874
      %v1907 = vunpack.c.l.b16 %v1875
      %v1908 = vunpack.c.l.b16 %v1876
      %v1909 = vunpack.c.l.b16 %v1877
      %v1910 = vunpack.c.l.b16 %v1878
      %v1911 = vpack.c.b16 %v1896, %v1895
      %v1912 = vpack.c.b16 %v1898, %v1897
      %v1913 = vpack.c.b16 %v1900, %v1899
      %v1914 = vpack.c.b16 %v1902, %v1901
      %v1915 = vpack.c.b16 %v1904, %v1903
      %v1916 = vpack.c.b16 %v1906, %v1905
      %v1917 = vpack.c.b16 %v1908, %v1907
      %v1918 = vpack.c.b16 %v1910, %v1909
      %1927 = vmatprep.subr.bf16.mxu0 0
      %1928 = vmatpush1.bf16.msra.mxu0 %v1911
      %1929 = vmatprep.subr.bf16.mxu0 0
      %1930 = vmatpush1.bf16.msra.mxu0 %v1912
      %1931 = vmatprep.subr.bf16.mxu0 0
      %1932 = vmatpush1.bf16.msra.mxu0 %v1913
      %1933 = vmatprep.subr.bf16.mxu0 0
      %1934 = vmatpush1.bf16.msra.mxu0 %v1914
      %1935 = vmatprep.subr.bf16.mxu0 0
      %1936 = vmatpush1.bf16.msra.mxu0 %v1915
      %1937 = vmatprep.subr.bf16.mxu0 0
      %1938 = vmatpush1.bf16.msra.mxu0 %v1916
      %1939 = vmatprep.subr.bf16.mxu0 0
      %1940 = vmatpush1.bf16.msra.mxu0 %v1917
      %1941 = vmatprep.subr.bf16.mxu0 0
      %1942 = vmatpush1.bf16.msra.mxu0 %v1918
      %1943 = vmatprep.subr.bf16.mxu0 0
      %1944 = vmatpush1.bf16.msra.mxu0 0
      %1945 = vmatprep.subr.bf16.mxu0 0
      %1946 = vmatpush1.bf16.msra.mxu0 0
      %1947 = vmatprep.subr.bf16.mxu0 0
      %1948 = vmatpush1.bf16.msra.mxu0 0
      %1949 = vmatprep.subr.bf16.mxu0 0
      %1950 = vmatpush1.bf16.msra.mxu0 0
      %1951 = vmatprep.subr.bf16.mxu0 0
      %1952 = vmatpush1.bf16.msra.mxu0 0
      %1953 = vmatprep.subr.bf16.mxu0 0
      %1954 = vmatpush1.bf16.msra.mxu0 0
      %1955 = vmatprep.subr.bf16.mxu0 0
      %1956 = vmatpush1.bf16.msra.mxu0 0
      %1957 = vmatprep.subr.bf16.mxu0 0
      %1958 = vmatpush1.bf16.msra.mxu0 0
      %1959 = vmatprep.mubr.bf16.mxu0 0
      %1960 = vmatmul.mubr.bf16.gmra.mrb[0].mxu0 %v1844
      %v1961 = vpop.f32.mrb[0].mxu0
      %v1962 = vadd.f32 0.0, %v1961
      %v1963 = vpop.f32.mrb[0].mxu0
      %v1964 = vpop.f32.mrb[0].mxu0
      %v1965 = vadd.f32 0.0, %v1964
      %v1966 = vpop.f32.mrb[0].mxu0
      %1967 = vmatprep.mubr.bf16.mxu0 0
      %1968 = vmatmul.mubr.bf16.gmra.mrb[0].mxu0 %v1845
      %v1969 = vpop.f32.mrb[0].mxu0
      %v1970 = vadd.f32 0.0, %v1969
      %v1971 = vpop.f32.mrb[0].mxu0
      %v1972 = vpop.f32.mrb[0].mxu0
      %v1973 = vadd.f32 0.0, %v1972
      %v1974 = vpop.f32.mrb[0].mxu0
      %1975 = vmatprep.mubr.bf16.mxu0 0
      %1976 = vmatmul.mubr.bf16.gmra.mrb[0].mxu0 %v1846
      %v1977 = vpop.f32.mrb[0].mxu0
      %v1978 = vadd.f32 0.0, %v1977
      %v1979 = vpop.f32.mrb[0].mxu0
      %v1980 = vpop.f32.mrb[0].mxu0
      %v1981 = vadd.f32 0.0, %v1980
      %v1982 = vpop.f32.mrb[0].mxu0
      %1983 = vmatprep.mubr.bf16.mxu0 0
      %1984 = vmatmul.mubr.bf16.gmra.mrb[0].mxu0 %v1847
      %v1985 = vpop.f32.mrb[0].mxu0
      %v1986 = vadd.f32 0.0, %v1985
      %v1987 = vpop.f32.mrb[0].mxu0
      %v1988 = vpop.f32.mrb[0].mxu0
      %v1989 = vadd.f32 0.0, %v1988
      %v1990 = vpop.f32.mrb[0].mxu0
      %1991 = vmatprep.mubr.bf16.mxu0 0
      %1992 = vmatmul.mubr.bf16.gmra.mrb[0].mxu0 %v1848
      %v1993 = vpop.f32.mrb[0].mxu0
      %v1994 = vadd.f32 0.0, %v1993
      %v1995 = vpop.f32.mrb[0].mxu0
      %v1996 = vpop.f32.mrb[0].mxu0
      %v1997 = vadd.f32 0.0, %v1996
      %v1998 = vpop.f32.mrb[0].mxu0
      %1999 = vmatprep.mubr.bf16.mxu0 0
      %2000 = vmatmul.mubr.bf16.gmra.mrb[0].mxu0 %v1849
      %v2001 = vpop.f32.mrb[0].mxu0
      %v2002 = vadd.f32 0.0, %v2001
      %v2003 = vpop.f32.mrb[0].mxu0
      %v2004 = vpop.f32.mrb[0].mxu0
      %v2005 = vadd.f32 0.0, %v2004
      %v2006 = vpop.f32.mrb[0].mxu0
      %2007 = vmatprep.mubr.bf16.mxu0 0
      %2008 = vmatmul.mubr.bf16.gmra.mrb[0].mxu0 %v1850
      %v2009 = vpop.f32.mrb[0].mxu0
      %v2010 = vadd.f32 0.0, %v2009
      %v2011 = vpop.f32.mrb[0].mxu0
      %v2012 = vpop.f32.mrb[0].mxu0
      %v2013 = vadd.f32 0.0, %v2012
      %v2014 = vpop.f32.mrb[0].mxu0
      %2015 = vmatprep.mubr.bf16.mxu0 0
      %2016 = vmatmul.mubr.bf16.gmra.mrb[0].mxu0 %v1851
      %v2017 = vpop.f32.mrb[0].mxu0
      %v2018 = vadd.f32 0.0, %v2017
      %v2019 = vpop.f32.mrb[0].mxu0
      %v2020 = vpop.f32.mrb[0].mxu0
      %v2021 = vadd.f32 0.0, %v2020
      %v2022 = vpop.f32.mrb[0].mxu0
      %2023 = vmatprep.mubr.bf16.mxu0 0
      %2024 = vmatmul.mubr.bf16.gmra.mrb[0].mxu0 %v1852
      %v2025 = vpop.f32.mrb[0].mxu0
      %v2026 = vadd.f32 0.0, %v2025
      %v2027 = vpop.f32.mrb[0].mxu0
      %v2028 = vpop.f32.mrb[0].mxu0
      %v2029 = vadd.f32 0.0, %v2028
      %v2030 = vpop.f32.mrb[0].mxu0
      %2031 = vmatprep.mubr.bf16.mxu0 0
      %2032 = vmatmul.mubr.bf16.gmra.mrb[0].mxu0 %v1853
      %v2033 = vpop.f32.mrb[0].mxu0
      %v2034 = vadd.f32 0.0, %v2033
      %v2035 = vpop.f32.mrb[0].mxu0
      %v2036 = vpop.f32.mrb[0].mxu0
      %v2037 = vadd.f32 0.0, %v2036
      %v2038 = vpop.f32.mrb[0].mxu0
      %2039 = vmatprep.mubr.bf16.mxu0 0
      %2040 = vmatmul.mubr.bf16.gmra.mrb[0].mxu0 %v1854
      %v2041 = vpop.f32.mrb[0].mxu0
      %v2042 = vadd.f32 0.0, %v2041
      %v2043 = vpop.f32.mrb[0].mxu0
      %v2044 = vpop.f32.mrb[0].mxu0
      %v2045 = vadd.f32 0.0, %v2044
      %v2046 = vpop.f32.mrb[0].mxu0
      %2047 = vmatprep.mubr.bf16.mxu0 0
      %2048 = vmatmul.mubr.bf16.gmra.mrb[0].mxu0 %v1855
      %v2049 = vpop.f32.mrb[0].mxu0
      %v2050 = vadd.f32 0.0, %v2049
      %v2051 = vpop.f32.mrb[0].mxu0
      %v2052 = vpop.f32.mrb[0].mxu0
      %v2053 = vadd.f32 0.0, %v2052
      %v2054 = vpop.f32.mrb[0].mxu0
      %2055 = vmatprep.mubr.bf16.mxu0 0
      %2056 = vmatmul.mubr.bf16.gmra.mrb[0].mxu0 %v1856
      %v2057 = vpop.f32.mrb[0].mxu0
      %v2058 = vadd.f32 0.0, %v2057
      %v2059 = vpop.f32.mrb[0].mxu0
      %v2060 = vpop.f32.mrb[0].mxu0
      %v2061 = vadd.f32 0.0, %v2060
      %v2062 = vpop.f32.mrb[0].mxu0
      %2063 = vmatprep.mubr.bf16.mxu0 0
      %2064 = vmatmul.mubr.bf16.gmra.mrb[0].mxu0 %v1857
      %v2065 = vpop.f32.mrb[0].mxu0
      %v2066 = vadd.f32 0.0, %v2065
      %v2067 = vpop.f32.mrb[0].mxu0
      %v2068 = vpop.f32.mrb[0].mxu0
      %v2069 = vadd.f32 0.0, %v2068
      %v2070 = vpop.f32.mrb[0].mxu0
      %2071 = vmatprep.mubr.bf16.mxu0 0
      %2072 = vmatmul.mubr.bf16.gmra.mrb[0].mxu0 %v1858
      %v2073 = vpop.f32.mrb[0].mxu0
      %v2074 = vadd.f32 0.0, %v2073
      %v2075 = vpop.f32.mrb[0].mxu0
      %v2076 = vpop.f32.mrb[0].mxu0
      %v2077 = vadd.f32 0.0, %v2076
      %v2078 = vpop.f32.mrb[0].mxu0
      %2079 = vmatprep.mubr.bf16.mxu0 0
      %2080 = vmatmul.mubr.bf16.gmra.mrb[0].mxu0 %v1859
      %v2081 = vpop.f32.mrb[0].mxu0
      %v2082 = vadd.f32 0.0, %v2081
      %v2083 = vpop.f32.mrb[0].mxu0
      %v2084 = vpop.f32.mrb[0].mxu0
      %v2085 = vadd.f32 0.0, %v2084
      %v2086 = vpop.f32.mrb[0].mxu0
      %2087 = vmatprep.mubr.bf16.mxu0 0
      %2088 = vmatmul.mubr.bf16.gmra.mrb[0].mxu0 %v1860
      %v2089 = vpop.f32.mrb[0].mxu0
      %v2090 = vadd.f32 0.0, %v2089
      %v2091 = vpop.f32.mrb[0].mxu0
      %v2092 = vpop.f32.mrb[0].mxu0
      %v2093 = vadd.f32 0.0, %v2092
      %v2094 = vpop.f32.mrb[0].mxu0
      %2095 = vmatprep.mubr.bf16.mxu0 0
      %2096 = vmatmul.mubr.bf16.gmra.mrb[0].mxu0 %v1861
      %v2097 = vpop.f32.mrb[0].mxu0
      %v2098 = vadd.f32 0.0, %v2097
      %v2099 = vpop.f32.mrb[0].mxu0
      %v2100 = vpop.f32.mrb[0].mxu0
      %v2101 = vadd.f32 0.0, %v2100
      %v2102 = vpop.f32.mrb[0].mxu0
      %2103 = vdwg.mxu0
      %v2104 = vadd.f32 %v1772, %v1962
      %v2105 = vadd.f32 %v1773, %v1965
      %v2106 = vadd.f32 %v1774, %v1970
      %v2107 = vadd.f32 %v1775, %v1973
      %v2108 = vadd.f32 %v1776, %v1978
      %v2109 = vadd.f32 %v1777, %v1981
      %v2110 = vadd.f32 %v1778, %v1986
      %v2111 = vadd.f32 %v1779, %v1989
      %v2112 = vadd.f32 %v1780, %v1994
      %v2113 = vadd.f32 %v1781, %v1997
      %v2114 = vadd.f32 %v1782, %v2002
      %v2115 = vadd.f32 %v1783, %v2005
      %v2116 = vadd.f32 %v1784, %v2010
      %v2117 = vadd.f32 %v1785, %v2013
      %v2118 = vadd.f32 %v1786, %v2018
      %v2119 = vadd.f32 %v1787, %v2021
      %v2120 = vadd.f32 %v1788, %v2026
      %v2121 = vadd.f32 %v1789, %v2029
      %v2122 = vadd.f32 %v1790, %v2034
      %v2123 = vadd.f32 %v1791, %v2037
      %v2124 = vadd.f32 %v1792, %v2042
      %v2125 = vadd.f32 %v1793, %v2045
      %v2126 = vadd.f32 %v1794, %v2050
      %v2127 = vadd.f32 %v1795, %v2053
      %v2128 = vadd.f32 %v1796, %v2058
      %v2129 = vadd.f32 %v1797, %v2061
      %v2130 = vadd.f32 %v1798, %v2066
      %v2131 = vadd.f32 %v1799, %v2069
      %v2132 = vadd.f32 %v1800, %v2074
      %v2133 = vadd.f32 %v1801, %v2077
      %v2134 = vadd.f32 %v1802, %v2082
      %v2135 = vadd.f32 %v1803, %v2085
      %v2136 = vadd.f32 %v1804, %v2090
      %v2137 = vadd.f32 %v1805, %v2093
      %v2138 = vadd.f32 %v1806, %v2098
      %v2139 = vadd.f32 %v1807, %v2101
      %v2140 = vld [vmem:[%s214 + $0x24] sm:$0xff]
      %v2141 = vld [vmem:[%s214 + $0x2c] sm:$0xff]
      %v2142 = vld [vmem:[%s214 + $0x34] sm:$0xff]
      %v2143 = vld [vmem:[%s214 + $0x3c] sm:$0xff]
      %v2144 = vld [vmem:[%s214 + $0x44] sm:$0xff]
      %v2145 = vld [vmem:[%s214 + $0x4c] sm:$0xff]
      %v2146 = vld [vmem:[%s214 + $0x54] sm:$0xff]
      %v2147 = vld [vmem:[%s214 + $0x5c] sm:$0xff]
      %v2148 = vld [vmem:[%s214 + $0x64] sm:$0xff]
      %v2149 = vld [vmem:[%s214 + $0x6c] sm:$0xff]
      %v2150 = vld [vmem:[%s214 + $0x74] sm:$0xff]
      %v2151 = vld [vmem:[%s214 + $0x7c] sm:$0xff]
      %v2152 = vld [vmem:[%s214 + $0x84] sm:$0xff]
      %v2153 = vld [vmem:[%s214 + $0x8c] sm:$0xff]
      %v2154 = vld [vmem:[%s214 + $0x94] sm:$0xff]
      %v2155 = vld [vmem:[%s214 + $0x9c] sm:$0xff]
      %v2156 = vld [vmem:[%s214 + $0xa4] sm:$0xff]
      %v2157 = vld [vmem:[%s214 + $0xac] sm:$0xff]
      %v2158 = vld [vmem:[%s214 + $0xb4] sm:$0xff]
      %v2159 = vld [vmem:[%s214 + $0xbc] sm:$0xff]
      %v2160 = vld [vmem:[%s214 + $0xc4] sm:$0xff]
      %v2161 = vld [vmem:[%s214 + $0xcc] sm:$0xff]
      %v2162 = vld [vmem:[%s214 + $0xd4] sm:$0xff]
      %v2163 = vld [vmem:[%s214 + $0xdc] sm:$0xff]
      %v2164 = vld [vmem:[%s214 + $0xe4] sm:$0xff]
      %v2165 = vld [vmem:[%s214 + $0xec] sm:$0xff]
      %v2166 = vld [vmem:[%s214 + $0xf4] sm:$0xff]
      %v2167 = vld [vmem:[%s214 + $0xfc] sm:$0xff]
      %v2168 = vld [vmem:[%s214 + $0x104] sm:$0xff]
      %v2169 = vld [vmem:[%s214 + $0x10c] sm:$0xff]
      %v2170 = vld [vmem:[%s214 + $0x114] sm:$0xff]
      %v2171 = vld [vmem:[%s214 + $0x11c] sm:$0xff]
      %v2172 = vld [vmem:[%s214 + $0x124] sm:$0xff]
      %v2173 = vld [vmem:[%s214 + $0x12c] sm:$0xff]
      %v2174 = vld [vmem:[%s214 + $0x134] sm:$0xff]
      %v2175 = vld [vmem:[%s214 + $0x13c] sm:$0xff]
      %v2176 = vpack.c.bf16 %v2141, %v2140
      %v2177 = vpack.c.bf16 %v2143, %v2142
      %v2178 = vpack.c.bf16 %v2145, %v2144
      %v2179 = vpack.c.bf16 %v2147, %v2146
      %v2180 = vpack.c.bf16 %v2149, %v2148
      %v2181 = vpack.c.bf16 %v2151, %v2150
      %v2182 = vpack.c.bf16 %v2153, %v2152
      %v2183 = vpack.c.bf16 %v2155, %v2154
      %v2184 = vpack.c.bf16 %v2157, %v2156
      %v2185 = vpack.c.bf16 %v2159, %v2158
      %v2186 = vpack.c.bf16 %v2161, %v2160
      %v2187 = vpack.c.bf16 %v2163, %v2162
      %v2188 = vpack.c.bf16 %v2165, %v2164
      %v2189 = vpack.c.bf16 %v2167, %v2166
      %v2190 = vpack.c.bf16 %v2169, %v2168
      %v2191 = vpack.c.bf16 %v2171, %v2170
      %v2192 = vpack.c.bf16 %v2173, %v2172
      %v2193 = vpack.c.bf16 %v2175, %v2174
      %s2194 = scalar_lea.vmem %s1, 384
      %v2195 = vld [vmem:[%s2194] sm:$0xf]
      %v2196 = vld [vmem:[%s2194 + $0x4] sm:$0xf]
      %v2197 = vld [vmem:[%s2194 + $0x8] sm:$0xf]
      %v2198 = vld [vmem:[%s2194 + $0xc] sm:$0xf]
      %v2199 = vld [vmem:[%s2194 + $0x10] sm:$0xf]
      %v2200 = vld [vmem:[%s2194 + $0x14] sm:$0xf]
      %v2201 = vld [vmem:[%s2194 + $0x18] sm:$0xf]
      %v2202 = vld [vmem:[%s2194 + $0x1c] sm:$0xf]
      %v2203 = vld [vmem:[%s2194 + $0x20] sm:$0xf]
      %v2204 = vld [vmem:[%s2194 + $0x24] sm:$0xf]
      %v2205 = vld [vmem:[%s2194 + $0x28] sm:$0xf]
      %v2206 = vld [vmem:[%s2194 + $0x2c] sm:$0xf]
      %v2207 = vld [vmem:[%s2194 + $0x30] sm:$0xf]
      %v2208 = vld [vmem:[%s2194 + $0x34] sm:$0xf]
      %v2209 = vld [vmem:[%s2194 + $0x38] sm:$0xf]
      %v2210 = vld [vmem:[%s2194 + $0x3c] sm:$0xf]
      %v2227 = vunpack.c.l.b16 %v2195
      %v2228 = vunpack.c.l.b16 %v2196
      %v2229 = vunpack.c.l.b16 %v2197
      %v2230 = vunpack.c.l.b16 %v2198
      %v2231 = vunpack.c.l.b16 %v2199
      %v2232 = vunpack.c.l.b16 %v2200
      %v2233 = vunpack.c.l.b16 %v2201
      %v2234 = vunpack.c.l.b16 %v2202
      %v2235 = vunpack.c.l.b16 %v2203
      %v2236 = vunpack.c.l.b16 %v2204
      %v2237 = vunpack.c.l.b16 %v2205
      %v2238 = vunpack.c.l.b16 %v2206
      %v2239 = vunpack.c.l.b16 %v2207
      %v2240 = vunpack.c.l.b16 %v2208
      %v2241 = vunpack.c.l.b16 %v2209
      %v2242 = vunpack.c.l.b16 %v2210
      %v2243 = vpack.c.b16 %v2228, %v2227
      %v2244 = vpack.c.b16 %v2230, %v2229
      %v2245 = vpack.c.b16 %v2232, %v2231
      %v2246 = vpack.c.b16 %v2234, %v2233
      %v2247 = vpack.c.b16 %v2236, %v2235
      %v2248 = vpack.c.b16 %v2238, %v2237
      %v2249 = vpack.c.b16 %v2240, %v2239
      %v2250 = vpack.c.b16 %v2242, %v2241
      %2259 = vmatprep.subr.bf16.mxu0 0
      %2260 = vmatpush1.bf16.msra.mxu0 %v2243
      %2261 = vmatprep.subr.bf16.mxu0 0
      %2262 = vmatpush1.bf16.msra.mxu0 %v2244
      %2263 = vmatprep.subr.bf16.mxu0 0
      %2264 = vmatpush1.bf16.msra.mxu0 %v2245
      %2265 = vmatprep.subr.bf16.mxu0 0
      %2266 = vmatpush1.bf16.msra.mxu0 %v2246
      %2267 = vmatprep.subr.bf16.mxu0 0
      %2268 = vmatpush1.bf16.msra.mxu0 %v2247
      %2269 = vmatprep.subr.bf16.mxu0 0
      %2270 = vmatpush1.bf16.msra.mxu0 %v2248
      %2271 = vmatprep.subr.bf16.mxu0 0
      %2272 = vmatpush1.bf16.msra.mxu0 %v2249
      %2273 = vmatprep.subr.bf16.mxu0 0
      %2274 = vmatpush1.bf16.msra.mxu0 %v2250
      %2275 = vmatprep.subr.bf16.mxu0 0
      %2276 = vmatpush1.bf16.msra.mxu0 0
      %2277 = vmatprep.subr.bf16.mxu0 0
      %2278 = vmatpush1.bf16.msra.mxu0 0
      %2279 = vmatprep.subr.bf16.mxu0 0
      %2280 = vmatpush1.bf16.msra.mxu0 0
      %2281 = vmatprep.subr.bf16.mxu0 0
      %2282 = vmatpush1.bf16.msra.mxu0 0
      %2283 = vmatprep.subr.bf16.mxu0 0
      %2284 = vmatpush1.bf16.msra.mxu0 0
      %2285 = vmatprep.subr.bf16.mxu0 0
      %2286 = vmatpush1.bf16.msra.mxu0 0
      %2287 = vmatprep.subr.bf16.mxu0 0
      %2288 = vmatpush1.bf16.msra.mxu0 0
      %2289 = vmatprep.subr.bf16.mxu0 0
      %2290 = vmatpush1.bf16.msra.mxu0 0
      %2291 = vmatprep.mubr.bf16.mxu0 0
      %2292 = vmatmul.mubr.bf16.gmra.mrb[0].mxu0 %v2176
      %v2293 = vpop.f32.mrb[0].mxu0
      %v2294 = vadd.f32 0.0, %v2293
      %v2295 = vpop.f32.mrb[0].mxu0
      %v2296 = vpop.f32.mrb[0].mxu0
      %v2297 = vadd.f32 0.0, %v2296
      %v2298 = vpop.f32.mrb[0].mxu0
      %2299 = vmatprep.mubr.bf16.mxu0 0
      %2300 = vmatmul.mubr.bf16.gmra.mrb[0].mxu0 %v2177
      %v2301 = vpop.f32.mrb[0].mxu0
      %v2302 = vadd.f32 0.0, %v2301
      %v2303 = vpop.f32.mrb[0].mxu0
      %v2304 = vpop.f32.mrb[0].mxu0
      %v2305 = vadd.f32 0.0, %v2304
      %v2306 = vpop.f32.mrb[0].mxu0
      %2307 = vmatprep.mubr.bf16.mxu0 0
      %2308 = vmatmul.mubr.bf16.gmra.mrb[0].mxu0 %v2178
      %v2309 = vpop.f32.mrb[0].mxu0
      %v2310 = vadd.f32 0.0, %v2309
      %v2311 = vpop.f32.mrb[0].mxu0
      %v2312 = vpop.f32.mrb[0].mxu0
      %v2313 = vadd.f32 0.0, %v2312
      %v2314 = vpop.f32.mrb[0].mxu0
      %2315 = vmatprep.mubr.bf16.mxu0 0
      %2316 = vmatmul.mubr.bf16.gmra.mrb[0].mxu0 %v2179
      %v2317 = vpop.f32.mrb[0].mxu0
      %v2318 = vadd.f32 0.0, %v2317
      %v2319 = vpop.f32.mrb[0].mxu0
      %v2320 = vpop.f32.mrb[0].mxu0
      %v2321 = vadd.f32 0.0, %v2320
      %v2322 = vpop.f32.mrb[0].mxu0
      %2323 = vmatprep.mubr.bf16.mxu0 0
      %2324 = vmatmul.mubr.bf16.gmra.mrb[0].mxu0 %v2180
      %v2325 = vpop.f32.mrb[0].mxu0
      %v2326 = vadd.f32 0.0, %v2325
      %v2327 = vpop.f32.mrb[0].mxu0
      %v2328 = vpop.f32.mrb[0].mxu0
      %v2329 = vadd.f32 0.0, %v2328
      %v2330 = vpop.f32.mrb[0].mxu0
      %2331 = vmatprep.mubr.bf16.mxu0 0
      %2332 = vmatmul.mubr.bf16.gmra.mrb[0].mxu0 %v2181
      %v2333 = vpop.f32.mrb[0].mxu0
      %v2334 = vadd.f32 0.0, %v2333
      %v2335 = vpop.f32.mrb[0].mxu0
      %v2336 = vpop.f32.mrb[0].mxu0
      %v2337 = vadd.f32 0.0, %v2336
      %v2338 = vpop.f32.mrb[0].mxu0
      %2339 = vmatprep.mubr.bf16.mxu0 0
      %2340 = vmatmul.mubr.bf16.gmra.mrb[0].mxu0 %v2182
      %v2341 = vpop.f32.mrb[0].mxu0
      %v2342 = vadd.f32 0.0, %v2341
      %v2343 = vpop.f32.mrb[0].mxu0
      %v2344 = vpop.f32.mrb[0].mxu0
      %v2345 = vadd.f32 0.0, %v2344
      %v2346 = vpop.f32.mrb[0].mxu0
      %2347 = vmatprep.mubr.bf16.mxu0 0
      %2348 = vmatmul.mubr.bf16.gmra.mrb[0].mxu0 %v2183
      %v2349 = vpop.f32.mrb[0].mxu0
      %v2350 = vadd.f32 0.0, %v2349
      %v2351 = vpop.f32.mrb[0].mxu0
      %v2352 = vpop.f32.mrb[0].mxu0
      %v2353 = vadd.f32 0.0, %v2352
      %v2354 = vpop.f32.mrb[0].mxu0
      %2355 = vmatprep.mubr.bf16.mxu0 0
      %2356 = vmatmul.mubr.bf16.gmra.mrb[0].mxu0 %v2184
      %v2357 = vpop.f32.mrb[0].mxu0
      %v2358 = vadd.f32 0.0, %v2357
      %v2359 = vpop.f32.mrb[0].mxu0
      %v2360 = vpop.f32.mrb[0].mxu0
      %v2361 = vadd.f32 0.0, %v2360
      %v2362 = vpop.f32.mrb[0].mxu0
      %2363 = vmatprep.mubr.bf16.mxu0 0
      %2364 = vmatmul.mubr.bf16.gmra.mrb[0].mxu0 %v2185
      %v2365 = vpop.f32.mrb[0].mxu0
      %v2366 = vadd.f32 0.0, %v2365
      %v2367 = vpop.f32.mrb[0].mxu0
      %v2368 = vpop.f32.mrb[0].mxu0
      %v2369 = vadd.f32 0.0, %v2368
      %v2370 = vpop.f32.mrb[0].mxu0
      %2371 = vmatprep.mubr.bf16.mxu0 0
      %2372 = vmatmul.mubr.bf16.gmra.mrb[0].mxu0 %v2186
      %v2373 = vpop.f32.mrb[0].mxu0
      %v2374 = vadd.f32 0.0, %v2373
      %v2375 = vpop.f32.mrb[0].mxu0
      %v2376 = vpop.f32.mrb[0].mxu0
      %v2377 = vadd.f32 0.0, %v2376
      %v2378 = vpop.f32.mrb[0].mxu0
      %2379 = vmatprep.mubr.bf16.mxu0 0
      %2380 = vmatmul.mubr.bf16.gmra.mrb[0].mxu0 %v2187
      %v2381 = vpop.f32.mrb[0].mxu0
      %v2382 = vadd.f32 0.0, %v2381
      %v2383 = vpop.f32.mrb[0].mxu0
      %v2384 = vpop.f32.mrb[0].mxu0
      %v2385 = vadd.f32 0.0, %v2384
      %v2386 = vpop.f32.mrb[0].mxu0
      %2387 = vmatprep.mubr.bf16.mxu0 0
      %2388 = vmatmul.mubr.bf16.gmra.mrb[0].mxu0 %v2188
      %v2389 = vpop.f32.mrb[0].mxu0
      %v2390 = vadd.f32 0.0, %v2389
      %v2391 = vpop.f32.mrb[0].mxu0
      %v2392 = vpop.f32.mrb[0].mxu0
      %v2393 = vadd.f32 0.0, %v2392
      %v2394 = vpop.f32.mrb[0].mxu0
      %2395 = vmatprep.mubr.bf16.mxu0 0
      %2396 = vmatmul.mubr.bf16.gmra.mrb[0].mxu0 %v2189
      %v2397 = vpop.f32.mrb[0].mxu0
      %v2398 = vadd.f32 0.0, %v2397
      %v2399 = vpop.f32.mrb[0].mxu0
      %v2400 = vpop.f32.mrb[0].mxu0
      %v2401 = vadd.f32 0.0, %v2400
      %v2402 = vpop.f32.mrb[0].mxu0
      %2403 = vmatprep.mubr.bf16.mxu0 0
      %2404 = vmatmul.mubr.bf16.gmra.mrb[0].mxu0 %v2190
      %v2405 = vpop.f32.mrb[0].mxu0
      %v2406 = vadd.f32 0.0, %v2405
      %v2407 = vpop.f32.mrb[0].mxu0
      %v2408 = vpop.f32.mrb[0].mxu0
      %v2409 = vadd.f32 0.0, %v2408
      %v2410 = vpop.f32.mrb[0].mxu0
      %2411 = vmatprep.mubr.bf16.mxu0 0
      %2412 = vmatmul.mubr.bf16.gmra.mrb[0].mxu0 %v2191
      %v2413 = vpop.f32.mrb[0].mxu0
      %v2414 = vadd.f32 0.0, %v2413
      %v2415 = vpop.f32.mrb[0].mxu0
      %v2416 = vpop.f32.mrb[0].mxu0
      %v2417 = vadd.f32 0.0, %v2416
      %v2418 = vpop.f32.mrb[0].mxu0
      %2419 = vmatprep.mubr.bf16.mxu0 0
      %2420 = vmatmul.mubr.bf16.gmra.mrb[0].mxu0 %v2192
      %v2421 = vpop.f32.mrb[0].mxu0
      %v2422 = vadd.f32 0.0, %v2421
      %v2423 = vpop.f32.mrb[0].mxu0
      %v2424 = vpop.f32.mrb[0].mxu0
      %v2425 = vadd.f32 0.0, %v2424
      %v2426 = vpop.f32.mrb[0].mxu0
      %2427 = vmatprep.mubr.bf16.mxu0 0
      %2428 = vmatmul.mubr.bf16.gmra.mrb[0].mxu0 %v2193
      %v2429 = vpop.f32.mrb[0].mxu0
      %v2430 = vadd.f32 0.0, %v2429
      %v2431 = vpop.f32.mrb[0].mxu0
      %v2432 = vpop.f32.mrb[0].mxu0
      %v2433 = vadd.f32 0.0, %v2432
      %v2434 = vpop.f32.mrb[0].mxu0
      %2435 = vdwg.mxu0
      %v2436 = vadd.f32 %v2104, %v2294
      %v2437 = vadd.f32 %v2105, %v2297
      %v2438 = vadd.f32 %v2106, %v2302
      %v2439 = vadd.f32 %v2107, %v2305
      %v2440 = vadd.f32 %v2108, %v2310
      %v2441 = vadd.f32 %v2109, %v2313
      %v2442 = vadd.f32 %v2110, %v2318
      %v2443 = vadd.f32 %v2111, %v2321
      %v2444 = vadd.f32 %v2112, %v2326
      %v2445 = vadd.f32 %v2113, %v2329
      %v2446 = vadd.f32 %v2114, %v2334
      %v2447 = vadd.f32 %v2115, %v2337
      %v2448 = vadd.f32 %v2116, %v2342
      %v2449 = vadd.f32 %v2117, %v2345
      %v2450 = vadd.f32 %v2118, %v2350
      %v2451 = vadd.f32 %v2119, %v2353
      %v2452 = vadd.f32 %v2120, %v2358
      %v2453 = vadd.f32 %v2121, %v2361
      %v2454 = vadd.f32 %v2122, %v2366
      %v2455 = vadd.f32 %v2123, %v2369
      %v2456 = vadd.f32 %v2124, %v2374
      %v2457 = vadd.f32 %v2125, %v2377
      %v2458 = vadd.f32 %v2126, %v2382
      %v2459 = vadd.f32 %v2127, %v2385
      %v2460 = vadd.f32 %v2128, %v2390
      %v2461 = vadd.f32 %v2129, %v2393
      %v2462 = vadd.f32 %v2130, %v2398
      %v2463 = vadd.f32 %v2131, %v2401
      %v2464 = vadd.f32 %v2132, %v2406
      %v2465 = vadd.f32 %v2133, %v2409
      %v2466 = vadd.f32 %v2134, %v2414
      %v2467 = vadd.f32 %v2135, %v2417
      %v2468 = vadd.f32 %v2136, %v2422
      %v2469 = vadd.f32 %v2137, %v2425
      %v2470 = vadd.f32 %v2138, %v2430
      %v2471 = vadd.f32 %v2139, %v2433
      %v2472 = vld [vmem:[%s214 + $0x25] sm:$0xff]
      %v2473 = vld [vmem:[%s214 + $0x2d] sm:$0xff]
      %v2474 = vld [vmem:[%s214 + $0x35] sm:$0xff]
      %v2475 = vld [vmem:[%s214 + $0x3d] sm:$0xff]
      %v2476 = vld [vmem:[%s214 + $0x45] sm:$0xff]
      %v2477 = vld [vmem:[%s214 + $0x4d] sm:$0xff]
      %v2478 = vld [vmem:[%s214 + $0x55] sm:$0xff]
      %v2479 = vld [vmem:[%s214 + $0x5d] sm:$0xff]
      %v2480 = vld [vmem:[%s214 + $0x65] sm:$0xff]
      %v2481 = vld [vmem:[%s214 + $0x6d] sm:$0xff]
      %v2482 = vld [vmem:[%s214 + $0x75] sm:$0xff]
      %v2483 = vld [vmem:[%s214 + $0x7d] sm:$0xff]
      %v2484 = vld [vmem:[%s214 + $0x85] sm:$0xff]
      %v2485 = vld [vmem:[%s214 + $0x8d] sm:$0xff]
      %v2486 = vld [vmem:[%s214 + $0x95] sm:$0xff]
      %v2487 = vld [vmem:[%s214 + $0x9d] sm:$0xff]
      %v2488 = vld [vmem:[%s214 + $0xa5] sm:$0xff]
      %v2489 = vld [vmem:[%s214 + $0xad] sm:$0xff]
      %v2490 = vld [vmem:[%s214 + $0xb5] sm:$0xff]
      %v2491 = vld [vmem:[%s214 + $0xbd] sm:$0xff]
      %v2492 = vld [vmem:[%s214 + $0xc5] sm:$0xff]
      %v2493 = vld [vmem:[%s214 + $0xcd] sm:$0xff]
      %v2494 = vld [vmem:[%s214 + $0xd5] sm:$0xff]
      %v2495 = vld [vmem:[%s214 + $0xdd] sm:$0xff]
      %v2496 = vld [vmem:[%s214 + $0xe5] sm:$0xff]
      %v2497 = vld [vmem:[%s214 + $0xed] sm:$0xff]
      %v2498 = vld [vmem:[%s214 + $0xf5] sm:$0xff]
      %v2499 = vld [vmem:[%s214 + $0xfd] sm:$0xff]
      %v2500 = vld [vmem:[%s214 + $0x105] sm:$0xff]
      %v2501 = vld [vmem:[%s214 + $0x10d] sm:$0xff]
      %v2502 = vld [vmem:[%s214 + $0x115] sm:$0xff]
      %v2503 = vld [vmem:[%s214 + $0x11d] sm:$0xff]
      %v2504 = vld [vmem:[%s214 + $0x125] sm:$0xff]
      %v2505 = vld [vmem:[%s214 + $0x12d] sm:$0xff]
      %v2506 = vld [vmem:[%s214 + $0x135] sm:$0xff]
      %v2507 = vld [vmem:[%s214 + $0x13d] sm:$0xff]
      %v2508 = vpack.c.bf16 %v2473, %v2472
      %v2509 = vpack.c.bf16 %v2475, %v2474
      %v2510 = vpack.c.bf16 %v2477, %v2476
      %v2511 = vpack.c.bf16 %v2479, %v2478
      %v2512 = vpack.c.bf16 %v2481, %v2480
      %v2513 = vpack.c.bf16 %v2483, %v2482
      %v2514 = vpack.c.bf16 %v2485, %v2484
      %v2515 = vpack.c.bf16 %v2487, %v2486
      %v2516 = vpack.c.bf16 %v2489, %v2488
      %v2517 = vpack.c.bf16 %v2491, %v2490
      %v2518 = vpack.c.bf16 %v2493, %v2492
      %v2519 = vpack.c.bf16 %v2495, %v2494
      %v2520 = vpack.c.bf16 %v2497, %v2496
      %v2521 = vpack.c.bf16 %v2499, %v2498
      %v2522 = vpack.c.bf16 %v2501, %v2500
      %v2523 = vpack.c.bf16 %v2503, %v2502
      %v2524 = vpack.c.bf16 %v2505, %v2504
      %v2525 = vpack.c.bf16 %v2507, %v2506
      %s2526 = scalar_lea.vmem %s1, 448
      %v2527 = vld [vmem:[%s2526] sm:$0xf]
      %v2528 = vld [vmem:[%s2526 + $0x4] sm:$0xf]
      %v2529 = vld [vmem:[%s2526 + $0x8] sm:$0xf]
      %v2530 = vld [vmem:[%s2526 + $0xc] sm:$0xf]
      %v2531 = vld [vmem:[%s2526 + $0x10] sm:$0xf]
      %v2532 = vld [vmem:[%s2526 + $0x14] sm:$0xf]
      %v2533 = vld [vmem:[%s2526 + $0x18] sm:$0xf]
      %v2534 = vld [vmem:[%s2526 + $0x1c] sm:$0xf]
      %v2535 = vld [vmem:[%s2526 + $0x20] sm:$0xf]
      %v2536 = vld [vmem:[%s2526 + $0x24] sm:$0xf]
      %v2537 = vld [vmem:[%s2526 + $0x28] sm:$0xf]
      %v2538 = vld [vmem:[%s2526 + $0x2c] sm:$0xf]
      %v2539 = vld [vmem:[%s2526 + $0x30] sm:$0xf]
      %v2540 = vld [vmem:[%s2526 + $0x34] sm:$0xf]
      %v2541 = vld [vmem:[%s2526 + $0x38] sm:$0xf]
      %v2542 = vld [vmem:[%s2526 + $0x3c] sm:$0xf]
      %v2559 = vunpack.c.l.b16 %v2527
      %v2560 = vunpack.c.l.b16 %v2528
      %v2561 = vunpack.c.l.b16 %v2529
      %v2562 = vunpack.c.l.b16 %v2530
      %v2563 = vunpack.c.l.b16 %v2531
      %v2564 = vunpack.c.l.b16 %v2532
      %v2565 = vunpack.c.l.b16 %v2533
      %v2566 = vunpack.c.l.b16 %v2534
      %v2567 = vunpack.c.l.b16 %v2535
      %v2568 = vunpack.c.l.b16 %v2536
      %v2569 = vunpack.c.l.b16 %v2537
      %v2570 = vunpack.c.l.b16 %v2538
      %v2571 = vunpack.c.l.b16 %v2539
      %v2572 = vunpack.c.l.b16 %v2540
      %v2573 = vunpack.c.l.b16 %v2541
      %v2574 = vunpack.c.l.b16 %v2542
      %v2575 = vpack.c.b16 %v2560, %v2559
      %v2576 = vpack.c.b16 %v2562, %v2561
      %v2577 = vpack.c.b16 %v2564, %v2563
      %v2578 = vpack.c.b16 %v2566, %v2565
      %v2579 = vpack.c.b16 %v2568, %v2567
      %v2580 = vpack.c.b16 %v2570, %v2569
      %v2581 = vpack.c.b16 %v2572, %v2571
      %v2582 = vpack.c.b16 %v2574, %v2573
      %2591 = vmatprep.subr.bf16.mxu0 0
      %2592 = vmatpush1.bf16.msra.mxu0 %v2575
      %2593 = vmatprep.subr.bf16.mxu0 0
      %2594 = vmatpush1.bf16.msra.mxu0 %v2576
      %2595 = vmatprep.subr.bf16.mxu0 0
      %2596 = vmatpush1.bf16.msra.mxu0 %v2577
      %2597 = vmatprep.subr.bf16.mxu0 0
      %2598 = vmatpush1.bf16.msra.mxu0 %v2578
      %2599 = vmatprep.subr.bf16.mxu0 0
      %2600 = vmatpush1.bf16.msra.mxu0 %v2579
      %2601 = vmatprep.subr.bf16.mxu0 0
      %2602 = vmatpush1.bf16.msra.mxu0 %v2580
      %2603 = vmatprep.subr.bf16.mxu0 0
      %2604 = vmatpush1.bf16.msra.mxu0 %v2581
      %2605 = vmatprep.subr.bf16.mxu0 0
      %2606 = vmatpush1.bf16.msra.mxu0 %v2582
      %2607 = vmatprep.subr.bf16.mxu0 0
      %2608 = vmatpush1.bf16.msra.mxu0 0
      %2609 = vmatprep.subr.bf16.mxu0 0
      %2610 = vmatpush1.bf16.msra.mxu0 0
      %2611 = vmatprep.subr.bf16.mxu0 0
      %2612 = vmatpush1.bf16.msra.mxu0 0
      %2613 = vmatprep.subr.bf16.mxu0 0
      %2614 = vmatpush1.bf16.msra.mxu0 0
      %2615 = vmatprep.subr.bf16.mxu0 0
      %2616 = vmatpush1.bf16.msra.mxu0 0
      %2617 = vmatprep.subr.bf16.mxu0 0
      %2618 = vmatpush1.bf16.msra.mxu0 0
      %2619 = vmatprep.subr.bf16.mxu0 0
      %2620 = vmatpush1.bf16.msra.mxu0 0
      %2621 = vmatprep.subr.bf16.mxu0 0
      %2622 = vmatpush1.bf16.msra.mxu0 0
      %2623 = vmatprep.mubr.bf16.mxu0 0
      %2624 = vmatmul.mubr.bf16.gmra.mrb[0].mxu0 %v2508
      %v2625 = vpop.f32.mrb[0].mxu0
      %v2626 = vadd.f32 0.0, %v2625
      %v2627 = vpop.f32.mrb[0].mxu0
      %v2628 = vpop.f32.mrb[0].mxu0
      %v2629 = vadd.f32 0.0, %v2628
      %v2630 = vpop.f32.mrb[0].mxu0
      %2631 = vmatprep.mubr.bf16.mxu0 0
      %2632 = vmatmul.mubr.bf16.gmra.mrb[0].mxu0 %v2509
      %v2633 = vpop.f32.mrb[0].mxu0
      %v2634 = vadd.f32 0.0, %v2633
      %v2635 = vpop.f32.mrb[0].mxu0
      %v2636 = vpop.f32.mrb[0].mxu0
      %v2637 = vadd.f32 0.0, %v2636
      %v2638 = vpop.f32.mrb[0].mxu0
      %2639 = vmatprep.mubr.bf16.mxu0 0
      %2640 = vmatmul.mubr.bf16.gmra.mrb[0].mxu0 %v2510
      %v2641 = vpop.f32.mrb[0].mxu0
      %v2642 = vadd.f32 0.0, %v2641
      %v2643 = vpop.f32.mrb[0].mxu0
      %v2644 = vpop.f32.mrb[0].mxu0
      %v2645 = vadd.f32 0.0, %v2644
      %v2646 = vpop.f32.mrb[0].mxu0
      %2647 = vmatprep.mubr.bf16.mxu0 0
      %2648 = vmatmul.mubr.bf16.gmra.mrb[0].mxu0 %v2511
      %v2649 = vpop.f32.mrb[0].mxu0
      %v2650 = vadd.f32 0.0, %v2649
      %v2651 = vpop.f32.mrb[0].mxu0
      %v2652 = vpop.f32.mrb[0].mxu0
      %v2653 = vadd.f32 0.0, %v2652
      %v2654 = vpop.f32.mrb[0].mxu0
      %2655 = vmatprep.mubr.bf16.mxu0 0
      %2656 = vmatmul.mubr.bf16.gmra.mrb[0].mxu0 %v2512
      %v2657 = vpop.f32.mrb[0].mxu0
      %v2658 = vadd.f32 0.0, %v2657
      %v2659 = vpop.f32.mrb[0].mxu0
      %v2660 = vpop.f32.mrb[0].mxu0
      %v2661 = vadd.f32 0.0, %v2660
      %v2662 = vpop.f32.mrb[0].mxu0
      %2663 = vmatprep.mubr.bf16.mxu0 0
      %2664 = vmatmul.mubr.bf16.gmra.mrb[0].mxu0 %v2513
      %v2665 = vpop.f32.mrb[0].mxu0
      %v2666 = vadd.f32 0.0, %v2665
      %v2667 = vpop.f32.mrb[0].mxu0
      %v2668 = vpop.f32.mrb[0].mxu0
      %v2669 = vadd.f32 0.0, %v2668
      %v2670 = vpop.f32.mrb[0].mxu0
      %2671 = vmatprep.mubr.bf16.mxu0 0
      %2672 = vmatmul.mubr.bf16.gmra.mrb[0].mxu0 %v2514
      %v2673 = vpop.f32.mrb[0].mxu0
      %v2674 = vadd.f32 0.0, %v2673
      %v2675 = vpop.f32.mrb[0].mxu0
      %v2676 = vpop.f32.mrb[0].mxu0
      %v2677 = vadd.f32 0.0, %v2676
      %v2678 = vpop.f32.mrb[0].mxu0
      %2679 = vmatprep.mubr.bf16.mxu0 0
      %2680 = vmatmul.mubr.bf16.gmra.mrb[0].mxu0 %v2515
      %v2681 = vpop.f32.mrb[0].mxu0
      %v2682 = vadd.f32 0.0, %v2681
      %v2683 = vpop.f32.mrb[0].mxu0
      %v2684 = vpop.f32.mrb[0].mxu0
      %v2685 = vadd.f32 0.0, %v2684
      %v2686 = vpop.f32.mrb[0].mxu0
      %2687 = vmatprep.mubr.bf16.mxu0 0
      %2688 = vmatmul.mubr.bf16.gmra.mrb[0].mxu0 %v2516
      %v2689 = vpop.f32.mrb[0].mxu0
      %v2690 = vadd.f32 0.0, %v2689
      %v2691 = vpop.f32.mrb[0].mxu0
      %v2692 = vpop.f32.mrb[0].mxu0
      %v2693 = vadd.f32 0.0, %v2692
      %v2694 = vpop.f32.mrb[0].mxu0
      %2695 = vmatprep.mubr.bf16.mxu0 0
      %2696 = vmatmul.mubr.bf16.gmra.mrb[0].mxu0 %v2517
      %v2697 = vpop.f32.mrb[0].mxu0
      %v2698 = vadd.f32 0.0, %v2697
      %v2699 = vpop.f32.mrb[0].mxu0
      %v2700 = vpop.f32.mrb[0].mxu0
      %v2701 = vadd.f32 0.0, %v2700
      %v2702 = vpop.f32.mrb[0].mxu0
      %2703 = vmatprep.mubr.bf16.mxu0 0
      %2704 = vmatmul.mubr.bf16.gmra.mrb[0].mxu0 %v2518
      %v2705 = vpop.f32.mrb[0].mxu0
      %v2706 = vadd.f32 0.0, %v2705
      %v2707 = vpop.f32.mrb[0].mxu0
      %v2708 = vpop.f32.mrb[0].mxu0
      %v2709 = vadd.f32 0.0, %v2708
      %v2710 = vpop.f32.mrb[0].mxu0
      %2711 = vmatprep.mubr.bf16.mxu0 0
      %2712 = vmatmul.mubr.bf16.gmra.mrb[0].mxu0 %v2519
      %v2713 = vpop.f32.mrb[0].mxu0
      %v2714 = vadd.f32 0.0, %v2713
      %v2715 = vpop.f32.mrb[0].mxu0
      %v2716 = vpop.f32.mrb[0].mxu0
      %v2717 = vadd.f32 0.0, %v2716
      %v2718 = vpop.f32.mrb[0].mxu0
      %2719 = vmatprep.mubr.bf16.mxu0 0
      %2720 = vmatmul.mubr.bf16.gmra.mrb[0].mxu0 %v2520
      %v2721 = vpop.f32.mrb[0].mxu0
      %v2722 = vadd.f32 0.0, %v2721
      %v2723 = vpop.f32.mrb[0].mxu0
      %v2724 = vpop.f32.mrb[0].mxu0
      %v2725 = vadd.f32 0.0, %v2724
      %v2726 = vpop.f32.mrb[0].mxu0
      %2727 = vmatprep.mubr.bf16.mxu0 0
      %2728 = vmatmul.mubr.bf16.gmra.mrb[0].mxu0 %v2521
      %v2729 = vpop.f32.mrb[0].mxu0
      %v2730 = vadd.f32 0.0, %v2729
      %v2731 = vpop.f32.mrb[0].mxu0
      %v2732 = vpop.f32.mrb[0].mxu0
      %v2733 = vadd.f32 0.0, %v2732
      %v2734 = vpop.f32.mrb[0].mxu0
      %2735 = vmatprep.mubr.bf16.mxu0 0
      %2736 = vmatmul.mubr.bf16.gmra.mrb[0].mxu0 %v2522
      %v2737 = vpop.f32.mrb[0].mxu0
      %v2738 = vadd.f32 0.0, %v2737
      %v2739 = vpop.f32.mrb[0].mxu0
      %v2740 = vpop.f32.mrb[0].mxu0
      %v2741 = vadd.f32 0.0, %v2740
      %v2742 = vpop.f32.mrb[0].mxu0
      %2743 = vmatprep.mubr.bf16.mxu0 0
      %2744 = vmatmul.mubr.bf16.gmra.mrb[0].mxu0 %v2523
      %v2745 = vpop.f32.mrb[0].mxu0
      %v2746 = vadd.f32 0.0, %v2745
      %v2747 = vpop.f32.mrb[0].mxu0
      %v2748 = vpop.f32.mrb[0].mxu0
      %v2749 = vadd.f32 0.0, %v2748
      %v2750 = vpop.f32.mrb[0].mxu0
      %2751 = vmatprep.mubr.bf16.mxu0 0
      %2752 = vmatmul.mubr.bf16.gmra.mrb[0].mxu0 %v2524
      %v2753 = vpop.f32.mrb[0].mxu0
      %v2754 = vadd.f32 0.0, %v2753
      %v2755 = vpop.f32.mrb[0].mxu0
      %v2756 = vpop.f32.mrb[0].mxu0
      %v2757 = vadd.f32 0.0, %v2756
      %v2758 = vpop.f32.mrb[0].mxu0
      %2759 = vmatprep.mubr.bf16.mxu0 0
      %2760 = vmatmul.mubr.bf16.gmra.mrb[0].mxu0 %v2525
      %v2761 = vpop.f32.mrb[0].mxu0
      %v2762 = vadd.f32 0.0, %v2761
      %v2763 = vpop.f32.mrb[0].mxu0
      %v2764 = vpop.f32.mrb[0].mxu0
      %v2765 = vadd.f32 0.0, %v2764
      %v2766 = vpop.f32.mrb[0].mxu0
      %2767 = vdwg.mxu0
      %v2768 = vadd.f32 %v2436, %v2626
      %v2769 = vadd.f32 %v2437, %v2629
      %v2770 = vadd.f32 %v2438, %v2634
      %v2771 = vadd.f32 %v2439, %v2637
      %v2772 = vadd.f32 %v2440, %v2642
      %v2773 = vadd.f32 %v2441, %v2645
      %v2774 = vadd.f32 %v2442, %v2650
      %v2775 = vadd.f32 %v2443, %v2653
      %v2776 = vadd.f32 %v2444, %v2658
      %v2777 = vadd.f32 %v2445, %v2661
      %v2778 = vadd.f32 %v2446, %v2666
      %v2779 = vadd.f32 %v2447, %v2669
      %v2780 = vadd.f32 %v2448, %v2674
      %v2781 = vadd.f32 %v2449, %v2677
      %v2782 = vadd.f32 %v2450, %v2682
      %v2783 = vadd.f32 %v2451, %v2685
      %v2784 = vadd.f32 %v2452, %v2690
      %v2785 = vadd.f32 %v2453, %v2693
      %v2786 = vadd.f32 %v2454, %v2698
      %v2787 = vadd.f32 %v2455, %v2701
      %v2788 = vadd.f32 %v2456, %v2706
      %v2789 = vadd.f32 %v2457, %v2709
      %v2790 = vadd.f32 %v2458, %v2714
      %v2791 = vadd.f32 %v2459, %v2717
      %v2792 = vadd.f32 %v2460, %v2722
      %v2793 = vadd.f32 %v2461, %v2725
      %v2794 = vadd.f32 %v2462, %v2730
      %v2795 = vadd.f32 %v2463, %v2733
      %v2796 = vadd.f32 %v2464, %v2738
      %v2797 = vadd.f32 %v2465, %v2741
      %v2798 = vadd.f32 %v2466, %v2746
      %v2799 = vadd.f32 %v2467, %v2749
      %v2800 = vadd.f32 %v2468, %v2754
      %v2801 = vadd.f32 %v2469, %v2757
      %v2802 = vadd.f32 %v2470, %v2762
      %v2803 = vadd.f32 %v2471, %v2765
      %v2804 = vld [vmem:[%s214 + $0x26] sm:$0xff]
      %v2805 = vld [vmem:[%s214 + $0x2e] sm:$0xff]
      %v2806 = vld [vmem:[%s214 + $0x36] sm:$0xff]
      %v2807 = vld [vmem:[%s214 + $0x3e] sm:$0xff]
      %v2808 = vld [vmem:[%s214 + $0x46] sm:$0xff]
      %v2809 = vld [vmem:[%s214 + $0x4e] sm:$0xff]
      %v2810 = vld [vmem:[%s214 + $0x56] sm:$0xff]
      %v2811 = vld [vmem:[%s214 + $0x5e] sm:$0xff]
      %v2812 = vld [vmem:[%s214 + $0x66] sm:$0xff]
      %v2813 = vld [vmem:[%s214 + $0x6e] sm:$0xff]
      %v2814 = vld [vmem:[%s214 + $0x76] sm:$0xff]
      %v2815 = vld [vmem:[%s214 + $0x7e] sm:$0xff]
      %v2816 = vld [vmem:[%s214 + $0x86] sm:$0xff]
      %v2817 = vld [vmem:[%s214 + $0x8e] sm:$0xff]
      %v2818 = vld [vmem:[%s214 + $0x96] sm:$0xff]
      %v2819 = vld [vmem:[%s214 + $0x9e] sm:$0xff]
      %v2820 = vld [vmem:[%s214 + $0xa6] sm:$0xff]
      %v2821 = vld [vmem:[%s214 + $0xae] sm:$0xff]
      %v2822 = vld [vmem:[%s214 + $0xb6] sm:$0xff]
      %v2823 = vld [vmem:[%s214 + $0xbe] sm:$0xff]
      %v2824 = vld [vmem:[%s214 + $0xc6] sm:$0xff]
      %v2825 = vld [vmem:[%s214 + $0xce] sm:$0xff]
      %v2826 = vld [vmem:[%s214 + $0xd6] sm:$0xff]
      %v2827 = vld [vmem:[%s214 + $0xde] sm:$0xff]
      %v2828 = vld [vmem:[%s214 + $0xe6] sm:$0xff]
      %v2829 = vld [vmem:[%s214 + $0xee] sm:$0xff]
      %v2830 = vld [vmem:[%s214 + $0xf6] sm:$0xff]
      %v2831 = vld [vmem:[%s214 + $0xfe] sm:$0xff]
      %v2832 = vld [vmem:[%s214 + $0x106] sm:$0xff]
      %v2833 = vld [vmem:[%s214 + $0x10e] sm:$0xff]
      %v2834 = vld [vmem:[%s214 + $0x116] sm:$0xff]
      %v2835 = vld [vmem:[%s214 + $0x11e] sm:$0xff]
      %v2836 = vld [vmem:[%s214 + $0x126] sm:$0xff]
      %v2837 = vld [vmem:[%s214 + $0x12e] sm:$0xff]
      %v2838 = vld [vmem:[%s214 + $0x136] sm:$0xff]
      %v2839 = vld [vmem:[%s214 + $0x13e] sm:$0xff]
      %v2840 = vpack.c.bf16 %v2805, %v2804
      %v2841 = vpack.c.bf16 %v2807, %v2806
      %v2842 = vpack.c.bf16 %v2809, %v2808
      %v2843 = vpack.c.bf16 %v2811, %v2810
      %v2844 = vpack.c.bf16 %v2813, %v2812
      %v2845 = vpack.c.bf16 %v2815, %v2814
      %v2846 = vpack.c.bf16 %v2817, %v2816
      %v2847 = vpack.c.bf16 %v2819, %v2818
      %v2848 = vpack.c.bf16 %v2821, %v2820
      %v2849 = vpack.c.bf16 %v2823, %v2822
      %v2850 = vpack.c.bf16 %v2825, %v2824
      %v2851 = vpack.c.bf16 %v2827, %v2826
      %v2852 = vpack.c.bf16 %v2829, %v2828
      %v2853 = vpack.c.bf16 %v2831, %v2830
      %v2854 = vpack.c.bf16 %v2833, %v2832
      %v2855 = vpack.c.bf16 %v2835, %v2834
      %v2856 = vpack.c.bf16 %v2837, %v2836
      %v2857 = vpack.c.bf16 %v2839, %v2838
      %s2858 = scalar_lea.vmem %s1, 512
      %v2859 = vld [vmem:[%s2858] sm:$0xf]
      %v2860 = vld [vmem:[%s2858 + $0x4] sm:$0xf]
      %v2861 = vld [vmem:[%s2858 + $0x8] sm:$0xf]
      %v2862 = vld [vmem:[%s2858 + $0xc] sm:$0xf]
      %v2863 = vld [vmem:[%s2858 + $0x10] sm:$0xf]
      %v2864 = vld [vmem:[%s2858 + $0x14] sm:$0xf]
      %v2865 = vld [vmem:[%s2858 + $0x18] sm:$0xf]
      %v2866 = vld [vmem:[%s2858 + $0x1c] sm:$0xf]
      %v2867 = vld [vmem:[%s2858 + $0x20] sm:$0xf]
      %v2868 = vld [vmem:[%s2858 + $0x24] sm:$0xf]
      %v2869 = vld [vmem:[%s2858 + $0x28] sm:$0xf]
      %v2870 = vld [vmem:[%s2858 + $0x2c] sm:$0xf]
      %v2871 = vld [vmem:[%s2858 + $0x30] sm:$0xf]
      %v2872 = vld [vmem:[%s2858 + $0x34] sm:$0xf]
      %v2873 = vld [vmem:[%s2858 + $0x38] sm:$0xf]
      %v2874 = vld [vmem:[%s2858 + $0x3c] sm:$0xf]
      %v2891 = vunpack.c.l.b16 %v2859
      %v2892 = vunpack.c.l.b16 %v2860
      %v2893 = vunpack.c.l.b16 %v2861
      %v2894 = vunpack.c.l.b16 %v2862
      %v2895 = vunpack.c.l.b16 %v2863
      %v2896 = vunpack.c.l.b16 %v2864
      %v2897 = vunpack.c.l.b16 %v2865
      %v2898 = vunpack.c.l.b16 %v2866
      %v2899 = vunpack.c.l.b16 %v2867
      %v2900 = vunpack.c.l.b16 %v2868
      %v2901 = vunpack.c.l.b16 %v2869
      %v2902 = vunpack.c.l.b16 %v2870
      %v2903 = vunpack.c.l.b16 %v2871
      %v2904 = vunpack.c.l.b16 %v2872
      %v2905 = vunpack.c.l.b16 %v2873
      %v2906 = vunpack.c.l.b16 %v2874
      %v2907 = vpack.c.b16 %v2892, %v2891
      %v2908 = vpack.c.b16 %v2894, %v2893
      %v2909 = vpack.c.b16 %v2896, %v2895
      %v2910 = vpack.c.b16 %v2898, %v2897
      %v2911 = vpack.c.b16 %v2900, %v2899
      %v2912 = vpack.c.b16 %v2902, %v2901
      %v2913 = vpack.c.b16 %v2904, %v2903
      %v2914 = vpack.c.b16 %v2906, %v2905
      %2923 = vmatprep.subr.bf16.mxu0 0
      %2924 = vmatpush1.bf16.msra.mxu0 %v2907
      %2925 = vmatprep.subr.bf16.mxu0 0
      %2926 = vmatpush1.bf16.msra.mxu0 %v2908
      %2927 = vmatprep.subr.bf16.mxu0 0
      %2928 = vmatpush1.bf16.msra.mxu0 %v2909
      %2929 = vmatprep.subr.bf16.mxu0 0
      %2930 = vmatpush1.bf16.msra.mxu0 %v2910
      %2931 = vmatprep.subr.bf16.mxu0 0
      %2932 = vmatpush1.bf16.msra.mxu0 %v2911
      %2933 = vmatprep.subr.bf16.mxu0 0
      %2934 = vmatpush1.bf16.msra.mxu0 %v2912
      %2935 = vmatprep.subr.bf16.mxu0 0
      %2936 = vmatpush1.bf16.msra.mxu0 %v2913
      %2937 = vmatprep.subr.bf16.mxu0 0
      %2938 = vmatpush1.bf16.msra.mxu0 %v2914
      %2939 = vmatprep.subr.bf16.mxu0 0
      %2940 = vmatpush1.bf16.msra.mxu0 0
      %2941 = vmatprep.subr.bf16.mxu0 0
      %2942 = vmatpush1.bf16.msra.mxu0 0
      %2943 = vmatprep.subr.bf16.mxu0 0
      %2944 = vmatpush1.bf16.msra.mxu0 0
      %2945 = vmatprep.subr.bf16.mxu0 0
      %2946 = vmatpush1.bf16.msra.mxu0 0
      %2947 = vmatprep.subr.bf16.mxu0 0
      %2948 = vmatpush1.bf16.msra.mxu0 0
      %2949 = vmatprep.subr.bf16.mxu0 0
      %2950 = vmatpush1.bf16.msra.mxu0 0
      %2951 = vmatprep.subr.bf16.mxu0 0
      %2952 = vmatpush1.bf16.msra.mxu0 0
      %2953 = vmatprep.subr.bf16.mxu0 0
      %2954 = vmatpush1.bf16.msra.mxu0 0
      %2955 = vmatprep.mubr.bf16.mxu0 0
      %2956 = vmatmul.mubr.bf16.gmra.mrb[0].mxu0 %v2840
      %v2957 = vpop.f32.mrb[0].mxu0
      %v2958 = vadd.f32 0.0, %v2957
      %v2959 = vpop.f32.mrb[0].mxu0
      %v2960 = vpop.f32.mrb[0].mxu0
      %v2961 = vadd.f32 0.0, %v2960
      %v2962 = vpop.f32.mrb[0].mxu0
      %2963 = vmatprep.mubr.bf16.mxu0 0
      %2964 = vmatmul.mubr.bf16.gmra.mrb[0].mxu0 %v2841
      %v2965 = vpop.f32.mrb[0].mxu0
      %v2966 = vadd.f32 0.0, %v2965
      %v2967 = vpop.f32.mrb[0].mxu0
      %v2968 = vpop.f32.mrb[0].mxu0
      %v2969 = vadd.f32 0.0, %v2968
      %v2970 = vpop.f32.mrb[0].mxu0
      %2971 = vmatprep.mubr.bf16.mxu0 0
      %2972 = vmatmul.mubr.bf16.gmra.mrb[0].mxu0 %v2842
      %v2973 = vpop.f32.mrb[0].mxu0
      %v2974 = vadd.f32 0.0, %v2973
      %v2975 = vpop.f32.mrb[0].mxu0
      %v2976 = vpop.f32.mrb[0].mxu0
      %v2977 = vadd.f32 0.0, %v2976
      %v2978 = vpop.f32.mrb[0].mxu0
      %2979 = vmatprep.mubr.bf16.mxu0 0
      %2980 = vmatmul.mubr.bf16.gmra.mrb[0].mxu0 %v2843
      %v2981 = vpop.f32.mrb[0].mxu0
      %v2982 = vadd.f32 0.0, %v2981
      %v2983 = vpop.f32.mrb[0].mxu0
      %v2984 = vpop.f32.mrb[0].mxu0
      %v2985 = vadd.f32 0.0, %v2984
      %v2986 = vpop.f32.mrb[0].mxu0
      %2987 = vmatprep.mubr.bf16.mxu0 0
      %2988 = vmatmul.mubr.bf16.gmra.mrb[0].mxu0 %v2844
      %v2989 = vpop.f32.mrb[0].mxu0
      %v2990 = vadd.f32 0.0, %v2989
      %v2991 = vpop.f32.mrb[0].mxu0
      %v2992 = vpop.f32.mrb[0].mxu0
      %v2993 = vadd.f32 0.0, %v2992
      %v2994 = vpop.f32.mrb[0].mxu0
      %2995 = vmatprep.mubr.bf16.mxu0 0
      %2996 = vmatmul.mubr.bf16.gmra.mrb[0].mxu0 %v2845
      %v2997 = vpop.f32.mrb[0].mxu0
      %v2998 = vadd.f32 0.0, %v2997
      %v2999 = vpop.f32.mrb[0].mxu0
      %v3000 = vpop.f32.mrb[0].mxu0
      %v3001 = vadd.f32 0.0, %v3000
      %v3002 = vpop.f32.mrb[0].mxu0
      %3003 = vmatprep.mubr.bf16.mxu0 0
      %3004 = vmatmul.mubr.bf16.gmra.mrb[0].mxu0 %v2846
      %v3005 = vpop.f32.mrb[0].mxu0
      %v3006 = vadd.f32 0.0, %v3005
      %v3007 = vpop.f32.mrb[0].mxu0
      %v3008 = vpop.f32.mrb[0].mxu0
      %v3009 = vadd.f32 0.0, %v3008
      %v3010 = vpop.f32.mrb[0].mxu0
      %3011 = vmatprep.mubr.bf16.mxu0 0
      %3012 = vmatmul.mubr.bf16.gmra.mrb[0].mxu0 %v2847
      %v3013 = vpop.f32.mrb[0].mxu0
      %v3014 = vadd.f32 0.0, %v3013
      %v3015 = vpop.f32.mrb[0].mxu0
      %v3016 = vpop.f32.mrb[0].mxu0
      %v3017 = vadd.f32 0.0, %v3016
      %v3018 = vpop.f32.mrb[0].mxu0
      %3019 = vmatprep.mubr.bf16.mxu0 0
      %3020 = vmatmul.mubr.bf16.gmra.mrb[0].mxu0 %v2848
      %v3021 = vpop.f32.mrb[0].mxu0
      %v3022 = vadd.f32 0.0, %v3021
      %v3023 = vpop.f32.mrb[0].mxu0
      %v3024 = vpop.f32.mrb[0].mxu0
      %v3025 = vadd.f32 0.0, %v3024
      %v3026 = vpop.f32.mrb[0].mxu0
      %3027 = vmatprep.mubr.bf16.mxu0 0
      %3028 = vmatmul.mubr.bf16.gmra.mrb[0].mxu0 %v2849
      %v3029 = vpop.f32.mrb[0].mxu0
      %v3030 = vadd.f32 0.0, %v3029
      %v3031 = vpop.f32.mrb[0].mxu0
      %v3032 = vpop.f32.mrb[0].mxu0
      %v3033 = vadd.f32 0.0, %v3032
      %v3034 = vpop.f32.mrb[0].mxu0
      %3035 = vmatprep.mubr.bf16.mxu0 0
      %3036 = vmatmul.mubr.bf16.gmra.mrb[0].mxu0 %v2850
      %v3037 = vpop.f32.mrb[0].mxu0
      %v3038 = vadd.f32 0.0, %v3037
      %v3039 = vpop.f32.mrb[0].mxu0
      %v3040 = vpop.f32.mrb[0].mxu0
      %v3041 = vadd.f32 0.0, %v3040
      %v3042 = vpop.f32.mrb[0].mxu0
      %3043 = vmatprep.mubr.bf16.mxu0 0
      %3044 = vmatmul.mubr.bf16.gmra.mrb[0].mxu0 %v2851
      %v3045 = vpop.f32.mrb[0].mxu0
      %v3046 = vadd.f32 0.0, %v3045
      %v3047 = vpop.f32.mrb[0].mxu0
      %v3048 = vpop.f32.mrb[0].mxu0
      %v3049 = vadd.f32 0.0, %v3048
      %v3050 = vpop.f32.mrb[0].mxu0
      %3051 = vmatprep.mubr.bf16.mxu0 0
      %3052 = vmatmul.mubr.bf16.gmra.mrb[0].mxu0 %v2852
      %v3053 = vpop.f32.mrb[0].mxu0
      %v3054 = vadd.f32 0.0, %v3053
      %v3055 = vpop.f32.mrb[0].mxu0
      %v3056 = vpop.f32.mrb[0].mxu0
      %v3057 = vadd.f32 0.0, %v3056
      %v3058 = vpop.f32.mrb[0].mxu0
      %3059 = vmatprep.mubr.bf16.mxu0 0
      %3060 = vmatmul.mubr.bf16.gmra.mrb[0].mxu0 %v2853
      %v3061 = vpop.f32.mrb[0].mxu0
      %v3062 = vadd.f32 0.0, %v3061
      %v3063 = vpop.f32.mrb[0].mxu0
      %v3064 = vpop.f32.mrb[0].mxu0
      %v3065 = vadd.f32 0.0, %v3064
      %v3066 = vpop.f32.mrb[0].mxu0
      %3067 = vmatprep.mubr.bf16.mxu0 0
      %3068 = vmatmul.mubr.bf16.gmra.mrb[0].mxu0 %v2854
      %v3069 = vpop.f32.mrb[0].mxu0
      %v3070 = vadd.f32 0.0, %v3069
      %v3071 = vpop.f32.mrb[0].mxu0
      %v3072 = vpop.f32.mrb[0].mxu0
      %v3073 = vadd.f32 0.0, %v3072
      %v3074 = vpop.f32.mrb[0].mxu0
      %3075 = vmatprep.mubr.bf16.mxu0 0
      %3076 = vmatmul.mubr.bf16.gmra.mrb[0].mxu0 %v2855
      %v3077 = vpop.f32.mrb[0].mxu0
      %v3078 = vadd.f32 0.0, %v3077
      %v3079 = vpop.f32.mrb[0].mxu0
      %v3080 = vpop.f32.mrb[0].mxu0
      %v3081 = vadd.f32 0.0, %v3080
      %v3082 = vpop.f32.mrb[0].mxu0
      %3083 = vmatprep.mubr.bf16.mxu0 0
      %3084 = vmatmul.mubr.bf16.gmra.mrb[0].mxu0 %v2856
      %v3085 = vpop.f32.mrb[0].mxu0
      %v3086 = vadd.f32 0.0, %v3085
      %v3087 = vpop.f32.mrb[0].mxu0
      %v3088 = vpop.f32.mrb[0].mxu0
      %v3089 = vadd.f32 0.0, %v3088
      %v3090 = vpop.f32.mrb[0].mxu0
      %3091 = vmatprep.mubr.bf16.mxu0 0
      %3092 = vmatmul.mubr.bf16.gmra.mrb[0].mxu0 %v2857
      %v3093 = vpop.f32.mrb[0].mxu0
      %v3094 = vadd.f32 0.0, %v3093
      %v3095 = vpop.f32.mrb[0].mxu0
      %v3096 = vpop.f32.mrb[0].mxu0
      %v3097 = vadd.f32 0.0, %v3096
      %v3098 = vpop.f32.mrb[0].mxu0
      %3099 = vdwg.mxu0
      %v3100 = vadd.f32 %v2768, %v2958
      %v3101 = vadd.f32 %v2769, %v2961
      %v3102 = vadd.f32 %v2770, %v2966
      %v3103 = vadd.f32 %v2771, %v2969
      %v3104 = vadd.f32 %v2772, %v2974
      %v3105 = vadd.f32 %v2773, %v2977
      %v3106 = vadd.f32 %v2774, %v2982
      %v3107 = vadd.f32 %v2775, %v2985
      %v3108 = vadd.f32 %v2776, %v2990
      %v3109 = vadd.f32 %v2777, %v2993
      %v3110 = vadd.f32 %v2778, %v2998
      %v3111 = vadd.f32 %v2779, %v3001
      %v3112 = vadd.f32 %v2780, %v3006
      %v3113 = vadd.f32 %v2781, %v3009
      %v3114 = vadd.f32 %v2782, %v3014
      %v3115 = vadd.f32 %v2783, %v3017
      %v3116 = vadd.f32 %v2784, %v3022
      %v3117 = vadd.f32 %v2785, %v3025
      %v3118 = vadd.f32 %v2786, %v3030
      %v3119 = vadd.f32 %v2787, %v3033
      %v3120 = vadd.f32 %v2788, %v3038
      %v3121 = vadd.f32 %v2789, %v3041
      %v3122 = vadd.f32 %v2790, %v3046
      %v3123 = vadd.f32 %v2791, %v3049
      %v3124 = vadd.f32 %v2792, %v3054
      %v3125 = vadd.f32 %v2793, %v3057
      %v3126 = vadd.f32 %v2794, %v3062
      %v3127 = vadd.f32 %v2795, %v3065
      %v3128 = vadd.f32 %v2796, %v3070
      %v3129 = vadd.f32 %v2797, %v3073
      %v3130 = vadd.f32 %v2798, %v3078
      %v3131 = vadd.f32 %v2799, %v3081
      %v3132 = vadd.f32 %v2800, %v3086
      %v3133 = vadd.f32 %v2801, %v3089
      %v3134 = vadd.f32 %v2802, %v3094
      %v3135 = vadd.f32 %v2803, %v3097
      %v3136 = vld [vmem:[%s2] sm:$0xff]
      %v3137 = vld [vmem:[%s2 + $0x8] sm:$0xff]
      %v3138 = vld [vmem:[%s2 + $0x10] sm:$0xff]
      %v3139 = vld [vmem:[%s2 + $0x18] sm:$0xff]
      %v3140 = vld [vmem:[%s2 + $0x20] sm:$0xff]
      %v3141 = vld [vmem:[%s2 + $0x28] sm:$0xff]
      %v3142 = vld [vmem:[%s2 + $0x30] sm:$0xff]
      %v3143 = vld [vmem:[%s2 + $0x38] sm:$0xff]
      %v3144 = vld [vmem:[%s2 + $0x40] sm:$0xff]
      %v3145 = vld [vmem:[%s2 + $0x48] sm:$0xff]
      %v3146 = vld [vmem:[%s2 + $0x50] sm:$0xff]
      %v3147 = vld [vmem:[%s2 + $0x58] sm:$0xff]
      %v3148 = vld [vmem:[%s2 + $0x60] sm:$0xff]
      %v3149 = vld [vmem:[%s2 + $0x68] sm:$0xff]
      %v3150 = vld [vmem:[%s2 + $0x70] sm:$0xff]
      %v3151 = vld [vmem:[%s2 + $0x78] sm:$0xff]
      %v3152 = vld [vmem:[%s2 + $0x80] sm:$0xff]
      %v3153 = vld [vmem:[%s2 + $0x88] sm:$0xff]
      %v3154 = vld [vmem:[%s2 + $0x90] sm:$0xff]
      %v3155 = vld [vmem:[%s2 + $0x98] sm:$0xff]
      %v3156 = vld [vmem:[%s2 + $0xa0] sm:$0xff]
      %v3157 = vld [vmem:[%s2 + $0xa8] sm:$0xff]
      %v3158 = vld [vmem:[%s2 + $0xb0] sm:$0xff]
      %v3159 = vld [vmem:[%s2 + $0xb8] sm:$0xff]
      %v3160 = vld [vmem:[%s2 + $0xc0] sm:$0xff]
      %v3161 = vld [vmem:[%s2 + $0xc8] sm:$0xff]
      %v3162 = vld [vmem:[%s2 + $0xd0] sm:$0xff]
      %v3163 = vld [vmem:[%s2 + $0xd8] sm:$0xff]
      %v3164 = vld [vmem:[%s2 + $0xe0] sm:$0xff]
      %v3165 = vld [vmem:[%s2 + $0xe8] sm:$0xff]
      %v3166 = vld [vmem:[%s2 + $0xf0] sm:$0xff]
      %v3167 = vld [vmem:[%s2 + $0xf8] sm:$0xff]
      %v3168 = vld [vmem:[%s2 + $0x100] sm:$0xff]
      %v3169 = vld [vmem:[%s2 + $0x108] sm:$0xff]
      %v3170 = vld [vmem:[%s2 + $0x110] sm:$0xff]
      %v3171 = vld [vmem:[%s2 + $0x118] sm:$0xff]
      %3173 = vset.pattern.permute.xlu0 0
      %3174 = vperm.xlu0 %3173, %v3136
      %v3175 = vpop.permute.xlu0 %3174
      %3178 = vset.pattern.permute.xlu0 0
      %3179 = vperm.xlu0 %3178, %v3137
      %v3180 = vpop.permute.xlu0 %3179
      %3183 = vset.pattern.permute.xlu0 0
      %3184 = vperm.xlu0 %3183, %v3138
      %v3185 = vpop.permute.xlu0 %3184
      %3188 = vset.pattern.permute.xlu0 0
      %3189 = vperm.xlu0 %3188, %v3139
      %v3190 = vpop.permute.xlu0 %3189
      %3193 = vset.pattern.permute.xlu0 0
      %3194 = vperm.xlu0 %3193, %v3140
      %v3195 = vpop.permute.xlu0 %3194
      %3198 = vset.pattern.permute.xlu0 0
      %3199 = vperm.xlu0 %3198, %v3141
      %v3200 = vpop.permute.xlu0 %3199
      %3203 = vset.pattern.permute.xlu0 0
      %3204 = vperm.xlu0 %3203, %v3142
      %v3205 = vpop.permute.xlu0 %3204
      %3208 = vset.pattern.permute.xlu0 0
      %3209 = vperm.xlu0 %3208, %v3143
      %v3210 = vpop.permute.xlu0 %3209
      %3213 = vset.pattern.permute.xlu0 0
      %3214 = vperm.xlu0 %3213, %v3144
      %v3215 = vpop.permute.xlu0 %3214
      %3218 = vset.pattern.permute.xlu0 0
      %3219 = vperm.xlu0 %3218, %v3145
      %v3220 = vpop.permute.xlu0 %3219
      %3223 = vset.pattern.permute.xlu0 0
      %3224 = vperm.xlu0 %3223, %v3146
      %v3225 = vpop.permute.xlu0 %3224
      %3228 = vset.pattern.permute.xlu0 0
      %3229 = vperm.xlu0 %3228, %v3147
      %v3230 = vpop.permute.xlu0 %3229
      %3233 = vset.pattern.permute.xlu0 0
      %3234 = vperm.xlu0 %3233, %v3148
      %v3235 = vpop.permute.xlu0 %3234
      %3238 = vset.pattern.permute.xlu0 0
      %3239 = vperm.xlu0 %3238, %v3149
      %v3240 = vpop.permute.xlu0 %3239
      %3243 = vset.pattern.permute.xlu0 0
      %3244 = vperm.xlu0 %3243, %v3150
      %v3245 = vpop.permute.xlu0 %3244
      %3248 = vset.pattern.permute.xlu0 0
      %3249 = vperm.xlu0 %3248, %v3151
      %v3250 = vpop.permute.xlu0 %3249
      %3253 = vset.pattern.permute.xlu0 0
      %3254 = vperm.xlu0 %3253, %v3152
      %v3255 = vpop.permute.xlu0 %3254
      %3258 = vset.pattern.permute.xlu0 0
      %3259 = vperm.xlu0 %3258, %v3153
      %v3260 = vpop.permute.xlu0 %3259
      %3263 = vset.pattern.permute.xlu0 0
      %3264 = vperm.xlu0 %3263, %v3154
      %v3265 = vpop.permute.xlu0 %3264
      %3268 = vset.pattern.permute.xlu0 0
      %3269 = vperm.xlu0 %3268, %v3155
      %v3270 = vpop.permute.xlu0 %3269
      %3273 = vset.pattern.permute.xlu0 0
      %3274 = vperm.xlu0 %3273, %v3156
      %v3275 = vpop.permute.xlu0 %3274
      %3278 = vset.pattern.permute.xlu0 0
      %3279 = vperm.xlu0 %3278, %v3157
      %v3280 = vpop.permute.xlu0 %3279
      %3283 = vset.pattern.permute.xlu0 0
      %3284 = vperm.xlu0 %3283, %v3158
      %v3285 = vpop.permute.xlu0 %3284
      %3288 = vset.pattern.permute.xlu0 0
      %3289 = vperm.xlu0 %3288, %v3159
      %v3290 = vpop.permute.xlu0 %3289
      %3293 = vset.pattern.permute.xlu0 0
      %3294 = vperm.xlu0 %3293, %v3160
      %v3295 = vpop.permute.xlu0 %3294
      %3298 = vset.pattern.permute.xlu0 0
      %3299 = vperm.xlu0 %3298, %v3161
      %v3300 = vpop.permute.xlu0 %3299
      %3303 = vset.pattern.permute.xlu0 0
      %3304 = vperm.xlu0 %3303, %v3162
      %v3305 = vpop.permute.xlu0 %3304
      %3308 = vset.pattern.permute.xlu0 0
      %3309 = vperm.xlu0 %3308, %v3163
      %v3310 = vpop.permute.xlu0 %3309
      %3313 = vset.pattern.permute.xlu0 0
      %3314 = vperm.xlu0 %3313, %v3164
      %v3315 = vpop.permute.xlu0 %3314
      %3318 = vset.pattern.permute.xlu0 0
      %3319 = vperm.xlu0 %3318, %v3165
      %v3320 = vpop.permute.xlu0 %3319
      %3323 = vset.pattern.permute.xlu0 0
      %3324 = vperm.xlu0 %3323, %v3166
      %v3325 = vpop.permute.xlu0 %3324
      %3328 = vset.pattern.permute.xlu0 0
      %3329 = vperm.xlu0 %3328, %v3167
      %v3330 = vpop.permute.xlu0 %3329
      %3333 = vset.pattern.permute.xlu0 0
      %3334 = vperm.xlu0 %3333, %v3168
      %v3335 = vpop.permute.xlu0 %3334
      %3338 = vset.pattern.permute.xlu0 0
      %3339 = vperm.xlu0 %3338, %v3169
      %v3340 = vpop.permute.xlu0 %3339
      %3343 = vset.pattern.permute.xlu0 0
      %3344 = vperm.xlu0 %3343, %v3170
      %v3345 = vpop.permute.xlu0 %3344
      %3348 = vset.pattern.permute.xlu0 0
      %3349 = vperm.xlu0 %3348, %v3171
      %v3350 = vpop.permute.xlu0 %3349
      %v3352 = vmul.f32 %v3100, %v3175
      %v3353 = vmul.f32 %v3101, %v3180
      %v3354 = vmul.f32 %v3102, %v3185
      %v3355 = vmul.f32 %v3103, %v3190
      %v3356 = vmul.f32 %v3104, %v3195
      %v3357 = vmul.f32 %v3105, %v3200
      %v3358 = vmul.f32 %v3106, %v3205
      %v3359 = vmul.f32 %v3107, %v3210
      %v3360 = vmul.f32 %v3108, %v3215
      %v3361 = vmul.f32 %v3109, %v3220
      %v3362 = vmul.f32 %v3110, %v3225
      %v3363 = vmul.f32 %v3111, %v3230
      %v3364 = vmul.f32 %v3112, %v3235
      %v3365 = vmul.f32 %v3113, %v3240
      %v3366 = vmul.f32 %v3114, %v3245
      %v3367 = vmul.f32 %v3115, %v3250
      %v3368 = vmul.f32 %v3116, %v3255
      %v3369 = vmul.f32 %v3117, %v3260
      %v3370 = vmul.f32 %v3118, %v3265
      %v3371 = vmul.f32 %v3119, %v3270
      %v3372 = vmul.f32 %v3120, %v3275
      %v3373 = vmul.f32 %v3121, %v3280
      %v3374 = vmul.f32 %v3122, %v3285
      %v3375 = vmul.f32 %v3123, %v3290
      %v3376 = vmul.f32 %v3124, %v3295
      %v3377 = vmul.f32 %v3125, %v3300
      %v3378 = vmul.f32 %v3126, %v3305
      %v3379 = vmul.f32 %v3127, %v3310
      %v3380 = vmul.f32 %v3128, %v3315
      %v3381 = vmul.f32 %v3129, %v3320
      %v3382 = vmul.f32 %v3130, %v3325
      %v3383 = vmul.f32 %v3131, %v3330
      %v3384 = vmul.f32 %v3132, %v3335
      %v3385 = vmul.f32 %v3133, %v3340
      %v3386 = vmul.f32 %v3134, %v3345
      %v3387 = vmul.f32 %v3135, %v3350
      %3388 = vst [vmem:[%s219] sm:$0xff] %v3352
      %3389 = vst [vmem:[%s219 + $0x8] sm:$0xff] %v3353
      %3390 = vst [vmem:[%s219 + $0x10] sm:$0xff] %v3354
      %3391 = vst [vmem:[%s219 + $0x18] sm:$0xff] %v3355
      %3392 = vst [vmem:[%s219 + $0x20] sm:$0xff] %v3356
      %3393 = vst [vmem:[%s219 + $0x28] sm:$0xff] %v3357
      %3394 = vst [vmem:[%s219 + $0x30] sm:$0xff] %v3358
      %3395 = vst [vmem:[%s219 + $0x38] sm:$0xff] %v3359
      %3396 = vst [vmem:[%s219 + $0x40] sm:$0xff] %v3360
      %3397 = vst [vmem:[%s219 + $0x48] sm:$0xff] %v3361
      %3398 = vst [vmem:[%s219 + $0x50] sm:$0xff] %v3362
      %3399 = vst [vmem:[%s219 + $0x58] sm:$0xff] %v3363
      %3400 = vst [vmem:[%s219 + $0x60] sm:$0xff] %v3364
      %3401 = vst [vmem:[%s219 + $0x68] sm:$0xff] %v3365
      %3402 = vst [vmem:[%s219 + $0x70] sm:$0xff] %v3366
      %3403 = vst [vmem:[%s219 + $0x78] sm:$0xff] %v3367
      %3404 = vst [vmem:[%s219 + $0x80] sm:$0xff] %v3368
      %3405 = vst [vmem:[%s219 + $0x88] sm:$0xff] %v3369
      %3406 = vst [vmem:[%s219 + $0x90] sm:$0xff] %v3370
      %3407 = vst [vmem:[%s219 + $0x98] sm:$0xff] %v3371
      %3408 = vst [vmem:[%s219 + $0xa0] sm:$0xff] %v3372
      %3409 = vst [vmem:[%s219 + $0xa8] sm:$0xff] %v3373
      %3410 = vst [vmem:[%s219 + $0xb0] sm:$0xff] %v3374
      %3411 = vst [vmem:[%s219 + $0xb8] sm:$0xff] %v3375
      %3412 = vst [vmem:[%s219 + $0xc0] sm:$0xff] %v3376
      %3413 = vst [vmem:[%s219 + $0xc8] sm:$0xff] %v3377
      %3414 = vst [vmem:[%s219 + $0xd0] sm:$0xff] %v3378
      %3415 = vst [vmem:[%s219 + $0xd8] sm:$0xff] %v3379
      %3416 = vst [vmem:[%s219 + $0xe0] sm:$0xff] %v3380
      %3417 = vst [vmem:[%s219 + $0xe8] sm:$0xff] %v3381
      %3418 = vst [vmem:[%s219 + $0xf0] sm:$0xff] %v3382
      %3419 = vst [vmem:[%s219 + $0xf8] sm:$0xff] %v3383
      %3420 = vst [vmem:[%s219 + $0x100] sm:$0xff] %v3384
      %3421 = vst [vmem:[%s219 + $0x108] sm:$0xff] %v3385
      %3422 = vst [vmem:[%s219 + $0x110] sm:$0xff] %v3386
      %3423 = vst [vmem:[%s219 + $0x118] sm:$0xff] %v3387
      %p3424 = scmp.eq.s32.totalorder %s17, 0
      // Predicated region
      $region33: #{encoder_forward.18} parent=31 // pred_check
        %p3425 = pneg %p3424
      $region34: #{encoder_forward.18} parent=31 // pred_check_branch
        %3427 = sbr.rel (%p3425) target = $region36
      $region35: #{encoder_forward.18} parent=31 // pred_region
        %3428 = vst [vmem:[%s4] sm:$0x1] 0.0
        %3429 = vst [vmem:[%s5] sm:$0x1] 0.0
      $region36: #{encoder_forward.18} parent=31 // pred_fallthru
        _
      %v3430 = vld [vmem:[%s4] sm:$0x1]
      %v3431 = vadd.f32 %v3352, %v3353
      %v3432 = vadd.f32 %v3431, %v3354
      %v3433 = vadd.f32 %v3432, %v3355
      %v3434 = vadd.f32 %v3433, %v3356
      %v3435 = vadd.f32 %v3434, %v3357
      %v3436 = vadd.f32 %v3435, %v3358
      %v3437 = vadd.f32 %v3436, %v3359
      %v3438 = vadd.f32 %v3437, %v3360
      %v3439 = vadd.f32 %v3438, %v3361
      %v3440 = vadd.f32 %v3439, %v3362
      %v3441 = vadd.f32 %v3440, %v3363
      %v3442 = vadd.f32 %v3441, %v3364
      %v3443 = vadd.f32 %v3442, %v3365
      %v3444 = vadd.f32 %v3443, %v3366
      %v3445 = vadd.f32 %v3444, %v3367
      %v3446 = vadd.f32 %v3445, %v3368
      %v3447 = vadd.f32 %v3446, %v3369
      %v3448 = vadd.f32 %v3447, %v3370
      %v3449 = vadd.f32 %v3448, %v3371
      %v3450 = vadd.f32 %v3449, %v3372
      %v3451 = vadd.f32 %v3450, %v3373
      %v3452 = vadd.f32 %v3451, %v3374
      %v3453 = vadd.f32 %v3452, %v3375
      %v3454 = vadd.f32 %v3453, %v3376
      %v3455 = vadd.f32 %v3454, %v3377
      %v3456 = vadd.f32 %v3455, %v3378
      %v3457 = vadd.f32 %v3456, %v3379
      %v3458 = vadd.f32 %v3457, %v3380
      %v3459 = vadd.f32 %v3458, %v3381
      %v3460 = vadd.f32 %v3459, %v3382
      %v3461 = vadd.f32 %v3460, %v3383
      %v3462 = vadd.f32 %v3461, %v3384
      %v3463 = vadd.f32 %v3462, %v3385
      %v3464 = vadd.f32 %v3463, %v3386
      %v3465 = vadd.f32 %v3464, %v3387
      %v3466 = vrot.slane %v3465, 4
      %v3467 = vadd.f32 %v3465, %v3466
      %v3468 = vrot.slane %v3467, 2
      %v3469 = vadd.f32 %v3467, %v3468
      %v3470 = vrot.slane %v3469, 1
      %v3471 = vadd.f32 %v3469, %v3470
      %v3472 = vadd.f32 %v3430, %v3471
      %3473 = vst [vmem:[%s4] sm:$0x1] %v3472
      %v3474 = vld [vmem:[%s5] sm:$0x1]
      %v3475 = vmul.f32 %v3352, %v3352
      %v3476 = vmul.f32 %v3353, %v3353
      %v3477 = vmul.f32 %v3354, %v3354
      %v3478 = vmul.f32 %v3355, %v3355
      %v3479 = vmul.f32 %v3356, %v3356
      %v3480 = vmul.f32 %v3357, %v3357
      %v3481 = vmul.f32 %v3358, %v3358
      %v3482 = vmul.f32 %v3359, %v3359
      %v3483 = vmul.f32 %v3360, %v3360
      %v3484 = vmul.f32 %v3361, %v3361
      %v3485 = vmul.f32 %v3362, %v3362
      %v3486 = vmul.f32 %v3363, %v3363
      %v3487 = vmul.f32 %v3364, %v3364
      %v3488 = vmul.f32 %v3365, %v3365
      %v3489 = vmul.f32 %v3366, %v3366
      %v3490 = vmul.f32 %v3367, %v3367
      %v3491 = vmul.f32 %v3368, %v3368
      %v3492 = vmul.f32 %v3369, %v3369
      %v3493 = vmul.f32 %v3370, %v3370
      %v3494 = vmul.f32 %v3371, %v3371
      %v3495 = vmul.f32 %v3372, %v3372
      %v3496 = vmul.f32 %v3373, %v3373
      %v3497 = vmul.f32 %v3374, %v3374
      %v3498 = vmul.f32 %v3375, %v3375
      %v3499 = vmul.f32 %v3376, %v3376
      %v3500 = vmul.f32 %v3377, %v3377
      %v3501 = vmul.f32 %v3378, %v3378
      %v3502 = vmul.f32 %v3379, %v3379
      %v3503 = vmul.f32 %v3380, %v3380
      %v3504 = vmul.f32 %v3381, %v3381
      %v3505 = vmul.f32 %v3382, %v3382
      %v3506 = vmul.f32 %v3383, %v3383
      %v3507 = vmul.f32 %v3384, %v3384
      %v3508 = vmul.f32 %v3385, %v3385
      %v3509 = vmul.f32 %v3386, %v3386
      %v3510 = vmul.f32 %v3387, %v3387
      %v3511 = vadd.f32 %v3475, %v3476
      %v3512 = vadd.f32 %v3511, %v3477
      %v3513 = vadd.f32 %v3512, %v3478
      %v3514 = vadd.f32 %v3513, %v3479
      %v3515 = vadd.f32 %v3514, %v3480
      %v3516 = vadd.f32 %v3515, %v3481
      %v3517 = vadd.f32 %v3516, %v3482
      %v3518 = vadd.f32 %v3517, %v3483
      %v3519 = vadd.f32 %v3518, %v3484
      %v3520 = vadd.f32 %v3519, %v3485
      %v3521 = vadd.f32 %v3520, %v3486
      %v3522 = vadd.f32 %v3521, %v3487
      %v3523 = vadd.f32 %v3522, %v3488
      %v3524 = vadd.f32 %v3523, %v3489
      %v3525 = vadd.f32 %v3524, %v3490
      %v3526 = vadd.f32 %v3525, %v3491
      %v3527 = vadd.f32 %v3526, %v3492
      %v3528 = vadd.f32 %v3527, %v3493
      %v3529 = vadd.f32 %v3528, %v3494
      %v3530 = vadd.f32 %v3529, %v3495
      %v3531 = vadd.f32 %v3530, %v3496
      %v3532 = vadd.f32 %v3531, %v3497
      %v3533 = vadd.f32 %v3532, %v3498
      %v3534 = vadd.f32 %v3533, %v3499
      %v3535 = vadd.f32 %v3534, %v3500
      %v3536 = vadd.f32 %v3535, %v3501
      %v3537 = vadd.f32 %v3536, %v3502
      %v3538 = vadd.f32 %v3537, %v3503
      %v3539 = vadd.f32 %v3538, %v3504
      %v3540 = vadd.f32 %v3539, %v3505
      %v3541 = vadd.f32 %v3540, %v3506
      %v3542 = vadd.f32 %v3541, %v3507
      %v3543 = vadd.f32 %v3542, %v3508
      %v3544 = vadd.f32 %v3543, %v3509
      %v3545 = vadd.f32 %v3544, %v3510
      %v3546 = vrot.slane %v3545, 4
      %v3547 = vadd.f32 %v3545, %v3546
      %v3548 = vrot.slane %v3547, 2
      %v3549 = vadd.f32 %v3547, %v3548
      %v3550 = vrot.slane %v3549, 1
      %v3551 = vadd.f32 %v3549, %v3550
      %v3552 = vadd.f32 %v3474, %v3551
      %3553 = vst [vmem:[%s5] sm:$0x1] %v3552
      %p3554 = scmp.lt.s32.totalorder %s17, 1
      %s3555 = scalar_select %p3554, %s17, 1
      %s3556 = smul.addr %s3555, 36
      %s3557 = smul.addr %s3556, 8
      %s3558 = scalar_lea.vmem %s3, %s3557
      // Predicated region
      $region37: #{encoder_forward.18} parent=31 // pred_check
        %p3559 = pneg %p103
      $region38: #{encoder_forward.18} parent=31 // pred_check_branch
        %3561 = sbr.rel (%p3559) target = $region40
      $region39: #{encoder_forward.18} parent=31 // pred_region
        _
      $region40: #{encoder_forward.18} parent=31 // pred_fallthru
        _
      // Predicated region
      $region41: #{encoder_forward.18} parent=31 // pred_check
        %p3562 = pneg %p124
      $region42: #{encoder_forward.18} parent=31 // pred_check_branch
        %3564 = sbr.rel (%p3562) target = $region44
      $region43: #{encoder_forward.18} parent=31 // pred_region
        _
      $region44: #{encoder_forward.18} parent=31 // pred_fallthru
        _
      // Predicated region
      $region45: #{encoder_forward.18} parent=31 // pred_check
        %p3565 = pneg %p145
      $region46: #{encoder_forward.18} parent=31 // pred_check_branch
        %3567 = sbr.rel (%p3565) target = $region48
      $region47: #{encoder_forward.18} parent=31 // pred_region
        _
      $region48: #{encoder_forward.18} parent=31 // pred_fallthru
        _
      // Predicated region
      $region49: #{encoder_forward.18} parent=31 // pred_check
        %p3568 = pneg %p124
      $region50: #{encoder_forward.18} parent=31 // pred_check_branch
        %3570 = sbr.rel (%p3568) target = $region52
      $region51: #{encoder_forward.18} parent=31 // pred_region
        _
      $region52: #{encoder_forward.18} parent=31 // pred_fallthru
        _
      // Predicated region
      $region53: #{encoder_forward.18} parent=31 // pred_check
        %p3571 = pneg %p145
      $region54: #{encoder_forward.18} parent=31 // pred_check_branch
        %3573 = sbr.rel (%p3571) target = $region56
      $region55: #{encoder_forward.18} parent=31 // pred_region
        _
      $region56: #{encoder_forward.18} parent=31 // pred_fallthru
        _
    $region32: #{encoder_forward.18} parent=5 // pred_fallthru
      _
    %p3574 = scmp.le.s32.totalorder 2, %s12
    // Predicated region
    $region57: #{encoder_forward.18} parent=5 // pred_check
      %p3575 = pneg %p3574
    $region58: #{encoder_forward.18} parent=5 // pred_check_branch
      %3577 = sbr.rel (%p3575) target = $region60
    $region59: #{encoder_forward.18} parent=5 // pred_region
      %s3578 = ssub.s32 %s12, 2
      // Predicated region
      $region61: #{encoder_forward.18} parent=59 // pred_check
        %p3579 = pneg %p109
      $region62: #{encoder_forward.18} parent=59 // pred_check_branch
        %3581 = sbr.rel (%p3579) target = $region64
      $region63: #{encoder_forward.18} parent=59 // pred_region
        %p3582 = scmp.lt.s32.totalorder %s18, 1
        %s3583 = scalar_select %p3582, %s18, 1
        %s3584 = smul.addr %s3583, 36
        %s3585 = smul.addr %s3584, 8
        %s3586 = scalar_lea.vmem %s3, %s3585
      $region64: #{encoder_forward.18} parent=59 // pred_fallthru
        _
    $region60: #{encoder_forward.18} parent=5 // pred_fallthru
      _
  $region6: #{encoder_forward.18} parent=0 // loop_footer
    %s16 = sadd.s32 1, %s12
  $region7: #{encoder_forward.18} parent=0 // loop_footer_branch
    %11 = sbr.rel target = $region3
  $region8: #{encoder_forward.18} parent=0 // loop_exit
    _

</llo_original>
